<compile_context>
chip_gen: v6e
topology: v6e:2x2x1
jax: 0.10.0
libtpu: 0.0.40
codegen_flags: <defaults>
</compile_context>

<pallas_src>
import functools

import jax
import jax.numpy as jnp
from jax.experimental import pallas as pl
from jax.experimental.pallas import tpu as pltpu

LANE = 128


def _round_up(x, m):
    return ((x + m - 1) // m) * m


def _pick_row_tile(h):
    # 8-32 output rows per grid step; prefer >=2 tiles so the halo path is used.
    for tr in (32, 16, 8, 4, 2):
        if h % tr == 0 and h // tr >= 2:
            return tr
    return h


def _vmem_limit(block_bytes):
    # Per-step blocks + generous headroom; >= default 16 MiB, capped well under
    # the 64 MiB physical VMEM of v7x.
    return int(min(max(block_bytes + (8 << 20), 16 << 20), 48 << 20))


# ----------------------------------------------------------------------------
# Shared tap loop: 3x3 conv on a (TR+2, W+2, Cin) VMEM window as 9 shifted-
# window MXU matmuls (bf16 operands, f32 accumulation).
# ----------------------------------------------------------------------------
def _conv_taps(win_ref, w_ref, tr, w, cout):
    hw = tr * w
    acc = jnp.zeros((hw, cout), jnp.float32)
    for dy in range(3):
        for dx in range(3):
            patch = win_ref[dy:dy + tr, dx:dx + w, :].reshape(hw, -1)
            acc = acc + jnp.dot(patch, w_ref[dy * 3 + dx],
                                preferred_element_type=jnp.float32)
    return acc


# ----------------------------------------------------------------------------
# Stage 1: conv1 (3x3) on the padded concat input -> pre-IN activations (bf16,
# W-padded) + per-tile InstanceNorm partial stats.
# ----------------------------------------------------------------------------
def _conv1_kernel(xmain_ref, xh0_ref, xh1_ref, w1_ref,    # inputs
                  mid_ref, st_ref,                         # outputs
                  win_ref,                                 # scratch
                  *, tr, w):
    cmid = mid_ref.shape[-1]

    # Assemble the (TR+2)-row input window: aligned leading-dim row stores only.
    win_ref[0:tr] = xmain_ref[0]
    win_ref[tr:tr + 1] = xh0_ref[0]
    win_ref[tr + 1:tr + 2] = xh1_ref[0]

    acc = _conv_taps(win_ref, w1_ref, tr, w, cmid)          # (TR*W, Cmid) f32

    # Per-tile partial stats for two-phase InstanceNorm (exact f32 reductions).
    st_ref[0, 0, 0:1, :] = jnp.sum(acc, axis=0, keepdims=True)
    st_ref[0, 0, 1:2, :] = jnp.sum(acc * acc, axis=0, keepdims=True)

    # Store pre-IN conv1 output W-padded (zero 1-px column halo) so stage 2
    # only needs aligned row copies.
    tile = acc.reshape(tr, w, cmid).astype(mid_ref.dtype)
    zcol = jnp.zeros((tr, 1, cmid), mid_ref.dtype)
    mid_ref[0, :, 1:1 + w, :] = tile
    mid_ref[0, :, 0:1, :] = zcol
    mid_ref[0, :, 1 + w:2 + w, :] = zcol


def conv_stage1(xpad, w1c, tr):
    n, hp2, wp2, c1p = xpad.shape
    h, w = hp2 - 2, wp2 - 2
    cmid = w1c.shape[2]
    t = h // tr
    kern = functools.partial(_conv1_kernel, tr=tr, w=w)
    blk_bytes = (2 * (tr + 2) * wp2 * c1p * 2          # double-buffered input rows
                 + 2 * 9 * c1p * cmid * 2              # weights
                 + 2 * (tr * wp2 * cmid * 2 + 2 * cmid * 4)   # outputs
                 + (tr + 2) * wp2 * c1p * 2)           # window scratch
    return pl.pallas_call(
        kern,
        out_shape=(jax.ShapeDtypeStruct((n, h, wp2, cmid), jnp.bfloat16),
                   jax.ShapeDtypeStruct((n, t, 2, cmid), jnp.float32)),
        grid_spec=pltpu.PrefetchScalarGridSpec(
            num_scalar_prefetch=0,
            grid=(n, t),
            in_specs=[
                # main TR padded-input rows of this tile
                pl.BlockSpec((1, tr, wp2, c1p), lambda b, i: (b, i, 0, 0)),
                # two 1-row bottom halos (always in range: xpad has H+2 rows)
                pl.BlockSpec((1, 1, wp2, c1p),
                             lambda b, i: (b, (i + 1) * tr, 0, 0)),
                pl.BlockSpec((1, 1, wp2, c1p),
                             lambda b, i: (b, (i + 1) * tr + 1, 0, 0)),
                # constant block index -> weights stay VMEM-resident
                pl.BlockSpec((9, c1p, cmid), lambda b, i: (0, 0, 0)),
            ],
            out_specs=[
                pl.BlockSpec((1, tr, wp2, cmid), lambda b, i: (b, i, 0, 0)),
                pl.BlockSpec((1, 1, 2, cmid), lambda b, i: (b, i, 0, 0)),
            ],
            scratch_shapes=[pltpu.VMEM((tr + 2, wp2, c1p), jnp.bfloat16)],
        ),
        compiler_params=pltpu.CompilerParams(
            dimension_semantics=("parallel", "parallel"),
            vmem_limit_bytes=_vmem_limit(blk_bytes)),
    )(xpad, xpad, xpad, w1c)


# ----------------------------------------------------------------------------
# Stage 2: normalize+ReLU stage-1 activations on the fly (per-channel affine
# from precomputed stats, with a column/row mask so the zero halo stays zero),
# conv2 (3x3) -> pre-IN activations (bf16) + per-tile stats.
# ----------------------------------------------------------------------------
def _conv2_kernel(ymain_ref, ytop_ref, ybot_ref, st1_ref, w2_ref,   # inputs
                  y2_ref, st2_ref,                                   # outputs
                  win_ref,                                           # scratch
                  *, tr, w):
    c2p = y2_ref.shape[-1]
    cmid = win_ref.shape[-1]
    wp2 = win_ref.shape[1]
    i = pl.program_id(1)
    n_tiles = pl.num_programs(1)

    mean1 = st1_ref[0, 0:1, :][None]          # (1, 1, Cmid)
    inv1 = st1_ref[0, 1:2, :][None]           # (1, 1, Cmid)

    # Column mask: InstanceNorm maps the stored zero halo to relu(-mean*inv)!=0,
    # so re-zero the 1-px W halo after normalization.
    col = jax.lax.broadcasted_iota(jnp.int32, (wp2, cmid), 0)
    cmask = ((col >= 1) & (col <= w)).astype(jnp.float32)

    def norm_relu(x):
        return jnp.maximum((x.astype(jnp.float32) - mean1) * inv1, 0.0) * cmask

    # Row flags: zero the top/bottom halo rows at the image boundary.
    f_top = jnp.where(i > 0, 1.0, 0.0)
    f_bot = jnp.where(i < n_tiles - 1, 1.0, 0.0)

    # Assemble the normalized (TR+2)-row window: aligned leading-dim stores only.
    win_ref[1:1 + tr] = norm_relu(ymain_ref[0]).astype(win_ref.dtype)
    win_ref[0:1] = (norm_relu(ytop_ref[0]) * f_top).astype(win_ref.dtype)
    win_ref[1 + tr:2 + tr] = (norm_relu(ybot_ref[0]) * f_bot).astype(win_ref.dtype)

    acc = _conv_taps(win_ref, w2_ref, tr, w, c2p)            # (TR*W, C2p) f32

    st2_ref[0, 0, 0:1, :] = jnp.sum(acc, axis=0, keepdims=True)
    st2_ref[0, 0, 1:2, :] = jnp.sum(acc * acc, axis=0, keepdims=True)
    y2_ref[0] = acc.reshape(tr, w, c2p).astype(y2_ref.dtype)


def conv_stage2(mid, st1, w2c, tr):
    n, h, wp2, cmid = mid.shape
    w = wp2 - 2
    c2p = w2c.shape[2]
    t = h // tr
    kern = functools.partial(_conv2_kernel, tr=tr, w=w)
    blk_bytes = (2 * (tr + 2) * wp2 * cmid * 2
                 + 2 * 2 * cmid * 4
                 + 2 * 9 * cmid * c2p * 2
                 + 2 * (tr * w * c2p * 2 + 2 * c2p * 4)
                 + (tr + 2) * wp2 * cmid * 2)
    return pl.pallas_call(
        kern,
        out_shape=(jax.ShapeDtypeStruct((n, h, w, c2p), jnp.bfloat16),
                   jax.ShapeDtypeStruct((n, t, 2, c2p), jnp.float32)),
        grid_spec=pltpu.PrefetchScalarGridSpec(
            num_scalar_prefetch=0,
            grid=(n, t),
            in_specs=[
                pl.BlockSpec((1, tr, wp2, cmid), lambda b, i: (b, i, 0, 0)),
                # 1-row top/bottom halos, clamped in range; out-of-range rows
                # are zeroed in-kernel via f_top/f_bot.
                pl.BlockSpec((1, 1, wp2, cmid),
                             lambda b, i: (b, jnp.maximum(i * tr - 1, 0), 0, 0)),
                pl.BlockSpec((1, 1, wp2, cmid),
                             lambda b, i: (b, jnp.minimum((i + 1) * tr, h - 1), 0, 0)),
                # stage-1 per-channel [mean, invstd]
                pl.BlockSpec((1, 2, cmid), lambda b, i: (b, 0, 0)),
                pl.BlockSpec((9, cmid, c2p), lambda b, i: (0, 0, 0)),
            ],
            out_specs=[
                pl.BlockSpec((1, tr, w, c2p), lambda b, i: (b, i, 0, 0)),
                pl.BlockSpec((1, 1, 2, c2p), lambda b, i: (b, i, 0, 0)),
            ],
            scratch_shapes=[pltpu.VMEM((tr + 2, wp2, cmid), jnp.bfloat16)],
        ),
        compiler_params=pltpu.CompilerParams(
            dimension_semantics=("parallel", "parallel"),
            vmem_limit_bytes=_vmem_limit(blk_bytes)),
    )(mid, mid, mid, st1, w2c)


# ----------------------------------------------------------------------------
# JAX glue: bilinear upsample (align_corners=False), weight packing, stats.
# ----------------------------------------------------------------------------
def upsample_bilinear_x2(x):
    """x: (N, C, H, W) -> (N, C, 2H, 2W), bilinear, align_corners=False."""
    N, C, H, W = x.shape

    def src_coords(out_size, in_size):
        s = (jnp.arange(out_size, dtype=jnp.float32) + 0.5) * (in_size / out_size) - 0.5
        s = jnp.maximum(s, 0.0)                       # PyTorch clamps src >= 0
        i0 = jnp.minimum(jnp.floor(s).astype(jnp.int32), in_size - 1)
        i1 = jnp.minimum(i0 + 1, in_size - 1)
        frac = s - i0.astype(jnp.float32)
        return i0, i1, frac

    y0, y1, fy = src_coords(2 * H, H)
    x0, x1, fx = src_coords(2 * W, W)

    top = x[:, :, y0, :]
    bot = x[:, :, y1, :]
    rows = top * (1.0 - fy)[None, None, :, None] + bot * fy[None, None, :, None]
    left = rows[:, :, :, x0]
    right = rows[:, :, :, x1]
    return left * (1.0 - fx)[None, None, None, :] + right * fx[None, None, None, :]


def _weight_to_col(w, cin_pad, cout_pad):
    """PyTorch conv weight (Cout, Cin, 3, 3) -> (9, cin_pad, cout_pad) bf16."""
    cout, cin = w.shape[0], w.shape[1]
    wc = jnp.transpose(w, (2, 3, 1, 0)).reshape(9, cin, cout)   # (ky*3+kx, ci, co)
    wc = jnp.pad(wc, ((0, 0), (0, cin_pad - cin), (0, cout_pad - cout)))
    return wc.astype(jnp.bfloat16)


def _finalize_stats(st, hw, eps=1e-5):
    """st: (N, T, 2, C) per-tile [sum, sumsq] -> per-(n, c) mean, rsqrt(var+eps)."""
    s = jnp.sum(st, axis=1)                          # (N, 2, C)
    mean = s[:, 0] / hw
    var = jnp.maximum(s[:, 1] / hw - mean * mean, 0.0)
    return mean, jax.lax.rsqrt(var + eps)


# ----------------------------------------------------------------------------
# Full forward pass (public API NCHW, matching the PyTorch module)
# ----------------------------------------------------------------------------
def upsampling_concat_forward(x_to_upsample, x, w1, w2):
    up = upsample_bilinear_x2(x_to_upsample)
    cat = jnp.concatenate([x, up], axis=1)             # (N, Cin, H, W)
    n, cin, h, w = cat.shape
    cmid, cout = w1.shape[0], w2.shape[0]
    c1p = _round_up(cin, LANE)
    cmp_ = _round_up(cmid, LANE)
    c2p = _round_up(cout, LANE)
    tr = _pick_row_tile(h)

    # NHWC + 1px spatial pad + lane pad + bf16: one fused XLA pass.
    nhwc = jnp.transpose(cat, (0, 2, 3, 1))
    xpad = jnp.pad(nhwc, ((0, 0), (1, 1), (1, 1), (0, c1p - cin))).astype(jnp.bfloat16)
    w1c = _weight_to_col(w1, c1p, cmp_)
    w2c = _weight_to_col(w2, cmp_, c2p)

    mid, st1 = conv_stage1(xpad, w1c, tr)               # pre-IN conv1 (bf16)
    mean1, inv1 = _finalize_stats(st1, h * w)
    st1p = jnp.stack([mean1, inv1], axis=1)             # (N, 2, Cmid_pad)

    y2, st2 = conv_stage2(mid, st1p, w2c, tr)            # pre-IN conv2 (bf16)
    mean2, inv2 = _finalize_stats(st2, h * w)

    # Stage-2 InstanceNorm + ReLU + channel unpad fuse into the (required)
    # NHWC -> NCHW output transpose as a single XLA elementwise pass.
    y2 = jnp.maximum((y2.astype(jnp.float32) - mean2[:, None, None, :])
                     * inv2[:, None, None, :], 0.0)
    return jnp.transpose(y2[..., :cout], (0, 3, 1, 2))


# ----------------------------------------------------------------------------
# Pure-JAX f32 reference (loose numerical sanity check; kernel uses bf16 ops)
# ----------------------------------------------------------------------------
def _reference_forward(x_to_upsample, x, w1, w2):
    def conv_in_relu(inp, w):
        y = jax.lax.conv_general_dilated(
            inp, w, window_strides=(1, 1), padding=((1, 1), (1, 1)),
            dimension_numbers=("NCHW", "OIHW", "NCHW"))
        mean = jnp.mean(y, axis=(2, 3), keepdims=True)
        var = jnp.mean(jnp.square(y - mean), axis=(2, 3), keepdims=True)
        return jnp.maximum((y - mean) * jax.lax.rsqrt(var + 1e-5), 0.0)

    up = upsample_bilinear_x2(x_to_upsample)
    cat = jnp.concatenate([x, up], axis=1)
    return conv_in_relu(conv_in_relu(cat, w1), w2)


if __name__ == "__main__":
    key = jax.random.PRNGKey(0)
    k_up, k_x, k_w1, k_w2 = jax.random.split(key, 4)

    # small deterministic example shapes (two row tiles -> halo paths exercised)
    N = 2
    C_up, C_x = 6, 4              # channels of the to-upsample map and skip map
    H_low, W_low = 8, 8           # low-res spatial
    H, W = 2 * H_low, 2 * W_low   # after x2 upsample, matches x
    in_channels = C_up + C_x      # 10
    out_channels = 8

    x_to_upsample = jax.random.normal(k_up, (N, C_up, H_low, W_low), jnp.float32)
    x = jax.random.normal(k_x, (N, C_x, H, W), jnp.float32)

    # deterministic Kaiming-style init for the two 3x3 convs (bias=False)
    fan1 = in_channels * 9
    fan2 = out_channels * 9
    w1 = jax.random.normal(k_w1, (out_channels, in_channels, 3, 3),
                           jnp.float32) * jnp.sqrt(2.0 / fan1)
    w2 = jax.random.normal(k_w2, (out_channels, out_channels, 3, 3),
                           jnp.float32) * jnp.sqrt(2.0 / fan2)

    out = jax.jit(upsampling_concat_forward)(x_to_upsample, x, w1, w2)
    out = jax.block_until_ready(out)
    assert out.shape == (N, out_channels, H, W), out.shape
    assert bool(jnp.all(jnp.isfinite(out)))

    # loose check vs. pure-f32 reference (kernel feeds bf16 operands to the MXU
    # and stores bf16 intermediates)
    ref = _reference_forward(x_to_upsample, x, w1, w2)
    max_err = float(jnp.max(jnp.abs(out - ref)))
    assert max_err < 0.25, max_err

    print("KERNEL_OK")
</pallas_src>

<mosaic_0001>
module attributes {stable_mosaic.version = 11 : i64} {
  func.func @_conv1_kernel(%arg0: i32, %arg1: i32, %arg2: memref<1x8x18x128xbf16, #tpu.memory_space<vmem>>, %arg3: memref<1x1x18x128xbf16, #tpu.memory_space<vmem>>, %arg4: memref<1x1x18x128xbf16, #tpu.memory_space<vmem>>, %arg5: memref<9x128x128xbf16, #tpu.memory_space<vmem>>, %arg6: memref<1x8x18x128xbf16, #tpu.memory_space<vmem>>, %arg7: memref<1x1x2x128xf32, #tpu.memory_space<vmem>>, %arg8: memref<10x18x128xbf16, #tpu.memory_space<vmem>>) attributes {dimension_semantics = [#tpu.dimension_semantics<parallel>, #tpu.dimension_semantics<parallel>], iteration_bounds = array<i64: 2, 2>, scalar_prefetch = 0 : i64, scratch_operands = 1 : i64, tpu.core_type = #tpu.core_type<tc>, window_params = [{transform_indices = @transform_0, window_bounds = array<i64: 1, 8, 18, 128>}, {transform_indices = @transform_1, window_bounds = array<i64: 1, 1, 18, 128>}, {transform_indices = @transform_2, window_bounds = array<i64: 1, 1, 18, 128>}, {pipeline_mode = #tpu.pipeline_mode<synchronous>, transform_indices = @transform_3, window_bounds = array<i64: 9, 128, 128>}, {transform_indices = @transform_4, window_bounds = array<i64: 1, 8, 18, 128>}, {transform_indices = @transform_5, window_bounds = array<i64: 1, 1, 2, 128>}]} {
    %c0 = arith.constant 0 : index
    %c0_0 = arith.constant 0 : index
    %c0_1 = arith.constant 0 : index
    %c0_2 = arith.constant 0 : index
    %0 = vector.load %arg2[%c0, %c0_0, %c0_1, %c0_2] : memref<1x8x18x128xbf16, #tpu.memory_space<vmem>>, vector<1x8x18x128xbf16>
    %1 = vector.shape_cast %0 : vector<1x8x18x128xbf16> to vector<8x18x128xbf16>
    %c0_3 = arith.constant 0 : index
    %c0_4 = arith.constant 0 : index
    %c0_5 = arith.constant 0 : index
    %2 = vector.load %arg8[%c0_3, %c0_4, %c0_5] : memref<10x18x128xbf16, #tpu.memory_space<vmem>>, vector<8x18x128xbf16>
    tpu.vector_store %arg8[%c0_3, %c0_4, %c0_5], %1 {strides = array<i32>} : memref<10x18x128xbf16, #tpu.memory_space<vmem>>, vector<8x18x128xbf16>,
    %c0_6 = arith.constant 0 : index
    %c0_7 = arith.constant 0 : index
    %c0_8 = arith.constant 0 : index
    %c0_9 = arith.constant 0 : index
    %3 = vector.load %arg3[%c0_6, %c0_7, %c0_8, %c0_9] : memref<1x1x18x128xbf16, #tpu.memory_space<vmem>>, vector<1x1x18x128xbf16>
    %4 = vector.shape_cast %3 : vector<1x1x18x128xbf16> to vector<1x18x128xbf16>
    %c8 = arith.constant 8 : index
    %c0_10 = arith.constant 0 : index
    %c0_11 = arith.constant 0 : index
    %5 = vector.load %arg8[%c8, %c0_10, %c0_11] : memref<10x18x128xbf16, #tpu.memory_space<vmem>>, vector<1x18x128xbf16>
    tpu.vector_store %arg8[%c8, %c0_10, %c0_11], %4 {strides = array<i32>} : memref<10x18x128xbf16, #tpu.memory_space<vmem>>, vector<1x18x128xbf16>,
    %c0_12 = arith.constant 0 : index
    %c0_13 = arith.constant 0 : index
    %c0_14 = arith.constant 0 : index
    %c0_15 = arith.constant 0 : index
    %6 = vector.load %arg4[%c0_12, %c0_13, %c0_14, %c0_15] : memref<1x1x18x128xbf16, #tpu.memory_space<vmem>>, vector<1x1x18x128xbf16>
    %7 = vector.shape_cast %6 : vector<1x1x18x128xbf16> to vector<1x18x128xbf16>
    %c9 = arith.constant 9 : index
    %c0_16 = arith.constant 0 : index
    %c0_17 = arith.constant 0 : index
    %8 = vector.load %arg8[%c9, %c0_16, %c0_17] : memref<10x18x128xbf16, #tpu.memory_space<vmem>>, vector<1x18x128xbf16>
    tpu.vector_store %arg8[%c9, %c0_16, %c0_17], %7 {strides = array<i32>} : memref<10x18x128xbf16, #tpu.memory_space<vmem>>, vector<1x18x128xbf16>,
    %cst = arith.constant 0.000000e+00 : f32
    %9 = vector.broadcast %cst : f32 to vector<128x128xf32>
    %c0_18 = arith.constant 0 : index
    %c0_19 = arith.constant 0 : index
    %c0_20 = arith.constant 0 : index
    %10 = vector.load %arg8[%c0_18, %c0_19, %c0_20] : memref<10x18x128xbf16, #tpu.memory_space<vmem>>, vector<8x16x128xbf16>
    %11 = vector.shape_cast %10 : vector<8x16x128xbf16> to vector<128x128xbf16>
    %c0_21 = arith.constant 0 : index
    %c0_22 = arith.constant 0 : index
    %c0_23 = arith.constant 0 : index
    %12 = vector.load %arg5[%c0_21, %c0_22, %c0_23] : memref<9x128x128xbf16, #tpu.memory_space<vmem>>, vector<1x128x128xbf16>
    %13 = vector.shape_cast %12 : vector<1x128x128xbf16> to vector<128x128xbf16>
    %cst_24 = arith.constant dense<0.000000e+00> : vector<128x128xf32>
    %14 = tpu.matmul %11, %13, %cst_24 {dimension_numbers = #tpu.dot_dimension_numbers<[1], [0], [0], [1], [0, 0, 1, 1], [], []>} : vector<128x128xbf16>, vector<128x128xbf16>, vector<128x128xf32> -> vector<128x128xf32>
    %15 = arith.addf %9, %14 : vector<128x128xf32>
    %c0_25 = arith.constant 0 : index
    %c1 = arith.constant 1 : index
    %c0_26 = arith.constant 0 : index
    %16 = vector.load %arg8[%c0_25, %c1, %c0_26] : memref<10x18x128xbf16, #tpu.memory_space<vmem>>, vector<8x16x128xbf16>
    %17 = vector.shape_cast %16 : vector<8x16x128xbf16> to vector<128x128xbf16>
    %c1_27 = arith.constant 1 : index
    %c0_28 = arith.constant 0 : index
    %c0_29 = arith.constant 0 : index
    %18 = vector.load %arg5[%c1_27, %c0_28, %c0_29] : memref<9x128x128xbf16, #tpu.memory_space<vmem>>, vector<1x128x128xbf16>
    %19 = vector.shape_cast %18 : vector<1x128x128xbf16> to vector<128x128xbf16>
    %cst_30 = arith.constant dense<0.000000e+00> : vector<128x128xf32>
    %20 = tpu.matmul %17, %19, %cst_30 {dimension_numbers = #tpu.dot_dimension_numbers<[1], [0], [0], [1], [0, 0, 1, 1], [], []>} : vector<128x128xbf16>, vector<128x128xbf16>, vector<128x128xf32> -> vector<128x128xf32>
    %21 = arith.addf %15, %20 : vector<128x128xf32>
    %c0_31 = arith.constant 0 : index
    %c2 = arith.constant 2 : index
    %c0_32 = arith.constant 0 : index
    %22 = vector.load %arg8[%c0_31, %c2, %c0_32] : memref<10x18x128xbf16, #tpu.memory_space<vmem>>, vector<8x16x128xbf16>
    %23 = vector.shape_cast %22 : vector<8x16x128xbf16> to vector<128x128xbf16>
    %c2_33 = arith.constant 2 : index
    %c0_34 = arith.constant 0 : index
    %c0_35 = arith.constant 0 : index
    %24 = vector.load %arg5[%c2_33, %c0_34, %c0_35] : memref<9x128x128xbf16, #tpu.memory_space<vmem>>, vector<1x128x128xbf16>
    %25 = vector.shape_cast %24 : vector<1x128x128xbf16> to vector<128x128xbf16>
    %cst_36 = arith.constant dense<0.000000e+00> : vector<128x128xf32>
    %26 = tpu.matmul %23, %25, %cst_36 {dimension_numbers = #tpu.dot_dimension_numbers<[1], [0], [0], [1], [0, 0, 1, 1], [], []>} : vector<128x128xbf16>, vector<128x128xbf16>, vector<128x128xf32> -> vector<128x128xf32>
    %27 = arith.addf %21, %26 : vector<128x128xf32>
    %c1_37 = arith.constant 1 : index
    %c0_38 = arith.constant 0 : index
    %c0_39 = arith.constant 0 : index
    %28 = vector.load %arg8[%c1_37, %c0_38, %c0_39] : memref<10x18x128xbf16, #tpu.memory_space<vmem>>, vector<8x16x128xbf16>
    %29 = vector.shape_cast %28 : vector<8x16x128xbf16> to vector<128x128xbf16>
    %c3 = arith.constant 3 : index
    %c0_40 = arith.constant 0 : index
    %c0_41 = arith.constant 0 : index
    %30 = vector.load %arg5[%c3, %c0_40, %c0_41] : memref<9x128x128xbf16, #tpu.memory_space<vmem>>, vector<1x128x128xbf16>
    %31 = vector.shape_cast %30 : vector<1x128x128xbf16> to vector<128x128xbf16>
    %cst_42 = arith.constant dense<0.000000e+00> : vector<128x128xf32>
    %32 = tpu.matmul %29, %31, %cst_42 {dimension_numbers = #tpu.dot_dimension_numbers<[1], [0], [0], [1], [0, 0, 1, 1], [], []>} : vector<128x128xbf16>, vector<128x128xbf16>, vector<128x128xf32> -> vector<128x128xf32>
    %33 = arith.addf %27, %32 : vector<128x128xf32>
    %c1_43 = arith.constant 1 : index
    %c1_44 = arith.constant 1 : index
    %c0_45 = arith.constant 0 : index
    %34 = vector.load %arg8[%c1_43, %c1_44, %c0_45] : memref<10x18x128xbf16, #tpu.memory_space<vmem>>, vector<8x16x128xbf16>
    %35 = vector.shape_cast %34 : vector<8x16x128xbf16> to vector<128x128xbf16>
    %c4 = arith.constant 4 : index
    %c0_46 = arith.constant 0 : index
    %c0_47 = arith.constant 0 : index
    %36 = vector.load %arg5[%c4, %c0_46, %c0_47] : memref<9x128x128xbf16, #tpu.memory_space<vmem>>, vector<1x128x128xbf16>
    %37 = vector.shape_cast %36 : vector<1x128x128xbf16> to vector<128x128xbf16>
    %cst_48 = arith.constant dense<0.000000e+00> : vector<128x128xf32>
    %38 = tpu.matmul %35, %37, %cst_48 {dimension_numbers = #tpu.dot_dimension_numbers<[1], [0], [0], [1], [0, 0, 1, 1], [], []>} : vector<128x128xbf16>, vector<128x128xbf16>, vector<128x128xf32> -> vector<128x128xf32>
    %39 = arith.addf %33, %38 : vector<128x128xf32>
    %c1_49 = arith.constant 1 : index
    %c2_50 = arith.constant 2 : index
    %c0_51 = arith.constant 0 : index
    %40 = vector.load %arg8[%c1_49, %c2_50, %c0_51] : memref<10x18x128xbf16, #tpu.memory_space<vmem>>, vector<8x16x128xbf16>
    %41 = vector.shape_cast %40 : vector<8x16x128xbf16> to vector<128x128xbf16>
    %c5 = arith.constant 5 : index
    %c0_52 = arith.constant 0 : index
    %c0_53 = arith.constant 0 : index
    %42 = vector.load %arg5[%c5, %c0_52, %c0_53] : memref<9x128x128xbf16, #tpu.memory_space<vmem>>, vector<1x128x128xbf16>
    %43 = vector.shape_cast %42 : vector<1x128x128xbf16> to vector<128x128xbf16>
    %cst_54 = arith.constant dense<0.000000e+00> : vector<128x128xf32>
    %44 = tpu.matmul %41, %43, %cst_54 {dimension_numbers = #tpu.dot_dimension_numbers<[1], [0], [0], [1], [0, 0, 1, 1], [], []>} : vector<128x128xbf16>, vector<128x128xbf16>, vector<128x128xf32> -> vector<128x128xf32>
    %45 = arith.addf %39, %44 : vector<128x128xf32>
    %c2_55 = arith.constant 2 : index
    %c0_56 = arith.constant 0 : index
    %c0_57 = arith.constant 0 : index
    %46 = vector.load %arg8[%c2_55, %c0_56, %c0_57] : memref<10x18x128xbf16, #tpu.memory_space<vmem>>, vector<8x16x128xbf16>
    %47 = vector.shape_cast %46 : vector<8x16x128xbf16> to vector<128x128xbf16>
    %c6 = arith.constant 6 : index
    %c0_58 = arith.constant 0 : index
    %c0_59 = arith.constant 0 : index
    %48 = vector.load %arg5[%c6, %c0_58, %c0_59] : memref<9x128x128xbf16, #tpu.memory_space<vmem>>, vector<1x128x128xbf16>
    %49 = vector.shape_cast %48 : vector<1x128x128xbf16> to vector<128x128xbf16>
    %cst_60 = arith.constant dense<0.000000e+00> : vector<128x128xf32>
    %50 = tpu.matmul %47, %49, %cst_60 {dimension_numbers = #tpu.dot_dimension_numbers<[1], [0], [0], [1], [0, 0, 1, 1], [], []>} : vector<128x128xbf16>, vector<128x128xbf16>, vector<128x128xf32> -> vector<128x128xf32>
    %51 = arith.addf %45, %50 : vector<128x128xf32>
    %c2_61 = arith.constant 2 : index
    %c1_62 = arith.constant 1 : index
    %c0_63 = arith.constant 0 : index
    %52 = vector.load %arg8[%c2_61, %c1_62, %c0_63] : memref<10x18x128xbf16, #tpu.memory_space<vmem>>, vector<8x16x128xbf16>
    %53 = vector.shape_cast %52 : vector<8x16x128xbf16> to vector<128x128xbf16>
    %c7 = arith.constant 7 : index
    %c0_64 = arith.constant 0 : index
    %c0_65 = arith.constant 0 : index
    %54 = vector.load %arg5[%c7, %c0_64, %c0_65] : memref<9x128x128xbf16, #tpu.memory_space<vmem>>, vector<1x128x128xbf16>
    %55 = vector.shape_cast %54 : vector<1x128x128xbf16> to vector<128x128xbf16>
    %cst_66 = arith.constant dense<0.000000e+00> : vector<128x128xf32>
    %56 = tpu.matmul %53, %55, %cst_66 {dimension_numbers = #tpu.dot_dimension_numbers<[1], [0], [0], [1], [0, 0, 1, 1], [], []>} : vector<128x128xbf16>, vector<128x128xbf16>, vector<128x128xf32> -> vector<128x128xf32>
    %57 = arith.addf %51, %56 : vector<128x128xf32>
    %c2_67 = arith.constant 2 : index
    %c2_68 = arith.constant 2 : index
    %c0_69 = arith.constant 0 : index
    %58 = vector.load %arg8[%c2_67, %c2_68, %c0_69] : memref<10x18x128xbf16, #tpu.memory_space<vmem>>, vector<8x16x128xbf16>
    %59 = vector.shape_cast %58 : vector<8x16x128xbf16> to vector<128x128xbf16>
    %c8_70 = arith.constant 8 : index
    %c0_71 = arith.constant 0 : index
    %c0_72 = arith.constant 0 : index
    %60 = vector.load %arg5[%c8_70, %c0_71, %c0_72] : memref<9x128x128xbf16, #tpu.memory_space<vmem>>, vector<1x128x128xbf16>
    %61 = vector.shape_cast %60 : vector<1x128x128xbf16> to vector<128x128xbf16>
    %cst_73 = arith.constant dense<0.000000e+00> : vector<128x128xf32>
    %62 = tpu.matmul %59, %61, %cst_73 {dimension_numbers = #tpu.dot_dimension_numbers<[1], [0], [0], [1], [0, 0, 1, 1], [], []>} : vector<128x128xbf16>, vector<128x128xbf16>, vector<128x128xf32> -> vector<128x128xf32>
    %63 = arith.addf %57, %62 : vector<128x128xf32>
    %cst_74 = arith.constant dense<0.000000e+00> : vector<128xf32>
    %64 = vector.multi_reduction <add>, %63, %cst_74 [0] : vector<128x128xf32> to vector<128xf32>
    %65 = vector.shape_cast %64 : vector<128xf32> to vector<1x128xf32>
    %c0_75 = arith.constant 0 : index
    %c0_76 = arith.constant 0 : index
    %c0_77 = arith.constant 0 : index
    %c0_78 = arith.constant 0 : index
    %66 = vector.load %arg7[%c0_75, %c0_76, %c0_77, %c0_78] : memref<1x1x2x128xf32, #tpu.memory_space<vmem>>, vector<1x1x1x128xf32>
    %67 = vector.shape_cast %66 : vector<1x1x1x128xf32> to vector<1x128xf32>
    %68 = vector.shape_cast %65 : vector<1x128xf32> to vector<1x1x1x128xf32>
    tpu.vector_store %arg7[%c0_75, %c0_76, %c0_77, %c0_78], %68 {strides = array<i32>} : memref<1x1x2x128xf32, #tpu.memory_space<vmem>>, vector<1x1x1x128xf32>,
    %69 = arith.mulf %63, %63 : vector<128x128xf32>
    %cst_79 = arith.constant dense<0.000000e+00> : vector<128xf32>
    %70 = vector.multi_reduction <add>, %69, %cst_79 [0] : vector<128x128xf32> to vector<128xf32>
    %71 = vector.shape_cast %70 : vector<128xf32> to vector<1x128xf32>
    %c0_80 = arith.constant 0 : index
    %c0_81 = arith.constant 0 : index
    %c1_82 = arith.constant 1 : index
    %c0_83 = arith.constant 0 : index
    %72 = vector.load %arg7[%c0_80, %c0_81, %c1_82, %c0_83] : memref<1x1x2x128xf32, #tpu.memory_space<vmem>>, vector<1x1x1x128xf32>
    %73 = vector.shape_cast %72 : vector<1x1x1x128xf32> to vector<1x128xf32>
    %74 = vector.shape_cast %71 : vector<1x128xf32> to vector<1x1x1x128xf32>
    tpu.vector_store %arg7[%c0_80, %c0_81, %c1_82, %c0_83], %74 {strides = array<i32>} : memref<1x1x2x128xf32, #tpu.memory_space<vmem>>, vector<1x1x1x128xf32>,
    %75 = vector.shape_cast %63 : vector<128x128xf32> to vector<8x16x128xf32>
    %76 = arith.truncf %75 : vector<8x16x128xf32> to vector<8x16x128xbf16>
    %cst_84 = arith.constant 0.000000e+00 : bf16
    %77 = vector.broadcast %cst_84 : bf16 to vector<8x1x128xbf16>
    %c0_85 = arith.constant 0 : index
    %c0_86 = arith.constant 0 : index
    %c1_87 = arith.constant 1 : index
    %c0_88 = arith.constant 0 : index
    %78 = vector.load %arg6[%c0_85, %c0_86, %c1_87, %c0_88] : memref<1x8x18x128xbf16, #tpu.memory_space<vmem>>, vector<1x8x16x128xbf16>
    %79 = vector.shape_cast %78 : vector<1x8x16x128xbf16> to vector<8x16x128xbf16>
    %80 = vector.shape_cast %76 : vector<8x16x128xbf16> to vector<1x8x16x128xbf16>
    tpu.vector_store %arg6[%c0_85, %c0_86, %c1_87, %c0_88], %80 {strides = array<i32>} : memref<1x8x18x128xbf16, #tpu.memory_space<vmem>>, vector<1x8x16x128xbf16>,
    %c0_89 = arith.constant 0 : index
    %c0_90 = arith.constant 0 : index
    %c0_91 = arith.constant 0 : index
    %c0_92 = arith.constant 0 : index
    %81 = vector.load %arg6[%c0_89, %c0_90, %c0_91, %c0_92] : memref<1x8x18x128xbf16, #tpu.memory_space<vmem>>, vector<1x8x1x128xbf16>
    %82 = vector.shape_cast %81 : vector<1x8x1x128xbf16> to vector<8x1x128xbf16>
    %83 = vector.shape_cast %77 : vector<8x1x128xbf16> to vector<1x8x1x128xbf16>
    tpu.vector_store %arg6[%c0_89, %c0_90, %c0_91, %c0_92], %83 {strides = array<i32>} : memref<1x8x18x128xbf16, #tpu.memory_space<vmem>>, vector<1x8x1x128xbf16>,
    %c0_93 = arith.constant 0 : index
    %c0_94 = arith.constant 0 : index
    %c17 = arith.constant 17 : index
    %c0_95 = arith.constant 0 : index
    %84 = vector.load %arg6[%c0_93, %c0_94, %c17, %c0_95] : memref<1x8x18x128xbf16, #tpu.memory_space<vmem>>, vector<1x8x1x128xbf16>
    %85 = vector.shape_cast %84 : vector<1x8x1x128xbf16> to vector<8x1x128xbf16>
    %86 = vector.shape_cast %77 : vector<8x1x128xbf16> to vector<1x8x1x128xbf16>
    tpu.vector_store %arg6[%c0_93, %c0_94, %c17, %c0_95], %86 {strides = array<i32>} : memref<1x8x18x128xbf16, #tpu.memory_space<vmem>>, vector<1x8x1x128xbf16>,
    return
  }
  func.func @transform_0(%arg0: i32, %arg1: i32) -> (i32, i32, i32, i32) {
    %c0_i32 = arith.constant 0 : i32
    %c0_i32_0 = arith.constant 0 : i32
    %c0_i32_1 = arith.constant 0 : i32
    return %arg0, %arg1, %c0_i32, %c0_i32_0 : i32, i32, i32, i32
  }
  func.func @transform_1(%arg0: i32, %arg1: i32) -> (i32, i32, i32, i32) {
    %c1_i32 = arith.constant 1 : i32
    %0 = arith.addi %arg1, %c1_i32 : i32
    %c8_i32 = arith.constant 8 : i32
    %1 = arith.muli %0, %c8_i32 : i32
    %c0_i32 = arith.constant 0 : i32
    %c0_i32_0 = arith.constant 0 : i32
    %c0_i32_1 = arith.constant 0 : i32
    return %arg0, %1, %c0_i32, %c0_i32_0 : i32, i32, i32, i32
  }
  func.func @transform_2(%arg0: i32, %arg1: i32) -> (i32, i32, i32, i32) {
    %c1_i32 = arith.constant 1 : i32
    %0 = arith.addi %arg1, %c1_i32 : i32
    %c8_i32 = arith.constant 8 : i32
    %1 = arith.muli %0, %c8_i32 : i32
    %c1_i32_0 = arith.constant 1 : i32
    %2 = arith.addi %1, %c1_i32_0 : i32
    %c0_i32 = arith.constant 0 : i32
    %c0_i32_1 = arith.constant 0 : i32
    %c0_i32_2 = arith.constant 0 : i32
    return %arg0, %2, %c0_i32, %c0_i32_1 : i32, i32, i32, i32
  }
  func.func @transform_3(%arg0: i32, %arg1: i32) -> (i32, i32, i32) {
    %c0_i32 = arith.constant 0 : i32
    %c0_i32_0 = arith.constant 0 : i32
    %c0_i32_1 = arith.constant 0 : i32
    %c0_i32_2 = arith.constant 0 : i32
    return %c0_i32, %c0_i32_0, %c0_i32_1 : i32, i32, i32
  }
  func.func @transform_4(%arg0: i32, %arg1: i32) -> (i32, i32, i32, i32) {
    %c0_i32 = arith.constant 0 : i32
    %c0_i32_0 = arith.constant 0 : i32
    %c0_i32_1 = arith.constant 0 : i32
    return %arg0, %arg1, %c0_i32, %c0_i32_0 : i32, i32, i32, i32
  }
  func.func @transform_5(%arg0: i32, %arg1: i32) -> (i32, i32, i32, i32) {
    %c0_i32 = arith.constant 0 : i32
    %c0_i32_0 = arith.constant 0 : i32
    %c0_i32_1 = arith.constant 0 : i32
    return %arg0, %arg1, %c0_i32, %c0_i32_0 : i32, i32, i32, i32
  }
}

module attributes {stable_mosaic.version = 11 : i64} {
  func.func @_conv2_kernel(%arg0: i32, %arg1: i32, %arg2: memref<1x8x18x128xbf16, #tpu.memory_space<vmem>>, %arg3: memref<1x1x18x128xbf16, #tpu.memory_space<vmem>>, %arg4: memref<1x1x18x128xbf16, #tpu.memory_space<vmem>>, %arg5: memref<1x2x128xf32, #tpu.memory_space<vmem>>, %arg6: memref<9x128x128xbf16, #tpu.memory_space<vmem>>, %arg7: memref<1x8x16x128xbf16, #tpu.memory_space<vmem>>, %arg8: memref<1x1x2x128xf32, #tpu.memory_space<vmem>>, %arg9: memref<10x18x128xbf16, #tpu.memory_space<vmem>>) attributes {dimension_semantics = [#tpu.dimension_semantics<parallel>, #tpu.dimension_semantics<parallel>], iteration_bounds = array<i64: 2, 2>, scalar_prefetch = 0 : i64, scratch_operands = 1 : i64, tpu.core_type = #tpu.core_type<tc>, window_params = [{transform_indices = @transform_0, window_bounds = array<i64: 1, 8, 18, 128>}, {transform_indices = @transform_1, window_bounds = array<i64: 1, 1, 18, 128>}, {transform_indices = @transform_2, window_bounds = array<i64: 1, 1, 18, 128>}, {transform_indices = @transform_3, window_bounds = array<i64: 1, 2, 128>}, {pipeline_mode = #tpu.pipeline_mode<synchronous>, transform_indices = @transform_4, window_bounds = array<i64: 9, 128, 128>}, {transform_indices = @transform_5, window_bounds = array<i64: 1, 8, 16, 128>}, {transform_indices = @transform_6, window_bounds = array<i64: 1, 1, 2, 128>}]} {
    %c0 = arith.constant 0 : index
    %c0_0 = arith.constant 0 : index
    %c0_1 = arith.constant 0 : index
    %0 = vector.load %arg5[%c0, %c0_0, %c0_1] : memref<1x2x128xf32, #tpu.memory_space<vmem>>, vector<1x1x128xf32>
    %1 = vector.shape_cast %0 : vector<1x1x128xf32> to vector<1x128xf32>
    %2 = vector.shape_cast %1 : vector<1x128xf32> to vector<1x1x128xf32>
    %c0_2 = arith.constant 0 : index
    %c1 = arith.constant 1 : index
    %c0_3 = arith.constant 0 : index
    %3 = vector.load %arg5[%c0_2, %c1, %c0_3] : memref<1x2x128xf32, #tpu.memory_space<vmem>>, vector<1x1x128xf32>
    %4 = vector.shape_cast %3 : vector<1x1x128xf32> to vector<1x128xf32>
    %5 = vector.shape_cast %4 : vector<1x128xf32> to vector<1x1x128xf32>
    %6 = tpu.iota {dimensions = array<i32: 0>} : vector<18x128xi32>
    %c1_i32 = arith.constant 1 : i32
    %7 = vector.broadcast %c1_i32 : i32 to vector<18x128xi32>
    %8 = arith.cmpi sge, %6, %7 : vector<18x128xi32>
    %c16_i32 = arith.constant 16 : i32
    %9 = vector.broadcast %c16_i32 : i32 to vector<18x128xi32>
    %10 = arith.cmpi sle, %6, %9 : vector<18x128xi32>
    %11 = arith.andi %8, %10 : vector<18x128xi1>
    %12 = arith.extui %11 : vector<18x128xi1> to vector<18x128xi32>
    %13 = arith.sitofp %12 : vector<18x128xi32> to vector<18x128xf32>
    %c0_i32 = arith.constant 0 : i32
    %14 = arith.cmpi sgt, %arg1, %c0_i32 : i32
    %cst = arith.constant 1.000000e+00 : f32
    %cst_4 = arith.constant 0.000000e+00 : f32
    %15 = arith.select %14, %cst, %cst_4 : f32
    %c1_i32_5 = arith.constant 1 : i32
    %16 = arith.cmpi slt, %arg1, %c1_i32_5 : i32
    %cst_6 = arith.constant 1.000000e+00 : f32
    %cst_7 = arith.constant 0.000000e+00 : f32
    %17 = arith.select %16, %cst_6, %cst_7 : f32
    %c0_8 = arith.constant 0 : index
    %c0_9 = arith.constant 0 : index
    %c0_10 = arith.constant 0 : index
    %c0_11 = arith.constant 0 : index
    %18 = vector.load %arg2[%c0_8, %c0_9, %c0_10, %c0_11] : memref<1x8x18x128xbf16, #tpu.memory_space<vmem>>, vector<1x8x18x128xbf16>
    %19 = vector.shape_cast %18 : vector<1x8x18x128xbf16> to vector<8x18x128xbf16>
    %20 = arith.extf %19 : vector<8x18x128xbf16> to vector<8x18x128xf32>
    %21 = vector.broadcast %2 : vector<1x1x128xf32> to vector<8x18x128xf32>
    %22 = arith.subf %20, %21 : vector<8x18x128xf32>
    %23 = vector.broadcast %5 : vector<1x1x128xf32> to vector<8x18x128xf32>
    %24 = arith.mulf %22, %23 : vector<8x18x128xf32>
    %cst_12 = arith.constant 0.000000e+00 : f32
    %25 = vector.broadcast %cst_12 : f32 to vector<8x18x128xf32>
    %26 = arith.maximumf %24, %25 : vector<8x18x128xf32>
    %27 = vector.shape_cast %13 : vector<18x128xf32> to vector<1x18x128xf32>
    %28 = vector.broadcast %27 : vector<1x18x128xf32> to vector<8x18x128xf32>
    %29 = arith.mulf %26, %28 : vector<8x18x128xf32>
    %30 = arith.truncf %29 : vector<8x18x128xf32> to vector<8x18x128xbf16>
    %c1_13 = arith.constant 1 : index
    %c0_14 = arith.constant 0 : index
    %c0_15 = arith.constant 0 : index
    %31 = vector.load %arg9[%c1_13, %c0_14, %c0_15] : memref<10x18x128xbf16, #tpu.memory_space<vmem>>, vector<8x18x128xbf16>
    tpu.vector_store %arg9[%c1_13, %c0_14, %c0_15], %30 {strides = array<i32>} : memref<10x18x128xbf16, #tpu.memory_space<vmem>>, vector<8x18x128xbf16>,
    %c0_16 = arith.constant 0 : index
    %c0_17 = arith.constant 0 : index
    %c0_18 = arith.constant 0 : index
    %c0_19 = arith.constant 0 : index
    %32 = vector.load %arg3[%c0_16, %c0_17, %c0_18, %c0_19] : memref<1x1x18x128xbf16, #tpu.memory_space<vmem>>, vector<1x1x18x128xbf16>
    %33 = vector.shape_cast %32 : vector<1x1x18x128xbf16> to vector<1x18x128xbf16>
    %34 = arith.extf %33 : vector<1x18x128xbf16> to vector<1x18x128xf32>
    %35 = vector.broadcast %2 : vector<1x1x128xf32> to vector<1x18x128xf32>
    %36 = arith.subf %34, %35 : vector<1x18x128xf32>
    %37 = vector.broadcast %5 : vector<1x1x128xf32> to vector<1x18x128xf32>
    %38 = arith.mulf %36, %37 : vector<1x18x128xf32>
    %cst_20 = arith.constant 0.000000e+00 : f32
    %39 = vector.broadcast %cst_20 : f32 to vector<1x18x128xf32>
    %40 = arith.maximumf %38, %39 : vector<1x18x128xf32>
    %41 = vector.shape_cast %13 : vector<18x128xf32> to vector<1x18x128xf32>
    %42 = arith.mulf %40, %41 : vector<1x18x128xf32>
    %43 = vector.broadcast %15 : f32 to vector<1x18x128xf32>
    %44 = arith.mulf %42, %43 : vector<1x18x128xf32>
    %45 = arith.truncf %44 : vector<1x18x128xf32> to vector<1x18x128xbf16>
    %c0_21 = arith.constant 0 : index
    %c0_22 = arith.constant 0 : index
    %c0_23 = arith.constant 0 : index
    %46 = vector.load %arg9[%c0_21, %c0_22, %c0_23] : memref<10x18x128xbf16, #tpu.memory_space<vmem>>, vector<1x18x128xbf16>
    tpu.vector_store %arg9[%c0_21, %c0_22, %c0_23], %45 {strides = array<i32>} : memref<10x18x128xbf16, #tpu.memory_space<vmem>>, vector<1x18x128xbf16>,
    %c0_24 = arith.constant 0 : index
    %c0_25 = arith.constant 0 : index
    %c0_26 = arith.constant 0 : index
    %c0_27 = arith.constant 0 : index
    %47 = vector.load %arg4[%c0_24, %c0_25, %c0_26, %c0_27] : memref<1x1x18x128xbf16, #tpu.memory_space<vmem>>, vector<1x1x18x128xbf16>
    %48 = vector.shape_cast %47 : vector<1x1x18x128xbf16> to vector<1x18x128xbf16>
    %49 = arith.extf %48 : vector<1x18x128xbf16> to vector<1x18x128xf32>
    %50 = vector.broadcast %2 : vector<1x1x128xf32> to vector<1x18x128xf32>
    %51 = arith.subf %49, %50 : vector<1x18x128xf32>
    %52 = vector.broadcast %5 : vector<1x1x128xf32> to vector<1x18x128xf32>
    %53 = arith.mulf %51, %52 : vector<1x18x128xf32>
    %cst_28 = arith.constant 0.000000e+00 : f32
    %54 = vector.broadcast %cst_28 : f32 to vector<1x18x128xf32>
    %55 = arith.maximumf %53, %54 : vector<1x18x128xf32>
    %56 = vector.shape_cast %13 : vector<18x128xf32> to vector<1x18x128xf32>
    %57 = arith.mulf %55, %56 : vector<1x18x128xf32>
    %58 = vector.broadcast %17 : f32 to vector<1x18x128xf32>
    %59 = arith.mulf %57, %58 : vector<1x18x128xf32>
    %60 = arith.truncf %59 : vector<1x18x128xf32> to vector<1x18x128xbf16>
    %c9 = arith.constant 9 : index
    %c0_29 = arith.constant 0 : index
    %c0_30 = arith.constant 0 : index
    %61 = vector.load %arg9[%c9, %c0_29, %c0_30] : memref<10x18x128xbf16, #tpu.memory_space<vmem>>, vector<1x18x128xbf16>
    tpu.vector_store %arg9[%c9, %c0_29, %c0_30], %60 {strides = array<i32>} : memref<10x18x128xbf16, #tpu.memory_space<vmem>>, vector<1x18x128xbf16>,
    %cst_31 = arith.constant 0.000000e+00 : f32
    %62 = vector.broadcast %cst_31 : f32 to vector<128x128xf32>
    %c0_32 = arith.constant 0 : index
    %c0_33 = arith.constant 0 : index
    %c0_34 = arith.constant 0 : index
    %63 = vector.load %arg9[%c0_32, %c0_33, %c0_34] : memref<10x18x128xbf16, #tpu.memory_space<vmem>>, vector<8x16x128xbf16>
    %64 = vector.shape_cast %63 : vector<8x16x128xbf16> to vector<128x128xbf16>
    %c0_35 = arith.constant 0 : index
    %c0_36 = arith.constant 0 : index
    %c0_37 = arith.constant 0 : index
    %65 = vector.load %arg6[%c0_35, %c0_36, %c0_37] : memref<9x128x128xbf16, #tpu.memory_space<vmem>>, vector<1x128x128xbf16>
    %66 = vector.shape_cast %65 : vector<1x128x128xbf16> to vector<128x128xbf16>
    %cst_38 = arith.constant dense<0.000000e+00> : vector<128x128xf32>
    %67 = tpu.matmul %64, %66, %cst_38 {dimension_numbers = #tpu.dot_dimension_numbers<[1], [0], [0], [1], [0, 0, 1, 1], [], []>} : vector<128x128xbf16>, vector<128x128xbf16>, vector<128x128xf32> -> vector<128x128xf32>
    %68 = arith.addf %62, %67 : vector<128x128xf32>
    %c0_39 = arith.constant 0 : index
    %c1_40 = arith.constant 1 : index
    %c0_41 = arith.constant 0 : index
    %69 = vector.load %arg9[%c0_39, %c1_40, %c0_41] : memref<10x18x128xbf16, #tpu.memory_space<vmem>>, vector<8x16x128xbf16>
    %70 = vector.shape_cast %69 : vector<8x16x128xbf16> to vector<128x128xbf16>
    %c1_42 = arith.constant 1 : index
    %c0_43 = arith.constant 0 : index
    %c0_44 = arith.constant 0 : index
    %71 = vector.load %arg6[%c1_42, %c0_43, %c0_44] : memref<9x128x128xbf16, #tpu.memory_space<vmem>>, vector<1x128x128xbf16>
    %72 = vector.shape_cast %71 : vector<1x128x128xbf16> to vector<128x128xbf16>
    %cst_45 = arith.constant dense<0.000000e+00> : vector<128x128xf32>
    %73 = tpu.matmul %70, %72, %cst_45 {dimension_numbers = #tpu.dot_dimension_numbers<[1], [0], [0], [1], [0, 0, 1, 1], [], []>} : vector<128x128xbf16>, vector<128x128xbf16>, vector<128x128xf32> -> vector<128x128xf32>
    %74 = arith.addf %68, %73 : vector<128x128xf32>
    %c0_46 = arith.constant 0 : index
    %c2 = arith.constant 2 : index
    %c0_47 = arith.constant 0 : index
    %75 = vector.load %arg9[%c0_46, %c2, %c0_47] : memref<10x18x128xbf16, #tpu.memory_space<vmem>>, vector<8x16x128xbf16>
    %76 = vector.shape_cast %75 : vector<8x16x128xbf16> to vector<128x128xbf16>
    %c2_48 = arith.constant 2 : index
    %c0_49 = arith.constant 0 : index
    %c0_50 = arith.constant 0 : index
    %77 = vector.load %arg6[%c2_48, %c0_49, %c0_50] : memref<9x128x128xbf16, #tpu.memory_space<vmem>>, vector<1x128x128xbf16>
    %78 = vector.shape_cast %77 : vector<1x128x128xbf16> to vector<128x128xbf16>
    %cst_51 = arith.constant dense<0.000000e+00> : vector<128x128xf32>
    %79 = tpu.matmul %76, %78, %cst_51 {dimension_numbers = #tpu.dot_dimension_numbers<[1], [0], [0], [1], [0, 0, 1, 1], [], []>} : vector<128x128xbf16>, vector<128x128xbf16>, vector<128x128xf32> -> vector<128x128xf32>
    %80 = arith.addf %74, %79 : vector<128x128xf32>
    %c1_52 = arith.constant 1 : index
    %c0_53 = arith.constant 0 : index
    %c0_54 = arith.constant 0 : index
    %81 = vector.load %arg9[%c1_52, %c0_53, %c0_54] : memref<10x18x128xbf16, #tpu.memory_space<vmem>>, vector<8x16x128xbf16>
    %82 = vector.shape_cast %81 : vector<8x16x128xbf16> to vector<128x128xbf16>
    %c3 = arith.constant 3 : index
    %c0_55 = arith.constant 0 : index
    %c0_56 = arith.constant 0 : index
    %83 = vector.load %arg6[%c3, %c0_55, %c0_56] : memref<9x128x128xbf16, #tpu.memory_space<vmem>>, vector<1x128x128xbf16>
    %84 = vector.shape_cast %83 : vector<1x128x128xbf16> to vector<128x128xbf16>
    %cst_57 = arith.constant dense<0.000000e+00> : vector<128x128xf32>
    %85 = tpu.matmul %82, %84, %cst_57 {dimension_numbers = #tpu.dot_dimension_numbers<[1], [0], [0], [1], [0, 0, 1, 1], [], []>} : vector<128x128xbf16>, vector<128x128xbf16>, vector<128x128xf32> -> vector<128x128xf32>
    %86 = arith.addf %80, %85 : vector<128x128xf32>
    %c1_58 = arith.constant 1 : index
    %c1_59 = arith.constant 1 : index
    %c0_60 = arith.constant 0 : index
    %87 = vector.load %arg9[%c1_58, %c1_59, %c0_60] : memref<10x18x128xbf16, #tpu.memory_space<vmem>>, vector<8x16x128xbf16>
    %88 = vector.shape_cast %87 : vector<8x16x128xbf16> to vector<128x128xbf16>
    %c4 = arith.constant 4 : index
    %c0_61 = arith.constant 0 : index
    %c0_62 = arith.constant 0 : index
    %89 = vector.load %arg6[%c4, %c0_61, %c0_62] : memref<9x128x128xbf16, #tpu.memory_space<vmem>>, vector<1x128x128xbf16>
    %90 = vector.shape_cast %89 : vector<1x128x128xbf16> to vector<128x128xbf16>
    %cst_63 = arith.constant dense<0.000000e+00> : vector<128x128xf32>
    %91 = tpu.matmul %88, %90, %cst_63 {dimension_numbers = #tpu.dot_dimension_numbers<[1], [0], [0], [1], [0, 0, 1, 1], [], []>} : vector<128x128xbf16>, vector<128x128xbf16>, vector<128x128xf32> -> vector<128x128xf32>
    %92 = arith.addf %86, %91 : vector<128x128xf32>
    %c1_64 = arith.constant 1 : index
    %c2_65 = arith.constant 2 : index
    %c0_66 = arith.constant 0 : index
    %93 = vector.load %arg9[%c1_64, %c2_65, %c0_66] : memref<10x18x128xbf16, #tpu.memory_space<vmem>>, vector<8x16x128xbf16>
    %94 = vector.shape_cast %93 : vector<8x16x128xbf16> to vector<128x128xbf16>
    %c5 = arith.constant 5 : index
    %c0_67 = arith.constant 0 : index
    %c0_68 = arith.constant 0 : index
    %95 = vector.load %arg6[%c5, %c0_67, %c0_68] : memref<9x128x128xbf16, #tpu.memory_space<vmem>>, vector<1x128x128xbf16>
    %96 = vector.shape_cast %95 : vector<1x128x128xbf16> to vector<128x128xbf16>
    %cst_69 = arith.constant dense<0.000000e+00> : vector<128x128xf32>
    %97 = tpu.matmul %94, %96, %cst_69 {dimension_numbers = #tpu.dot_dimension_numbers<[1], [0], [0], [1], [0, 0, 1, 1], [], []>} : vector<128x128xbf16>, vector<128x128xbf16>, vector<128x128xf32> -> vector<128x128xf32>
    %98 = arith.addf %92, %97 : vector<128x128xf32>
    %c2_70 = arith.constant 2 : index
    %c0_71 = arith.constant 0 : index
    %c0_72 = arith.constant 0 : index
    %99 = vector.load %arg9[%c2_70, %c0_71, %c0_72] : memref<10x18x128xbf16, #tpu.memory_space<vmem>>, vector<8x16x128xbf16>
    %100 = vector.shape_cast %99 : vector<8x16x128xbf16> to vector<128x128xbf16>
    %c6 = arith.constant 6 : index
    %c0_73 = arith.constant 0 : index
    %c0_74 = arith.constant 0 : index
    %101 = vector.load %arg6[%c6, %c0_73, %c0_74] : memref<9x128x128xbf16, #tpu.memory_space<vmem>>, vector<1x128x128xbf16>
    %102 = vector.shape_cast %101 : vector<1x128x128xbf16> to vector<128x128xbf16>
    %cst_75 = arith.constant dense<0.000000e+00> : vector<128x128xf32>
    %103 = tpu.matmul %100, %102, %cst_75 {dimension_numbers = #tpu.dot_dimension_numbers<[1], [0], [0], [1], [0, 0, 1, 1], [], []>} : vector<128x128xbf16>, vector<128x128xbf16>, vector<128x128xf32> -> vector<128x128xf32>
    %104 = arith.addf %98, %103 : vector<128x128xf32>
    %c2_76 = arith.constant 2 : index
    %c1_77 = arith.constant 1 : index
    %c0_78 = arith.constant 0 : index
    %105 = vector.load %arg9[%c2_76, %c1_77, %c0_78] : memref<10x18x128xbf16, #tpu.memory_space<vmem>>, vector<8x16x128xbf16>
    %106 = vector.shape_cast %105 : vector<8x16x128xbf16> to vector<128x128xbf16>
    %c7 = arith.constant 7 : index
    %c0_79 = arith.constant 0 : index
    %c0_80 = arith.constant 0 : index
    %107 = vector.load %arg6[%c7, %c0_79, %c0_80] : memref<9x128x128xbf16, #tpu.memory_space<vmem>>, vector<1x128x128xbf16>
    %108 = vector.shape_cast %107 : vector<1x128x128xbf16> to vector<128x128xbf16>
    %cst_81 = arith.constant dense<0.000000e+00> : vector<128x128xf32>
    %109 = tpu.matmul %106, %108, %cst_81 {dimension_numbers = #tpu.dot_dimension_numbers<[1], [0], [0], [1], [0, 0, 1, 1], [], []>} : vector<128x128xbf16>, vector<128x128xbf16>, vector<128x128xf32> -> vector<128x128xf32>
    %110 = arith.addf %104, %109 : vector<128x128xf32>
    %c2_82 = arith.constant 2 : index
    %c2_83 = arith.constant 2 : index
    %c0_84 = arith.constant 0 : index
    %111 = vector.load %arg9[%c2_82, %c2_83, %c0_84] : memref<10x18x128xbf16, #tpu.memory_space<vmem>>, vector<8x16x128xbf16>
    %112 = vector.shape_cast %111 : vector<8x16x128xbf16> to vector<128x128xbf16>
    %c8 = arith.constant 8 : index
    %c0_85 = arith.constant 0 : index
    %c0_86 = arith.constant 0 : index
    %113 = vector.load %arg6[%c8, %c0_85, %c0_86] : memref<9x128x128xbf16, #tpu.memory_space<vmem>>, vector<1x128x128xbf16>
    %114 = vector.shape_cast %113 : vector<1x128x128xbf16> to vector<128x128xbf16>
    %cst_87 = arith.constant dense<0.000000e+00> : vector<128x128xf32>
    %115 = tpu.matmul %112, %114, %cst_87 {dimension_numbers = #tpu.dot_dimension_numbers<[1], [0], [0], [1], [0, 0, 1, 1], [], []>} : vector<128x128xbf16>, vector<128x128xbf16>, vector<128x128xf32> -> vector<128x128xf32>
    %116 = arith.addf %110, %115 : vector<128x128xf32>
    %cst_88 = arith.constant dense<0.000000e+00> : vector<128xf32>
    %117 = vector.multi_reduction <add>, %116, %cst_88 [0] : vector<128x128xf32> to vector<128xf32>
    %118 = vector.shape_cast %117 : vector<128xf32> to vector<1x128xf32>
    %c0_89 = arith.constant 0 : index
    %c0_90 = arith.constant 0 : index
    %c0_91 = arith.constant 0 : index
    %c0_92 = arith.constant 0 : index
    %119 = vector.load %arg8[%c0_89, %c0_90, %c0_91, %c0_92] : memref<1x1x2x128xf32, #tpu.memory_space<vmem>>, vector<1x1x1x128xf32>
    %120 = vector.shape_cast %119 : vector<1x1x1x128xf32> to vector<1x128xf32>
    %121 = vector.shape_cast %118 : vector<1x128xf32> to vector<1x1x1x128xf32>
    tpu.vector_store %arg8[%c0_89, %c0_90, %c0_91, %c0_92], %121 {strides = array<i32>} : memref<1x1x2x128xf32, #tpu.memory_space<vmem>>, vector<1x1x1x128xf32>,
    %122 = arith.mulf %116, %116 : vector<128x128xf32>
    %cst_93 = arith.constant dense<0.000000e+00> : vector<128xf32>
    %123 = vector.multi_reduction <add>, %122, %cst_93 [0] : vector<128x128xf32> to vector<128xf32>
    %124 = vector.shape_cast %123 : vector<128xf32> to vector<1x128xf32>
    %c0_94 = arith.constant 0 : index
    %c0_95 = arith.constant 0 : index
    %c1_96 = arith.constant 1 : index
    %c0_97 = arith.constant 0 : index
    %125 = vector.load %arg8[%c0_94, %c0_95, %c1_96, %c0_97] : memref<1x1x2x128xf32, #tpu.memory_space<vmem>>, vector<1x1x1x128xf32>
    %126 = vector.shape_cast %125 : vector<1x1x1x128xf32> to vector<1x128xf32>
    %127 = vector.shape_cast %124 : vector<1x128xf32> to vector<1x1x1x128xf32>
    tpu.vector_store %arg8[%c0_94, %c0_95, %c1_96, %c0_97], %127 {strides = array<i32>} : memref<1x1x2x128xf32, #tpu.memory_space<vmem>>, vector<1x1x1x128xf32>,
    %128 = vector.shape_cast %116 : vector<128x128xf32> to vector<8x16x128xf32>
    %129 = arith.truncf %128 : vector<8x16x128xf32> to vector<8x16x128xbf16>
    %c0_98 = arith.constant 0 : index
    %c0_99 = arith.constant 0 : index
    %c0_100 = arith.constant 0 : index
    %c0_101 = arith.constant 0 : index
    %130 = vector.load %arg7[%c0_98, %c0_99, %c0_100, %c0_101] : memref<1x8x16x128xbf16, #tpu.memory_space<vmem>>, vector<1x8x16x128xbf16>
    %131 = vector.shape_cast %130 : vector<1x8x16x128xbf16> to vector<8x16x128xbf16>
    %132 = vector.shape_cast %129 : vector<8x16x128xbf16> to vector<1x8x16x128xbf16>
    tpu.vector_store %arg7[%c0_98, %c0_99, %c0_100, %c0_101], %132 {strides = array<i32>} : memref<1x8x16x128xbf16, #tpu.memory_space<vmem>>, vector<1x8x16x128xbf16>,
    return
  }
  func.func @transform_0(%arg0: i32, %arg1: i32) -> (i32, i32, i32, i32) {
    %c0_i32 = arith.constant 0 : i32
    %c0_i32_0 = arith.constant 0 : i32
    %c0_i32_1 = arith.constant 0 : i32
    return %arg0, %arg1, %c0_i32, %c0_i32_0 : i32, i32, i32, i32
  }
  func.func @transform_1(%arg0: i32, %arg1: i32) -> (i32, i32, i32, i32) {
    %c8_i32 = arith.constant 8 : i32
    %0 = arith.muli %arg1, %c8_i32 : i32
    %c1_i32 = arith.constant 1 : i32
    %1 = arith.subi %0, %c1_i32 : i32
    %c0_i32 = arith.constant 0 : i32
    %2 = arith.maxsi %1, %c0_i32 : i32
    %c0_i32_0 = arith.constant 0 : i32
    %c0_i32_1 = arith.constant 0 : i32
    %c0_i32_2 = arith.constant 0 : i32
    return %arg0, %2, %c0_i32_0, %c0_i32_1 : i32, i32, i32, i32
  }
  func.func @transform_2(%arg0: i32, %arg1: i32) -> (i32, i32, i32, i32) {
    %c1_i32 = arith.constant 1 : i32
    %0 = arith.addi %arg1, %c1_i32 : i32
    %c8_i32 = arith.constant 8 : i32
    %1 = arith.muli %0, %c8_i32 : i32
    %c15_i32 = arith.constant 15 : i32
    %2 = arith.minsi %1, %c15_i32 : i32
    %c0_i32 = arith.constant 0 : i32
    %c0_i32_0 = arith.constant 0 : i32
    %c0_i32_1 = arith.constant 0 : i32
    return %arg0, %2, %c0_i32, %c0_i32_0 : i32, i32, i32, i32
  }
  func.func @transform_3(%arg0: i32, %arg1: i32) -> (i32, i32, i32) {
    %c0_i32 = arith.constant 0 : i32
    %c0_i32_0 = arith.constant 0 : i32
    %c0_i32_1 = arith.constant 0 : i32
    return %arg0, %c0_i32, %c0_i32_0 : i32, i32, i32
  }
  func.func @transform_4(%arg0: i32, %arg1: i32) -> (i32, i32, i32) {
    %c0_i32 = arith.constant 0 : i32
    %c0_i32_0 = arith.constant 0 : i32
    %c0_i32_1 = arith.constant 0 : i32
    %c0_i32_2 = arith.constant 0 : i32
    return %c0_i32, %c0_i32_0, %c0_i32_1 : i32, i32, i32
  }
  func.func @transform_5(%arg0: i32, %arg1: i32) -> (i32, i32, i32, i32) {
    %c0_i32 = arith.constant 0 : i32
    %c0_i32_0 = arith.constant 0 : i32
    %c0_i32_1 = arith.constant 0 : i32
    return %arg0, %arg1, %c0_i32, %c0_i32_0 : i32, i32, i32, i32
  }
  func.func @transform_6(%arg0: i32, %arg1: i32) -> (i32, i32, i32, i32) {
    %c0_i32 = arith.constant 0 : i32
    %c0_i32_0 = arith.constant 0 : i32
    %c0_i32_1 = arith.constant 0 : i32
    return %arg0, %arg1, %c0_i32, %c0_i32_0 : i32, i32, i32, i32
  }
}

</mosaic_0001>

<llo_original>
// kernel: upsampling_concat_forward.3
$region0: #{upsampling_concat_forward.3}
  #allocation0 [shape = 'u32[]', space=smem, size = 0x4, offset = 0x4, fixed_abs, tag = 'smem constant byte address 0x4 - core index']
  #allocation1 [shape = 'u32[144,128]{1,0:T(1,128)}', space=vmem, size = 0x12000, scoped, tag = 'internal scratch']
  #allocation2 [shape = 'bf16[10,18,128]{2,1,0:T(8,128)(2,1)}', space=vmem, size = 0xf000, scoped, tag = 'scratch operand']
  %s0 = inlined_call_operand.vmem [shape: bf16[2,16,18,128], index: 0, kind: input, shape index: {}, may-alias: {0,1,2}]
  %s1 = inlined_call_operand.vmem [shape: bf16[2,16,18,128], index: 1, kind: input, shape index: {}, may-alias: {0,1,2}]
  %s2 = inlined_call_operand.vmem [shape: bf16[2,16,18,128], index: 2, kind: input, shape index: {}, may-alias: {0,1,2}]
  %s3 = inlined_call_operand.vmem [shape: f32[2,2,128], index: 3, kind: input, shape index: {}]
  %s4 = inlined_call_operand.vmem [shape: bf16[9,128,128], index: 4, kind: input, shape index: {}]
  %s5 = inlined_call_operand.vmem [shape: bf16[2,16,16,128], index: 5, kind: output, shape index: {0}]
  %s6 = inlined_call_operand.vmem [shape: f32[2,2,2,128], index: 6, kind: output, shape index: {1}]
  %7 = xla_tuple %s5, %s6
  %s8 = sld [smem:[#allocation0]]
  $region61: #{upsampling_concat_forward.3} parent=0
    _
  %s10 = ssub.s32 1, %s8
  %s11 = scalar_select 0, %s10, %s8
  loop: start=0, step=1, limit=6
  $region2: #{upsampling_concat_forward.3} parent=0 // loop_pre_header
    _
  $region3: #{upsampling_concat_forward.3} parent=0 // loop_header
    %s13 = sphi 0, %s17
    %p14 = scmp.ge.s32.totalorder %s13, 6
    %s20 = sphi 0, %s32
    %s21 = sphi 0, %s28
    %s22 = sphi 0, %s20
    %s23 = sphi 0, %s21
    %s24 = sphi 0, %s22
    %s25 = sphi 0, %s23
    %s37 = sphi 0, %s39
    %s40 = sphi 0, %s37
    %s41 = sphi 0, %s40
    %s57 = sphi 0, %s41
    %s73 = sphi 0, %s75
    %s76 = sphi 0, %s73
    %s77 = sphi 0, %s76
    %s93 = sphi 0, %s77
    %s109 = sphi 0, %s111
    %s112 = sphi 0, %s109
    %s113 = sphi 0, %s112
    %s129 = sphi 0, %s113
    %s135 = sphi 0, %s137
    %s138 = sphi 0, %s135
    %s139 = sphi 0, %s138
    %s155 = sphi 0, %s139
    %s159 = sphi 0, %s159
    %s161 = sphi 0, %s159
    %s162 = sphi 0, %s161
    %s176 = sphi 0, %s162
    %s184 = sphi 0, %s186
    %s187 = sphi 0, %s184
    %s188 = sphi 0, %s187
    %s204 = sphi 0, %s188
    %s212 = sphi 0, %s214
    %s215 = sphi 0, %s212
    %s216 = sphi 0, %s215
    %s232 = sphi 0, %s216
  $region4: #{upsampling_concat_forward.3} parent=0 // loop_header_branch
    %16 = sbr.rel (%p14) target = $region8
  $region5: #{upsampling_concat_forward.3} parent=0 // loop_body
    %s18 = ssub.s32 %s13, 1
    %s19 = ssub.s32 %s13, 2
    %s26 = sadd.s32 1, %s21
    %p27 = scmp.ge.s32.totalorder %s26, 2
    %s28 = scalar_select %p27, 0, %s26
    %s29 = sadd.s32 1, %s20
    %s30 = scalar_select %p27, %s29, %s20
    %p31 = scmp.ge.s32.totalorder %s30, 2
    %s32 = scalar_select %p31, 0, %s30
    %s33 = ssub.s32 %s20, %s32
    %s34 = ssub.s32 %s21, %s28
    %s35 = sor.u32 %s33, %s34
    %p36 = scmp.eq.s32.totalorder %s35, 0
    %s38 = sadd.s32 %s37, 1
    %s39 = scalar_select %p36, %s37, %s38
    %p42 = pneg %p36
    %p43 = scmp.eq.s32.totalorder %s13, 3
    %p44 = por %p42, %p43
    %p45 = scmp.ne.s32.totalorder %s37, %s40
    %p46 = scmp.eq.s32.totalorder %s13, 0
    %p47 = por %p45, %p46
    %p48 = scmp.ne.s32.totalorder %s37, %s40
    %p49 = scmp.eq.s32.totalorder %s18, 3
    %p50 = por %p48, %p49
    %p51 = scmp.ne.s32.totalorder %s40, %s41
    %p52 = scmp.eq.s32.totalorder %s18, 0
    %p53 = por %p51, %p52
    %p54 = scmp.ne.s32.totalorder %s40, %s41
    %p55 = scmp.eq.s32.totalorder %s19, 3
    %p56 = por %p54, %p55
    %p58 = scmp.ne.s32.totalorder %s41, %s57
    %p59 = scmp.eq.s32.totalorder %s19, 0
    %p60 = por %p58, %p59
    %s61 = smul.u32 %s21, 8
    %s62 = ssub.s32 %s61, 1
    %p63 = scmp.gt.s32.totalorder %s62, 0
    %s64 = scalar_select %p63, %s62, 0
    %s65 = smul.u32 %s28, 8
    %s66 = ssub.s32 %s65, 1
    %p67 = scmp.gt.s32.totalorder %s66, 0
    %s68 = scalar_select %p67, %s66, 0
    %s69 = ssub.s32 %s20, %s32
    %s70 = ssub.s32 %s64, %s68
    %s71 = sor.u32 %s69, %s70
    %p72 = scmp.eq.s32.totalorder %s71, 0
    %s74 = sadd.s32 %s73, 1
    %s75 = scalar_select %p72, %s73, %s74
    %p78 = pneg %p72
    %p79 = scmp.eq.s32.totalorder %s13, 3
    %p80 = por %p78, %p79
    %p81 = scmp.ne.s32.totalorder %s73, %s76
    %p82 = scmp.eq.s32.totalorder %s13, 0
    %p83 = por %p81, %p82
    %p84 = scmp.ne.s32.totalorder %s73, %s76
    %p85 = scmp.eq.s32.totalorder %s18, 3
    %p86 = por %p84, %p85
    %p87 = scmp.ne.s32.totalorder %s76, %s77
    %p88 = scmp.eq.s32.totalorder %s18, 0
    %p89 = por %p87, %p88
    %p90 = scmp.ne.s32.totalorder %s76, %s77
    %p91 = scmp.eq.s32.totalorder %s19, 3
    %p92 = por %p90, %p91
    %p94 = scmp.ne.s32.totalorder %s77, %s93
    %p95 = scmp.eq.s32.totalorder %s19, 0
    %p96 = por %p94, %p95
    %s97 = sadd.s32 %s21, 1
    %s98 = smul.u32 %s97, 8
    %p99 = scmp.lt.s32.totalorder %s98, 15
    %s100 = scalar_select %p99, %s98, 15
    %s101 = sadd.s32 %s28, 1
    %s102 = smul.u32 %s101, 8
    %p103 = scmp.lt.s32.totalorder %s102, 15
    %s104 = scalar_select %p103, %s102, 15
    %s105 = ssub.s32 %s20, %s32
    %s106 = ssub.s32 %s100, %s104
    %s107 = sor.u32 %s105, %s106
    %p108 = scmp.eq.s32.totalorder %s107, 0
    %s110 = sadd.s32 %s109, 1
    %s111 = scalar_select %p108, %s109, %s110
    %p114 = pneg %p108
    %p115 = scmp.eq.s32.totalorder %s13, 3
    %p116 = por %p114, %p115
    %p117 = scmp.ne.s32.totalorder %s109, %s112
    %p118 = scmp.eq.s32.totalorder %s13, 0
    %p119 = por %p117, %p118
    %p120 = scmp.ne.s32.totalorder %s109, %s112
    %p121 = scmp.eq.s32.totalorder %s18, 3
    %p122 = por %p120, %p121
    %p123 = scmp.ne.s32.totalorder %s112, %s113
    %p124 = scmp.eq.s32.totalorder %s18, 0
    %p125 = por %p123, %p124
    %p126 = scmp.ne.s32.totalorder %s112, %s113
    %p127 = scmp.eq.s32.totalorder %s19, 3
    %p128 = por %p126, %p127
    %p130 = scmp.ne.s32.totalorder %s113, %s129
    %p131 = scmp.eq.s32.totalorder %s19, 0
    %p132 = por %p130, %p131
    %s133 = ssub.s32 %s20, %s32
    %p134 = scmp.eq.s32.totalorder %s133, 0
    %s136 = sadd.s32 %s135, 1
    %s137 = scalar_select %p134, %s135, %s136
    %p140 = pneg %p134
    %p141 = scmp.eq.s32.totalorder %s13, 3
    %p142 = por %p140, %p141
    %p143 = scmp.ne.s32.totalorder %s135, %s138
    %p144 = scmp.eq.s32.totalorder %s13, 0
    %p145 = por %p143, %p144
    %p146 = scmp.ne.s32.totalorder %s135, %s138
    %p147 = scmp.eq.s32.totalorder %s18, 3
    %p148 = por %p146, %p147
    %p149 = scmp.ne.s32.totalorder %s138, %s139
    %p150 = scmp.eq.s32.totalorder %s18, 0
    %p151 = por %p149, %p150
    %p152 = scmp.ne.s32.totalorder %s138, %s139
    %p153 = scmp.eq.s32.totalorder %s19, 3
    %p154 = por %p152, %p153
    %p156 = scmp.ne.s32.totalorder %s139, %s155
    %p157 = scmp.eq.s32.totalorder %s19, 0
    %p158 = por %p156, %p157
    %s160 = sadd.s32 %s159, 1
    %p163 = scmp.eq.s32.totalorder %s13, 3
    %p164 = scmp.ne.s32.totalorder %s159, %s161
    %p165 = scmp.eq.s32.totalorder %s13, 0
    %p166 = por %p164, %p165
    %p167 = scmp.ne.s32.totalorder %s159, %s161
    %p168 = scmp.eq.s32.totalorder %s18, 3
    %p169 = por %p167, %p168
    %p170 = scmp.ne.s32.totalorder %s161, %s162
    %p171 = scmp.eq.s32.totalorder %s18, 0
    %p172 = por %p170, %p171
    %p173 = scmp.ne.s32.totalorder %s161, %s162
    %p174 = scmp.eq.s32.totalorder %s19, 3
    %p175 = por %p173, %p174
    %p177 = scmp.ne.s32.totalorder %s162, %s176
    %p178 = scmp.eq.s32.totalorder %s19, 0
    %p179 = por %p177, %p178
    %s180 = ssub.s32 %s20, %s32
    %s181 = ssub.s32 %s21, %s28
    %s182 = sor.u32 %s180, %s181
    %p183 = scmp.eq.s32.totalorder %s182, 0
    %s185 = sadd.s32 %s184, 1
    %s186 = scalar_select %p183, %s184, %s185
    %p189 = pneg %p183
    %p190 = scmp.eq.s32.totalorder %s13, 3
    %p191 = por %p189, %p190
    %p192 = scmp.ne.s32.totalorder %s184, %s187
    %p193 = scmp.eq.s32.totalorder %s13, 0
    %p194 = por %p192, %p193
    %p195 = scmp.ne.s32.totalorder %s184, %s187
    %p196 = scmp.eq.s32.totalorder %s18, 3
    %p197 = por %p195, %p196
    %p198 = scmp.ne.s32.totalorder %s187, %s188
    %p199 = scmp.eq.s32.totalorder %s18, 0
    %p200 = por %p198, %p199
    %p201 = scmp.ne.s32.totalorder %s187, %s188
    %p202 = scmp.eq.s32.totalorder %s19, 3
    %p203 = por %p201, %p202
    %p205 = scmp.ne.s32.totalorder %s188, %s204
    %p206 = scmp.eq.s32.totalorder %s19, 0
    %p207 = por %p205, %p206
    %s208 = ssub.s32 %s20, %s32
    %s209 = ssub.s32 %s21, %s28
    %s210 = sor.u32 %s208, %s209
    %p211 = scmp.eq.s32.totalorder %s210, 0
    %s213 = sadd.s32 %s212, 1
    %s214 = scalar_select %p211, %s212, %s213
    %p217 = pneg %p211
    %p218 = scmp.eq.s32.totalorder %s13, 3
    %p219 = por %p217, %p218
    %p220 = scmp.ne.s32.totalorder %s212, %s215
    %p221 = scmp.eq.s32.totalorder %s13, 0
    %p222 = por %p220, %p221
    %p223 = scmp.ne.s32.totalorder %s212, %s215
    %p224 = scmp.eq.s32.totalorder %s18, 3
    %p225 = por %p223, %p224
    %p226 = scmp.ne.s32.totalorder %s215, %s216
    %p227 = scmp.eq.s32.totalorder %s18, 0
    %p228 = por %p226, %p227
    %p229 = scmp.ne.s32.totalorder %s215, %s216
    %p230 = scmp.eq.s32.totalorder %s19, 3
    %p231 = por %p229, %p230
    %p233 = scmp.ne.s32.totalorder %s216, %s232
    %p234 = scmp.eq.s32.totalorder %s19, 0
    %p235 = por %p233, %p234
    %p236 = scmp.le.s32.totalorder 1, %s13
    %p237 = scmp.lt.s32.totalorder %s13, 5
    %p238 = pnand %p236, %p237
    %p239 = pneg %p238
    // Predicated region
    $region9: #{upsampling_concat_forward.3} parent=5 // pred_check
      _
    $region10: #{upsampling_concat_forward.3} parent=5 // pred_check_branch
      %241 = sbr.rel (%p238) target = $region12
    $region11: #{upsampling_concat_forward.3} parent=5 // pred_region
      %s242 = ssub.s32 %s13, 1
      // Predicated region
      $region13: #{upsampling_concat_forward.3} parent=11 // pred_check
        %p243 = pneg %p172
      $region14: #{upsampling_concat_forward.3} parent=11 // pred_check_branch
        %245 = sbr.rel (%p243) target = $region16
      $region15: #{upsampling_concat_forward.3} parent=11 // pred_region
        _
      $region16: #{upsampling_concat_forward.3} parent=11 // pred_fallthru
        _
    $region12: #{upsampling_concat_forward.3} parent=5 // pred_fallthru
      _
    %p246 = scmp.lt.s32.totalorder %s13, 4
    // Predicated region
    $region17: #{upsampling_concat_forward.3} parent=5 // pred_check
      %p247 = pneg %p246
    $region18: #{upsampling_concat_forward.3} parent=5 // pred_check_branch
      %249 = sbr.rel (%p247) target = $region20
    $region19: #{upsampling_concat_forward.3} parent=5 // pred_region
      // Predicated region
      $region21: #{upsampling_concat_forward.3} parent=19 // pred_check
        %p250 = pneg %p47
      $region22: #{upsampling_concat_forward.3} parent=19 // pred_check_branch
        %252 = sbr.rel (%p250) target = $region24
      $region23: #{upsampling_concat_forward.3} parent=19 // pred_region
        %s253 = smul.u32 8, %s21
        %p254 = scmp.lt.s32.totalorder %s20, 1
        %s255 = scalar_select %p254, %s20, 1
        %p256 = scmp.lt.s32.totalorder %s253, 15
        %s257 = scalar_select %p256, %s253, 15
        %s258 = smul.addr %s257, 3
        %s259 = smul.addr %s255, 48
        %s260 = sadd.s32 %s258, %s259
        %s261 = smul.addr %s260, 4
        %s262 = scalar_lea.vmem %s0, %s261
        %s263 = smul.u32 8, %s21
      $region24: #{upsampling_concat_forward.3} parent=19 // pred_fallthru
        _
      // Predicated region
      $region25: #{upsampling_concat_forward.3} parent=19 // pred_check
        %p264 = pneg %p83
      $region26: #{upsampling_concat_forward.3} parent=19 // pred_check_branch
        %266 = sbr.rel (%p264) target = $region28
      $region27: #{upsampling_concat_forward.3} parent=19 // pred_region
        %s267 = smul.u32 %s21, 8
        %s268 = ssub.s32 %s267, 1
        %p269 = scmp.gt.s32.totalorder %s268, 0
        %s270 = scalar_select %p269, %s268, 0
        %p271 = scmp.lt.s32.totalorder %s20, 1
        %s272 = scalar_select %p271, %s20, 1
        %p273 = scmp.lt.s32.totalorder %s270, 15
        %s274 = scalar_select %p273, %s270, 15
        %s275 = smul.addr %s274, 3
        %s276 = smul.addr %s272, 48
        %s277 = sadd.s32 %s275, %s276
        %s278 = smul.addr %s277, 4
        %s279 = scalar_lea.vmem %s1, %s278
        %s280 = smul.u32 %s21, 8
        %s281 = ssub.s32 %s280, 1
        %p282 = scmp.gt.s32.totalorder %s281, 0
        %s283 = scalar_select %p282, %s281, 0
      $region28: #{upsampling_concat_forward.3} parent=19 // pred_fallthru
        _
      // Predicated region
      $region29: #{upsampling_concat_forward.3} parent=19 // pred_check
        %p284 = pneg %p119
      $region30: #{upsampling_concat_forward.3} parent=19 // pred_check_branch
        %286 = sbr.rel (%p284) target = $region32
      $region31: #{upsampling_concat_forward.3} parent=19 // pred_region
        %s287 = sadd.s32 %s21, 1
        %s288 = smul.u32 %s287, 8
        %p289 = scmp.lt.s32.totalorder %s288, 15
        %s290 = scalar_select %p289, %s288, 15
        %p291 = scmp.lt.s32.totalorder %s20, 1
        %s292 = scalar_select %p291, %s20, 1
        %p293 = scmp.lt.s32.totalorder %s290, 15
        %s294 = scalar_select %p293, %s290, 15
        %s295 = smul.addr %s294, 3
        %s296 = smul.addr %s292, 48
        %s297 = sadd.s32 %s295, %s296
        %s298 = smul.addr %s297, 4
        %s299 = scalar_lea.vmem %s2, %s298
        %s300 = sadd.s32 %s21, 1
        %s301 = smul.u32 %s300, 8
        %p302 = scmp.lt.s32.totalorder %s301, 15
        %s303 = scalar_select %p302, %s301, 15
      $region32: #{upsampling_concat_forward.3} parent=19 // pred_fallthru
        _
      // Predicated region
      $region33: #{upsampling_concat_forward.3} parent=19 // pred_check
        %p304 = pneg %p145
      $region34: #{upsampling_concat_forward.3} parent=19 // pred_check_branch
        %306 = sbr.rel (%p304) target = $region36
      $region35: #{upsampling_concat_forward.3} parent=19 // pred_region
        %p307 = scmp.lt.s32.totalorder %s20, 1
        %s308 = scalar_select %p307, %s20, 1
        %s309 = smul.addr %s308, 2
        %s310 = scalar_lea.vmem %s3, %s309
      $region36: #{upsampling_concat_forward.3} parent=19 // pred_fallthru
        _
    $region20: #{upsampling_concat_forward.3} parent=5 // pred_fallthru
      _
    %p311 = scmp.le.s32.totalorder 1, %s13
    %p312 = scmp.lt.s32.totalorder %s13, 5
    %p313 = pnand %p311, %p312
    %p314 = pneg %p313
    // Predicated region
    $region37: #{upsampling_concat_forward.3} parent=5 // pred_check
      _
    $region38: #{upsampling_concat_forward.3} parent=5 // pred_check_branch
      %316 = sbr.rel (%p313) target = $region40
    $region39: #{upsampling_concat_forward.3} parent=5 // pred_region
      %s317 = ssub.s32 %s13, 1
      %s318 = smul.u32 8, %s23
      %p319 = scmp.lt.s32.totalorder %s22, 1
      %s320 = scalar_select %p319, %s22, 1
      %p321 = scmp.lt.s32.totalorder %s318, 15
      %s322 = scalar_select %p321, %s318, 15
      %s323 = smul.addr %s322, 3
      %s324 = smul.addr %s320, 48
      %s325 = sadd.s32 %s323, %s324
      %s326 = smul.addr %s325, 4
      %s327 = scalar_lea.vmem %s0, %s326
      %p328 = pneg %p53
      %p329 = pneg %p50
      %s330 = smul.u32 %s23, 8
      %s331 = ssub.s32 %s330, 1
      %p332 = scmp.gt.s32.totalorder %s331, 0
      %s333 = scalar_select %p332, %s331, 0
      %p334 = scmp.lt.s32.totalorder %s22, 1
      %s335 = scalar_select %p334, %s22, 1
      %p336 = scmp.lt.s32.totalorder %s333, 15
      %s337 = scalar_select %p336, %s333, 15
      %s338 = smul.addr %s337, 3
      %s339 = smul.addr %s335, 48
      %s340 = sadd.s32 %s338, %s339
      %s341 = smul.addr %s340, 4
      %s342 = scalar_lea.vmem %s1, %s341
      %p343 = pneg %p89
      %p344 = pneg %p86
      %s345 = sadd.s32 %s23, 1
      %s346 = smul.u32 %s345, 8
      %p347 = scmp.lt.s32.totalorder %s346, 15
      %s348 = scalar_select %p347, %s346, 15
      %p349 = scmp.lt.s32.totalorder %s22, 1
      %s350 = scalar_select %p349, %s22, 1
      %p351 = scmp.lt.s32.totalorder %s348, 15
      %s352 = scalar_select %p351, %s348, 15
      %s353 = smul.addr %s352, 3
      %s354 = smul.addr %s350, 48
      %s355 = sadd.s32 %s353, %s354
      %s356 = smul.addr %s355, 4
      %s357 = scalar_lea.vmem %s2, %s356
      %p358 = pneg %p125
      %p359 = pneg %p122
      %p360 = scmp.lt.s32.totalorder %s22, 1
      %s361 = scalar_select %p360, %s22, 1
      %s362 = smul.addr %s361, 2
      %s363 = scalar_lea.vmem %s3, %s362
      %p364 = pneg %p151
      %p365 = pneg %p148
      %p366 = pneg %p172
      %p367 = pneg %p169
      %p368 = pneg %p200
      %p369 = pneg %p197
      %s370 = smul.u32 8, %s23
      %p371 = scmp.lt.s32.totalorder %s22, 1
      %s372 = scalar_select %p371, %s22, 1
      %p373 = scmp.lt.s32.totalorder %s370, 15
      %s374 = scalar_select %p373, %s370, 15
      %s375 = smul.addr %s374, 2
      %s376 = smul.addr %s372, 32
      %s377 = sadd.s32 %s375, %s376
      %s378 = smul.addr %s377, 4
      %s379 = scalar_lea.vmem %s5, %s378
      %p380 = pneg %p228
      %p381 = pneg %p225
      %p382 = scmp.lt.s32.totalorder %s22, 1
      %s383 = scalar_select %p382, %s22, 1
      %p384 = scmp.lt.s32.totalorder %s23, 1
      %s385 = scalar_select %p384, %s23, 1
      %s386 = smul.addr %s383, 2
      %s387 = sadd.s32 %s385, %s386
      %s388 = smul.addr %s387, 2
      %s389 = scalar_lea.vmem %s6, %s388
      %s390 = smul.u32 8, %s23
      %p391 = scmp.lt.s32.totalorder %s22, 1
      %s392 = scalar_select %p391, %s22, 1
      %p393 = scmp.lt.s32.totalorder %s390, 15
      %s394 = scalar_select %p393, %s390, 15
      %s395 = smul.addr %s394, 3
      %s396 = smul.addr %s392, 48
      %s397 = sadd.s32 %s395, %s396
      %s398 = smul.addr %s397, 4
      %s399 = scalar_lea.vmem %s0, %s398
      %s400 = smul.u32 8, %s23
      %s401 = smul.u32 %s23, 8
      %s402 = ssub.s32 %s401, 1
      %p403 = scmp.gt.s32.totalorder %s402, 0
      %s404 = scalar_select %p403, %s402, 0
      %p405 = scmp.lt.s32.totalorder %s22, 1
      %s406 = scalar_select %p405, %s22, 1
      %p407 = scmp.lt.s32.totalorder %s404, 15
      %s408 = scalar_select %p407, %s404, 15
      %s409 = smul.addr %s408, 3
      %s410 = smul.addr %s406, 48
      %s411 = sadd.s32 %s409, %s410
      %s412 = smul.addr %s411, 4
      %s413 = scalar_lea.vmem %s1, %s412
      %s414 = smul.u32 %s23, 8
      %s415 = ssub.s32 %s414, 1
      %p416 = scmp.gt.s32.totalorder %s415, 0
      %s417 = scalar_select %p416, %s415, 0
      %s418 = sadd.s32 %s23, 1
      %s419 = smul.u32 %s418, 8
      %p420 = scmp.lt.s32.totalorder %s419, 15
      %s421 = scalar_select %p420, %s419, 15
      %p422 = scmp.lt.s32.totalorder %s22, 1
      %s423 = scalar_select %p422, %s22, 1
      %p424 = scmp.lt.s32.totalorder %s421, 15
      %s425 = scalar_select %p424, %s421, 15
      %s426 = smul.addr %s425, 3
      %s427 = smul.addr %s423, 48
      %s428 = sadd.s32 %s426, %s427
      %s429 = smul.addr %s428, 4
      %s430 = scalar_lea.vmem %s2, %s429
      %s431 = sadd.s32 %s23, 1
      %s432 = smul.u32 %s431, 8
      %p433 = scmp.lt.s32.totalorder %s432, 15
      %s434 = scalar_select %p433, %s432, 15
      %p435 = scmp.lt.s32.totalorder %s22, 1
      %s436 = scalar_select %p435, %s22, 1
      %s437 = smul.addr %s436, 2
      %s438 = scalar_lea.vmem %s3, %s437
      %s439 = smul.u32 8, %s23
      %p440 = scmp.lt.s32.totalorder %s22, 1
      %s441 = scalar_select %p440, %s22, 1
      %p442 = scmp.lt.s32.totalorder %s439, 15
      %s443 = scalar_select %p442, %s439, 15
      %s444 = smul.addr %s443, 2
      %s445 = smul.addr %s441, 32
      %s446 = sadd.s32 %s444, %s445
      %s447 = smul.addr %s446, 4
      %s448 = scalar_lea.vmem %s5, %s447
      %s449 = smul.u32 8, %s23
      %p450 = scmp.lt.s32.totalorder %s22, 1
      %s451 = scalar_select %p450, %s22, 1
      %p452 = scmp.lt.s32.totalorder %s23, 1
      %s453 = scalar_select %p452, %s23, 1
      %s454 = smul.addr %s451, 2
      %s455 = sadd.s32 %s453, %s454
      %s456 = smul.addr %s455, 2
      %s457 = scalar_lea.vmem %s6, %s456
      %v459 = vld [vmem:[%s438] sm:$0x1]
      %v460 = vld [vmem:[%s438 + $0x1] sm:$0x1]
      %v461 = vlaneseq
      %v462 = vshrl.u32 %v461, 7
      %v463 = vadd.s32 %v462, 8
      %v464 = vadd.s32 %v462, 16
      %vm465 = vcmp.ge.s32.totalorder %v462, 1
      %vm466 = vcmp.ge.s32.totalorder %v463, 1
      %vm467 = vcmp.ge.s32.totalorder %v464, 1
      %vm468 = vcmp.le.s32.totalorder %v462, 16
      %vm469 = vcmp.le.s32.totalorder %v463, 16
      %vm470 = vcmp.le.s32.totalorder %v464, 16
      %vm471 = vmand %vm465, %vm468
      %vm472 = vmand %vm466, %vm469
      %vm473 = vmand %vm467, %vm470
      %v474 = vsel %vm471, 1, 0
      %v475 = vsel %vm472, 1, 0
      %v476 = vsel %vm473, 1, 0
      %v477 = vcvt.s32.f32 %v474
      %v478 = vcvt.s32.f32 %v475
      %v479 = vcvt.s32.f32 %v476
      %p480 = scmp.gt.s32.totalorder %s23, 0
      %s481 = scalar_select %p480, 1.0, 0.0
      %p482 = scmp.lt.s32.totalorder %s23, 1
      %s483 = scalar_select %p482, 1.0, 0.0
      %v484 = vld [vmem:[%s399] sm:$0xf]
      %v485 = vld [vmem:[%s399 + $0x4] sm:$0xf]
      %v486 = vld [vmem:[%s399 + $0x8] sm:$0x1]
      %v487 = vld [vmem:[%s399 + $0xc] sm:$0xf]
      %v488 = vld [vmem:[%s399 + $0x10] sm:$0xf]
      %v489 = vld [vmem:[%s399 + $0x14] sm:$0x1]
      %v490 = vld [vmem:[%s399 + $0x18] sm:$0xf]
      %v491 = vld [vmem:[%s399 + $0x1c] sm:$0xf]
      %v492 = vld [vmem:[%s399 + $0x20] sm:$0x1]
      %v493 = vld [vmem:[%s399 + $0x24] sm:$0xf]
      %v494 = vld [vmem:[%s399 + $0x28] sm:$0xf]
      %v495 = vld [vmem:[%s399 + $0x2c] sm:$0x1]
      %v496 = vld [vmem:[%s399 + $0x30] sm:$0xf]
      %v497 = vld [vmem:[%s399 + $0x34] sm:$0xf]
      %v498 = vld [vmem:[%s399 + $0x38] sm:$0x1]
      %v499 = vld [vmem:[%s399 + $0x3c] sm:$0xf]
      %v500 = vld [vmem:[%s399 + $0x40] sm:$0xf]
      %v501 = vld [vmem:[%s399 + $0x44] sm:$0x1]
      %v502 = vld [vmem:[%s399 + $0x48] sm:$0xf]
      %v503 = vld [vmem:[%s399 + $0x4c] sm:$0xf]
      %v504 = vld [vmem:[%s399 + $0x50] sm:$0x1]
      %v505 = vld [vmem:[%s399 + $0x54] sm:$0xf]
      %v506 = vld [vmem:[%s399 + $0x58] sm:$0xf]
      %v507 = vld [vmem:[%s399 + $0x5c] sm:$0x1]
      %v508 = vunpack.c.l.bf16 %v484
      %v509 = vunpack.c.l.bf16 %v485
      %v510 = vunpack.c.l.bf16 %v486
      %v511 = vunpack.c.l.bf16 %v487
      %v512 = vunpack.c.l.bf16 %v488
      %v513 = vunpack.c.l.bf16 %v489
      %v514 = vunpack.c.l.bf16 %v490
      %v515 = vunpack.c.l.bf16 %v491
      %v516 = vunpack.c.l.bf16 %v492
      %v517 = vunpack.c.l.bf16 %v493
      %v518 = vunpack.c.l.bf16 %v494
      %v519 = vunpack.c.l.bf16 %v495
      %v520 = vunpack.c.l.bf16 %v496
      %v521 = vunpack.c.l.bf16 %v497
      %v522 = vunpack.c.l.bf16 %v498
      %v523 = vunpack.c.l.bf16 %v499
      %v524 = vunpack.c.l.bf16 %v500
      %v525 = vunpack.c.l.bf16 %v501
      %v526 = vunpack.c.l.bf16 %v502
      %v527 = vunpack.c.l.bf16 %v503
      %v528 = vunpack.c.l.bf16 %v504
      %v529 = vunpack.c.l.bf16 %v505
      %v530 = vunpack.c.l.bf16 %v506
      %v531 = vunpack.c.l.bf16 %v507
      %v532 = vlaneseq
      %v533 = vshrl.u32 %v532, 7
      %v534 = vsub.s32 0, %v533
      %v535 = vrot.slane %v459, %v534
      %v536 = vsub.f32 %v508, %v535
      %v537 = vsub.f32 %v509, %v535
      %v538 = vsub.f32 %v510, %v535
      %v539 = vsub.f32 %v511, %v535
      %v540 = vsub.f32 %v512, %v535
      %v541 = vsub.f32 %v513, %v535
      %v542 = vsub.f32 %v514, %v535
      %v543 = vsub.f32 %v515, %v535
      %v544 = vsub.f32 %v516, %v535
      %v545 = vsub.f32 %v517, %v535
      %v546 = vsub.f32 %v518, %v535
      %v547 = vsub.f32 %v519, %v535
      %v548 = vsub.f32 %v520, %v535
      %v549 = vsub.f32 %v521, %v535
      %v550 = vsub.f32 %v522, %v535
      %v551 = vsub.f32 %v523, %v535
      %v552 = vsub.f32 %v524, %v535
      %v553 = vsub.f32 %v525, %v535
      %v554 = vsub.f32 %v526, %v535
      %v555 = vsub.f32 %v527, %v535
      %v556 = vsub.f32 %v528, %v535
      %v557 = vsub.f32 %v529, %v535
      %v558 = vsub.f32 %v530, %v535
      %v559 = vsub.f32 %v531, %v535
      %v560 = vlaneseq
      %v561 = vshrl.u32 %v560, 7
      %v562 = vsub.s32 0, %v561
      %v563 = vrot.slane %v460, %v562
      %v564 = vmul.f32 %v536, %v563
      %v565 = vmul.f32 %v537, %v563
      %v566 = vmul.f32 %v538, %v563
      %v567 = vmul.f32 %v539, %v563
      %v568 = vmul.f32 %v540, %v563
      %v569 = vmul.f32 %v541, %v563
      %v570 = vmul.f32 %v542, %v563
      %v571 = vmul.f32 %v543, %v563
      %v572 = vmul.f32 %v544, %v563
      %v573 = vmul.f32 %v545, %v563
      %v574 = vmul.f32 %v546, %v563
      %v575 = vmul.f32 %v547, %v563
      %v576 = vmul.f32 %v548, %v563
      %v577 = vmul.f32 %v549, %v563
      %v578 = vmul.f32 %v550, %v563
      %v579 = vmul.f32 %v551, %v563
      %v580 = vmul.f32 %v552, %v563
      %v581 = vmul.f32 %v553, %v563
      %v582 = vmul.f32 %v554, %v563
      %v583 = vmul.f32 %v555, %v563
      %v584 = vmul.f32 %v556, %v563
      %v585 = vmul.f32 %v557, %v563
      %v586 = vmul.f32 %v558, %v563
      %v587 = vmul.f32 %v559, %v563
      %v588 = vmax.f32 %v564, 0.0
      %v589 = vmax.f32 %v565, 0.0
      %v590 = vmax.f32 %v566, 0.0
      %v591 = vmax.f32 %v567, 0.0
      %v592 = vmax.f32 %v568, 0.0
      %v593 = vmax.f32 %v569, 0.0
      %v594 = vmax.f32 %v570, 0.0
      %v595 = vmax.f32 %v571, 0.0
      %v596 = vmax.f32 %v572, 0.0
      %v597 = vmax.f32 %v573, 0.0
      %v598 = vmax.f32 %v574, 0.0
      %v599 = vmax.f32 %v575, 0.0
      %v600 = vmax.f32 %v576, 0.0
      %v601 = vmax.f32 %v577, 0.0
      %v602 = vmax.f32 %v578, 0.0
      %v603 = vmax.f32 %v579, 0.0
      %v604 = vmax.f32 %v580, 0.0
      %v605 = vmax.f32 %v581, 0.0
      %v606 = vmax.f32 %v582, 0.0
      %v607 = vmax.f32 %v583, 0.0
      %v608 = vmax.f32 %v584, 0.0
      %v609 = vmax.f32 %v585, 0.0
      %v610 = vmax.f32 %v586, 0.0
      %v611 = vmax.f32 %v587, 0.0
      %v612 = vmul.f32 %v588, %v477
      %v613 = vmul.f32 %v589, %v478
      %v614 = vmul.f32 %v590, %v479
      %v615 = vmul.f32 %v591, %v477
      %v616 = vmul.f32 %v592, %v478
      %v617 = vmul.f32 %v593, %v479
      %v618 = vmul.f32 %v594, %v477
      %v619 = vmul.f32 %v595, %v478
      %v620 = vmul.f32 %v596, %v479
      %v621 = vmul.f32 %v597, %v477
      %v622 = vmul.f32 %v598, %v478
      %v623 = vmul.f32 %v599, %v479
      %v624 = vmul.f32 %v600, %v477
      %v625 = vmul.f32 %v601, %v478
      %v626 = vmul.f32 %v602, %v479
      %v627 = vmul.f32 %v603, %v477
      %v628 = vmul.f32 %v604, %v478
      %v629 = vmul.f32 %v605, %v479
      %v630 = vmul.f32 %v606, %v477
      %v631 = vmul.f32 %v607, %v478
      %v632 = vmul.f32 %v608, %v479
      %v633 = vmul.f32 %v609, %v477
      %v634 = vmul.f32 %v610, %v478
      %v635 = vmul.f32 %v611, %v479
      %v636 = vpack.c.bf16 %v613, %v612
      %v637 = vpack.c.bf16 %v614, %v614
      %v638 = vpack.c.bf16 %v616, %v615
      %v639 = vpack.c.bf16 %v617, %v617
      %v640 = vpack.c.bf16 %v619, %v618
      %v641 = vpack.c.bf16 %v620, %v620
      %v642 = vpack.c.bf16 %v622, %v621
      %v643 = vpack.c.bf16 %v623, %v623
      %v644 = vpack.c.bf16 %v625, %v624
      %v645 = vpack.c.bf16 %v626, %v626
      %v646 = vpack.c.bf16 %v628, %v627
      %v647 = vpack.c.bf16 %v629, %v629
      %v648 = vpack.c.bf16 %v631, %v630
      %v649 = vpack.c.bf16 %v632, %v632
      %v650 = vpack.c.bf16 %v634, %v633
      %v651 = vpack.c.bf16 %v635, %v635
      %v668 = vunpack.c.l.b16 %v636
      %v669 = vunpack.c.h.b16 %v636
      %v670 = vunpack.c.l.b16 %v637
      %v671 = vunpack.c.l.b16 %v638
      %v672 = vunpack.c.h.b16 %v638
      %v673 = vunpack.c.l.b16 %v639
      %v674 = vunpack.c.l.b16 %v640
      %v675 = vunpack.c.h.b16 %v640
      %v676 = vunpack.c.l.b16 %v641
      %v677 = vunpack.c.l.b16 %v642
      %v678 = vunpack.c.h.b16 %v642
      %v679 = vunpack.c.l.b16 %v643
      %v680 = vunpack.c.l.b16 %v644
      %v681 = vunpack.c.h.b16 %v644
      %v682 = vunpack.c.l.b16 %v645
      %v683 = vunpack.c.l.b16 %v646
      %v684 = vunpack.c.h.b16 %v646
      %v685 = vunpack.c.l.b16 %v647
      %v686 = vunpack.c.l.b16 %v648
      %v687 = vunpack.c.h.b16 %v648
      %v688 = vunpack.c.l.b16 %v649
      %v689 = vunpack.c.l.b16 %v650
      %v690 = vunpack.c.h.b16 %v650
      %v691 = vunpack.c.l.b16 %v651
      %v692 = vpack.c.b16 %v668, %v668
      %v693 = vpack.c.b16 %v669, %v669
      %v694 = vpack.c.b16 %v670, %v670
      %v695 = vpack.c.b16 %v671, %v671
      %v696 = vpack.c.b16 %v672, %v672
      %v697 = vpack.c.b16 %v673, %v673
      %v698 = vpack.c.b16 %v674, %v674
      %v699 = vpack.c.b16 %v675, %v675
      %v700 = vpack.c.b16 %v676, %v676
      %v701 = vpack.c.b16 %v677, %v677
      %v702 = vpack.c.b16 %v678, %v678
      %v703 = vpack.c.b16 %v679, %v679
      %v704 = vpack.c.b16 %v680, %v680
      %v705 = vpack.c.b16 %v681, %v681
      %v706 = vpack.c.b16 %v682, %v682
      %v707 = vpack.c.b16 %v683, %v683
      %v708 = vpack.c.b16 %v684, %v684
      %v709 = vpack.c.b16 %v685, %v685
      %v710 = vpack.c.b16 %v686, %v686
      %v711 = vpack.c.b16 %v687, %v687
      %v712 = vpack.c.b16 %v688, %v688
      %v713 = vpack.c.b16 %v689, %v689
      %v714 = vpack.c.b16 %v690, %v690
      %v715 = vpack.c.b16 %v691, %v691
      %s740 = scalar_lea.vmem [#allocation2], 12
      %741 = vst [vmem:[%s740] sm:$0xf] %v692
      %742 = vst [vmem:[%s740 + $0x4] sm:$0xf] %v693
      %743 = vst [vmem:[%s740 + $0x8] sm:$0x1] %v694
      %744 = vst [vmem:[%s740 + $0xc] sm:$0xf] %v695
      %745 = vst [vmem:[%s740 + $0x10] sm:$0xf] %v696
      %746 = vst [vmem:[%s740 + $0x14] sm:$0x1] %v697
      %747 = vst [vmem:[%s740 + $0x18] sm:$0xf] %v698
      %748 = vst [vmem:[%s740 + $0x1c] sm:$0xf] %v699
      %749 = vst [vmem:[%s740 + $0x20] sm:$0x1] %v700
      %750 = vst [vmem:[%s740 + $0x24] sm:$0xf] %v701
      %751 = vst [vmem:[%s740 + $0x28] sm:$0xf] %v702
      %752 = vst [vmem:[%s740 + $0x2c] sm:$0x1] %v703
      %753 = vst [vmem:[%s740 + $0x30] sm:$0xf] %v704
      %754 = vst [vmem:[%s740 + $0x34] sm:$0xf] %v705
      %755 = vst [vmem:[%s740 + $0x38] sm:$0x1] %v706
      %756 = vst [vmem:[%s740 + $0x3c] sm:$0xf] %v707
      %757 = vst [vmem:[%s740 + $0x40] sm:$0xf] %v708
      %758 = vst [vmem:[%s740 + $0x44] sm:$0x1] %v709
      %759 = vst [vmem:[%s740 + $0x48] sm:$0xf] %v710
      %760 = vst [vmem:[%s740 + $0x4c] sm:$0xf] %v711
      %761 = vst [vmem:[%s740 + $0x50] sm:$0x1] %v712
      %762 = vst [vmem:[%s740 + $0x54] sm:$0xf] %v713
      %763 = vst [vmem:[%s740 + $0x58] sm:$0xf] %v714
      %764 = vst [vmem:[%s740 + $0x5c] sm:$0x1] %v715
      %v765 = vld [vmem:[%s413] sm:$0xf]
      %v766 = vld [vmem:[%s413 + $0x4] sm:$0xf]
      %v767 = vld [vmem:[%s413 + $0x8] sm:$0x1]
      %v768 = vunpack.c.l.bf16 %v765
      %v769 = vunpack.c.l.bf16 %v766
      %v770 = vunpack.c.l.bf16 %v767
      %v771 = vsub.f32 %v768, %v535
      %v772 = vsub.f32 %v769, %v535
      %v773 = vsub.f32 %v770, %v535
      %v774 = vmul.f32 %v771, %v563
      %v775 = vmul.f32 %v772, %v563
      %v776 = vmul.f32 %v773, %v563
      %v777 = vmax.f32 %v774, 0.0
      %v778 = vmax.f32 %v775, 0.0
      %v779 = vmax.f32 %v776, 0.0
      %v780 = vmul.f32 %v777, %v477
      %v781 = vmul.f32 %v778, %v478
      %v782 = vmul.f32 %v779, %v479
      %v783 = vstv %s481
      %v784 = vmul.f32 %v780, %v783
      %v785 = vmul.f32 %v781, %v783
      %v786 = vmul.f32 %v782, %v783
      %v787 = vpack.c.bf16 %v785, %v784
      %v788 = vpack.c.bf16 %v786, %v786
      %v791 = vunpack.c.l.b16 %v787
      %v792 = vunpack.c.h.b16 %v787
      %v793 = vunpack.c.l.b16 %v788
      %v794 = vpack.c.b16 %v791, %v791
      %v795 = vpack.c.b16 %v792, %v792
      %v796 = vpack.c.b16 %v793, %v793
      %800 = vst [vmem:[#allocation2] sm:$0xf] %v794
      %801 = vst [vmem:[#allocation2 + $0x4] sm:$0xf] %v795
      %802 = vst [vmem:[#allocation2 + $0x8] sm:$0x1] %v796
      %v803 = vld [vmem:[%s430] sm:$0xf]
      %v804 = vld [vmem:[%s430 + $0x4] sm:$0xf]
      %v805 = vld [vmem:[%s430 + $0x8] sm:$0x1]
      %v806 = vunpack.c.l.bf16 %v803
      %v807 = vunpack.c.l.bf16 %v804
      %v808 = vunpack.c.l.bf16 %v805
      %v809 = vsub.f32 %v806, %v535
      %v810 = vsub.f32 %v807, %v535
      %v811 = vsub.f32 %v808, %v535
      %v812 = vmul.f32 %v809, %v563
      %v813 = vmul.f32 %v810, %v563
      %v814 = vmul.f32 %v811, %v563
      %v815 = vmax.f32 %v812, 0.0
      %v816 = vmax.f32 %v813, 0.0
      %v817 = vmax.f32 %v814, 0.0
      %v818 = vmul.f32 %v815, %v477
      %v819 = vmul.f32 %v816, %v478
      %v820 = vmul.f32 %v817, %v479
      %v821 = vstv %s483
      %v822 = vmul.f32 %v818, %v821
      %v823 = vmul.f32 %v819, %v821
      %v824 = vmul.f32 %v820, %v821
      %v825 = vpack.c.bf16 %v823, %v822
      %v826 = vpack.c.bf16 %v824, %v824
      %v829 = vunpack.c.l.b16 %v825
      %v830 = vunpack.c.h.b16 %v825
      %v831 = vunpack.c.l.b16 %v826
      %v832 = vpack.c.b16 %v829, %v829
      %v833 = vpack.c.b16 %v830, %v830
      %v834 = vpack.c.b16 %v831, %v831
      %s838 = scalar_lea.vmem [#allocation2], 108
      %839 = vst [vmem:[%s838] sm:$0xf] %v832
      %840 = vst [vmem:[%s838 + $0x4] sm:$0xf] %v833
      %841 = vst [vmem:[%s838 + $0x8] sm:$0x1] %v834
      %v842 = vld [vmem:[#allocation2] sm:$0xf]
      %v843 = vld [vmem:[#allocation2 + $0x4] sm:$0xf]
      %v844 = vld [vmem:[#allocation2 + $0xc] sm:$0xf]
      %v845 = vld [vmem:[#allocation2 + $0x10] sm:$0xf]
      %v846 = vld [vmem:[#allocation2 + $0x18] sm:$0xf]
      %v847 = vld [vmem:[#allocation2 + $0x1c] sm:$0xf]
      %v848 = vld [vmem:[#allocation2 + $0x24] sm:$0xf]
      %v849 = vld [vmem:[#allocation2 + $0x28] sm:$0xf]
      %v850 = vld [vmem:[#allocation2 + $0x30] sm:$0xf]
      %v851 = vld [vmem:[#allocation2 + $0x34] sm:$0xf]
      %v852 = vld [vmem:[#allocation2 + $0x3c] sm:$0xf]
      %v853 = vld [vmem:[#allocation2 + $0x40] sm:$0xf]
      %v854 = vld [vmem:[#allocation2 + $0x48] sm:$0xf]
      %v855 = vld [vmem:[#allocation2 + $0x4c] sm:$0xf]
      %v856 = vld [vmem:[#allocation2 + $0x54] sm:$0xf]
      %v857 = vld [vmem:[#allocation2 + $0x58] sm:$0xf]
      %v858 = vld [vmem:[%s4] sm:$0xf]
      %v859 = vld [vmem:[%s4 + $0x4] sm:$0xf]
      %v860 = vld [vmem:[%s4 + $0x8] sm:$0xf]
      %v861 = vld [vmem:[%s4 + $0xc] sm:$0xf]
      %v862 = vld [vmem:[%s4 + $0x10] sm:$0xf]
      %v863 = vld [vmem:[%s4 + $0x14] sm:$0xf]
      %v864 = vld [vmem:[%s4 + $0x18] sm:$0xf]
      %v865 = vld [vmem:[%s4 + $0x1c] sm:$0xf]
      %v866 = vld [vmem:[%s4 + $0x20] sm:$0xf]
      %v867 = vld [vmem:[%s4 + $0x24] sm:$0xf]
      %v868 = vld [vmem:[%s4 + $0x28] sm:$0xf]
      %v869 = vld [vmem:[%s4 + $0x2c] sm:$0xf]
      %v870 = vld [vmem:[%s4 + $0x30] sm:$0xf]
      %v871 = vld [vmem:[%s4 + $0x34] sm:$0xf]
      %v872 = vld [vmem:[%s4 + $0x38] sm:$0xf]
      %v873 = vld [vmem:[%s4 + $0x3c] sm:$0xf]
      %v874 = vld [vmem:[#allocation2 + $0x8] sm:$0x1]
      %v875 = vld [vmem:[#allocation2 + $0x14] sm:$0x1]
      %v876 = vld [vmem:[#allocation2 + $0x20] sm:$0x1]
      %v877 = vld [vmem:[#allocation2 + $0x2c] sm:$0x1]
      %v878 = vld [vmem:[#allocation2 + $0x38] sm:$0x1]
      %v879 = vld [vmem:[#allocation2 + $0x44] sm:$0x1]
      %v880 = vld [vmem:[#allocation2 + $0x50] sm:$0x1]
      %v881 = vld [vmem:[#allocation2 + $0x5c] sm:$0x1]
      %vm882 = vsmask.f32 3328
      %vm883 = vsmask.f32 7440
      %vm884 = vmor %vm882, %vm883
      %v886 = vshrl.u32 %v842, 16
      %v888 = vrot.slane %v886, 4
      %v889 = vshll.u32 %v842, 16
      %v891 = vrot.slane %v889, 5
      %v892 = vor.u32 %v888, %v891
      %v893 = vrot.slane %v892, 4
      %v895 = vshll.u32 %v843, 16
      %v897 = vrot.slane %v895, 5
      %v898 = vsel %vm884, %v893, %v897
      %v899 = vshrl.u32 %v843, 16
      %v901 = vrot.slane %v899, 4
      %v902 = vor.u32 %v901, %v897
      %v903 = vrot.slane %v902, 4
      %v905 = vshll.u32 %v874, 16
      %v907 = vrot.slane %v905, 5
      %v908 = vsel %vm884, %v903, %v907
      %v910 = vshrl.u32 %v844, 16
      %v912 = vrot.slane %v910, 4
      %v913 = vshll.u32 %v844, 16
      %v915 = vrot.slane %v913, 5
      %v916 = vor.u32 %v912, %v915
      %v917 = vrot.slane %v916, 4
      %v919 = vshll.u32 %v845, 16
      %v921 = vrot.slane %v919, 5
      %v922 = vsel %vm884, %v917, %v921
      %v923 = vshrl.u32 %v845, 16
      %v925 = vrot.slane %v923, 4
      %v926 = vor.u32 %v925, %v921
      %v927 = vrot.slane %v926, 4
      %v929 = vshll.u32 %v875, 16
      %v931 = vrot.slane %v929, 5
      %v932 = vsel %vm884, %v927, %v931
      %v934 = vshrl.u32 %v846, 16
      %v936 = vrot.slane %v934, 4
      %v937 = vshll.u32 %v846, 16
      %v939 = vrot.slane %v937, 5
      %v940 = vor.u32 %v936, %v939
      %v941 = vrot.slane %v940, 4
      %v943 = vshll.u32 %v847, 16
      %v945 = vrot.slane %v943, 5
      %v946 = vsel %vm884, %v941, %v945
      %v947 = vshrl.u32 %v847, 16
      %v949 = vrot.slane %v947, 4
      %v950 = vor.u32 %v949, %v945
      %v951 = vrot.slane %v950, 4
      %v953 = vshll.u32 %v876, 16
      %v955 = vrot.slane %v953, 5
      %v956 = vsel %vm884, %v951, %v955
      %v958 = vshrl.u32 %v848, 16
      %v960 = vrot.slane %v958, 4
      %v961 = vshll.u32 %v848, 16
      %v963 = vrot.slane %v961, 5
      %v964 = vor.u32 %v960, %v963
      %v965 = vrot.slane %v964, 4
      %v967 = vshll.u32 %v849, 16
      %v969 = vrot.slane %v967, 5
      %v970 = vsel %vm884, %v965, %v969
      %v971 = vshrl.u32 %v849, 16
      %v973 = vrot.slane %v971, 4
      %v974 = vor.u32 %v973, %v969
      %v975 = vrot.slane %v974, 4
      %v977 = vshll.u32 %v877, 16
      %v979 = vrot.slane %v977, 5
      %v980 = vsel %vm884, %v975, %v979
      %v982 = vshrl.u32 %v850, 16
      %v984 = vrot.slane %v982, 4
      %v985 = vshll.u32 %v850, 16
      %v987 = vrot.slane %v985, 5
      %v988 = vor.u32 %v984, %v987
      %v989 = vrot.slane %v988, 4
      %v991 = vshll.u32 %v851, 16
      %v993 = vrot.slane %v991, 5
      %v994 = vsel %vm884, %v989, %v993
      %v995 = vshrl.u32 %v851, 16
      %v997 = vrot.slane %v995, 4
      %v998 = vor.u32 %v997, %v993
      %v999 = vrot.slane %v998, 4
      %v1001 = vshll.u32 %v878, 16
      %v1003 = vrot.slane %v1001, 5
      %v1004 = vsel %vm884, %v999, %v1003
      %v1006 = vshrl.u32 %v852, 16
      %v1008 = vrot.slane %v1006, 4
      %v1009 = vshll.u32 %v852, 16
      %v1011 = vrot.slane %v1009, 5
      %v1012 = vor.u32 %v1008, %v1011
      %v1013 = vrot.slane %v1012, 4
      %v1015 = vshll.u32 %v853, 16
      %v1017 = vrot.slane %v1015, 5
      %v1018 = vsel %vm884, %v1013, %v1017
      %v1019 = vshrl.u32 %v853, 16
      %v1021 = vrot.slane %v1019, 4
      %v1022 = vor.u32 %v1021, %v1017
      %v1023 = vrot.slane %v1022, 4
      %v1025 = vshll.u32 %v879, 16
      %v1027 = vrot.slane %v1025, 5
      %v1028 = vsel %vm884, %v1023, %v1027
      %v1030 = vshrl.u32 %v854, 16
      %v1032 = vrot.slane %v1030, 4
      %v1033 = vshll.u32 %v854, 16
      %v1035 = vrot.slane %v1033, 5
      %v1036 = vor.u32 %v1032, %v1035
      %v1037 = vrot.slane %v1036, 4
      %v1039 = vshll.u32 %v855, 16
      %v1041 = vrot.slane %v1039, 5
      %v1042 = vsel %vm884, %v1037, %v1041
      %v1043 = vshrl.u32 %v855, 16
      %v1045 = vrot.slane %v1043, 4
      %v1046 = vor.u32 %v1045, %v1041
      %v1047 = vrot.slane %v1046, 4
      %v1049 = vshll.u32 %v880, 16
      %v1051 = vrot.slane %v1049, 5
      %v1052 = vsel %vm884, %v1047, %v1051
      %v1054 = vshrl.u32 %v856, 16
      %v1056 = vrot.slane %v1054, 4
      %v1057 = vshll.u32 %v856, 16
      %v1059 = vrot.slane %v1057, 5
      %v1060 = vor.u32 %v1056, %v1059
      %v1061 = vrot.slane %v1060, 4
      %v1063 = vshll.u32 %v857, 16
      %v1065 = vrot.slane %v1063, 5
      %v1066 = vsel %vm884, %v1061, %v1065
      %v1067 = vshrl.u32 %v857, 16
      %v1069 = vrot.slane %v1067, 4
      %v1070 = vor.u32 %v1069, %v1065
      %v1071 = vrot.slane %v1070, 4
      %v1073 = vshll.u32 %v881, 16
      %v1075 = vrot.slane %v1073, 5
      %v1076 = vsel %vm884, %v1071, %v1075
      %s1077 = scalar_lea.vmem %s4, 64
      %v1078 = vld [vmem:[%s1077] sm:$0xf]
      %v1079 = vld [vmem:[%s1077 + $0x4] sm:$0xf]
      %v1080 = vld [vmem:[%s1077 + $0x8] sm:$0xf]
      %v1081 = vld [vmem:[%s1077 + $0xc] sm:$0xf]
      %v1082 = vld [vmem:[%s1077 + $0x10] sm:$0xf]
      %v1083 = vld [vmem:[%s1077 + $0x14] sm:$0xf]
      %v1084 = vld [vmem:[%s1077 + $0x18] sm:$0xf]
      %v1085 = vld [vmem:[%s1077 + $0x1c] sm:$0xf]
      %v1086 = vld [vmem:[%s1077 + $0x20] sm:$0xf]
      %v1087 = vld [vmem:[%s1077 + $0x24] sm:$0xf]
      %v1088 = vld [vmem:[%s1077 + $0x28] sm:$0xf]
      %v1089 = vld [vmem:[%s1077 + $0x2c] sm:$0xf]
      %v1090 = vld [vmem:[%s1077 + $0x30] sm:$0xf]
      %v1091 = vld [vmem:[%s1077 + $0x34] sm:$0xf]
      %v1092 = vld [vmem:[%s1077 + $0x38] sm:$0xf]
      %v1093 = vld [vmem:[%s1077 + $0x3c] sm:$0xf]
      %v1094 = vunpack.c.l.b16 %v898
      %v1095 = vunpack.c.l.b16 %v908
      %v1096 = vunpack.c.l.b16 %v922
      %v1097 = vunpack.c.l.b16 %v932
      %v1098 = vunpack.c.l.b16 %v946
      %v1099 = vunpack.c.l.b16 %v956
      %v1100 = vunpack.c.l.b16 %v970
      %v1101 = vunpack.c.l.b16 %v980
      %v1102 = vunpack.c.l.b16 %v994
      %v1103 = vunpack.c.l.b16 %v1004
      %v1104 = vunpack.c.l.b16 %v1018
      %v1105 = vunpack.c.l.b16 %v1028
      %v1106 = vunpack.c.l.b16 %v1042
      %v1107 = vunpack.c.l.b16 %v1052
      %v1108 = vunpack.c.l.b16 %v1066
      %v1109 = vunpack.c.l.b16 %v1076
      %v1110 = vpack.c.b16 %v1095, %v1094
      %v1111 = vpack.c.b16 %v1097, %v1096
      %v1112 = vpack.c.b16 %v1099, %v1098
      %v1113 = vpack.c.b16 %v1101, %v1100
      %v1114 = vpack.c.b16 %v1103, %v1102
      %v1115 = vpack.c.b16 %v1105, %v1104
      %v1116 = vpack.c.b16 %v1107, %v1106
      %v1117 = vpack.c.b16 %v1109, %v1108
      %v1142 = vunpack.c.l.b16 %v1078
      %v1143 = vunpack.c.l.b16 %v1079
      %v1144 = vunpack.c.l.b16 %v1080
      %v1145 = vunpack.c.l.b16 %v1081
      %v1146 = vunpack.c.l.b16 %v1082
      %v1147 = vunpack.c.l.b16 %v1083
      %v1148 = vunpack.c.l.b16 %v1084
      %v1149 = vunpack.c.l.b16 %v1085
      %v1150 = vunpack.c.l.b16 %v1086
      %v1151 = vunpack.c.l.b16 %v1087
      %v1152 = vunpack.c.l.b16 %v1088
      %v1153 = vunpack.c.l.b16 %v1089
      %v1154 = vunpack.c.l.b16 %v1090
      %v1155 = vunpack.c.l.b16 %v1091
      %v1156 = vunpack.c.l.b16 %v1092
      %v1157 = vunpack.c.l.b16 %v1093
      %v1158 = vpack.c.b16 %v1143, %v1142
      %v1159 = vpack.c.b16 %v1145, %v1144
      %v1160 = vpack.c.b16 %v1147, %v1146
      %v1161 = vpack.c.b16 %v1149, %v1148
      %v1162 = vpack.c.b16 %v1151, %v1150
      %v1163 = vpack.c.b16 %v1153, %v1152
      %v1164 = vpack.c.b16 %v1155, %v1154
      %v1165 = vpack.c.b16 %v1157, %v1156
      %1174 = vmatprep.subr.bf16.mxu0 0
      %1175 = vmatpush1.bf16.msra.mxu0 %v1165
      %1176 = vmatprep.subr.bf16.mxu0 0
      %1177 = vmatpush1.bf16.msra.mxu0 %v1164
      %1178 = vmatprep.subr.bf16.mxu0 0
      %1179 = vmatpush1.bf16.msra.mxu0 %v1163
      %1180 = vmatprep.subr.bf16.mxu0 0
      %1181 = vmatpush1.bf16.msra.mxu0 %v1162
      %1182 = vmatprep.subr.bf16.mxu0 0
      %1183 = vmatpush1.bf16.msra.mxu0 %v1161
      %1184 = vmatprep.subr.bf16.mxu0 0
      %1185 = vmatpush1.bf16.msra.mxu0 %v1160
      %1186 = vmatprep.subr.bf16.mxu0 0
      %1187 = vmatpush1.bf16.msra.mxu0 %v1159
      %1188 = vmatprep.subr.bf16.mxu0 0
      %1189 = vmatpush1.bf16.msra.mxu0 %v1158
      %1190 = vmatprep.subr.bf16.mxu0 0
      %1191 = vmatpush2.bf16.msra.mxu0 0
      %1192 = vmatprep.subr.bf16.mxu0 0
      %1193 = vmatpush2.bf16.msra.mxu0 0
      %1194 = vmatprep.subr.bf16.mxu0 0
      %1195 = vmatpush2.bf16.msra.mxu0 0
      %1196 = vmatprep.subr.bf16.mxu0 0
      %1197 = vmatpush2.bf16.msra.mxu0 0
      %1198 = vmatprep.subr.bf16.mxu0 0
      %1199 = vmatpush2.bf16.msra.mxu0 0
      %1200 = vmatprep.subr.bf16.mxu0 0
      %1201 = vmatpush2.bf16.msra.mxu0 0
      %1202 = vmatprep.subr.bf16.mxu0 0
      %1203 = vmatpush2.bf16.msra.mxu0 0
      %1204 = vmatprep.subr.bf16.mxu0 0
      %1205 = vmatpush2.bf16.msra.mxu0 0
      %1206 = vmatprep.mubr.bf16.mxu0 0
      %1207 = vmatmul.mubr.bf16.gmra.mxu0 %v1110
      %v1208 = vpop.f32.mrf.mxu0
      %v1209 = vadd.f32 0.0, %v1208
      %v1210 = vpop.f32.mrf.mxu0
      %v1211 = vpop.f32.mrf.mxu0
      %v1212 = vadd.f32 0.0, %v1211
      %v1213 = vpop.f32.mrf.mxu0
      %1214 = vmatprep.mubr.bf16.mxu0 0
      %1215 = vmatmul.mubr.bf16.gmra.mxu0 %v1111
      %v1216 = vpop.f32.mrf.mxu0
      %v1217 = vadd.f32 0.0, %v1216
      %v1218 = vpop.f32.mrf.mxu0
      %v1219 = vpop.f32.mrf.mxu0
      %v1220 = vadd.f32 0.0, %v1219
      %v1221 = vpop.f32.mrf.mxu0
      %1222 = vmatprep.mubr.bf16.mxu0 0
      %1223 = vmatmul.mubr.bf16.gmra.mxu0 %v1112
      %v1224 = vpop.f32.mrf.mxu0
      %v1225 = vadd.f32 0.0, %v1224
      %v1226 = vpop.f32.mrf.mxu0
      %v1227 = vpop.f32.mrf.mxu0
      %v1228 = vadd.f32 0.0, %v1227
      %v1229 = vpop.f32.mrf.mxu0
      %1230 = vmatprep.mubr.bf16.mxu0 0
      %1231 = vmatmul.mubr.bf16.gmra.mxu0 %v1113
      %v1232 = vpop.f32.mrf.mxu0
      %v1233 = vadd.f32 0.0, %v1232
      %v1234 = vpop.f32.mrf.mxu0
      %v1235 = vpop.f32.mrf.mxu0
      %v1236 = vadd.f32 0.0, %v1235
      %v1237 = vpop.f32.mrf.mxu0
      %1238 = vmatprep.mubr.bf16.mxu0 0
      %1239 = vmatmul.mubr.bf16.gmra.mxu0 %v1114
      %v1240 = vpop.f32.mrf.mxu0
      %v1241 = vadd.f32 0.0, %v1240
      %v1242 = vpop.f32.mrf.mxu0
      %v1243 = vpop.f32.mrf.mxu0
      %v1244 = vadd.f32 0.0, %v1243
      %v1245 = vpop.f32.mrf.mxu0
      %1246 = vmatprep.mubr.bf16.mxu0 0
      %1247 = vmatmul.mubr.bf16.gmra.mxu0 %v1115
      %v1248 = vpop.f32.mrf.mxu0
      %v1249 = vadd.f32 0.0, %v1248
      %v1250 = vpop.f32.mrf.mxu0
      %v1251 = vpop.f32.mrf.mxu0
      %v1252 = vadd.f32 0.0, %v1251
      %v1253 = vpop.f32.mrf.mxu0
      %1254 = vmatprep.mubr.bf16.mxu0 0
      %1255 = vmatmul.mubr.bf16.gmra.mxu0 %v1116
      %v1256 = vpop.f32.mrf.mxu0
      %v1257 = vadd.f32 0.0, %v1256
      %v1258 = vpop.f32.mrf.mxu0
      %v1259 = vpop.f32.mrf.mxu0
      %v1260 = vadd.f32 0.0, %v1259
      %v1261 = vpop.f32.mrf.mxu0
      %1262 = vmatprep.mubr.bf16.mxu0 0
      %1263 = vmatmul.mubr.bf16.gmra.mxu0 %v1117
      %v1264 = vpop.f32.mrf.mxu0
      %v1265 = vadd.f32 0.0, %v1264
      %v1266 = vpop.f32.mrf.mxu0
      %v1267 = vpop.f32.mrf.mxu0
      %v1268 = vadd.f32 0.0, %v1267
      %v1269 = vpop.f32.mrf.mxu0
      %1270 = vdwg.mxu0
      %v1287 = vunpack.c.l.b16 %v842
      %v1288 = vunpack.c.l.b16 %v843
      %v1289 = vunpack.c.l.b16 %v844
      %v1290 = vunpack.c.l.b16 %v845
      %v1291 = vunpack.c.l.b16 %v846
      %v1292 = vunpack.c.l.b16 %v847
      %v1293 = vunpack.c.l.b16 %v848
      %v1294 = vunpack.c.l.b16 %v849
      %v1295 = vunpack.c.l.b16 %v850
      %v1296 = vunpack.c.l.b16 %v851
      %v1297 = vunpack.c.l.b16 %v852
      %v1298 = vunpack.c.l.b16 %v853
      %v1299 = vunpack.c.l.b16 %v854
      %v1300 = vunpack.c.l.b16 %v855
      %v1301 = vunpack.c.l.b16 %v856
      %v1302 = vunpack.c.l.b16 %v857
      %v1303 = vpack.c.b16 %v1288, %v1287
      %v1304 = vpack.c.b16 %v1290, %v1289
      %v1305 = vpack.c.b16 %v1292, %v1291
      %v1306 = vpack.c.b16 %v1294, %v1293
      %v1307 = vpack.c.b16 %v1296, %v1295
      %v1308 = vpack.c.b16 %v1298, %v1297
      %v1309 = vpack.c.b16 %v1300, %v1299
      %v1310 = vpack.c.b16 %v1302, %v1301
      %v1335 = vunpack.c.l.b16 %v858
      %v1336 = vunpack.c.l.b16 %v859
      %v1337 = vunpack.c.l.b16 %v860
      %v1338 = vunpack.c.l.b16 %v861
      %v1339 = vunpack.c.l.b16 %v862
      %v1340 = vunpack.c.l.b16 %v863
      %v1341 = vunpack.c.l.b16 %v864
      %v1342 = vunpack.c.l.b16 %v865
      %v1343 = vunpack.c.l.b16 %v866
      %v1344 = vunpack.c.l.b16 %v867
      %v1345 = vunpack.c.l.b16 %v868
      %v1346 = vunpack.c.l.b16 %v869
      %v1347 = vunpack.c.l.b16 %v870
      %v1348 = vunpack.c.l.b16 %v871
      %v1349 = vunpack.c.l.b16 %v872
      %v1350 = vunpack.c.l.b16 %v873
      %v1351 = vpack.c.b16 %v1336, %v1335
      %v1352 = vpack.c.b16 %v1338, %v1337
      %v1353 = vpack.c.b16 %v1340, %v1339
      %v1354 = vpack.c.b16 %v1342, %v1341
      %v1355 = vpack.c.b16 %v1344, %v1343
      %v1356 = vpack.c.b16 %v1346, %v1345
      %v1357 = vpack.c.b16 %v1348, %v1347
      %v1358 = vpack.c.b16 %v1350, %v1349
      %1367 = vmatprep.subr.bf16.mxu0 0
      %1368 = vmatpush1.bf16.msra.mxu0 %v1358
      %1369 = vmatprep.subr.bf16.mxu0 0
      %1370 = vmatpush1.bf16.msra.mxu0 %v1357
      %1371 = vmatprep.subr.bf16.mxu0 0
      %1372 = vmatpush1.bf16.msra.mxu0 %v1356
      %1373 = vmatprep.subr.bf16.mxu0 0
      %1374 = vmatpush1.bf16.msra.mxu0 %v1355
      %1375 = vmatprep.subr.bf16.mxu0 0
      %1376 = vmatpush1.bf16.msra.mxu0 %v1354
      %1377 = vmatprep.subr.bf16.mxu0 0
      %1378 = vmatpush1.bf16.msra.mxu0 %v1353
      %1379 = vmatprep.subr.bf16.mxu0 0
      %1380 = vmatpush1.bf16.msra.mxu0 %v1352
      %1381 = vmatprep.subr.bf16.mxu0 0
      %1382 = vmatpush1.bf16.msra.mxu0 %v1351
      %1383 = vmatprep.subr.bf16.mxu0 0
      %1384 = vmatpush2.bf16.msra.mxu0 0
      %1385 = vmatprep.subr.bf16.mxu0 0
      %1386 = vmatpush2.bf16.msra.mxu0 0
      %1387 = vmatprep.subr.bf16.mxu0 0
      %1388 = vmatpush2.bf16.msra.mxu0 0
      %1389 = vmatprep.subr.bf16.mxu0 0
      %1390 = vmatpush2.bf16.msra.mxu0 0
      %1391 = vmatprep.subr.bf16.mxu0 0
      %1392 = vmatpush2.bf16.msra.mxu0 0
      %1393 = vmatprep.subr.bf16.mxu0 0
      %1394 = vmatpush2.bf16.msra.mxu0 0
      %1395 = vmatprep.subr.bf16.mxu0 0
      %1396 = vmatpush2.bf16.msra.mxu0 0
      %1397 = vmatprep.subr.bf16.mxu0 0
      %1398 = vmatpush2.bf16.msra.mxu0 0
      %1399 = vmatprep.mubr.bf16.mxu0 0
      %1400 = vmatmul.mubr.bf16.gmra.mxu0 %v1303
      %v1401 = vpop.f32.mrf.mxu0
      %v1402 = vadd.f32 %v1209, %v1401
      %v1403 = vpop.f32.mrf.mxu0
      %v1404 = vpop.f32.mrf.mxu0
      %v1405 = vadd.f32 %v1212, %v1404
      %v1406 = vpop.f32.mrf.mxu0
      %1407 = vmatprep.mubr.bf16.mxu0 0
      %1408 = vmatmul.mubr.bf16.gmra.mxu0 %v1304
      %v1409 = vpop.f32.mrf.mxu0
      %v1410 = vadd.f32 %v1217, %v1409
      %v1411 = vpop.f32.mrf.mxu0
      %v1412 = vpop.f32.mrf.mxu0
      %v1413 = vadd.f32 %v1220, %v1412
      %v1414 = vpop.f32.mrf.mxu0
      %1415 = vmatprep.mubr.bf16.mxu0 0
      %1416 = vmatmul.mubr.bf16.gmra.mxu0 %v1305
      %v1417 = vpop.f32.mrf.mxu0
      %v1418 = vadd.f32 %v1225, %v1417
      %v1419 = vpop.f32.mrf.mxu0
      %v1420 = vpop.f32.mrf.mxu0
      %v1421 = vadd.f32 %v1228, %v1420
      %v1422 = vpop.f32.mrf.mxu0
      %1423 = vmatprep.mubr.bf16.mxu0 0
      %1424 = vmatmul.mubr.bf16.gmra.mxu0 %v1306
      %v1425 = vpop.f32.mrf.mxu0
      %v1426 = vadd.f32 %v1233, %v1425
      %v1427 = vpop.f32.mrf.mxu0
      %v1428 = vpop.f32.mrf.mxu0
      %v1429 = vadd.f32 %v1236, %v1428
      %v1430 = vpop.f32.mrf.mxu0
      %1431 = vmatprep.mubr.bf16.mxu0 0
      %1432 = vmatmul.mubr.bf16.gmra.mxu0 %v1307
      %v1433 = vpop.f32.mrf.mxu0
      %v1434 = vadd.f32 %v1241, %v1433
      %v1435 = vpop.f32.mrf.mxu0
      %v1436 = vpop.f32.mrf.mxu0
      %v1437 = vadd.f32 %v1244, %v1436
      %v1438 = vpop.f32.mrf.mxu0
      %1439 = vmatprep.mubr.bf16.mxu0 0
      %1440 = vmatmul.mubr.bf16.gmra.mxu0 %v1308
      %v1441 = vpop.f32.mrf.mxu0
      %v1442 = vadd.f32 %v1249, %v1441
      %v1443 = vpop.f32.mrf.mxu0
      %v1444 = vpop.f32.mrf.mxu0
      %v1445 = vadd.f32 %v1252, %v1444
      %v1446 = vpop.f32.mrf.mxu0
      %1447 = vmatprep.mubr.bf16.mxu0 0
      %1448 = vmatmul.mubr.bf16.gmra.mxu0 %v1309
      %v1449 = vpop.f32.mrf.mxu0
      %v1450 = vadd.f32 %v1257, %v1449
      %v1451 = vpop.f32.mrf.mxu0
      %v1452 = vpop.f32.mrf.mxu0
      %v1453 = vadd.f32 %v1260, %v1452
      %v1454 = vpop.f32.mrf.mxu0
      %1455 = vmatprep.mubr.bf16.mxu0 0
      %1456 = vmatmul.mubr.bf16.gmra.mxu0 %v1310
      %v1457 = vpop.f32.mrf.mxu0
      %v1458 = vadd.f32 %v1265, %v1457
      %v1459 = vpop.f32.mrf.mxu0
      %v1460 = vpop.f32.mrf.mxu0
      %v1461 = vadd.f32 %v1268, %v1460
      %v1462 = vpop.f32.mrf.mxu0
      %1463 = vdwg.mxu0
      %v1464 = vld [vmem:[#allocation2] sm:$0xe]
      %v1465 = vld [vmem:[#allocation2 + $0xc] sm:$0xe]
      %v1466 = vld [vmem:[#allocation2 + $0x18] sm:$0xe]
      %v1467 = vld [vmem:[#allocation2 + $0x24] sm:$0xe]
      %v1468 = vld [vmem:[#allocation2 + $0x30] sm:$0xe]
      %v1469 = vld [vmem:[#allocation2 + $0x3c] sm:$0xe]
      %v1470 = vld [vmem:[#allocation2 + $0x48] sm:$0xe]
      %v1471 = vld [vmem:[#allocation2 + $0x54] sm:$0xe]
      %vm1488 = vcmask 1042432
      %vm1489 = vcmask 1046532
      %vm1490 = vmor %vm1488, %vm1489
      %v1491 = vrot.slane %v1464, 5
      %v1492 = vrot.slane %v1491, 4
      %v1493 = vrot.slane %v843, 5
      %v1494 = vsel %vm1490, %v1492, %v1493
      %v1495 = vrot.slane %v1493, 4
      %v1496 = vrot.slane %v874, 5
      %v1497 = vsel %vm1490, %v1495, %v1496
      %v1498 = vrot.slane %v1465, 5
      %v1499 = vrot.slane %v1498, 4
      %v1500 = vrot.slane %v845, 5
      %v1501 = vsel %vm1490, %v1499, %v1500
      %v1502 = vrot.slane %v1500, 4
      %v1503 = vrot.slane %v875, 5
      %v1504 = vsel %vm1490, %v1502, %v1503
      %v1505 = vrot.slane %v1466, 5
      %v1506 = vrot.slane %v1505, 4
      %v1507 = vrot.slane %v847, 5
      %v1508 = vsel %vm1490, %v1506, %v1507
      %v1509 = vrot.slane %v1507, 4
      %v1510 = vrot.slane %v876, 5
      %v1511 = vsel %vm1490, %v1509, %v1510
      %v1512 = vrot.slane %v1467, 5
      %v1513 = vrot.slane %v1512, 4
      %v1514 = vrot.slane %v849, 5
      %v1515 = vsel %vm1490, %v1513, %v1514
      %v1516 = vrot.slane %v1514, 4
      %v1517 = vrot.slane %v877, 5
      %v1518 = vsel %vm1490, %v1516, %v1517
      %v1519 = vrot.slane %v1468, 5
      %v1520 = vrot.slane %v1519, 4
      %v1521 = vrot.slane %v851, 5
      %v1522 = vsel %vm1490, %v1520, %v1521
      %v1523 = vrot.slane %v1521, 4
      %v1524 = vrot.slane %v878, 5
      %v1525 = vsel %vm1490, %v1523, %v1524
      %v1526 = vrot.slane %v1469, 5
      %v1527 = vrot.slane %v1526, 4
      %v1528 = vrot.slane %v853, 5
      %v1529 = vsel %vm1490, %v1527, %v1528
      %v1530 = vrot.slane %v1528, 4
      %v1531 = vrot.slane %v879, 5
      %v1532 = vsel %vm1490, %v1530, %v1531
      %v1533 = vrot.slane %v1470, 5
      %v1534 = vrot.slane %v1533, 4
      %v1535 = vrot.slane %v855, 5
      %v1536 = vsel %vm1490, %v1534, %v1535
      %v1537 = vrot.slane %v1535, 4
      %v1538 = vrot.slane %v880, 5
      %v1539 = vsel %vm1490, %v1537, %v1538
      %v1540 = vrot.slane %v1471, 5
      %v1541 = vrot.slane %v1540, 4
      %v1542 = vrot.slane %v857, 5
      %v1543 = vsel %vm1490, %v1541, %v1542
      %v1544 = vrot.slane %v1542, 4
      %v1545 = vrot.slane %v881, 5
      %v1546 = vsel %vm1490, %v1544, %v1545
      %s1547 = scalar_lea.vmem %s4, 128
      %v1548 = vld [vmem:[%s1547] sm:$0xf]
      %v1549 = vld [vmem:[%s1547 + $0x4] sm:$0xf]
      %v1550 = vld [vmem:[%s1547 + $0x8] sm:$0xf]
      %v1551 = vld [vmem:[%s1547 + $0xc] sm:$0xf]
      %v1552 = vld [vmem:[%s1547 + $0x10] sm:$0xf]
      %v1553 = vld [vmem:[%s1547 + $0x14] sm:$0xf]
      %v1554 = vld [vmem:[%s1547 + $0x18] sm:$0xf]
      %v1555 = vld [vmem:[%s1547 + $0x1c] sm:$0xf]
      %v1556 = vld [vmem:[%s1547 + $0x20] sm:$0xf]
      %v1557 = vld [vmem:[%s1547 + $0x24] sm:$0xf]
      %v1558 = vld [vmem:[%s1547 + $0x28] sm:$0xf]
      %v1559 = vld [vmem:[%s1547 + $0x2c] sm:$0xf]
      %v1560 = vld [vmem:[%s1547 + $0x30] sm:$0xf]
      %v1561 = vld [vmem:[%s1547 + $0x34] sm:$0xf]
      %v1562 = vld [vmem:[%s1547 + $0x38] sm:$0xf]
      %v1563 = vld [vmem:[%s1547 + $0x3c] sm:$0xf]
      %v1564 = vunpack.c.l.b16 %v1494
      %v1565 = vunpack.c.l.b16 %v1497
      %v1566 = vunpack.c.l.b16 %v1501
      %v1567 = vunpack.c.l.b16 %v1504
      %v1568 = vunpack.c.l.b16 %v1508
      %v1569 = vunpack.c.l.b16 %v1511
      %v1570 = vunpack.c.l.b16 %v1515
      %v1571 = vunpack.c.l.b16 %v1518
      %v1572 = vunpack.c.l.b16 %v1522
      %v1573 = vunpack.c.l.b16 %v1525
      %v1574 = vunpack.c.l.b16 %v1529
      %v1575 = vunpack.c.l.b16 %v1532
      %v1576 = vunpack.c.l.b16 %v1536
      %v1577 = vunpack.c.l.b16 %v1539
      %v1578 = vunpack.c.l.b16 %v1543
      %v1579 = vunpack.c.l.b16 %v1546
      %v1580 = vpack.c.b16 %v1565, %v1564
      %v1581 = vpack.c.b16 %v1567, %v1566
      %v1582 = vpack.c.b16 %v1569, %v1568
      %v1583 = vpack.c.b16 %v1571, %v1570
      %v1584 = vpack.c.b16 %v1573, %v1572
      %v1585 = vpack.c.b16 %v1575, %v1574
      %v1586 = vpack.c.b16 %v1577, %v1576
      %v1587 = vpack.c.b16 %v1579, %v1578
      %v1612 = vunpack.c.l.b16 %v1548
      %v1613 = vunpack.c.l.b16 %v1549
      %v1614 = vunpack.c.l.b16 %v1550
      %v1615 = vunpack.c.l.b16 %v1551
      %v1616 = vunpack.c.l.b16 %v1552
      %v1617 = vunpack.c.l.b16 %v1553
      %v1618 = vunpack.c.l.b16 %v1554
      %v1619 = vunpack.c.l.b16 %v1555
      %v1620 = vunpack.c.l.b16 %v1556
      %v1621 = vunpack.c.l.b16 %v1557
      %v1622 = vunpack.c.l.b16 %v1558
      %v1623 = vunpack.c.l.b16 %v1559
      %v1624 = vunpack.c.l.b16 %v1560
      %v1625 = vunpack.c.l.b16 %v1561
      %v1626 = vunpack.c.l.b16 %v1562
      %v1627 = vunpack.c.l.b16 %v1563
      %v1628 = vpack.c.b16 %v1613, %v1612
      %v1629 = vpack.c.b16 %v1615, %v1614
      %v1630 = vpack.c.b16 %v1617, %v1616
      %v1631 = vpack.c.b16 %v1619, %v1618
      %v1632 = vpack.c.b16 %v1621, %v1620
      %v1633 = vpack.c.b16 %v1623, %v1622
      %v1634 = vpack.c.b16 %v1625, %v1624
      %v1635 = vpack.c.b16 %v1627, %v1626
      %1644 = vmatprep.subr.bf16.mxu0 0
      %1645 = vmatpush1.bf16.msra.mxu0 %v1635
      %1646 = vmatprep.subr.bf16.mxu0 0
      %1647 = vmatpush1.bf16.msra.mxu0 %v1634
      %1648 = vmatprep.subr.bf16.mxu0 0
      %1649 = vmatpush1.bf16.msra.mxu0 %v1633
      %1650 = vmatprep.subr.bf16.mxu0 0
      %1651 = vmatpush1.bf16.msra.mxu0 %v1632
      %1652 = vmatprep.subr.bf16.mxu0 0
      %1653 = vmatpush1.bf16.msra.mxu0 %v1631
      %1654 = vmatprep.subr.bf16.mxu0 0
      %1655 = vmatpush1.bf16.msra.mxu0 %v1630
      %1656 = vmatprep.subr.bf16.mxu0 0
      %1657 = vmatpush1.bf16.msra.mxu0 %v1629
      %1658 = vmatprep.subr.bf16.mxu0 0
      %1659 = vmatpush1.bf16.msra.mxu0 %v1628
      %1660 = vmatprep.subr.bf16.mxu0 0
      %1661 = vmatpush2.bf16.msra.mxu0 0
      %1662 = vmatprep.subr.bf16.mxu0 0
      %1663 = vmatpush2.bf16.msra.mxu0 0
      %1664 = vmatprep.subr.bf16.mxu0 0
      %1665 = vmatpush2.bf16.msra.mxu0 0
      %1666 = vmatprep.subr.bf16.mxu0 0
      %1667 = vmatpush2.bf16.msra.mxu0 0
      %1668 = vmatprep.subr.bf16.mxu0 0
      %1669 = vmatpush2.bf16.msra.mxu0 0
      %1670 = vmatprep.subr.bf16.mxu0 0
      %1671 = vmatpush2.bf16.msra.mxu0 0
      %1672 = vmatprep.subr.bf16.mxu0 0
      %1673 = vmatpush2.bf16.msra.mxu0 0
      %1674 = vmatprep.subr.bf16.mxu0 0
      %1675 = vmatpush2.bf16.msra.mxu0 0
      %1676 = vmatprep.mubr.bf16.mxu0 0
      %1677 = vmatmul.mubr.bf16.gmra.mxu0 %v1580
      %v1678 = vpop.f32.mrf.mxu0
      %v1679 = vadd.f32 0.0, %v1678
      %v1680 = vpop.f32.mrf.mxu0
      %v1681 = vpop.f32.mrf.mxu0
      %v1682 = vadd.f32 0.0, %v1681
      %v1683 = vpop.f32.mrf.mxu0
      %1684 = vmatprep.mubr.bf16.mxu0 0
      %1685 = vmatmul.mubr.bf16.gmra.mxu0 %v1581
      %v1686 = vpop.f32.mrf.mxu0
      %v1687 = vadd.f32 0.0, %v1686
      %v1688 = vpop.f32.mrf.mxu0
      %v1689 = vpop.f32.mrf.mxu0
      %v1690 = vadd.f32 0.0, %v1689
      %v1691 = vpop.f32.mrf.mxu0
      %1692 = vmatprep.mubr.bf16.mxu0 0
      %1693 = vmatmul.mubr.bf16.gmra.mxu0 %v1582
      %v1694 = vpop.f32.mrf.mxu0
      %v1695 = vadd.f32 0.0, %v1694
      %v1696 = vpop.f32.mrf.mxu0
      %v1697 = vpop.f32.mrf.mxu0
      %v1698 = vadd.f32 0.0, %v1697
      %v1699 = vpop.f32.mrf.mxu0
      %1700 = vmatprep.mubr.bf16.mxu0 0
      %1701 = vmatmul.mubr.bf16.gmra.mxu0 %v1583
      %v1702 = vpop.f32.mrf.mxu0
      %v1703 = vadd.f32 0.0, %v1702
      %v1704 = vpop.f32.mrf.mxu0
      %v1705 = vpop.f32.mrf.mxu0
      %v1706 = vadd.f32 0.0, %v1705
      %v1707 = vpop.f32.mrf.mxu0
      %1708 = vmatprep.mubr.bf16.mxu0 0
      %1709 = vmatmul.mubr.bf16.gmra.mxu0 %v1584
      %v1710 = vpop.f32.mrf.mxu0
      %v1711 = vadd.f32 0.0, %v1710
      %v1712 = vpop.f32.mrf.mxu0
      %v1713 = vpop.f32.mrf.mxu0
      %v1714 = vadd.f32 0.0, %v1713
      %v1715 = vpop.f32.mrf.mxu0
      %1716 = vmatprep.mubr.bf16.mxu0 0
      %1717 = vmatmul.mubr.bf16.gmra.mxu0 %v1585
      %v1718 = vpop.f32.mrf.mxu0
      %v1719 = vadd.f32 0.0, %v1718
      %v1720 = vpop.f32.mrf.mxu0
      %v1721 = vpop.f32.mrf.mxu0
      %v1722 = vadd.f32 0.0, %v1721
      %v1723 = vpop.f32.mrf.mxu0
      %1724 = vmatprep.mubr.bf16.mxu0 0
      %1725 = vmatmul.mubr.bf16.gmra.mxu0 %v1586
      %v1726 = vpop.f32.mrf.mxu0
      %v1727 = vadd.f32 0.0, %v1726
      %v1728 = vpop.f32.mrf.mxu0
      %v1729 = vpop.f32.mrf.mxu0
      %v1730 = vadd.f32 0.0, %v1729
      %v1731 = vpop.f32.mrf.mxu0
      %1732 = vmatprep.mubr.bf16.mxu0 0
      %1733 = vmatmul.mubr.bf16.gmra.mxu0 %v1587
      %v1734 = vpop.f32.mrf.mxu0
      %v1735 = vadd.f32 0.0, %v1734
      %v1736 = vpop.f32.mrf.mxu0
      %v1737 = vpop.f32.mrf.mxu0
      %v1738 = vadd.f32 0.0, %v1737
      %v1739 = vpop.f32.mrf.mxu0
      %1740 = vdwg.mxu0
      %v1741 = vadd.f32 %v1402, %v1679
      %v1742 = vadd.f32 %v1405, %v1682
      %v1743 = vadd.f32 %v1410, %v1687
      %v1744 = vadd.f32 %v1413, %v1690
      %v1745 = vadd.f32 %v1418, %v1695
      %v1746 = vadd.f32 %v1421, %v1698
      %v1747 = vadd.f32 %v1426, %v1703
      %v1748 = vadd.f32 %v1429, %v1706
      %v1749 = vadd.f32 %v1434, %v1711
      %v1750 = vadd.f32 %v1437, %v1714
      %v1751 = vadd.f32 %v1442, %v1719
      %v1752 = vadd.f32 %v1445, %v1722
      %v1753 = vadd.f32 %v1450, %v1727
      %v1754 = vadd.f32 %v1453, %v1730
      %v1755 = vadd.f32 %v1458, %v1735
      %v1756 = vadd.f32 %v1461, %v1738
      %v1757 = vld [vmem:[%s740] sm:$0xf]
      %v1758 = vld [vmem:[%s740 + $0x4] sm:$0xf]
      %v1759 = vld [vmem:[%s740 + $0xc] sm:$0xf]
      %v1760 = vld [vmem:[%s740 + $0x10] sm:$0xf]
      %v1761 = vld [vmem:[%s740 + $0x18] sm:$0xf]
      %v1762 = vld [vmem:[%s740 + $0x1c] sm:$0xf]
      %v1763 = vld [vmem:[%s740 + $0x24] sm:$0xf]
      %v1764 = vld [vmem:[%s740 + $0x28] sm:$0xf]
      %v1765 = vld [vmem:[%s740 + $0x30] sm:$0xf]
      %v1766 = vld [vmem:[%s740 + $0x34] sm:$0xf]
      %v1767 = vld [vmem:[%s740 + $0x3c] sm:$0xf]
      %v1768 = vld [vmem:[%s740 + $0x40] sm:$0xf]
      %v1769 = vld [vmem:[%s740 + $0x48] sm:$0xf]
      %v1770 = vld [vmem:[%s740 + $0x4c] sm:$0xf]
      %v1771 = vld [vmem:[%s740 + $0x54] sm:$0xf]
      %v1772 = vld [vmem:[%s740 + $0x58] sm:$0xf]
      %s1773 = scalar_lea.vmem %s4, 192
      %v1774 = vld [vmem:[%s1773] sm:$0xf]
      %v1775 = vld [vmem:[%s1773 + $0x4] sm:$0xf]
      %v1776 = vld [vmem:[%s1773 + $0x8] sm:$0xf]
      %v1777 = vld [vmem:[%s1773 + $0xc] sm:$0xf]
      %v1778 = vld [vmem:[%s1773 + $0x10] sm:$0xf]
      %v1779 = vld [vmem:[%s1773 + $0x14] sm:$0xf]
      %v1780 = vld [vmem:[%s1773 + $0x18] sm:$0xf]
      %v1781 = vld [vmem:[%s1773 + $0x1c] sm:$0xf]
      %v1782 = vld [vmem:[%s1773 + $0x20] sm:$0xf]
      %v1783 = vld [vmem:[%s1773 + $0x24] sm:$0xf]
      %v1784 = vld [vmem:[%s1773 + $0x28] sm:$0xf]
      %v1785 = vld [vmem:[%s1773 + $0x2c] sm:$0xf]
      %v1786 = vld [vmem:[%s1773 + $0x30] sm:$0xf]
      %v1787 = vld [vmem:[%s1773 + $0x34] sm:$0xf]
      %v1788 = vld [vmem:[%s1773 + $0x38] sm:$0xf]
      %v1789 = vld [vmem:[%s1773 + $0x3c] sm:$0xf]
      %v1806 = vunpack.c.l.b16 %v1757
      %v1807 = vunpack.c.l.b16 %v1758
      %v1808 = vunpack.c.l.b16 %v1759
      %v1809 = vunpack.c.l.b16 %v1760
      %v1810 = vunpack.c.l.b16 %v1761
      %v1811 = vunpack.c.l.b16 %v1762
      %v1812 = vunpack.c.l.b16 %v1763
      %v1813 = vunpack.c.l.b16 %v1764
      %v1814 = vunpack.c.l.b16 %v1765
      %v1815 = vunpack.c.l.b16 %v1766
      %v1816 = vunpack.c.l.b16 %v1767
      %v1817 = vunpack.c.l.b16 %v1768
      %v1818 = vunpack.c.l.b16 %v1769
      %v1819 = vunpack.c.l.b16 %v1770
      %v1820 = vunpack.c.l.b16 %v1771
      %v1821 = vunpack.c.l.b16 %v1772
      %v1822 = vpack.c.b16 %v1807, %v1806
      %v1823 = vpack.c.b16 %v1809, %v1808
      %v1824 = vpack.c.b16 %v1811, %v1810
      %v1825 = vpack.c.b16 %v1813, %v1812
      %v1826 = vpack.c.b16 %v1815, %v1814
      %v1827 = vpack.c.b16 %v1817, %v1816
      %v1828 = vpack.c.b16 %v1819, %v1818
      %v1829 = vpack.c.b16 %v1821, %v1820
      %v1854 = vunpack.c.l.b16 %v1774
      %v1855 = vunpack.c.l.b16 %v1775
      %v1856 = vunpack.c.l.b16 %v1776
      %v1857 = vunpack.c.l.b16 %v1777
      %v1858 = vunpack.c.l.b16 %v1778
      %v1859 = vunpack.c.l.b16 %v1779
      %v1860 = vunpack.c.l.b16 %v1780
      %v1861 = vunpack.c.l.b16 %v1781
      %v1862 = vunpack.c.l.b16 %v1782
      %v1863 = vunpack.c.l.b16 %v1783
      %v1864 = vunpack.c.l.b16 %v1784
      %v1865 = vunpack.c.l.b16 %v1785
      %v1866 = vunpack.c.l.b16 %v1786
      %v1867 = vunpack.c.l.b16 %v1787
      %v1868 = vunpack.c.l.b16 %v1788
      %v1869 = vunpack.c.l.b16 %v1789
      %v1870 = vpack.c.b16 %v1855, %v1854
      %v1871 = vpack.c.b16 %v1857, %v1856
      %v1872 = vpack.c.b16 %v1859, %v1858
      %v1873 = vpack.c.b16 %v1861, %v1860
      %v1874 = vpack.c.b16 %v1863, %v1862
      %v1875 = vpack.c.b16 %v1865, %v1864
      %v1876 = vpack.c.b16 %v1867, %v1866
      %v1877 = vpack.c.b16 %v1869, %v1868
      %1886 = vmatprep.subr.bf16.mxu0 0
      %1887 = vmatpush1.bf16.msra.mxu0 %v1877
      %1888 = vmatprep.subr.bf16.mxu0 0
      %1889 = vmatpush1.bf16.msra.mxu0 %v1876
      %1890 = vmatprep.subr.bf16.mxu0 0
      %1891 = vmatpush1.bf16.msra.mxu0 %v1875
      %1892 = vmatprep.subr.bf16.mxu0 0
      %1893 = vmatpush1.bf16.msra.mxu0 %v1874
      %1894 = vmatprep.subr.bf16.mxu0 0
      %1895 = vmatpush1.bf16.msra.mxu0 %v1873
      %1896 = vmatprep.subr.bf16.mxu0 0
      %1897 = vmatpush1.bf16.msra.mxu0 %v1872
      %1898 = vmatprep.subr.bf16.mxu0 0
      %1899 = vmatpush1.bf16.msra.mxu0 %v1871
      %1900 = vmatprep.subr.bf16.mxu0 0
      %1901 = vmatpush1.bf16.msra.mxu0 %v1870
      %1902 = vmatprep.subr.bf16.mxu0 0
      %1903 = vmatpush2.bf16.msra.mxu0 0
      %1904 = vmatprep.subr.bf16.mxu0 0
      %1905 = vmatpush2.bf16.msra.mxu0 0
      %1906 = vmatprep.subr.bf16.mxu0 0
      %1907 = vmatpush2.bf16.msra.mxu0 0
      %1908 = vmatprep.subr.bf16.mxu0 0
      %1909 = vmatpush2.bf16.msra.mxu0 0
      %1910 = vmatprep.subr.bf16.mxu0 0
      %1911 = vmatpush2.bf16.msra.mxu0 0
      %1912 = vmatprep.subr.bf16.mxu0 0
      %1913 = vmatpush2.bf16.msra.mxu0 0
      %1914 = vmatprep.subr.bf16.mxu0 0
      %1915 = vmatpush2.bf16.msra.mxu0 0
      %1916 = vmatprep.subr.bf16.mxu0 0
      %1917 = vmatpush2.bf16.msra.mxu0 0
      %1918 = vmatprep.mubr.bf16.mxu0 0
      %1919 = vmatmul.mubr.bf16.gmra.mxu0 %v1822
      %v1920 = vpop.f32.mrf.mxu0
      %v1921 = vadd.f32 0.0, %v1920
      %v1922 = vpop.f32.mrf.mxu0
      %v1923 = vpop.f32.mrf.mxu0
      %v1924 = vadd.f32 0.0, %v1923
      %v1925 = vpop.f32.mrf.mxu0
      %1926 = vmatprep.mubr.bf16.mxu0 0
      %1927 = vmatmul.mubr.bf16.gmra.mxu0 %v1823
      %v1928 = vpop.f32.mrf.mxu0
      %v1929 = vadd.f32 0.0, %v1928
      %v1930 = vpop.f32.mrf.mxu0
      %v1931 = vpop.f32.mrf.mxu0
      %v1932 = vadd.f32 0.0, %v1931
      %v1933 = vpop.f32.mrf.mxu0
      %1934 = vmatprep.mubr.bf16.mxu0 0
      %1935 = vmatmul.mubr.bf16.gmra.mxu0 %v1824
      %v1936 = vpop.f32.mrf.mxu0
      %v1937 = vadd.f32 0.0, %v1936
      %v1938 = vpop.f32.mrf.mxu0
      %v1939 = vpop.f32.mrf.mxu0
      %v1940 = vadd.f32 0.0, %v1939
      %v1941 = vpop.f32.mrf.mxu0
      %1942 = vmatprep.mubr.bf16.mxu0 0
      %1943 = vmatmul.mubr.bf16.gmra.mxu0 %v1825
      %v1944 = vpop.f32.mrf.mxu0
      %v1945 = vadd.f32 0.0, %v1944
      %v1946 = vpop.f32.mrf.mxu0
      %v1947 = vpop.f32.mrf.mxu0
      %v1948 = vadd.f32 0.0, %v1947
      %v1949 = vpop.f32.mrf.mxu0
      %1950 = vmatprep.mubr.bf16.mxu0 0
      %1951 = vmatmul.mubr.bf16.gmra.mxu0 %v1826
      %v1952 = vpop.f32.mrf.mxu0
      %v1953 = vadd.f32 0.0, %v1952
      %v1954 = vpop.f32.mrf.mxu0
      %v1955 = vpop.f32.mrf.mxu0
      %v1956 = vadd.f32 0.0, %v1955
      %v1957 = vpop.f32.mrf.mxu0
      %1958 = vmatprep.mubr.bf16.mxu0 0
      %1959 = vmatmul.mubr.bf16.gmra.mxu0 %v1827
      %v1960 = vpop.f32.mrf.mxu0
      %v1961 = vadd.f32 0.0, %v1960
      %v1962 = vpop.f32.mrf.mxu0
      %v1963 = vpop.f32.mrf.mxu0
      %v1964 = vadd.f32 0.0, %v1963
      %v1965 = vpop.f32.mrf.mxu0
      %1966 = vmatprep.mubr.bf16.mxu0 0
      %1967 = vmatmul.mubr.bf16.gmra.mxu0 %v1828
      %v1968 = vpop.f32.mrf.mxu0
      %v1969 = vadd.f32 0.0, %v1968
      %v1970 = vpop.f32.mrf.mxu0
      %v1971 = vpop.f32.mrf.mxu0
      %v1972 = vadd.f32 0.0, %v1971
      %v1973 = vpop.f32.mrf.mxu0
      %1974 = vmatprep.mubr.bf16.mxu0 0
      %1975 = vmatmul.mubr.bf16.gmra.mxu0 %v1829
      %v1976 = vpop.f32.mrf.mxu0
      %v1977 = vadd.f32 0.0, %v1976
      %v1978 = vpop.f32.mrf.mxu0
      %v1979 = vpop.f32.mrf.mxu0
      %v1980 = vadd.f32 0.0, %v1979
      %v1981 = vpop.f32.mrf.mxu0
      %1982 = vdwg.mxu0
      %v1983 = vadd.f32 %v1741, %v1921
      %v1984 = vadd.f32 %v1742, %v1924
      %v1985 = vadd.f32 %v1743, %v1929
      %v1986 = vadd.f32 %v1744, %v1932
      %v1987 = vadd.f32 %v1745, %v1937
      %v1988 = vadd.f32 %v1746, %v1940
      %v1989 = vadd.f32 %v1747, %v1945
      %v1990 = vadd.f32 %v1748, %v1948
      %v1991 = vadd.f32 %v1749, %v1953
      %v1992 = vadd.f32 %v1750, %v1956
      %v1993 = vadd.f32 %v1751, %v1961
      %v1994 = vadd.f32 %v1752, %v1964
      %v1995 = vadd.f32 %v1753, %v1969
      %v1996 = vadd.f32 %v1754, %v1972
      %v1997 = vadd.f32 %v1755, %v1977
      %v1998 = vadd.f32 %v1756, %v1980
      %v1999 = vld [vmem:[%s740] sm:$0xf]
      %v2000 = vld [vmem:[%s740 + $0x4] sm:$0xf]
      %v2001 = vld [vmem:[%s740 + $0x8] sm:$0x1]
      %v2002 = vld [vmem:[%s740 + $0xc] sm:$0xf]
      %v2003 = vld [vmem:[%s740 + $0x10] sm:$0xf]
      %v2004 = vld [vmem:[%s740 + $0x14] sm:$0x1]
      %v2005 = vld [vmem:[%s740 + $0x18] sm:$0xf]
      %v2006 = vld [vmem:[%s740 + $0x1c] sm:$0xf]
      %v2007 = vld [vmem:[%s740 + $0x20] sm:$0x1]
      %v2008 = vld [vmem:[%s740 + $0x24] sm:$0xf]
      %v2009 = vld [vmem:[%s740 + $0x28] sm:$0xf]
      %v2010 = vld [vmem:[%s740 + $0x2c] sm:$0x1]
      %v2011 = vld [vmem:[%s740 + $0x30] sm:$0xf]
      %v2012 = vld [vmem:[%s740 + $0x34] sm:$0xf]
      %v2013 = vld [vmem:[%s740 + $0x38] sm:$0x1]
      %v2014 = vld [vmem:[%s740 + $0x3c] sm:$0xf]
      %v2015 = vld [vmem:[%s740 + $0x40] sm:$0xf]
      %v2016 = vld [vmem:[%s740 + $0x44] sm:$0x1]
      %v2017 = vld [vmem:[%s740 + $0x48] sm:$0xf]
      %v2018 = vld [vmem:[%s740 + $0x4c] sm:$0xf]
      %v2019 = vld [vmem:[%s740 + $0x50] sm:$0x1]
      %v2020 = vld [vmem:[%s740 + $0x54] sm:$0xf]
      %v2021 = vld [vmem:[%s740 + $0x58] sm:$0xf]
      %v2022 = vld [vmem:[%s740 + $0x5c] sm:$0x1]
      %v2024 = vshrl.u32 %v1999, 16
      %v2026 = vrot.slane %v2024, 4
      %v2027 = vshll.u32 %v1999, 16
      %v2029 = vrot.slane %v2027, 5
      %v2030 = vor.u32 %v2026, %v2029
      %v2031 = vrot.slane %v2030, 4
      %v2033 = vshll.u32 %v2000, 16
      %v2035 = vrot.slane %v2033, 5
      %v2036 = vsel %vm884, %v2031, %v2035
      %v2037 = vshrl.u32 %v2000, 16
      %v2039 = vrot.slane %v2037, 4
      %v2040 = vor.u32 %v2039, %v2035
      %v2041 = vrot.slane %v2040, 4
      %v2043 = vshll.u32 %v2001, 16
      %v2045 = vrot.slane %v2043, 5
      %v2046 = vsel %vm884, %v2041, %v2045
      %v2048 = vshrl.u32 %v2002, 16
      %v2050 = vrot.slane %v2048, 4
      %v2051 = vshll.u32 %v2002, 16
      %v2053 = vrot.slane %v2051, 5
      %v2054 = vor.u32 %v2050, %v2053
      %v2055 = vrot.slane %v2054, 4
      %v2057 = vshll.u32 %v2003, 16
      %v2059 = vrot.slane %v2057, 5
      %v2060 = vsel %vm884, %v2055, %v2059
      %v2061 = vshrl.u32 %v2003, 16
      %v2063 = vrot.slane %v2061, 4
      %v2064 = vor.u32 %v2063, %v2059
      %v2065 = vrot.slane %v2064, 4
      %v2067 = vshll.u32 %v2004, 16
      %v2069 = vrot.slane %v2067, 5
      %v2070 = vsel %vm884, %v2065, %v2069
      %v2072 = vshrl.u32 %v2005, 16
      %v2074 = vrot.slane %v2072, 4
      %v2075 = vshll.u32 %v2005, 16
      %v2077 = vrot.slane %v2075, 5
      %v2078 = vor.u32 %v2074, %v2077
      %v2079 = vrot.slane %v2078, 4
      %v2081 = vshll.u32 %v2006, 16
      %v2083 = vrot.slane %v2081, 5
      %v2084 = vsel %vm884, %v2079, %v2083
      %v2085 = vshrl.u32 %v2006, 16
      %v2087 = vrot.slane %v2085, 4
      %v2088 = vor.u32 %v2087, %v2083
      %v2089 = vrot.slane %v2088, 4
      %v2091 = vshll.u32 %v2007, 16
      %v2093 = vrot.slane %v2091, 5
      %v2094 = vsel %vm884, %v2089, %v2093
      %v2096 = vshrl.u32 %v2008, 16
      %v2098 = vrot.slane %v2096, 4
      %v2099 = vshll.u32 %v2008, 16
      %v2101 = vrot.slane %v2099, 5
      %v2102 = vor.u32 %v2098, %v2101
      %v2103 = vrot.slane %v2102, 4
      %v2105 = vshll.u32 %v2009, 16
      %v2107 = vrot.slane %v2105, 5
      %v2108 = vsel %vm884, %v2103, %v2107
      %v2109 = vshrl.u32 %v2009, 16
      %v2111 = vrot.slane %v2109, 4
      %v2112 = vor.u32 %v2111, %v2107
      %v2113 = vrot.slane %v2112, 4
      %v2115 = vshll.u32 %v2010, 16
      %v2117 = vrot.slane %v2115, 5
      %v2118 = vsel %vm884, %v2113, %v2117
      %v2120 = vshrl.u32 %v2011, 16
      %v2122 = vrot.slane %v2120, 4
      %v2123 = vshll.u32 %v2011, 16
      %v2125 = vrot.slane %v2123, 5
      %v2126 = vor.u32 %v2122, %v2125
      %v2127 = vrot.slane %v2126, 4
      %v2129 = vshll.u32 %v2012, 16
      %v2131 = vrot.slane %v2129, 5
      %v2132 = vsel %vm884, %v2127, %v2131
      %v2133 = vshrl.u32 %v2012, 16
      %v2135 = vrot.slane %v2133, 4
      %v2136 = vor.u32 %v2135, %v2131
      %v2137 = vrot.slane %v2136, 4
      %v2139 = vshll.u32 %v2013, 16
      %v2141 = vrot.slane %v2139, 5
      %v2142 = vsel %vm884, %v2137, %v2141
      %v2144 = vshrl.u32 %v2014, 16
      %v2146 = vrot.slane %v2144, 4
      %v2147 = vshll.u32 %v2014, 16
      %v2149 = vrot.slane %v2147, 5
      %v2150 = vor.u32 %v2146, %v2149
      %v2151 = vrot.slane %v2150, 4
      %v2153 = vshll.u32 %v2015, 16
      %v2155 = vrot.slane %v2153, 5
      %v2156 = vsel %vm884, %v2151, %v2155
      %v2157 = vshrl.u32 %v2015, 16
      %v2159 = vrot.slane %v2157, 4
      %v2160 = vor.u32 %v2159, %v2155
      %v2161 = vrot.slane %v2160, 4
      %v2163 = vshll.u32 %v2016, 16
      %v2165 = vrot.slane %v2163, 5
      %v2166 = vsel %vm884, %v2161, %v2165
      %v2168 = vshrl.u32 %v2017, 16
      %v2170 = vrot.slane %v2168, 4
      %v2171 = vshll.u32 %v2017, 16
      %v2173 = vrot.slane %v2171, 5
      %v2174 = vor.u32 %v2170, %v2173
      %v2175 = vrot.slane %v2174, 4
      %v2177 = vshll.u32 %v2018, 16
      %v2179 = vrot.slane %v2177, 5
      %v2180 = vsel %vm884, %v2175, %v2179
      %v2181 = vshrl.u32 %v2018, 16
      %v2183 = vrot.slane %v2181, 4
      %v2184 = vor.u32 %v2183, %v2179
      %v2185 = vrot.slane %v2184, 4
      %v2187 = vshll.u32 %v2019, 16
      %v2189 = vrot.slane %v2187, 5
      %v2190 = vsel %vm884, %v2185, %v2189
      %v2192 = vshrl.u32 %v2020, 16
      %v2194 = vrot.slane %v2192, 4
      %v2195 = vshll.u32 %v2020, 16
      %v2197 = vrot.slane %v2195, 5
      %v2198 = vor.u32 %v2194, %v2197
      %v2199 = vrot.slane %v2198, 4
      %v2201 = vshll.u32 %v2021, 16
      %v2203 = vrot.slane %v2201, 5
      %v2204 = vsel %vm884, %v2199, %v2203
      %v2205 = vshrl.u32 %v2021, 16
      %v2207 = vrot.slane %v2205, 4
      %v2208 = vor.u32 %v2207, %v2203
      %v2209 = vrot.slane %v2208, 4
      %v2211 = vshll.u32 %v2022, 16
      %v2213 = vrot.slane %v2211, 5
      %v2214 = vsel %vm884, %v2209, %v2213
      %s2215 = scalar_lea.vmem %s4, 256
      %v2216 = vld [vmem:[%s2215] sm:$0xf]
      %v2217 = vld [vmem:[%s2215 + $0x4] sm:$0xf]
      %v2218 = vld [vmem:[%s2215 + $0x8] sm:$0xf]
      %v2219 = vld [vmem:[%s2215 + $0xc] sm:$0xf]
      %v2220 = vld [vmem:[%s2215 + $0x10] sm:$0xf]
      %v2221 = vld [vmem:[%s2215 + $0x14] sm:$0xf]
      %v2222 = vld [vmem:[%s2215 + $0x18] sm:$0xf]
      %v2223 = vld [vmem:[%s2215 + $0x1c] sm:$0xf]
      %v2224 = vld [vmem:[%s2215 + $0x20] sm:$0xf]
      %v2225 = vld [vmem:[%s2215 + $0x24] sm:$0xf]
      %v2226 = vld [vmem:[%s2215 + $0x28] sm:$0xf]
      %v2227 = vld [vmem:[%s2215 + $0x2c] sm:$0xf]
      %v2228 = vld [vmem:[%s2215 + $0x30] sm:$0xf]
      %v2229 = vld [vmem:[%s2215 + $0x34] sm:$0xf]
      %v2230 = vld [vmem:[%s2215 + $0x38] sm:$0xf]
      %v2231 = vld [vmem:[%s2215 + $0x3c] sm:$0xf]
      %v2232 = vunpack.c.l.b16 %v2036
      %v2233 = vunpack.c.l.b16 %v2046
      %v2234 = vunpack.c.l.b16 %v2060
      %v2235 = vunpack.c.l.b16 %v2070
      %v2236 = vunpack.c.l.b16 %v2084
      %v2237 = vunpack.c.l.b16 %v2094
      %v2238 = vunpack.c.l.b16 %v2108
      %v2239 = vunpack.c.l.b16 %v2118
      %v2240 = vunpack.c.l.b16 %v2132
      %v2241 = vunpack.c.l.b16 %v2142
      %v2242 = vunpack.c.l.b16 %v2156
      %v2243 = vunpack.c.l.b16 %v2166
      %v2244 = vunpack.c.l.b16 %v2180
      %v2245 = vunpack.c.l.b16 %v2190
      %v2246 = vunpack.c.l.b16 %v2204
      %v2247 = vunpack.c.l.b16 %v2214
      %v2248 = vpack.c.b16 %v2233, %v2232
      %v2249 = vpack.c.b16 %v2235, %v2234
      %v2250 = vpack.c.b16 %v2237, %v2236
      %v2251 = vpack.c.b16 %v2239, %v2238
      %v2252 = vpack.c.b16 %v2241, %v2240
      %v2253 = vpack.c.b16 %v2243, %v2242
      %v2254 = vpack.c.b16 %v2245, %v2244
      %v2255 = vpack.c.b16 %v2247, %v2246
      %v2280 = vunpack.c.l.b16 %v2216
      %v2281 = vunpack.c.l.b16 %v2217
      %v2282 = vunpack.c.l.b16 %v2218
      %v2283 = vunpack.c.l.b16 %v2219
      %v2284 = vunpack.c.l.b16 %v2220
      %v2285 = vunpack.c.l.b16 %v2221
      %v2286 = vunpack.c.l.b16 %v2222
      %v2287 = vunpack.c.l.b16 %v2223
      %v2288 = vunpack.c.l.b16 %v2224
      %v2289 = vunpack.c.l.b16 %v2225
      %v2290 = vunpack.c.l.b16 %v2226
      %v2291 = vunpack.c.l.b16 %v2227
      %v2292 = vunpack.c.l.b16 %v2228
      %v2293 = vunpack.c.l.b16 %v2229
      %v2294 = vunpack.c.l.b16 %v2230
      %v2295 = vunpack.c.l.b16 %v2231
      %v2296 = vpack.c.b16 %v2281, %v2280
      %v2297 = vpack.c.b16 %v2283, %v2282
      %v2298 = vpack.c.b16 %v2285, %v2284
      %v2299 = vpack.c.b16 %v2287, %v2286
      %v2300 = vpack.c.b16 %v2289, %v2288
      %v2301 = vpack.c.b16 %v2291, %v2290
      %v2302 = vpack.c.b16 %v2293, %v2292
      %v2303 = vpack.c.b16 %v2295, %v2294
      %2312 = vmatprep.subr.bf16.mxu0 0
      %2313 = vmatpush1.bf16.msra.mxu0 %v2303
      %2314 = vmatprep.subr.bf16.mxu0 0
      %2315 = vmatpush1.bf16.msra.mxu0 %v2302
      %2316 = vmatprep.subr.bf16.mxu0 0
      %2317 = vmatpush1.bf16.msra.mxu0 %v2301
      %2318 = vmatprep.subr.bf16.mxu0 0
      %2319 = vmatpush1.bf16.msra.mxu0 %v2300
      %2320 = vmatprep.subr.bf16.mxu0 0
      %2321 = vmatpush1.bf16.msra.mxu0 %v2299
      %2322 = vmatprep.subr.bf16.mxu0 0
      %2323 = vmatpush1.bf16.msra.mxu0 %v2298
      %2324 = vmatprep.subr.bf16.mxu0 0
      %2325 = vmatpush1.bf16.msra.mxu0 %v2297
      %2326 = vmatprep.subr.bf16.mxu0 0
      %2327 = vmatpush1.bf16.msra.mxu0 %v2296
      %2328 = vmatprep.subr.bf16.mxu0 0
      %2329 = vmatpush2.bf16.msra.mxu0 0
      %2330 = vmatprep.subr.bf16.mxu0 0
      %2331 = vmatpush2.bf16.msra.mxu0 0
      %2332 = vmatprep.subr.bf16.mxu0 0
      %2333 = vmatpush2.bf16.msra.mxu0 0
      %2334 = vmatprep.subr.bf16.mxu0 0
      %2335 = vmatpush2.bf16.msra.mxu0 0
      %2336 = vmatprep.subr.bf16.mxu0 0
      %2337 = vmatpush2.bf16.msra.mxu0 0
      %2338 = vmatprep.subr.bf16.mxu0 0
      %2339 = vmatpush2.bf16.msra.mxu0 0
      %2340 = vmatprep.subr.bf16.mxu0 0
      %2341 = vmatpush2.bf16.msra.mxu0 0
      %2342 = vmatprep.subr.bf16.mxu0 0
      %2343 = vmatpush2.bf16.msra.mxu0 0
      %2344 = vmatprep.mubr.bf16.mxu0 0
      %2345 = vmatmul.mubr.bf16.gmra.mxu0 %v2248
      %v2346 = vpop.f32.mrf.mxu0
      %v2347 = vadd.f32 0.0, %v2346
      %v2348 = vpop.f32.mrf.mxu0
      %v2349 = vpop.f32.mrf.mxu0
      %v2350 = vadd.f32 0.0, %v2349
      %v2351 = vpop.f32.mrf.mxu0
      %2352 = vmatprep.mubr.bf16.mxu0 0
      %2353 = vmatmul.mubr.bf16.gmra.mxu0 %v2249
      %v2354 = vpop.f32.mrf.mxu0
      %v2355 = vadd.f32 0.0, %v2354
      %v2356 = vpop.f32.mrf.mxu0
      %v2357 = vpop.f32.mrf.mxu0
      %v2358 = vadd.f32 0.0, %v2357
      %v2359 = vpop.f32.mrf.mxu0
      %2360 = vmatprep.mubr.bf16.mxu0 0
      %2361 = vmatmul.mubr.bf16.gmra.mxu0 %v2250
      %v2362 = vpop.f32.mrf.mxu0
      %v2363 = vadd.f32 0.0, %v2362
      %v2364 = vpop.f32.mrf.mxu0
      %v2365 = vpop.f32.mrf.mxu0
      %v2366 = vadd.f32 0.0, %v2365
      %v2367 = vpop.f32.mrf.mxu0
      %2368 = vmatprep.mubr.bf16.mxu0 0
      %2369 = vmatmul.mubr.bf16.gmra.mxu0 %v2251
      %v2370 = vpop.f32.mrf.mxu0
      %v2371 = vadd.f32 0.0, %v2370
      %v2372 = vpop.f32.mrf.mxu0
      %v2373 = vpop.f32.mrf.mxu0
      %v2374 = vadd.f32 0.0, %v2373
      %v2375 = vpop.f32.mrf.mxu0
      %2376 = vmatprep.mubr.bf16.mxu0 0
      %2377 = vmatmul.mubr.bf16.gmra.mxu0 %v2252
      %v2378 = vpop.f32.mrf.mxu0
      %v2379 = vadd.f32 0.0, %v2378
      %v2380 = vpop.f32.mrf.mxu0
      %v2381 = vpop.f32.mrf.mxu0
      %v2382 = vadd.f32 0.0, %v2381
      %v2383 = vpop.f32.mrf.mxu0
      %2384 = vmatprep.mubr.bf16.mxu0 0
      %2385 = vmatmul.mubr.bf16.gmra.mxu0 %v2253
      %v2386 = vpop.f32.mrf.mxu0
      %v2387 = vadd.f32 0.0, %v2386
      %v2388 = vpop.f32.mrf.mxu0
      %v2389 = vpop.f32.mrf.mxu0
      %v2390 = vadd.f32 0.0, %v2389
      %v2391 = vpop.f32.mrf.mxu0
      %2392 = vmatprep.mubr.bf16.mxu0 0
      %2393 = vmatmul.mubr.bf16.gmra.mxu0 %v2254
      %v2394 = vpop.f32.mrf.mxu0
      %v2395 = vadd.f32 0.0, %v2394
      %v2396 = vpop.f32.mrf.mxu0
      %v2397 = vpop.f32.mrf.mxu0
      %v2398 = vadd.f32 0.0, %v2397
      %v2399 = vpop.f32.mrf.mxu0
      %2400 = vmatprep.mubr.bf16.mxu0 0
      %2401 = vmatmul.mubr.bf16.gmra.mxu0 %v2255
      %v2402 = vpop.f32.mrf.mxu0
      %v2403 = vadd.f32 0.0, %v2402
      %v2404 = vpop.f32.mrf.mxu0
      %v2405 = vpop.f32.mrf.mxu0
      %v2406 = vadd.f32 0.0, %v2405
      %v2407 = vpop.f32.mrf.mxu0
      %2408 = vdwg.mxu0
      %v2409 = vadd.f32 %v1983, %v2347
      %v2410 = vadd.f32 %v1984, %v2350
      %v2411 = vadd.f32 %v1985, %v2355
      %v2412 = vadd.f32 %v1986, %v2358
      %v2413 = vadd.f32 %v1987, %v2363
      %v2414 = vadd.f32 %v1988, %v2366
      %v2415 = vadd.f32 %v1989, %v2371
      %v2416 = vadd.f32 %v1990, %v2374
      %v2417 = vadd.f32 %v1991, %v2379
      %v2418 = vadd.f32 %v1992, %v2382
      %v2419 = vadd.f32 %v1993, %v2387
      %v2420 = vadd.f32 %v1994, %v2390
      %v2421 = vadd.f32 %v1995, %v2395
      %v2422 = vadd.f32 %v1996, %v2398
      %v2423 = vadd.f32 %v1997, %v2403
      %v2424 = vadd.f32 %v1998, %v2406
      %v2425 = vld [vmem:[%s740] sm:$0xe]
      %v2426 = vld [vmem:[%s740 + $0xc] sm:$0xe]
      %v2427 = vld [vmem:[%s740 + $0x18] sm:$0xe]
      %v2428 = vld [vmem:[%s740 + $0x24] sm:$0xe]
      %v2429 = vld [vmem:[%s740 + $0x30] sm:$0xe]
      %v2430 = vld [vmem:[%s740 + $0x3c] sm:$0xe]
      %v2431 = vld [vmem:[%s740 + $0x48] sm:$0xe]
      %v2432 = vld [vmem:[%s740 + $0x54] sm:$0xe]
      %v2457 = vrot.slane %v2425, 5
      %v2458 = vrot.slane %v2457, 4
      %v2459 = vrot.slane %v2000, 5
      %v2460 = vsel %vm1490, %v2458, %v2459
      %v2461 = vrot.slane %v2459, 4
      %v2462 = vrot.slane %v2001, 5
      %v2463 = vsel %vm1490, %v2461, %v2462
      %v2464 = vrot.slane %v2426, 5
      %v2465 = vrot.slane %v2464, 4
      %v2466 = vrot.slane %v2003, 5
      %v2467 = vsel %vm1490, %v2465, %v2466
      %v2468 = vrot.slane %v2466, 4
      %v2469 = vrot.slane %v2004, 5
      %v2470 = vsel %vm1490, %v2468, %v2469
      %v2471 = vrot.slane %v2427, 5
      %v2472 = vrot.slane %v2471, 4
      %v2473 = vrot.slane %v2006, 5
      %v2474 = vsel %vm1490, %v2472, %v2473
      %v2475 = vrot.slane %v2473, 4
      %v2476 = vrot.slane %v2007, 5
      %v2477 = vsel %vm1490, %v2475, %v2476
      %v2478 = vrot.slane %v2428, 5
      %v2479 = vrot.slane %v2478, 4
      %v2480 = vrot.slane %v2009, 5
      %v2481 = vsel %vm1490, %v2479, %v2480
      %v2482 = vrot.slane %v2480, 4
      %v2483 = vrot.slane %v2010, 5
      %v2484 = vsel %vm1490, %v2482, %v2483
      %v2485 = vrot.slane %v2429, 5
      %v2486 = vrot.slane %v2485, 4
      %v2487 = vrot.slane %v2012, 5
      %v2488 = vsel %vm1490, %v2486, %v2487
      %v2489 = vrot.slane %v2487, 4
      %v2490 = vrot.slane %v2013, 5
      %v2491 = vsel %vm1490, %v2489, %v2490
      %v2492 = vrot.slane %v2430, 5
      %v2493 = vrot.slane %v2492, 4
      %v2494 = vrot.slane %v2015, 5
      %v2495 = vsel %vm1490, %v2493, %v2494
      %v2496 = vrot.slane %v2494, 4
      %v2497 = vrot.slane %v2016, 5
      %v2498 = vsel %vm1490, %v2496, %v2497
      %v2499 = vrot.slane %v2431, 5
      %v2500 = vrot.slane %v2499, 4
      %v2501 = vrot.slane %v2018, 5
      %v2502 = vsel %vm1490, %v2500, %v2501
      %v2503 = vrot.slane %v2501, 4
      %v2504 = vrot.slane %v2019, 5
      %v2505 = vsel %vm1490, %v2503, %v2504
      %v2506 = vrot.slane %v2432, 5
      %v2507 = vrot.slane %v2506, 4
      %v2508 = vrot.slane %v2021, 5
      %v2509 = vsel %vm1490, %v2507, %v2508
      %v2510 = vrot.slane %v2508, 4
      %v2511 = vrot.slane %v2022, 5
      %v2512 = vsel %vm1490, %v2510, %v2511
      %s2513 = scalar_lea.vmem %s4, 320
      %v2514 = vld [vmem:[%s2513] sm:$0xf]
      %v2515 = vld [vmem:[%s2513 + $0x4] sm:$0xf]
      %v2516 = vld [vmem:[%s2513 + $0x8] sm:$0xf]
      %v2517 = vld [vmem:[%s2513 + $0xc] sm:$0xf]
      %v2518 = vld [vmem:[%s2513 + $0x10] sm:$0xf]
      %v2519 = vld [vmem:[%s2513 + $0x14] sm:$0xf]
      %v2520 = vld [vmem:[%s2513 + $0x18] sm:$0xf]
      %v2521 = vld [vmem:[%s2513 + $0x1c] sm:$0xf]
      %v2522 = vld [vmem:[%s2513 + $0x20] sm:$0xf]
      %v2523 = vld [vmem:[%s2513 + $0x24] sm:$0xf]
      %v2524 = vld [vmem:[%s2513 + $0x28] sm:$0xf]
      %v2525 = vld [vmem:[%s2513 + $0x2c] sm:$0xf]
      %v2526 = vld [vmem:[%s2513 + $0x30] sm:$0xf]
      %v2527 = vld [vmem:[%s2513 + $0x34] sm:$0xf]
      %v2528 = vld [vmem:[%s2513 + $0x38] sm:$0xf]
      %v2529 = vld [vmem:[%s2513 + $0x3c] sm:$0xf]
      %v2530 = vunpack.c.l.b16 %v2460
      %v2531 = vunpack.c.l.b16 %v2463
      %v2532 = vunpack.c.l.b16 %v2467
      %v2533 = vunpack.c.l.b16 %v2470
      %v2534 = vunpack.c.l.b16 %v2474
      %v2535 = vunpack.c.l.b16 %v2477
      %v2536 = vunpack.c.l.b16 %v2481
      %v2537 = vunpack.c.l.b16 %v2484
      %v2538 = vunpack.c.l.b16 %v2488
      %v2539 = vunpack.c.l.b16 %v2491
      %v2540 = vunpack.c.l.b16 %v2495
      %v2541 = vunpack.c.l.b16 %v2498
      %v2542 = vunpack.c.l.b16 %v2502
      %v2543 = vunpack.c.l.b16 %v2505
      %v2544 = vunpack.c.l.b16 %v2509
      %v2545 = vunpack.c.l.b16 %v2512
      %v2546 = vpack.c.b16 %v2531, %v2530
      %v2547 = vpack.c.b16 %v2533, %v2532
      %v2548 = vpack.c.b16 %v2535, %v2534
      %v2549 = vpack.c.b16 %v2537, %v2536
      %v2550 = vpack.c.b16 %v2539, %v2538
      %v2551 = vpack.c.b16 %v2541, %v2540
      %v2552 = vpack.c.b16 %v2543, %v2542
      %v2553 = vpack.c.b16 %v2545, %v2544
      %v2578 = vunpack.c.l.b16 %v2514
      %v2579 = vunpack.c.l.b16 %v2515
      %v2580 = vunpack.c.l.b16 %v2516
      %v2581 = vunpack.c.l.b16 %v2517
      %v2582 = vunpack.c.l.b16 %v2518
      %v2583 = vunpack.c.l.b16 %v2519
      %v2584 = vunpack.c.l.b16 %v2520
      %v2585 = vunpack.c.l.b16 %v2521
      %v2586 = vunpack.c.l.b16 %v2522
      %v2587 = vunpack.c.l.b16 %v2523
      %v2588 = vunpack.c.l.b16 %v2524
      %v2589 = vunpack.c.l.b16 %v2525
      %v2590 = vunpack.c.l.b16 %v2526
      %v2591 = vunpack.c.l.b16 %v2527
      %v2592 = vunpack.c.l.b16 %v2528
      %v2593 = vunpack.c.l.b16 %v2529
      %v2594 = vpack.c.b16 %v2579, %v2578
      %v2595 = vpack.c.b16 %v2581, %v2580
      %v2596 = vpack.c.b16 %v2583, %v2582
      %v2597 = vpack.c.b16 %v2585, %v2584
      %v2598 = vpack.c.b16 %v2587, %v2586
      %v2599 = vpack.c.b16 %v2589, %v2588
      %v2600 = vpack.c.b16 %v2591, %v2590
      %v2601 = vpack.c.b16 %v2593, %v2592
      %2610 = vmatprep.subr.bf16.mxu0 0
      %2611 = vmatpush1.bf16.msra.mxu0 %v2601
      %2612 = vmatprep.subr.bf16.mxu0 0
      %2613 = vmatpush1.bf16.msra.mxu0 %v2600
      %2614 = vmatprep.subr.bf16.mxu0 0
      %2615 = vmatpush1.bf16.msra.mxu0 %v2599
      %2616 = vmatprep.subr.bf16.mxu0 0
      %2617 = vmatpush1.bf16.msra.mxu0 %v2598
      %2618 = vmatprep.subr.bf16.mxu0 0
      %2619 = vmatpush1.bf16.msra.mxu0 %v2597
      %2620 = vmatprep.subr.bf16.mxu0 0
      %2621 = vmatpush1.bf16.msra.mxu0 %v2596
      %2622 = vmatprep.subr.bf16.mxu0 0
      %2623 = vmatpush1.bf16.msra.mxu0 %v2595
      %2624 = vmatprep.subr.bf16.mxu0 0
      %2625 = vmatpush1.bf16.msra.mxu0 %v2594
      %2626 = vmatprep.subr.bf16.mxu0 0
      %2627 = vmatpush2.bf16.msra.mxu0 0
      %2628 = vmatprep.subr.bf16.mxu0 0
      %2629 = vmatpush2.bf16.msra.mxu0 0
      %2630 = vmatprep.subr.bf16.mxu0 0
      %2631 = vmatpush2.bf16.msra.mxu0 0
      %2632 = vmatprep.subr.bf16.mxu0 0
      %2633 = vmatpush2.bf16.msra.mxu0 0
      %2634 = vmatprep.subr.bf16.mxu0 0
      %2635 = vmatpush2.bf16.msra.mxu0 0
      %2636 = vmatprep.subr.bf16.mxu0 0
      %2637 = vmatpush2.bf16.msra.mxu0 0
      %2638 = vmatprep.subr.bf16.mxu0 0
      %2639 = vmatpush2.bf16.msra.mxu0 0
      %2640 = vmatprep.subr.bf16.mxu0 0
      %2641 = vmatpush2.bf16.msra.mxu0 0
      %2642 = vmatprep.mubr.bf16.mxu0 0
      %2643 = vmatmul.mubr.bf16.gmra.mxu0 %v2546
      %v2644 = vpop.f32.mrf.mxu0
      %v2645 = vadd.f32 0.0, %v2644
      %v2646 = vpop.f32.mrf.mxu0
      %v2647 = vpop.f32.mrf.mxu0
      %v2648 = vadd.f32 0.0, %v2647
      %v2649 = vpop.f32.mrf.mxu0
      %2650 = vmatprep.mubr.bf16.mxu0 0
      %2651 = vmatmul.mubr.bf16.gmra.mxu0 %v2547
      %v2652 = vpop.f32.mrf.mxu0
      %v2653 = vadd.f32 0.0, %v2652
      %v2654 = vpop.f32.mrf.mxu0
      %v2655 = vpop.f32.mrf.mxu0
      %v2656 = vadd.f32 0.0, %v2655
      %v2657 = vpop.f32.mrf.mxu0
      %2658 = vmatprep.mubr.bf16.mxu0 0
      %2659 = vmatmul.mubr.bf16.gmra.mxu0 %v2548
      %v2660 = vpop.f32.mrf.mxu0
      %v2661 = vadd.f32 0.0, %v2660
      %v2662 = vpop.f32.mrf.mxu0
      %v2663 = vpop.f32.mrf.mxu0
      %v2664 = vadd.f32 0.0, %v2663
      %v2665 = vpop.f32.mrf.mxu0
      %2666 = vmatprep.mubr.bf16.mxu0 0
      %2667 = vmatmul.mubr.bf16.gmra.mxu0 %v2549
      %v2668 = vpop.f32.mrf.mxu0
      %v2669 = vadd.f32 0.0, %v2668
      %v2670 = vpop.f32.mrf.mxu0
      %v2671 = vpop.f32.mrf.mxu0
      %v2672 = vadd.f32 0.0, %v2671
      %v2673 = vpop.f32.mrf.mxu0
      %2674 = vmatprep.mubr.bf16.mxu0 0
      %2675 = vmatmul.mubr.bf16.gmra.mxu0 %v2550
      %v2676 = vpop.f32.mrf.mxu0
      %v2677 = vadd.f32 0.0, %v2676
      %v2678 = vpop.f32.mrf.mxu0
      %v2679 = vpop.f32.mrf.mxu0
      %v2680 = vadd.f32 0.0, %v2679
      %v2681 = vpop.f32.mrf.mxu0
      %2682 = vmatprep.mubr.bf16.mxu0 0
      %2683 = vmatmul.mubr.bf16.gmra.mxu0 %v2551
      %v2684 = vpop.f32.mrf.mxu0
      %v2685 = vadd.f32 0.0, %v2684
      %v2686 = vpop.f32.mrf.mxu0
      %v2687 = vpop.f32.mrf.mxu0
      %v2688 = vadd.f32 0.0, %v2687
      %v2689 = vpop.f32.mrf.mxu0
      %2690 = vmatprep.mubr.bf16.mxu0 0
      %2691 = vmatmul.mubr.bf16.gmra.mxu0 %v2552
      %v2692 = vpop.f32.mrf.mxu0
      %v2693 = vadd.f32 0.0, %v2692
      %v2694 = vpop.f32.mrf.mxu0
      %v2695 = vpop.f32.mrf.mxu0
      %v2696 = vadd.f32 0.0, %v2695
      %v2697 = vpop.f32.mrf.mxu0
      %2698 = vmatprep.mubr.bf16.mxu0 0
      %2699 = vmatmul.mubr.bf16.gmra.mxu0 %v2553
      %v2700 = vpop.f32.mrf.mxu0
      %v2701 = vadd.f32 0.0, %v2700
      %v2702 = vpop.f32.mrf.mxu0
      %v2703 = vpop.f32.mrf.mxu0
      %v2704 = vadd.f32 0.0, %v2703
      %v2705 = vpop.f32.mrf.mxu0
      %2706 = vdwg.mxu0
      %v2707 = vadd.f32 %v2409, %v2645
      %v2708 = vadd.f32 %v2410, %v2648
      %v2709 = vadd.f32 %v2411, %v2653
      %v2710 = vadd.f32 %v2412, %v2656
      %v2711 = vadd.f32 %v2413, %v2661
      %v2712 = vadd.f32 %v2414, %v2664
      %v2713 = vadd.f32 %v2415, %v2669
      %v2714 = vadd.f32 %v2416, %v2672
      %v2715 = vadd.f32 %v2417, %v2677
      %v2716 = vadd.f32 %v2418, %v2680
      %v2717 = vadd.f32 %v2419, %v2685
      %v2718 = vadd.f32 %v2420, %v2688
      %v2719 = vadd.f32 %v2421, %v2693
      %v2720 = vadd.f32 %v2422, %v2696
      %v2721 = vadd.f32 %v2423, %v2701
      %v2722 = vadd.f32 %v2424, %v2704
      %s2723 = scalar_lea.vmem [#allocation2], 24
      %v2724 = vld [vmem:[%s2723] sm:$0xf]
      %v2725 = vld [vmem:[%s2723 + $0x4] sm:$0xf]
      %v2726 = vld [vmem:[%s2723 + $0xc] sm:$0xf]
      %v2727 = vld [vmem:[%s2723 + $0x10] sm:$0xf]
      %v2728 = vld [vmem:[%s2723 + $0x18] sm:$0xf]
      %v2729 = vld [vmem:[%s2723 + $0x1c] sm:$0xf]
      %v2730 = vld [vmem:[%s2723 + $0x24] sm:$0xf]
      %v2731 = vld [vmem:[%s2723 + $0x28] sm:$0xf]
      %v2732 = vld [vmem:[%s2723 + $0x30] sm:$0xf]
      %v2733 = vld [vmem:[%s2723 + $0x34] sm:$0xf]
      %v2734 = vld [vmem:[%s2723 + $0x3c] sm:$0xf]
      %v2735 = vld [vmem:[%s2723 + $0x40] sm:$0xf]
      %v2736 = vld [vmem:[%s2723 + $0x48] sm:$0xf]
      %v2737 = vld [vmem:[%s2723 + $0x4c] sm:$0xf]
      %v2738 = vld [vmem:[%s2723 + $0x54] sm:$0xf]
      %v2739 = vld [vmem:[%s2723 + $0x58] sm:$0xf]
      %s2740 = scalar_lea.vmem %s4, 384
      %v2741 = vld [vmem:[%s2740] sm:$0xf]
      %v2742 = vld [vmem:[%s2740 + $0x4] sm:$0xf]
      %v2743 = vld [vmem:[%s2740 + $0x8] sm:$0xf]
      %v2744 = vld [vmem:[%s2740 + $0xc] sm:$0xf]
      %v2745 = vld [vmem:[%s2740 + $0x10] sm:$0xf]
      %v2746 = vld [vmem:[%s2740 + $0x14] sm:$0xf]
      %v2747 = vld [vmem:[%s2740 + $0x18] sm:$0xf]
      %v2748 = vld [vmem:[%s2740 + $0x1c] sm:$0xf]
      %v2749 = vld [vmem:[%s2740 + $0x20] sm:$0xf]
      %v2750 = vld [vmem:[%s2740 + $0x24] sm:$0xf]
      %v2751 = vld [vmem:[%s2740 + $0x28] sm:$0xf]
      %v2752 = vld [vmem:[%s2740 + $0x2c] sm:$0xf]
      %v2753 = vld [vmem:[%s2740 + $0x30] sm:$0xf]
      %v2754 = vld [vmem:[%s2740 + $0x34] sm:$0xf]
      %v2755 = vld [vmem:[%s2740 + $0x38] sm:$0xf]
      %v2756 = vld [vmem:[%s2740 + $0x3c] sm:$0xf]
      %v2773 = vunpack.c.l.b16 %v2724
      %v2774 = vunpack.c.l.b16 %v2725
      %v2775 = vunpack.c.l.b16 %v2726
      %v2776 = vunpack.c.l.b16 %v2727
      %v2777 = vunpack.c.l.b16 %v2728
      %v2778 = vunpack.c.l.b16 %v2729
      %v2779 = vunpack.c.l.b16 %v2730
      %v2780 = vunpack.c.l.b16 %v2731
      %v2781 = vunpack.c.l.b16 %v2732
      %v2782 = vunpack.c.l.b16 %v2733
      %v2783 = vunpack.c.l.b16 %v2734
      %v2784 = vunpack.c.l.b16 %v2735
      %v2785 = vunpack.c.l.b16 %v2736
      %v2786 = vunpack.c.l.b16 %v2737
      %v2787 = vunpack.c.l.b16 %v2738
      %v2788 = vunpack.c.l.b16 %v2739
      %v2789 = vpack.c.b16 %v2774, %v2773
      %v2790 = vpack.c.b16 %v2776, %v2775
      %v2791 = vpack.c.b16 %v2778, %v2777
      %v2792 = vpack.c.b16 %v2780, %v2779
      %v2793 = vpack.c.b16 %v2782, %v2781
      %v2794 = vpack.c.b16 %v2784, %v2783
      %v2795 = vpack.c.b16 %v2786, %v2785
      %v2796 = vpack.c.b16 %v2788, %v2787
      %v2821 = vunpack.c.l.b16 %v2741
      %v2822 = vunpack.c.l.b16 %v2742
      %v2823 = vunpack.c.l.b16 %v2743
      %v2824 = vunpack.c.l.b16 %v2744
      %v2825 = vunpack.c.l.b16 %v2745
      %v2826 = vunpack.c.l.b16 %v2746
      %v2827 = vunpack.c.l.b16 %v2747
      %v2828 = vunpack.c.l.b16 %v2748
      %v2829 = vunpack.c.l.b16 %v2749
      %v2830 = vunpack.c.l.b16 %v2750
      %v2831 = vunpack.c.l.b16 %v2751
      %v2832 = vunpack.c.l.b16 %v2752
      %v2833 = vunpack.c.l.b16 %v2753
      %v2834 = vunpack.c.l.b16 %v2754
      %v2835 = vunpack.c.l.b16 %v2755
      %v2836 = vunpack.c.l.b16 %v2756
      %v2837 = vpack.c.b16 %v2822, %v2821
      %v2838 = vpack.c.b16 %v2824, %v2823
      %v2839 = vpack.c.b16 %v2826, %v2825
      %v2840 = vpack.c.b16 %v2828, %v2827
      %v2841 = vpack.c.b16 %v2830, %v2829
      %v2842 = vpack.c.b16 %v2832, %v2831
      %v2843 = vpack.c.b16 %v2834, %v2833
      %v2844 = vpack.c.b16 %v2836, %v2835
      %2853 = vmatprep.subr.bf16.mxu0 0
      %2854 = vmatpush1.bf16.msra.mxu0 %v2844
      %2855 = vmatprep.subr.bf16.mxu0 0
      %2856 = vmatpush1.bf16.msra.mxu0 %v2843
      %2857 = vmatprep.subr.bf16.mxu0 0
      %2858 = vmatpush1.bf16.msra.mxu0 %v2842
      %2859 = vmatprep.subr.bf16.mxu0 0
      %2860 = vmatpush1.bf16.msra.mxu0 %v2841
      %2861 = vmatprep.subr.bf16.mxu0 0
      %2862 = vmatpush1.bf16.msra.mxu0 %v2840
      %2863 = vmatprep.subr.bf16.mxu0 0
      %2864 = vmatpush1.bf16.msra.mxu0 %v2839
      %2865 = vmatprep.subr.bf16.mxu0 0
      %2866 = vmatpush1.bf16.msra.mxu0 %v2838
      %2867 = vmatprep.subr.bf16.mxu0 0
      %2868 = vmatpush1.bf16.msra.mxu0 %v2837
      %2869 = vmatprep.subr.bf16.mxu0 0
      %2870 = vmatpush2.bf16.msra.mxu0 0
      %2871 = vmatprep.subr.bf16.mxu0 0
      %2872 = vmatpush2.bf16.msra.mxu0 0
      %2873 = vmatprep.subr.bf16.mxu0 0
      %2874 = vmatpush2.bf16.msra.mxu0 0
      %2875 = vmatprep.subr.bf16.mxu0 0
      %2876 = vmatpush2.bf16.msra.mxu0 0
      %2877 = vmatprep.subr.bf16.mxu0 0
      %2878 = vmatpush2.bf16.msra.mxu0 0
      %2879 = vmatprep.subr.bf16.mxu0 0
      %2880 = vmatpush2.bf16.msra.mxu0 0
      %2881 = vmatprep.subr.bf16.mxu0 0
      %2882 = vmatpush2.bf16.msra.mxu0 0
      %2883 = vmatprep.subr.bf16.mxu0 0
      %2884 = vmatpush2.bf16.msra.mxu0 0
      %2885 = vmatprep.mubr.bf16.mxu0 0
      %2886 = vmatmul.mubr.bf16.gmra.mxu0 %v2789
      %v2887 = vpop.f32.mrf.mxu0
      %v2888 = vadd.f32 0.0, %v2887
      %v2889 = vpop.f32.mrf.mxu0
      %v2890 = vpop.f32.mrf.mxu0
      %v2891 = vadd.f32 0.0, %v2890
      %v2892 = vpop.f32.mrf.mxu0
      %2893 = vmatprep.mubr.bf16.mxu0 0
      %2894 = vmatmul.mubr.bf16.gmra.mxu0 %v2790
      %v2895 = vpop.f32.mrf.mxu0
      %v2896 = vadd.f32 0.0, %v2895
      %v2897 = vpop.f32.mrf.mxu0
      %v2898 = vpop.f32.mrf.mxu0
      %v2899 = vadd.f32 0.0, %v2898
      %v2900 = vpop.f32.mrf.mxu0
      %2901 = vmatprep.mubr.bf16.mxu0 0
      %2902 = vmatmul.mubr.bf16.gmra.mxu0 %v2791
      %v2903 = vpop.f32.mrf.mxu0
      %v2904 = vadd.f32 0.0, %v2903
      %v2905 = vpop.f32.mrf.mxu0
      %v2906 = vpop.f32.mrf.mxu0
      %v2907 = vadd.f32 0.0, %v2906
      %v2908 = vpop.f32.mrf.mxu0
      %2909 = vmatprep.mubr.bf16.mxu0 0
      %2910 = vmatmul.mubr.bf16.gmra.mxu0 %v2792
      %v2911 = vpop.f32.mrf.mxu0
      %v2912 = vadd.f32 0.0, %v2911
      %v2913 = vpop.f32.mrf.mxu0
      %v2914 = vpop.f32.mrf.mxu0
      %v2915 = vadd.f32 0.0, %v2914
      %v2916 = vpop.f32.mrf.mxu0
      %2917 = vmatprep.mubr.bf16.mxu0 0
      %2918 = vmatmul.mubr.bf16.gmra.mxu0 %v2793
      %v2919 = vpop.f32.mrf.mxu0
      %v2920 = vadd.f32 0.0, %v2919
      %v2921 = vpop.f32.mrf.mxu0
      %v2922 = vpop.f32.mrf.mxu0
      %v2923 = vadd.f32 0.0, %v2922
      %v2924 = vpop.f32.mrf.mxu0
      %2925 = vmatprep.mubr.bf16.mxu0 0
      %2926 = vmatmul.mubr.bf16.gmra.mxu0 %v2794
      %v2927 = vpop.f32.mrf.mxu0
      %v2928 = vadd.f32 0.0, %v2927
      %v2929 = vpop.f32.mrf.mxu0
      %v2930 = vpop.f32.mrf.mxu0
      %v2931 = vadd.f32 0.0, %v2930
      %v2932 = vpop.f32.mrf.mxu0
      %2933 = vmatprep.mubr.bf16.mxu0 0
      %2934 = vmatmul.mubr.bf16.gmra.mxu0 %v2795
      %v2935 = vpop.f32.mrf.mxu0
      %v2936 = vadd.f32 0.0, %v2935
      %v2937 = vpop.f32.mrf.mxu0
      %v2938 = vpop.f32.mrf.mxu0
      %v2939 = vadd.f32 0.0, %v2938
      %v2940 = vpop.f32.mrf.mxu0
      %2941 = vmatprep.mubr.bf16.mxu0 0
      %2942 = vmatmul.mubr.bf16.gmra.mxu0 %v2796
      %v2943 = vpop.f32.mrf.mxu0
      %v2944 = vadd.f32 0.0, %v2943
      %v2945 = vpop.f32.mrf.mxu0
      %v2946 = vpop.f32.mrf.mxu0
      %v2947 = vadd.f32 0.0, %v2946
      %v2948 = vpop.f32.mrf.mxu0
      %2949 = vdwg.mxu0
      %v2950 = vadd.f32 %v2707, %v2888
      %v2951 = vadd.f32 %v2708, %v2891
      %v2952 = vadd.f32 %v2709, %v2896
      %v2953 = vadd.f32 %v2710, %v2899
      %v2954 = vadd.f32 %v2711, %v2904
      %v2955 = vadd.f32 %v2712, %v2907
      %v2956 = vadd.f32 %v2713, %v2912
      %v2957 = vadd.f32 %v2714, %v2915
      %v2958 = vadd.f32 %v2715, %v2920
      %v2959 = vadd.f32 %v2716, %v2923
      %v2960 = vadd.f32 %v2717, %v2928
      %v2961 = vadd.f32 %v2718, %v2931
      %v2962 = vadd.f32 %v2719, %v2936
      %v2963 = vadd.f32 %v2720, %v2939
      %v2964 = vadd.f32 %v2721, %v2944
      %v2965 = vadd.f32 %v2722, %v2947
      %v2966 = vld [vmem:[%s2723] sm:$0xf]
      %v2967 = vld [vmem:[%s2723 + $0x4] sm:$0xf]
      %v2968 = vld [vmem:[%s2723 + $0x8] sm:$0x1]
      %v2969 = vld [vmem:[%s2723 + $0xc] sm:$0xf]
      %v2970 = vld [vmem:[%s2723 + $0x10] sm:$0xf]
      %v2971 = vld [vmem:[%s2723 + $0x14] sm:$0x1]
      %v2972 = vld [vmem:[%s2723 + $0x18] sm:$0xf]
      %v2973 = vld [vmem:[%s2723 + $0x1c] sm:$0xf]
      %v2974 = vld [vmem:[%s2723 + $0x20] sm:$0x1]
      %v2975 = vld [vmem:[%s2723 + $0x24] sm:$0xf]
      %v2976 = vld [vmem:[%s2723 + $0x28] sm:$0xf]
      %v2977 = vld [vmem:[%s2723 + $0x2c] sm:$0x1]
      %v2978 = vld [vmem:[%s2723 + $0x30] sm:$0xf]
      %v2979 = vld [vmem:[%s2723 + $0x34] sm:$0xf]
      %v2980 = vld [vmem:[%s2723 + $0x38] sm:$0x1]
      %v2981 = vld [vmem:[%s2723 + $0x3c] sm:$0xf]
      %v2982 = vld [vmem:[%s2723 + $0x40] sm:$0xf]
      %v2983 = vld [vmem:[%s2723 + $0x44] sm:$0x1]
      %v2984 = vld [vmem:[%s2723 + $0x48] sm:$0xf]
      %v2985 = vld [vmem:[%s2723 + $0x4c] sm:$0xf]
      %v2986 = vld [vmem:[%s2723 + $0x50] sm:$0x1]
      %v2987 = vld [vmem:[%s2723 + $0x54] sm:$0xf]
      %v2988 = vld [vmem:[%s2723 + $0x58] sm:$0xf]
      %v2989 = vld [vmem:[%s2723 + $0x5c] sm:$0x1]
      %v2991 = vshrl.u32 %v2966, 16
      %v2993 = vrot.slane %v2991, 4
      %v2994 = vshll.u32 %v2966, 16
      %v2996 = vrot.slane %v2994, 5
      %v2997 = vor.u32 %v2993, %v2996
      %v2998 = vrot.slane %v2997, 4
      %v3000 = vshll.u32 %v2967, 16
      %v3002 = vrot.slane %v3000, 5
      %v3003 = vsel %vm884, %v2998, %v3002
      %v3004 = vshrl.u32 %v2967, 16
      %v3006 = vrot.slane %v3004, 4
      %v3007 = vor.u32 %v3006, %v3002
      %v3008 = vrot.slane %v3007, 4
      %v3010 = vshll.u32 %v2968, 16
      %v3012 = vrot.slane %v3010, 5
      %v3013 = vsel %vm884, %v3008, %v3012
      %v3015 = vshrl.u32 %v2969, 16
      %v3017 = vrot.slane %v3015, 4
      %v3018 = vshll.u32 %v2969, 16
      %v3020 = vrot.slane %v3018, 5
      %v3021 = vor.u32 %v3017, %v3020
      %v3022 = vrot.slane %v3021, 4
      %v3024 = vshll.u32 %v2970, 16
      %v3026 = vrot.slane %v3024, 5
      %v3027 = vsel %vm884, %v3022, %v3026
      %v3028 = vshrl.u32 %v2970, 16
      %v3030 = vrot.slane %v3028, 4
      %v3031 = vor.u32 %v3030, %v3026
      %v3032 = vrot.slane %v3031, 4
      %v3034 = vshll.u32 %v2971, 16
      %v3036 = vrot.slane %v3034, 5
      %v3037 = vsel %vm884, %v3032, %v3036
      %v3039 = vshrl.u32 %v2972, 16
      %v3041 = vrot.slane %v3039, 4
      %v3042 = vshll.u32 %v2972, 16
      %v3044 = vrot.slane %v3042, 5
      %v3045 = vor.u32 %v3041, %v3044
      %v3046 = vrot.slane %v3045, 4
      %v3048 = vshll.u32 %v2973, 16
      %v3050 = vrot.slane %v3048, 5
      %v3051 = vsel %vm884, %v3046, %v3050
      %v3052 = vshrl.u32 %v2973, 16
      %v3054 = vrot.slane %v3052, 4
      %v3055 = vor.u32 %v3054, %v3050
      %v3056 = vrot.slane %v3055, 4
      %v3058 = vshll.u32 %v2974, 16
      %v3060 = vrot.slane %v3058, 5
      %v3061 = vsel %vm884, %v3056, %v3060
      %v3063 = vshrl.u32 %v2975, 16
      %v3065 = vrot.slane %v3063, 4
      %v3066 = vshll.u32 %v2975, 16
      %v3068 = vrot.slane %v3066, 5
      %v3069 = vor.u32 %v3065, %v3068
      %v3070 = vrot.slane %v3069, 4
      %v3072 = vshll.u32 %v2976, 16
      %v3074 = vrot.slane %v3072, 5
      %v3075 = vsel %vm884, %v3070, %v3074
      %v3076 = vshrl.u32 %v2976, 16
      %v3078 = vrot.slane %v3076, 4
      %v3079 = vor.u32 %v3078, %v3074
      %v3080 = vrot.slane %v3079, 4
      %v3082 = vshll.u32 %v2977, 16
      %v3084 = vrot.slane %v3082, 5
      %v3085 = vsel %vm884, %v3080, %v3084
      %v3087 = vshrl.u32 %v2978, 16
      %v3089 = vrot.slane %v3087, 4
      %v3090 = vshll.u32 %v2978, 16
      %v3092 = vrot.slane %v3090, 5
      %v3093 = vor.u32 %v3089, %v3092
      %v3094 = vrot.slane %v3093, 4
      %v3096 = vshll.u32 %v2979, 16
      %v3098 = vrot.slane %v3096, 5
      %v3099 = vsel %vm884, %v3094, %v3098
      %v3100 = vshrl.u32 %v2979, 16
      %v3102 = vrot.slane %v3100, 4
      %v3103 = vor.u32 %v3102, %v3098
      %v3104 = vrot.slane %v3103, 4
      %v3106 = vshll.u32 %v2980, 16
      %v3108 = vrot.slane %v3106, 5
      %v3109 = vsel %vm884, %v3104, %v3108
      %v3111 = vshrl.u32 %v2981, 16
      %v3113 = vrot.slane %v3111, 4
      %v3114 = vshll.u32 %v2981, 16
      %v3116 = vrot.slane %v3114, 5
      %v3117 = vor.u32 %v3113, %v3116
      %v3118 = vrot.slane %v3117, 4
      %v3120 = vshll.u32 %v2982, 16
      %v3122 = vrot.slane %v3120, 5
      %v3123 = vsel %vm884, %v3118, %v3122
      %v3124 = vshrl.u32 %v2982, 16
      %v3126 = vrot.slane %v3124, 4
      %v3127 = vor.u32 %v3126, %v3122
      %v3128 = vrot.slane %v3127, 4
      %v3130 = vshll.u32 %v2983, 16
      %v3132 = vrot.slane %v3130, 5
      %v3133 = vsel %vm884, %v3128, %v3132
      %v3135 = vshrl.u32 %v2984, 16
      %v3137 = vrot.slane %v3135, 4
      %v3138 = vshll.u32 %v2984, 16
      %v3140 = vrot.slane %v3138, 5
      %v3141 = vor.u32 %v3137, %v3140
      %v3142 = vrot.slane %v3141, 4
      %v3144 = vshll.u32 %v2985, 16
      %v3146 = vrot.slane %v3144, 5
      %v3147 = vsel %vm884, %v3142, %v3146
      %v3148 = vshrl.u32 %v2985, 16
      %v3150 = vrot.slane %v3148, 4
      %v3151 = vor.u32 %v3150, %v3146
      %v3152 = vrot.slane %v3151, 4
      %v3154 = vshll.u32 %v2986, 16
      %v3156 = vrot.slane %v3154, 5
      %v3157 = vsel %vm884, %v3152, %v3156
      %v3159 = vshrl.u32 %v2987, 16
      %v3161 = vrot.slane %v3159, 4
      %v3162 = vshll.u32 %v2987, 16
      %v3164 = vrot.slane %v3162, 5
      %v3165 = vor.u32 %v3161, %v3164
      %v3166 = vrot.slane %v3165, 4
      %v3168 = vshll.u32 %v2988, 16
      %v3170 = vrot.slane %v3168, 5
      %v3171 = vsel %vm884, %v3166, %v3170
      %v3172 = vshrl.u32 %v2988, 16
      %v3174 = vrot.slane %v3172, 4
      %v3175 = vor.u32 %v3174, %v3170
      %v3176 = vrot.slane %v3175, 4
      %v3178 = vshll.u32 %v2989, 16
      %v3180 = vrot.slane %v3178, 5
      %v3181 = vsel %vm884, %v3176, %v3180
      %s3182 = scalar_lea.vmem %s4, 448
      %v3183 = vld [vmem:[%s3182] sm:$0xf]
      %v3184 = vld [vmem:[%s3182 + $0x4] sm:$0xf]
      %v3185 = vld [vmem:[%s3182 + $0x8] sm:$0xf]
      %v3186 = vld [vmem:[%s3182 + $0xc] sm:$0xf]
      %v3187 = vld [vmem:[%s3182 + $0x10] sm:$0xf]
      %v3188 = vld [vmem:[%s3182 + $0x14] sm:$0xf]
      %v3189 = vld [vmem:[%s3182 + $0x18] sm:$0xf]
      %v3190 = vld [vmem:[%s3182 + $0x1c] sm:$0xf]
      %v3191 = vld [vmem:[%s3182 + $0x20] sm:$0xf]
      %v3192 = vld [vmem:[%s3182 + $0x24] sm:$0xf]
      %v3193 = vld [vmem:[%s3182 + $0x28] sm:$0xf]
      %v3194 = vld [vmem:[%s3182 + $0x2c] sm:$0xf]
      %v3195 = vld [vmem:[%s3182 + $0x30] sm:$0xf]
      %v3196 = vld [vmem:[%s3182 + $0x34] sm:$0xf]
      %v3197 = vld [vmem:[%s3182 + $0x38] sm:$0xf]
      %v3198 = vld [vmem:[%s3182 + $0x3c] sm:$0xf]
      %v3199 = vunpack.c.l.b16 %v3003
      %v3200 = vunpack.c.l.b16 %v3013
      %v3201 = vunpack.c.l.b16 %v3027
      %v3202 = vunpack.c.l.b16 %v3037
      %v3203 = vunpack.c.l.b16 %v3051
      %v3204 = vunpack.c.l.b16 %v3061
      %v3205 = vunpack.c.l.b16 %v3075
      %v3206 = vunpack.c.l.b16 %v3085
      %v3207 = vunpack.c.l.b16 %v3099
      %v3208 = vunpack.c.l.b16 %v3109
      %v3209 = vunpack.c.l.b16 %v3123
      %v3210 = vunpack.c.l.b16 %v3133
      %v3211 = vunpack.c.l.b16 %v3147
      %v3212 = vunpack.c.l.b16 %v3157
      %v3213 = vunpack.c.l.b16 %v3171
      %v3214 = vunpack.c.l.b16 %v3181
      %v3215 = vpack.c.b16 %v3200, %v3199
      %v3216 = vpack.c.b16 %v3202, %v3201
      %v3217 = vpack.c.b16 %v3204, %v3203
      %v3218 = vpack.c.b16 %v3206, %v3205
      %v3219 = vpack.c.b16 %v3208, %v3207
      %v3220 = vpack.c.b16 %v3210, %v3209
      %v3221 = vpack.c.b16 %v3212, %v3211
      %v3222 = vpack.c.b16 %v3214, %v3213
      %v3247 = vunpack.c.l.b16 %v3183
      %v3248 = vunpack.c.l.b16 %v3184
      %v3249 = vunpack.c.l.b16 %v3185
      %v3250 = vunpack.c.l.b16 %v3186
      %v3251 = vunpack.c.l.b16 %v3187
      %v3252 = vunpack.c.l.b16 %v3188
      %v3253 = vunpack.c.l.b16 %v3189
      %v3254 = vunpack.c.l.b16 %v3190
      %v3255 = vunpack.c.l.b16 %v3191
      %v3256 = vunpack.c.l.b16 %v3192
      %v3257 = vunpack.c.l.b16 %v3193
      %v3258 = vunpack.c.l.b16 %v3194
      %v3259 = vunpack.c.l.b16 %v3195
      %v3260 = vunpack.c.l.b16 %v3196
      %v3261 = vunpack.c.l.b16 %v3197
      %v3262 = vunpack.c.l.b16 %v3198
      %v3263 = vpack.c.b16 %v3248, %v3247
      %v3264 = vpack.c.b16 %v3250, %v3249
      %v3265 = vpack.c.b16 %v3252, %v3251
      %v3266 = vpack.c.b16 %v3254, %v3253
      %v3267 = vpack.c.b16 %v3256, %v3255
      %v3268 = vpack.c.b16 %v3258, %v3257
      %v3269 = vpack.c.b16 %v3260, %v3259
      %v3270 = vpack.c.b16 %v3262, %v3261
      %3279 = vmatprep.subr.bf16.mxu0 0
      %3280 = vmatpush1.bf16.msra.mxu0 %v3270
      %3281 = vmatprep.subr.bf16.mxu0 0
      %3282 = vmatpush1.bf16.msra.mxu0 %v3269
      %3283 = vmatprep.subr.bf16.mxu0 0
      %3284 = vmatpush1.bf16.msra.mxu0 %v3268
      %3285 = vmatprep.subr.bf16.mxu0 0
      %3286 = vmatpush1.bf16.msra.mxu0 %v3267
      %3287 = vmatprep.subr.bf16.mxu0 0
      %3288 = vmatpush1.bf16.msra.mxu0 %v3266
      %3289 = vmatprep.subr.bf16.mxu0 0
      %3290 = vmatpush1.bf16.msra.mxu0 %v3265
      %3291 = vmatprep.subr.bf16.mxu0 0
      %3292 = vmatpush1.bf16.msra.mxu0 %v3264
      %3293 = vmatprep.subr.bf16.mxu0 0
      %3294 = vmatpush1.bf16.msra.mxu0 %v3263
      %3295 = vmatprep.subr.bf16.mxu0 0
      %3296 = vmatpush2.bf16.msra.mxu0 0
      %3297 = vmatprep.subr.bf16.mxu0 0
      %3298 = vmatpush2.bf16.msra.mxu0 0
      %3299 = vmatprep.subr.bf16.mxu0 0
      %3300 = vmatpush2.bf16.msra.mxu0 0
      %3301 = vmatprep.subr.bf16.mxu0 0
      %3302 = vmatpush2.bf16.msra.mxu0 0
      %3303 = vmatprep.subr.bf16.mxu0 0
      %3304 = vmatpush2.bf16.msra.mxu0 0
      %3305 = vmatprep.subr.bf16.mxu0 0
      %3306 = vmatpush2.bf16.msra.mxu0 0
      %3307 = vmatprep.subr.bf16.mxu0 0
      %3308 = vmatpush2.bf16.msra.mxu0 0
      %3309 = vmatprep.subr.bf16.mxu0 0
      %3310 = vmatpush2.bf16.msra.mxu0 0
      %3311 = vmatprep.mubr.bf16.mxu0 0
      %3312 = vmatmul.mubr.bf16.gmra.mxu0 %v3215
      %v3313 = vpop.f32.mrf.mxu0
      %v3314 = vadd.f32 0.0, %v3313
      %v3315 = vpop.f32.mrf.mxu0
      %v3316 = vpop.f32.mrf.mxu0
      %v3317 = vadd.f32 0.0, %v3316
      %v3318 = vpop.f32.mrf.mxu0
      %3319 = vmatprep.mubr.bf16.mxu0 0
      %3320 = vmatmul.mubr.bf16.gmra.mxu0 %v3216
      %v3321 = vpop.f32.mrf.mxu0
      %v3322 = vadd.f32 0.0, %v3321
      %v3323 = vpop.f32.mrf.mxu0
      %v3324 = vpop.f32.mrf.mxu0
      %v3325 = vadd.f32 0.0, %v3324
      %v3326 = vpop.f32.mrf.mxu0
      %3327 = vmatprep.mubr.bf16.mxu0 0
      %3328 = vmatmul.mubr.bf16.gmra.mxu0 %v3217
      %v3329 = vpop.f32.mrf.mxu0
      %v3330 = vadd.f32 0.0, %v3329
      %v3331 = vpop.f32.mrf.mxu0
      %v3332 = vpop.f32.mrf.mxu0
      %v3333 = vadd.f32 0.0, %v3332
      %v3334 = vpop.f32.mrf.mxu0
      %3335 = vmatprep.mubr.bf16.mxu0 0
      %3336 = vmatmul.mubr.bf16.gmra.mxu0 %v3218
      %v3337 = vpop.f32.mrf.mxu0
      %v3338 = vadd.f32 0.0, %v3337
      %v3339 = vpop.f32.mrf.mxu0
      %v3340 = vpop.f32.mrf.mxu0
      %v3341 = vadd.f32 0.0, %v3340
      %v3342 = vpop.f32.mrf.mxu0
      %3343 = vmatprep.mubr.bf16.mxu0 0
      %3344 = vmatmul.mubr.bf16.gmra.mxu0 %v3219
      %v3345 = vpop.f32.mrf.mxu0
      %v3346 = vadd.f32 0.0, %v3345
      %v3347 = vpop.f32.mrf.mxu0
      %v3348 = vpop.f32.mrf.mxu0
      %v3349 = vadd.f32 0.0, %v3348
      %v3350 = vpop.f32.mrf.mxu0
      %3351 = vmatprep.mubr.bf16.mxu0 0
      %3352 = vmatmul.mubr.bf16.gmra.mxu0 %v3220
      %v3353 = vpop.f32.mrf.mxu0
      %v3354 = vadd.f32 0.0, %v3353
      %v3355 = vpop.f32.mrf.mxu0
      %v3356 = vpop.f32.mrf.mxu0
      %v3357 = vadd.f32 0.0, %v3356
      %v3358 = vpop.f32.mrf.mxu0
      %3359 = vmatprep.mubr.bf16.mxu0 0
      %3360 = vmatmul.mubr.bf16.gmra.mxu0 %v3221
      %v3361 = vpop.f32.mrf.mxu0
      %v3362 = vadd.f32 0.0, %v3361
      %v3363 = vpop.f32.mrf.mxu0
      %v3364 = vpop.f32.mrf.mxu0
      %v3365 = vadd.f32 0.0, %v3364
      %v3366 = vpop.f32.mrf.mxu0
      %3367 = vmatprep.mubr.bf16.mxu0 0
      %3368 = vmatmul.mubr.bf16.gmra.mxu0 %v3222
      %v3369 = vpop.f32.mrf.mxu0
      %v3370 = vadd.f32 0.0, %v3369
      %v3371 = vpop.f32.mrf.mxu0
      %v3372 = vpop.f32.mrf.mxu0
      %v3373 = vadd.f32 0.0, %v3372
      %v3374 = vpop.f32.mrf.mxu0
      %3375 = vdwg.mxu0
      %v3376 = vadd.f32 %v2950, %v3314
      %v3377 = vadd.f32 %v2951, %v3317
      %v3378 = vadd.f32 %v2952, %v3322
      %v3379 = vadd.f32 %v2953, %v3325
      %v3380 = vadd.f32 %v2954, %v3330
      %v3381 = vadd.f32 %v2955, %v3333
      %v3382 = vadd.f32 %v2956, %v3338
      %v3383 = vadd.f32 %v2957, %v3341
      %v3384 = vadd.f32 %v2958, %v3346
      %v3385 = vadd.f32 %v2959, %v3349
      %v3386 = vadd.f32 %v2960, %v3354
      %v3387 = vadd.f32 %v2961, %v3357
      %v3388 = vadd.f32 %v2962, %v3362
      %v3389 = vadd.f32 %v2963, %v3365
      %v3390 = vadd.f32 %v2964, %v3370
      %v3391 = vadd.f32 %v2965, %v3373
      %v3392 = vld [vmem:[%s2723] sm:$0xe]
      %v3393 = vld [vmem:[%s2723 + $0xc] sm:$0xe]
      %v3394 = vld [vmem:[%s2723 + $0x18] sm:$0xe]
      %v3395 = vld [vmem:[%s2723 + $0x24] sm:$0xe]
      %v3396 = vld [vmem:[%s2723 + $0x30] sm:$0xe]
      %v3397 = vld [vmem:[%s2723 + $0x3c] sm:$0xe]
      %v3398 = vld [vmem:[%s2723 + $0x48] sm:$0xe]
      %v3399 = vld [vmem:[%s2723 + $0x54] sm:$0xe]
      %v3424 = vrot.slane %v3392, 5
      %v3425 = vrot.slane %v3424, 4
      %v3426 = vrot.slane %v2967, 5
      %v3427 = vsel %vm1490, %v3425, %v3426
      %v3428 = vrot.slane %v3426, 4
      %v3429 = vrot.slane %v2968, 5
      %v3430 = vsel %vm1490, %v3428, %v3429
      %v3431 = vrot.slane %v3393, 5
      %v3432 = vrot.slane %v3431, 4
      %v3433 = vrot.slane %v2970, 5
      %v3434 = vsel %vm1490, %v3432, %v3433
      %v3435 = vrot.slane %v3433, 4
      %v3436 = vrot.slane %v2971, 5
      %v3437 = vsel %vm1490, %v3435, %v3436
      %v3438 = vrot.slane %v3394, 5
      %v3439 = vrot.slane %v3438, 4
      %v3440 = vrot.slane %v2973, 5
      %v3441 = vsel %vm1490, %v3439, %v3440
      %v3442 = vrot.slane %v3440, 4
      %v3443 = vrot.slane %v2974, 5
      %v3444 = vsel %vm1490, %v3442, %v3443
      %v3445 = vrot.slane %v3395, 5
      %v3446 = vrot.slane %v3445, 4
      %v3447 = vrot.slane %v2976, 5
      %v3448 = vsel %vm1490, %v3446, %v3447
      %v3449 = vrot.slane %v3447, 4
      %v3450 = vrot.slane %v2977, 5
      %v3451 = vsel %vm1490, %v3449, %v3450
      %v3452 = vrot.slane %v3396, 5
      %v3453 = vrot.slane %v3452, 4
      %v3454 = vrot.slane %v2979, 5
      %v3455 = vsel %vm1490, %v3453, %v3454
      %v3456 = vrot.slane %v3454, 4
      %v3457 = vrot.slane %v2980, 5
      %v3458 = vsel %vm1490, %v3456, %v3457
      %v3459 = vrot.slane %v3397, 5
      %v3460 = vrot.slane %v3459, 4
      %v3461 = vrot.slane %v2982, 5
      %v3462 = vsel %vm1490, %v3460, %v3461
      %v3463 = vrot.slane %v3461, 4
      %v3464 = vrot.slane %v2983, 5
      %v3465 = vsel %vm1490, %v3463, %v3464
      %v3466 = vrot.slane %v3398, 5
      %v3467 = vrot.slane %v3466, 4
      %v3468 = vrot.slane %v2985, 5
      %v3469 = vsel %vm1490, %v3467, %v3468
      %v3470 = vrot.slane %v3468, 4
      %v3471 = vrot.slane %v2986, 5
      %v3472 = vsel %vm1490, %v3470, %v3471
      %v3473 = vrot.slane %v3399, 5
      %v3474 = vrot.slane %v3473, 4
      %v3475 = vrot.slane %v2988, 5
      %v3476 = vsel %vm1490, %v3474, %v3475
      %v3477 = vrot.slane %v3475, 4
      %v3478 = vrot.slane %v2989, 5
      %v3479 = vsel %vm1490, %v3477, %v3478
      %s3480 = scalar_lea.vmem %s4, 512
      %v3481 = vld [vmem:[%s3480] sm:$0xf]
      %v3482 = vld [vmem:[%s3480 + $0x4] sm:$0xf]
      %v3483 = vld [vmem:[%s3480 + $0x8] sm:$0xf]
      %v3484 = vld [vmem:[%s3480 + $0xc] sm:$0xf]
      %v3485 = vld [vmem:[%s3480 + $0x10] sm:$0xf]
      %v3486 = vld [vmem:[%s3480 + $0x14] sm:$0xf]
      %v3487 = vld [vmem:[%s3480 + $0x18] sm:$0xf]
      %v3488 = vld [vmem:[%s3480 + $0x1c] sm:$0xf]
      %v3489 = vld [vmem:[%s3480 + $0x20] sm:$0xf]
      %v3490 = vld [vmem:[%s3480 + $0x24] sm:$0xf]
      %v3491 = vld [vmem:[%s3480 + $0x28] sm:$0xf]
      %v3492 = vld [vmem:[%s3480 + $0x2c] sm:$0xf]
      %v3493 = vld [vmem:[%s3480 + $0x30] sm:$0xf]
      %v3494 = vld [vmem:[%s3480 + $0x34] sm:$0xf]
      %v3495 = vld [vmem:[%s3480 + $0x38] sm:$0xf]
      %v3496 = vld [vmem:[%s3480 + $0x3c] sm:$0xf]
      %v3497 = vunpack.c.l.b16 %v3427
      %v3498 = vunpack.c.l.b16 %v3430
      %v3499 = vunpack.c.l.b16 %v3434
      %v3500 = vunpack.c.l.b16 %v3437
      %v3501 = vunpack.c.l.b16 %v3441
      %v3502 = vunpack.c.l.b16 %v3444
      %v3503 = vunpack.c.l.b16 %v3448
      %v3504 = vunpack.c.l.b16 %v3451
      %v3505 = vunpack.c.l.b16 %v3455
      %v3506 = vunpack.c.l.b16 %v3458
      %v3507 = vunpack.c.l.b16 %v3462
      %v3508 = vunpack.c.l.b16 %v3465
      %v3509 = vunpack.c.l.b16 %v3469
      %v3510 = vunpack.c.l.b16 %v3472
      %v3511 = vunpack.c.l.b16 %v3476
      %v3512 = vunpack.c.l.b16 %v3479
      %v3513 = vpack.c.b16 %v3498, %v3497
      %v3514 = vpack.c.b16 %v3500, %v3499
      %v3515 = vpack.c.b16 %v3502, %v3501
      %v3516 = vpack.c.b16 %v3504, %v3503
      %v3517 = vpack.c.b16 %v3506, %v3505
      %v3518 = vpack.c.b16 %v3508, %v3507
      %v3519 = vpack.c.b16 %v3510, %v3509
      %v3520 = vpack.c.b16 %v3512, %v3511
      %v3545 = vunpack.c.l.b16 %v3481
      %v3546 = vunpack.c.l.b16 %v3482
      %v3547 = vunpack.c.l.b16 %v3483
      %v3548 = vunpack.c.l.b16 %v3484
      %v3549 = vunpack.c.l.b16 %v3485
      %v3550 = vunpack.c.l.b16 %v3486
      %v3551 = vunpack.c.l.b16 %v3487
      %v3552 = vunpack.c.l.b16 %v3488
      %v3553 = vunpack.c.l.b16 %v3489
      %v3554 = vunpack.c.l.b16 %v3490
      %v3555 = vunpack.c.l.b16 %v3491
      %v3556 = vunpack.c.l.b16 %v3492
      %v3557 = vunpack.c.l.b16 %v3493
      %v3558 = vunpack.c.l.b16 %v3494
      %v3559 = vunpack.c.l.b16 %v3495
      %v3560 = vunpack.c.l.b16 %v3496
      %v3561 = vpack.c.b16 %v3546, %v3545
      %v3562 = vpack.c.b16 %v3548, %v3547
      %v3563 = vpack.c.b16 %v3550, %v3549
      %v3564 = vpack.c.b16 %v3552, %v3551
      %v3565 = vpack.c.b16 %v3554, %v3553
      %v3566 = vpack.c.b16 %v3556, %v3555
      %v3567 = vpack.c.b16 %v3558, %v3557
      %v3568 = vpack.c.b16 %v3560, %v3559
      %3577 = vmatprep.subr.bf16.mxu0 0
      %3578 = vmatpush1.bf16.msra.mxu0 %v3568
      %3579 = vmatprep.subr.bf16.mxu0 0
      %3580 = vmatpush1.bf16.msra.mxu0 %v3567
      %3581 = vmatprep.subr.bf16.mxu0 0
      %3582 = vmatpush1.bf16.msra.mxu0 %v3566
      %3583 = vmatprep.subr.bf16.mxu0 0
      %3584 = vmatpush1.bf16.msra.mxu0 %v3565
      %3585 = vmatprep.subr.bf16.mxu0 0
      %3586 = vmatpush1.bf16.msra.mxu0 %v3564
      %3587 = vmatprep.subr.bf16.mxu0 0
      %3588 = vmatpush1.bf16.msra.mxu0 %v3563
      %3589 = vmatprep.subr.bf16.mxu0 0
      %3590 = vmatpush1.bf16.msra.mxu0 %v3562
      %3591 = vmatprep.subr.bf16.mxu0 0
      %3592 = vmatpush1.bf16.msra.mxu0 %v3561
      %3593 = vmatprep.subr.bf16.mxu0 0
      %3594 = vmatpush2.bf16.msra.mxu0 0
      %3595 = vmatprep.subr.bf16.mxu0 0
      %3596 = vmatpush2.bf16.msra.mxu0 0
      %3597 = vmatprep.subr.bf16.mxu0 0
      %3598 = vmatpush2.bf16.msra.mxu0 0
      %3599 = vmatprep.subr.bf16.mxu0 0
      %3600 = vmatpush2.bf16.msra.mxu0 0
      %3601 = vmatprep.subr.bf16.mxu0 0
      %3602 = vmatpush2.bf16.msra.mxu0 0
      %3603 = vmatprep.subr.bf16.mxu0 0
      %3604 = vmatpush2.bf16.msra.mxu0 0
      %3605 = vmatprep.subr.bf16.mxu0 0
      %3606 = vmatpush2.bf16.msra.mxu0 0
      %3607 = vmatprep.subr.bf16.mxu0 0
      %3608 = vmatpush2.bf16.msra.mxu0 0
      %3609 = vmatprep.mubr.bf16.mxu0 0
      %3610 = vmatmul.mubr.bf16.gmra.mxu0 %v3513
      %v3611 = vpop.f32.mrf.mxu0
      %v3612 = vadd.f32 0.0, %v3611
      %v3613 = vpop.f32.mrf.mxu0
      %v3614 = vpop.f32.mrf.mxu0
      %v3615 = vadd.f32 0.0, %v3614
      %v3616 = vpop.f32.mrf.mxu0
      %3617 = vmatprep.mubr.bf16.mxu0 0
      %3618 = vmatmul.mubr.bf16.gmra.mxu0 %v3514
      %v3619 = vpop.f32.mrf.mxu0
      %v3620 = vadd.f32 0.0, %v3619
      %v3621 = vpop.f32.mrf.mxu0
      %v3622 = vpop.f32.mrf.mxu0
      %v3623 = vadd.f32 0.0, %v3622
      %v3624 = vpop.f32.mrf.mxu0
      %3625 = vmatprep.mubr.bf16.mxu0 0
      %3626 = vmatmul.mubr.bf16.gmra.mxu0 %v3515
      %v3627 = vpop.f32.mrf.mxu0
      %v3628 = vadd.f32 0.0, %v3627
      %v3629 = vpop.f32.mrf.mxu0
      %v3630 = vpop.f32.mrf.mxu0
      %v3631 = vadd.f32 0.0, %v3630
      %v3632 = vpop.f32.mrf.mxu0
      %3633 = vmatprep.mubr.bf16.mxu0 0
      %3634 = vmatmul.mubr.bf16.gmra.mxu0 %v3516
      %v3635 = vpop.f32.mrf.mxu0
      %v3636 = vadd.f32 0.0, %v3635
      %v3637 = vpop.f32.mrf.mxu0
      %v3638 = vpop.f32.mrf.mxu0
      %v3639 = vadd.f32 0.0, %v3638
      %v3640 = vpop.f32.mrf.mxu0
      %3641 = vmatprep.mubr.bf16.mxu0 0
      %3642 = vmatmul.mubr.bf16.gmra.mxu0 %v3517
      %v3643 = vpop.f32.mrf.mxu0
      %v3644 = vadd.f32 0.0, %v3643
      %v3645 = vpop.f32.mrf.mxu0
      %v3646 = vpop.f32.mrf.mxu0
      %v3647 = vadd.f32 0.0, %v3646
      %v3648 = vpop.f32.mrf.mxu0
      %3649 = vmatprep.mubr.bf16.mxu0 0
      %3650 = vmatmul.mubr.bf16.gmra.mxu0 %v3518
      %v3651 = vpop.f32.mrf.mxu0
      %v3652 = vadd.f32 0.0, %v3651
      %v3653 = vpop.f32.mrf.mxu0
      %v3654 = vpop.f32.mrf.mxu0
      %v3655 = vadd.f32 0.0, %v3654
      %v3656 = vpop.f32.mrf.mxu0
      %3657 = vmatprep.mubr.bf16.mxu0 0
      %3658 = vmatmul.mubr.bf16.gmra.mxu0 %v3519
      %v3659 = vpop.f32.mrf.mxu0
      %v3660 = vadd.f32 0.0, %v3659
      %v3661 = vpop.f32.mrf.mxu0
      %v3662 = vpop.f32.mrf.mxu0
      %v3663 = vadd.f32 0.0, %v3662
      %v3664 = vpop.f32.mrf.mxu0
      %3665 = vmatprep.mubr.bf16.mxu0 0
      %3666 = vmatmul.mubr.bf16.gmra.mxu0 %v3520
      %v3667 = vpop.f32.mrf.mxu0
      %v3668 = vadd.f32 0.0, %v3667
      %v3669 = vpop.f32.mrf.mxu0
      %v3670 = vpop.f32.mrf.mxu0
      %v3671 = vadd.f32 0.0, %v3670
      %v3672 = vpop.f32.mrf.mxu0
      %3673 = vdwg.mxu0
      %v3674 = vadd.f32 %v3376, %v3612
      %v3675 = vadd.f32 %v3377, %v3615
      %v3676 = vadd.f32 %v3378, %v3620
      %v3677 = vadd.f32 %v3379, %v3623
      %v3678 = vadd.f32 %v3380, %v3628
      %v3679 = vadd.f32 %v3381, %v3631
      %v3680 = vadd.f32 %v3382, %v3636
      %v3681 = vadd.f32 %v3383, %v3639
      %v3682 = vadd.f32 %v3384, %v3644
      %v3683 = vadd.f32 %v3385, %v3647
      %v3684 = vadd.f32 %v3386, %v3652
      %v3685 = vadd.f32 %v3387, %v3655
      %v3686 = vadd.f32 %v3388, %v3660
      %v3687 = vadd.f32 %v3389, %v3663
      %v3688 = vadd.f32 %v3390, %v3668
      %v3689 = vadd.f32 %v3391, %v3671
      %v3690 = vadd.f32 %v3674, %v3675
      %v3691 = vadd.f32 %v3690, %v3676
      %v3692 = vadd.f32 %v3691, %v3677
      %v3693 = vadd.f32 %v3692, %v3678
      %v3694 = vadd.f32 %v3693, %v3679
      %v3695 = vadd.f32 %v3694, %v3680
      %v3696 = vadd.f32 %v3695, %v3681
      %v3697 = vadd.f32 %v3696, %v3682
      %v3698 = vadd.f32 %v3697, %v3683
      %v3699 = vadd.f32 %v3698, %v3684
      %v3700 = vadd.f32 %v3699, %v3685
      %v3701 = vadd.f32 %v3700, %v3686
      %v3702 = vadd.f32 %v3701, %v3687
      %v3703 = vadd.f32 %v3702, %v3688
      %v3704 = vadd.f32 %v3703, %v3689
      %v3705 = vrot.slane %v3704, 4
      %v3706 = vadd.f32 %v3704, %v3705
      %v3707 = vrot.slane %v3706, 2
      %v3708 = vadd.f32 %v3706, %v3707
      %v3709 = vrot.slane %v3708, 1
      %v3710 = vadd.f32 %v3708, %v3709
      %3711 = vst [vmem:[%s457] sm:$0x1] %v3710
      %v3712 = vmul.f32 %v3674, %v3674
      %v3713 = vmul.f32 %v3675, %v3675
      %v3714 = vmul.f32 %v3676, %v3676
      %v3715 = vmul.f32 %v3677, %v3677
      %v3716 = vmul.f32 %v3678, %v3678
      %v3717 = vmul.f32 %v3679, %v3679
      %v3718 = vmul.f32 %v3680, %v3680
      %v3719 = vmul.f32 %v3681, %v3681
      %v3720 = vmul.f32 %v3682, %v3682
      %v3721 = vmul.f32 %v3683, %v3683
      %v3722 = vmul.f32 %v3684, %v3684
      %v3723 = vmul.f32 %v3685, %v3685
      %v3724 = vmul.f32 %v3686, %v3686
      %v3725 = vmul.f32 %v3687, %v3687
      %v3726 = vmul.f32 %v3688, %v3688
      %v3727 = vmul.f32 %v3689, %v3689
      %v3728 = vadd.f32 %v3712, %v3713
      %v3729 = vadd.f32 %v3728, %v3714
      %v3730 = vadd.f32 %v3729, %v3715
      %v3731 = vadd.f32 %v3730, %v3716
      %v3732 = vadd.f32 %v3731, %v3717
      %v3733 = vadd.f32 %v3732, %v3718
      %v3734 = vadd.f32 %v3733, %v3719
      %v3735 = vadd.f32 %v3734, %v3720
      %v3736 = vadd.f32 %v3735, %v3721
      %v3737 = vadd.f32 %v3736, %v3722
      %v3738 = vadd.f32 %v3737, %v3723
      %v3739 = vadd.f32 %v3738, %v3724
      %v3740 = vadd.f32 %v3739, %v3725
      %v3741 = vadd.f32 %v3740, %v3726
      %v3742 = vadd.f32 %v3741, %v3727
      %v3743 = vrot.slane %v3742, 4
      %v3744 = vadd.f32 %v3742, %v3743
      %v3745 = vrot.slane %v3744, 2
      %v3746 = vadd.f32 %v3744, %v3745
      %v3747 = vrot.slane %v3746, 1
      %v3748 = vadd.f32 %v3746, %v3747
      %3749 = vst [vmem:[%s457 + $0x1] sm:$0x1] %v3748
      %v3750 = vpack.c.bf16 %v3675, %v3674
      %v3751 = vpack.c.bf16 %v3677, %v3676
      %v3752 = vpack.c.bf16 %v3679, %v3678
      %v3753 = vpack.c.bf16 %v3681, %v3680
      %v3754 = vpack.c.bf16 %v3683, %v3682
      %v3755 = vpack.c.bf16 %v3685, %v3684
      %v3756 = vpack.c.bf16 %v3687, %v3686
      %v3757 = vpack.c.bf16 %v3689, %v3688
      %v3766 = vunpack.c.l.b16 %v3750
      %v3767 = vunpack.c.h.b16 %v3750
      %v3768 = vunpack.c.l.b16 %v3751
      %v3769 = vunpack.c.h.b16 %v3751
      %v3770 = vunpack.c.l.b16 %v3752
      %v3771 = vunpack.c.h.b16 %v3752
      %v3772 = vunpack.c.l.b16 %v3753
      %v3773 = vunpack.c.h.b16 %v3753
      %v3774 = vunpack.c.l.b16 %v3754
      %v3775 = vunpack.c.h.b16 %v3754
      %v3776 = vunpack.c.l.b16 %v3755
      %v3777 = vunpack.c.h.b16 %v3755
      %v3778 = vunpack.c.l.b16 %v3756
      %v3779 = vunpack.c.h.b16 %v3756
      %v3780 = vunpack.c.l.b16 %v3757
      %v3781 = vunpack.c.h.b16 %v3757
      %v3782 = vpack.c.b16 %v3766, %v3766
      %v3783 = vpack.c.b16 %v3767, %v3767
      %v3784 = vpack.c.b16 %v3768, %v3768
      %v3785 = vpack.c.b16 %v3769, %v3769
      %v3786 = vpack.c.b16 %v3770, %v3770
      %v3787 = vpack.c.b16 %v3771, %v3771
      %v3788 = vpack.c.b16 %v3772, %v3772
      %v3789 = vpack.c.b16 %v3773, %v3773
      %v3790 = vpack.c.b16 %v3774, %v3774
      %v3791 = vpack.c.b16 %v3775, %v3775
      %v3792 = vpack.c.b16 %v3776, %v3776
      %v3793 = vpack.c.b16 %v3777, %v3777
      %v3794 = vpack.c.b16 %v3778, %v3778
      %v3795 = vpack.c.b16 %v3779, %v3779
      %v3796 = vpack.c.b16 %v3780, %v3780
      %v3797 = vpack.c.b16 %v3781, %v3781
      %3814 = vst [vmem:[%s448] sm:$0xf] %v3782
      %3815 = vst [vmem:[%s448 + $0x4] sm:$0xf] %v3783
      %3816 = vst [vmem:[%s448 + $0x8] sm:$0xf] %v3784
      %3817 = vst [vmem:[%s448 + $0xc] sm:$0xf] %v3785
      %3818 = vst [vmem:[%s448 + $0x10] sm:$0xf] %v3786
      %3819 = vst [vmem:[%s448 + $0x14] sm:$0xf] %v3787
      %3820 = vst [vmem:[%s448 + $0x18] sm:$0xf] %v3788
      %3821 = vst [vmem:[%s448 + $0x1c] sm:$0xf] %v3789
      %3822 = vst [vmem:[%s448 + $0x20] sm:$0xf] %v3790
      %3823 = vst [vmem:[%s448 + $0x24] sm:$0xf] %v3791
      %3824 = vst [vmem:[%s448 + $0x28] sm:$0xf] %v3792
      %3825 = vst [vmem:[%s448 + $0x2c] sm:$0xf] %v3793
      %3826 = vst [vmem:[%s448 + $0x30] sm:$0xf] %v3794
      %3827 = vst [vmem:[%s448 + $0x34] sm:$0xf] %v3795
      %3828 = vst [vmem:[%s448 + $0x38] sm:$0xf] %v3796
      %3829 = vst [vmem:[%s448 + $0x3c] sm:$0xf] %v3797
      %s3830 = smul.u32 8, %s23
      %p3831 = scmp.lt.s32.totalorder %s22, 1
      %s3832 = scalar_select %p3831, %s22, 1
      %p3833 = scmp.lt.s32.totalorder %s3830, 15
      %s3834 = scalar_select %p3833, %s3830, 15
      %s3835 = smul.addr %s3834, 2
      %s3836 = smul.addr %s3832, 32
      %s3837 = sadd.s32 %s3835, %s3836
      %s3838 = smul.addr %s3837, 4
      %s3839 = scalar_lea.vmem %s5, %s3838
      %p3840 = scmp.lt.s32.totalorder %s22, 1
      %s3841 = scalar_select %p3840, %s22, 1
      %p3842 = scmp.lt.s32.totalorder %s23, 1
      %s3843 = scalar_select %p3842, %s23, 1
      %s3844 = smul.addr %s3841, 2
      %s3845 = sadd.s32 %s3843, %s3844
      %s3846 = smul.addr %s3845, 2
      %s3847 = scalar_lea.vmem %s6, %s3846
      // Predicated region
      $region41: #{upsampling_concat_forward.3} parent=39 // pred_check
        %p3848 = pneg %p197
      $region42: #{upsampling_concat_forward.3} parent=39 // pred_check_branch
        %3850 = sbr.rel (%p3848) target = $region44
      $region43: #{upsampling_concat_forward.3} parent=39 // pred_region
        %s3851 = smul.u32 8, %s23
      $region44: #{upsampling_concat_forward.3} parent=39 // pred_fallthru
        _
      // Predicated region
      $region45: #{upsampling_concat_forward.3} parent=39 // pred_check
        %p3852 = pneg %p225
      $region46: #{upsampling_concat_forward.3} parent=39 // pred_check_branch
        %3854 = sbr.rel (%p3852) target = $region48
      $region47: #{upsampling_concat_forward.3} parent=39 // pred_region
        _
      $region48: #{upsampling_concat_forward.3} parent=39 // pred_fallthru
        _
    $region40: #{upsampling_concat_forward.3} parent=5 // pred_fallthru
      _
    %p3855 = scmp.le.s32.totalorder 2, %s13
    // Predicated region
    $region49: #{upsampling_concat_forward.3} parent=5 // pred_check
      %p3856 = pneg %p3855
    $region50: #{upsampling_concat_forward.3} parent=5 // pred_check_branch
      %3858 = sbr.rel (%p3856) target = $region52
    $region51: #{upsampling_concat_forward.3} parent=5 // pred_region
      %s3859 = ssub.s32 %s13, 2
      // Predicated region
      $region53: #{upsampling_concat_forward.3} parent=51 // pred_check
        %p3860 = pneg %p203
      $region54: #{upsampling_concat_forward.3} parent=51 // pred_check_branch
        %3862 = sbr.rel (%p3860) target = $region56
      $region55: #{upsampling_concat_forward.3} parent=51 // pred_region
        %s3863 = smul.u32 8, %s25
        %p3864 = scmp.lt.s32.totalorder %s24, 1
        %s3865 = scalar_select %p3864, %s24, 1
        %p3866 = scmp.lt.s32.totalorder %s3863, 15
        %s3867 = scalar_select %p3866, %s3863, 15
        %s3868 = smul.addr %s3867, 2
        %s3869 = smul.addr %s3865, 32
        %s3870 = sadd.s32 %s3868, %s3869
        %s3871 = smul.addr %s3870, 4
        %s3872 = scalar_lea.vmem %s5, %s3871
      $region56: #{upsampling_concat_forward.3} parent=51 // pred_fallthru
        _
      // Predicated region
      $region57: #{upsampling_concat_forward.3} parent=51 // pred_check
        %p3873 = pneg %p231
      $region58: #{upsampling_concat_forward.3} parent=51 // pred_check_branch
        %3875 = sbr.rel (%p3873) target = $region60
      $region59: #{upsampling_concat_forward.3} parent=51 // pred_region
        %p3876 = scmp.lt.s32.totalorder %s24, 1
        %s3877 = scalar_select %p3876, %s24, 1
        %p3878 = scmp.lt.s32.totalorder %s25, 1
        %s3879 = scalar_select %p3878, %s25, 1
        %s3880 = smul.addr %s3877, 2
        %s3881 = sadd.s32 %s3879, %s3880
        %s3882 = smul.addr %s3881, 2
        %s3883 = scalar_lea.vmem %s6, %s3882
      $region60: #{upsampling_concat_forward.3} parent=51 // pred_fallthru
        _
    $region52: #{upsampling_concat_forward.3} parent=5 // pred_fallthru
      _
  $region6: #{upsampling_concat_forward.3} parent=0 // loop_footer
    %s17 = sadd.s32 1, %s13
  $region7: #{upsampling_concat_forward.3} parent=0 // loop_footer_branch
    %12 = sbr.rel target = $region3
  $region8: #{upsampling_concat_forward.3} parent=0 // loop_exit
    _

// kernel: upsampling_concat_forward.2
$region0: #{upsampling_concat_forward.2}
  #allocation0 [shape = 'u32[]', space=smem, size = 0x4, offset = 0x4, fixed_abs, tag = 'smem constant byte address 0x4 - core index']
  #allocation1 [shape = 'u32[144,128]{1,0:T(1,128)}', space=vmem, size = 0x12000, scoped, tag = 'internal scratch']
  #allocation2 [shape = 'bf16[10,18,128]{2,1,0:T(8,128)(2,1)}', space=vmem, size = 0xf000, scoped, tag = 'scratch operand']
  %s0 = inlined_call_operand.vmem [shape: bf16[2,18,18,128], index: 0, kind: input, shape index: {}, may-alias: {0,1,2}]
  %s1 = inlined_call_operand.vmem [shape: bf16[2,18,18,128], index: 1, kind: input, shape index: {}, may-alias: {0,1,2}]
  %s2 = inlined_call_operand.vmem [shape: bf16[2,18,18,128], index: 2, kind: input, shape index: {}, may-alias: {0,1,2}]
  %s3 = inlined_call_operand.vmem [shape: bf16[9,128,128], index: 3, kind: input, shape index: {}]
  %s4 = inlined_call_operand.vmem [shape: bf16[2,16,18,128], index: 4, kind: output, shape index: {0}]
  %s5 = inlined_call_operand.vmem [shape: f32[2,2,2,128], index: 5, kind: output, shape index: {1}]
  %6 = xla_tuple %s4, %s5
  %s7 = sld [smem:[#allocation0]]
  $region57: #{upsampling_concat_forward.2} parent=0
    _
  %s9 = ssub.s32 1, %s7
  %s10 = scalar_select 0, %s9, %s7
  loop: start=0, step=1, limit=6
  $region2: #{upsampling_concat_forward.2} parent=0 // loop_pre_header
    _
  $region3: #{upsampling_concat_forward.2} parent=0 // loop_header
    %s12 = sphi 0, %s16
    %p13 = scmp.ge.s32.totalorder %s12, 6
    %s19 = sphi 0, %s31
    %s20 = sphi 0, %s27
    %s21 = sphi 0, %s19
    %s22 = sphi 0, %s20
    %s23 = sphi 0, %s21
    %s24 = sphi 0, %s22
    %s36 = sphi 0, %s38
    %s39 = sphi 0, %s36
    %s40 = sphi 0, %s39
    %s56 = sphi 0, %s40
    %s68 = sphi 0, %s70
    %s71 = sphi 0, %s68
    %s72 = sphi 0, %s71
    %s88 = sphi 0, %s72
    %s102 = sphi 0, %s104
    %s105 = sphi 0, %s102
    %s106 = sphi 0, %s105
    %s122 = sphi 0, %s106
    %s126 = sphi 0, %s126
    %s128 = sphi 0, %s126
    %s129 = sphi 0, %s128
    %s143 = sphi 0, %s129
    %s151 = sphi 0, %s153
    %s154 = sphi 0, %s151
    %s155 = sphi 0, %s154
    %s171 = sphi 0, %s155
    %s179 = sphi 0, %s181
    %s182 = sphi 0, %s179
    %s183 = sphi 0, %s182
    %s199 = sphi 0, %s183
  $region4: #{upsampling_concat_forward.2} parent=0 // loop_header_branch
    %15 = sbr.rel (%p13) target = $region8
  $region5: #{upsampling_concat_forward.2} parent=0 // loop_body
    %s17 = ssub.s32 %s12, 1
    %s18 = ssub.s32 %s12, 2
    %s25 = sadd.s32 1, %s20
    %p26 = scmp.ge.s32.totalorder %s25, 2
    %s27 = scalar_select %p26, 0, %s25
    %s28 = sadd.s32 1, %s19
    %s29 = scalar_select %p26, %s28, %s19
    %p30 = scmp.ge.s32.totalorder %s29, 2
    %s31 = scalar_select %p30, 0, %s29
    %s32 = ssub.s32 %s19, %s31
    %s33 = ssub.s32 %s20, %s27
    %s34 = sor.u32 %s32, %s33
    %p35 = scmp.eq.s32.totalorder %s34, 0
    %s37 = sadd.s32 %s36, 1
    %s38 = scalar_select %p35, %s36, %s37
    %p41 = pneg %p35
    %p42 = scmp.eq.s32.totalorder %s12, 3
    %p43 = por %p41, %p42
    %p44 = scmp.ne.s32.totalorder %s36, %s39
    %p45 = scmp.eq.s32.totalorder %s12, 0
    %p46 = por %p44, %p45
    %p47 = scmp.ne.s32.totalorder %s36, %s39
    %p48 = scmp.eq.s32.totalorder %s17, 3
    %p49 = por %p47, %p48
    %p50 = scmp.ne.s32.totalorder %s39, %s40
    %p51 = scmp.eq.s32.totalorder %s17, 0
    %p52 = por %p50, %p51
    %p53 = scmp.ne.s32.totalorder %s39, %s40
    %p54 = scmp.eq.s32.totalorder %s18, 3
    %p55 = por %p53, %p54
    %p57 = scmp.ne.s32.totalorder %s40, %s56
    %p58 = scmp.eq.s32.totalorder %s18, 0
    %p59 = por %p57, %p58
    %s60 = sadd.s32 %s20, 1
    %s61 = smul.u32 %s60, 8
    %s62 = sadd.s32 %s27, 1
    %s63 = smul.u32 %s62, 8
    %s64 = ssub.s32 %s19, %s31
    %s65 = ssub.s32 %s61, %s63
    %s66 = sor.u32 %s64, %s65
    %p67 = scmp.eq.s32.totalorder %s66, 0
    %s69 = sadd.s32 %s68, 1
    %s70 = scalar_select %p67, %s68, %s69
    %p73 = pneg %p67
    %p74 = scmp.eq.s32.totalorder %s12, 3
    %p75 = por %p73, %p74
    %p76 = scmp.ne.s32.totalorder %s68, %s71
    %p77 = scmp.eq.s32.totalorder %s12, 0
    %p78 = por %p76, %p77
    %p79 = scmp.ne.s32.totalorder %s68, %s71
    %p80 = scmp.eq.s32.totalorder %s17, 3
    %p81 = por %p79, %p80
    %p82 = scmp.ne.s32.totalorder %s71, %s72
    %p83 = scmp.eq.s32.totalorder %s17, 0
    %p84 = por %p82, %p83
    %p85 = scmp.ne.s32.totalorder %s71, %s72
    %p86 = scmp.eq.s32.totalorder %s18, 3
    %p87 = por %p85, %p86
    %p89 = scmp.ne.s32.totalorder %s72, %s88
    %p90 = scmp.eq.s32.totalorder %s18, 0
    %p91 = por %p89, %p90
    %s92 = sadd.s32 %s20, 1
    %s93 = smul.u32 %s92, 8
    %s94 = sadd.s32 %s93, 1
    %s95 = sadd.s32 %s27, 1
    %s96 = smul.u32 %s95, 8
    %s97 = sadd.s32 %s96, 1
    %s98 = ssub.s32 %s19, %s31
    %s99 = ssub.s32 %s94, %s97
    %s100 = sor.u32 %s98, %s99
    %p101 = scmp.eq.s32.totalorder %s100, 0
    %s103 = sadd.s32 %s102, 1
    %s104 = scalar_select %p101, %s102, %s103
    %p107 = pneg %p101
    %p108 = scmp.eq.s32.totalorder %s12, 3
    %p109 = por %p107, %p108
    %p110 = scmp.ne.s32.totalorder %s102, %s105
    %p111 = scmp.eq.s32.totalorder %s12, 0
    %p112 = por %p110, %p111
    %p113 = scmp.ne.s32.totalorder %s102, %s105
    %p114 = scmp.eq.s32.totalorder %s17, 3
    %p115 = por %p113, %p114
    %p116 = scmp.ne.s32.totalorder %s105, %s106
    %p117 = scmp.eq.s32.totalorder %s17, 0
    %p118 = por %p116, %p117
    %p119 = scmp.ne.s32.totalorder %s105, %s106
    %p120 = scmp.eq.s32.totalorder %s18, 3
    %p121 = por %p119, %p120
    %p123 = scmp.ne.s32.totalorder %s106, %s122
    %p124 = scmp.eq.s32.totalorder %s18, 0
    %p125 = por %p123, %p124
    %s127 = sadd.s32 %s126, 1
    %p130 = scmp.eq.s32.totalorder %s12, 3
    %p131 = scmp.ne.s32.totalorder %s126, %s128
    %p132 = scmp.eq.s32.totalorder %s12, 0
    %p133 = por %p131, %p132
    %p134 = scmp.ne.s32.totalorder %s126, %s128
    %p135 = scmp.eq.s32.totalorder %s17, 3
    %p136 = por %p134, %p135
    %p137 = scmp.ne.s32.totalorder %s128, %s129
    %p138 = scmp.eq.s32.totalorder %s17, 0
    %p139 = por %p137, %p138
    %p140 = scmp.ne.s32.totalorder %s128, %s129
    %p141 = scmp.eq.s32.totalorder %s18, 3
    %p142 = por %p140, %p141
    %p144 = scmp.ne.s32.totalorder %s129, %s143
    %p145 = scmp.eq.s32.totalorder %s18, 0
    %p146 = por %p144, %p145
    %s147 = ssub.s32 %s19, %s31
    %s148 = ssub.s32 %s20, %s27
    %s149 = sor.u32 %s147, %s148
    %p150 = scmp.eq.s32.totalorder %s149, 0
    %s152 = sadd.s32 %s151, 1
    %s153 = scalar_select %p150, %s151, %s152
    %p156 = pneg %p150
    %p157 = scmp.eq.s32.totalorder %s12, 3
    %p158 = por %p156, %p157
    %p159 = scmp.ne.s32.totalorder %s151, %s154
    %p160 = scmp.eq.s32.totalorder %s12, 0
    %p161 = por %p159, %p160
    %p162 = scmp.ne.s32.totalorder %s151, %s154
    %p163 = scmp.eq.s32.totalorder %s17, 3
    %p164 = por %p162, %p163
    %p165 = scmp.ne.s32.totalorder %s154, %s155
    %p166 = scmp.eq.s32.totalorder %s17, 0
    %p167 = por %p165, %p166
    %p168 = scmp.ne.s32.totalorder %s154, %s155
    %p169 = scmp.eq.s32.totalorder %s18, 3
    %p170 = por %p168, %p169
    %p172 = scmp.ne.s32.totalorder %s155, %s171
    %p173 = scmp.eq.s32.totalorder %s18, 0
    %p174 = por %p172, %p173
    %s175 = ssub.s32 %s19, %s31
    %s176 = ssub.s32 %s20, %s27
    %s177 = sor.u32 %s175, %s176
    %p178 = scmp.eq.s32.totalorder %s177, 0
    %s180 = sadd.s32 %s179, 1
    %s181 = scalar_select %p178, %s179, %s180
    %p184 = pneg %p178
    %p185 = scmp.eq.s32.totalorder %s12, 3
    %p186 = por %p184, %p185
    %p187 = scmp.ne.s32.totalorder %s179, %s182
    %p188 = scmp.eq.s32.totalorder %s12, 0
    %p189 = por %p187, %p188
    %p190 = scmp.ne.s32.totalorder %s179, %s182
    %p191 = scmp.eq.s32.totalorder %s17, 3
    %p192 = por %p190, %p191
    %p193 = scmp.ne.s32.totalorder %s182, %s183
    %p194 = scmp.eq.s32.totalorder %s17, 0
    %p195 = por %p193, %p194
    %p196 = scmp.ne.s32.totalorder %s182, %s183
    %p197 = scmp.eq.s32.totalorder %s18, 3
    %p198 = por %p196, %p197
    %p200 = scmp.ne.s32.totalorder %s183, %s199
    %p201 = scmp.eq.s32.totalorder %s18, 0
    %p202 = por %p200, %p201
    %p203 = scmp.le.s32.totalorder 1, %s12
    %p204 = scmp.lt.s32.totalorder %s12, 5
    %p205 = pnand %p203, %p204
    %p206 = pneg %p205
    // Predicated region
    $region9: #{upsampling_concat_forward.2} parent=5 // pred_check
      _
    $region10: #{upsampling_concat_forward.2} parent=5 // pred_check_branch
      %208 = sbr.rel (%p205) target = $region12
    $region11: #{upsampling_concat_forward.2} parent=5 // pred_region
      %s209 = ssub.s32 %s12, 1
      // Predicated region
      $region13: #{upsampling_concat_forward.2} parent=11 // pred_check
        %p210 = pneg %p139
      $region14: #{upsampling_concat_forward.2} parent=11 // pred_check_branch
        %212 = sbr.rel (%p210) target = $region16
      $region15: #{upsampling_concat_forward.2} parent=11 // pred_region
        _
      $region16: #{upsampling_concat_forward.2} parent=11 // pred_fallthru
        _
    $region12: #{upsampling_concat_forward.2} parent=5 // pred_fallthru
      _
    %p213 = scmp.lt.s32.totalorder %s12, 4
    // Predicated region
    $region17: #{upsampling_concat_forward.2} parent=5 // pred_check
      %p214 = pneg %p213
    $region18: #{upsampling_concat_forward.2} parent=5 // pred_check_branch
      %216 = sbr.rel (%p214) target = $region20
    $region19: #{upsampling_concat_forward.2} parent=5 // pred_region
      // Predicated region
      $region21: #{upsampling_concat_forward.2} parent=19 // pred_check
        %p217 = pneg %p46
      $region22: #{upsampling_concat_forward.2} parent=19 // pred_check_branch
        %219 = sbr.rel (%p217) target = $region24
      $region23: #{upsampling_concat_forward.2} parent=19 // pred_region
        %s220 = smul.u32 8, %s20
        %s221 = ssub.s32 18, %s220
        %p222 = scmp.lt.s32.totalorder %s221, 8
        %s223 = scalar_select %p222, %s221, 8
        %s224 = smul.u32 64, %s223
        %s225 = smul.u32 %s224, 3
        %p226 = scmp.lt.s32.totalorder %s19, 1
        %s227 = scalar_select %p226, %s19, 1
        %p228 = scmp.lt.s32.totalorder %s220, 17
        %s229 = scalar_select %p228, %s220, 17
        %s230 = smul.addr %s229, 3
        %s231 = smul.addr %s227, 54
        %s232 = sadd.s32 %s230, %s231
        %s233 = smul.addr %s232, 4
        %s234 = scalar_lea.vmem %s0, %s233
        %s235 = smul.u32 8, %s20
        %s236 = ssub.s32 18, %s235
        %p237 = scmp.lt.s32.totalorder %s236, 8
        %s238 = scalar_select %p237, %s236, 8
        %s239 = smul.u32 64, %s238
        %s240 = smul.u32 %s239, 3
      $region24: #{upsampling_concat_forward.2} parent=19 // pred_fallthru
        _
      // Predicated region
      $region25: #{upsampling_concat_forward.2} parent=19 // pred_check
        %p241 = pneg %p78
      $region26: #{upsampling_concat_forward.2} parent=19 // pred_check_branch
        %243 = sbr.rel (%p241) target = $region28
      $region27: #{upsampling_concat_forward.2} parent=19 // pred_region
        %s244 = sadd.s32 %s20, 1
        %s245 = smul.u32 %s244, 8
        %p246 = scmp.lt.s32.totalorder %s19, 1
        %s247 = scalar_select %p246, %s19, 1
        %p248 = scmp.lt.s32.totalorder %s245, 17
        %s249 = scalar_select %p248, %s245, 17
        %s250 = smul.addr %s249, 3
        %s251 = smul.addr %s247, 54
        %s252 = sadd.s32 %s250, %s251
        %s253 = smul.addr %s252, 4
        %s254 = scalar_lea.vmem %s1, %s253
        %s255 = sadd.s32 %s20, 1
        %s256 = smul.u32 %s255, 8
      $region28: #{upsampling_concat_forward.2} parent=19 // pred_fallthru
        _
      // Predicated region
      $region29: #{upsampling_concat_forward.2} parent=19 // pred_check
        %p257 = pneg %p112
      $region30: #{upsampling_concat_forward.2} parent=19 // pred_check_branch
        %259 = sbr.rel (%p257) target = $region32
      $region31: #{upsampling_concat_forward.2} parent=19 // pred_region
        %s260 = sadd.s32 %s20, 1
        %s261 = smul.u32 %s260, 8
        %s262 = sadd.s32 %s261, 1
        %p263 = scmp.lt.s32.totalorder %s19, 1
        %s264 = scalar_select %p263, %s19, 1
        %p265 = scmp.lt.s32.totalorder %s262, 17
        %s266 = scalar_select %p265, %s262, 17
        %s267 = smul.addr %s266, 3
        %s268 = smul.addr %s264, 54
        %s269 = sadd.s32 %s267, %s268
        %s270 = smul.addr %s269, 4
        %s271 = scalar_lea.vmem %s2, %s270
        %s272 = sadd.s32 %s20, 1
        %s273 = smul.u32 %s272, 8
        %s274 = sadd.s32 %s273, 1
      $region32: #{upsampling_concat_forward.2} parent=19 // pred_fallthru
        _
    $region20: #{upsampling_concat_forward.2} parent=5 // pred_fallthru
      _
    %p275 = scmp.le.s32.totalorder 1, %s12
    %p276 = scmp.lt.s32.totalorder %s12, 5
    %p277 = pnand %p275, %p276
    %p278 = pneg %p277
    // Predicated region
    $region33: #{upsampling_concat_forward.2} parent=5 // pred_check
      _
    $region34: #{upsampling_concat_forward.2} parent=5 // pred_check_branch
      %280 = sbr.rel (%p277) target = $region36
    $region35: #{upsampling_concat_forward.2} parent=5 // pred_region
      %s281 = ssub.s32 %s12, 1
      %s282 = smul.u32 8, %s22
      %s283 = ssub.s32 18, %s282
      %p284 = scmp.lt.s32.totalorder %s283, 8
      %s285 = scalar_select %p284, %s283, 8
      %s286 = smul.u32 64, %s285
      %s287 = smul.u32 %s286, 3
      %p288 = scmp.lt.s32.totalorder %s21, 1
      %s289 = scalar_select %p288, %s21, 1
      %p290 = scmp.lt.s32.totalorder %s282, 17
      %s291 = scalar_select %p290, %s282, 17
      %s292 = smul.addr %s291, 3
      %s293 = smul.addr %s289, 54
      %s294 = sadd.s32 %s292, %s293
      %s295 = smul.addr %s294, 4
      %s296 = scalar_lea.vmem %s0, %s295
      %p297 = pneg %p52
      %p298 = pneg %p49
      %s299 = sadd.s32 %s22, 1
      %s300 = smul.u32 %s299, 8
      %p301 = scmp.lt.s32.totalorder %s21, 1
      %s302 = scalar_select %p301, %s21, 1
      %p303 = scmp.lt.s32.totalorder %s300, 17
      %s304 = scalar_select %p303, %s300, 17
      %s305 = smul.addr %s304, 3
      %s306 = smul.addr %s302, 54
      %s307 = sadd.s32 %s305, %s306
      %s308 = smul.addr %s307, 4
      %s309 = scalar_lea.vmem %s1, %s308
      %p310 = pneg %p84
      %p311 = pneg %p81
      %s312 = sadd.s32 %s22, 1
      %s313 = smul.u32 %s312, 8
      %s314 = sadd.s32 %s313, 1
      %p315 = scmp.lt.s32.totalorder %s21, 1
      %s316 = scalar_select %p315, %s21, 1
      %p317 = scmp.lt.s32.totalorder %s314, 17
      %s318 = scalar_select %p317, %s314, 17
      %s319 = smul.addr %s318, 3
      %s320 = smul.addr %s316, 54
      %s321 = sadd.s32 %s319, %s320
      %s322 = smul.addr %s321, 4
      %s323 = scalar_lea.vmem %s2, %s322
      %p324 = pneg %p118
      %p325 = pneg %p115
      %p326 = pneg %p139
      %p327 = pneg %p136
      %p328 = pneg %p167
      %p329 = pneg %p164
      %s330 = smul.u32 8, %s22
      %p331 = scmp.lt.s32.totalorder %s21, 1
      %s332 = scalar_select %p331, %s21, 1
      %p333 = scmp.lt.s32.totalorder %s330, 15
      %s334 = scalar_select %p333, %s330, 15
      %s335 = smul.addr %s334, 3
      %s336 = smul.addr %s332, 48
      %s337 = sadd.s32 %s335, %s336
      %s338 = smul.addr %s337, 4
      %s339 = scalar_lea.vmem %s4, %s338
      %p340 = pneg %p195
      %p341 = pneg %p192
      %p342 = scmp.lt.s32.totalorder %s21, 1
      %s343 = scalar_select %p342, %s21, 1
      %p344 = scmp.lt.s32.totalorder %s22, 1
      %s345 = scalar_select %p344, %s22, 1
      %s346 = smul.addr %s343, 2
      %s347 = sadd.s32 %s345, %s346
      %s348 = smul.addr %s347, 2
      %s349 = scalar_lea.vmem %s5, %s348
      %s350 = smul.u32 8, %s22
      %s351 = ssub.s32 18, %s350
      %p352 = scmp.lt.s32.totalorder %s351, 8
      %s353 = scalar_select %p352, %s351, 8
      %s354 = smul.u32 64, %s353
      %s355 = smul.u32 %s354, 3
      %p356 = scmp.lt.s32.totalorder %s21, 1
      %s357 = scalar_select %p356, %s21, 1
      %p358 = scmp.lt.s32.totalorder %s350, 17
      %s359 = scalar_select %p358, %s350, 17
      %s360 = smul.addr %s359, 3
      %s361 = smul.addr %s357, 54
      %s362 = sadd.s32 %s360, %s361
      %s363 = smul.addr %s362, 4
      %s364 = scalar_lea.vmem %s0, %s363
      %s365 = smul.u32 8, %s22
      %s366 = ssub.s32 18, %s365
      %p367 = scmp.lt.s32.totalorder %s366, 8
      %s368 = scalar_select %p367, %s366, 8
      %s369 = smul.u32 64, %s368
      %s370 = smul.u32 %s369, 3
      %s371 = sadd.s32 %s22, 1
      %s372 = smul.u32 %s371, 8
      %p373 = scmp.lt.s32.totalorder %s21, 1
      %s374 = scalar_select %p373, %s21, 1
      %p375 = scmp.lt.s32.totalorder %s372, 17
      %s376 = scalar_select %p375, %s372, 17
      %s377 = smul.addr %s376, 3
      %s378 = smul.addr %s374, 54
      %s379 = sadd.s32 %s377, %s378
      %s380 = smul.addr %s379, 4
      %s381 = scalar_lea.vmem %s1, %s380
      %s382 = sadd.s32 %s22, 1
      %s383 = smul.u32 %s382, 8
      %s384 = sadd.s32 %s22, 1
      %s385 = smul.u32 %s384, 8
      %s386 = sadd.s32 %s385, 1
      %p387 = scmp.lt.s32.totalorder %s21, 1
      %s388 = scalar_select %p387, %s21, 1
      %p389 = scmp.lt.s32.totalorder %s386, 17
      %s390 = scalar_select %p389, %s386, 17
      %s391 = smul.addr %s390, 3
      %s392 = smul.addr %s388, 54
      %s393 = sadd.s32 %s391, %s392
      %s394 = smul.addr %s393, 4
      %s395 = scalar_lea.vmem %s2, %s394
      %s396 = sadd.s32 %s22, 1
      %s397 = smul.u32 %s396, 8
      %s398 = sadd.s32 %s397, 1
      %s399 = smul.u32 8, %s22
      %p400 = scmp.lt.s32.totalorder %s21, 1
      %s401 = scalar_select %p400, %s21, 1
      %p402 = scmp.lt.s32.totalorder %s399, 15
      %s403 = scalar_select %p402, %s399, 15
      %s404 = smul.addr %s403, 3
      %s405 = smul.addr %s401, 48
      %s406 = sadd.s32 %s404, %s405
      %s407 = smul.addr %s406, 4
      %s408 = scalar_lea.vmem %s4, %s407
      %s409 = smul.u32 8, %s22
      %p410 = scmp.lt.s32.totalorder %s21, 1
      %s411 = scalar_select %p410, %s21, 1
      %p412 = scmp.lt.s32.totalorder %s22, 1
      %s413 = scalar_select %p412, %s22, 1
      %s414 = smul.addr %s411, 2
      %s415 = sadd.s32 %s413, %s414
      %s416 = smul.addr %s415, 2
      %s417 = scalar_lea.vmem %s5, %s416
      %v419 = vld [vmem:[%s364] sm:$0xf]
      %v420 = vld [vmem:[%s364 + $0x4] sm:$0xf]
      %v421 = vld [vmem:[%s364 + $0x8] sm:$0x1]
      %v422 = vld [vmem:[%s364 + $0xc] sm:$0xf]
      %v423 = vld [vmem:[%s364 + $0x10] sm:$0xf]
      %v424 = vld [vmem:[%s364 + $0x14] sm:$0x1]
      %v425 = vld [vmem:[%s364 + $0x18] sm:$0xf]
      %v426 = vld [vmem:[%s364 + $0x1c] sm:$0xf]
      %v427 = vld [vmem:[%s364 + $0x20] sm:$0x1]
      %v428 = vld [vmem:[%s364 + $0x24] sm:$0xf]
      %v429 = vld [vmem:[%s364 + $0x28] sm:$0xf]
      %v430 = vld [vmem:[%s364 + $0x2c] sm:$0x1]
      %v431 = vld [vmem:[%s364 + $0x30] sm:$0xf]
      %v432 = vld [vmem:[%s364 + $0x34] sm:$0xf]
      %v433 = vld [vmem:[%s364 + $0x38] sm:$0x1]
      %v434 = vld [vmem:[%s364 + $0x3c] sm:$0xf]
      %v435 = vld [vmem:[%s364 + $0x40] sm:$0xf]
      %v436 = vld [vmem:[%s364 + $0x44] sm:$0x1]
      %v437 = vld [vmem:[%s364 + $0x48] sm:$0xf]
      %v438 = vld [vmem:[%s364 + $0x4c] sm:$0xf]
      %v439 = vld [vmem:[%s364 + $0x50] sm:$0x1]
      %v440 = vld [vmem:[%s364 + $0x54] sm:$0xf]
      %v441 = vld [vmem:[%s364 + $0x58] sm:$0xf]
      %v442 = vld [vmem:[%s364 + $0x5c] sm:$0x1]
      %443 = vst [vmem:[#allocation2] sm:$0xf] %v419
      %444 = vst [vmem:[#allocation2 + $0x4] sm:$0xf] %v420
      %445 = vst [vmem:[#allocation2 + $0x8] sm:$0x1] %v421
      %446 = vst [vmem:[#allocation2 + $0xc] sm:$0xf] %v422
      %447 = vst [vmem:[#allocation2 + $0x10] sm:$0xf] %v423
      %448 = vst [vmem:[#allocation2 + $0x14] sm:$0x1] %v424
      %449 = vst [vmem:[#allocation2 + $0x18] sm:$0xf] %v425
      %450 = vst [vmem:[#allocation2 + $0x1c] sm:$0xf] %v426
      %451 = vst [vmem:[#allocation2 + $0x20] sm:$0x1] %v427
      %452 = vst [vmem:[#allocation2 + $0x24] sm:$0xf] %v428
      %453 = vst [vmem:[#allocation2 + $0x28] sm:$0xf] %v429
      %454 = vst [vmem:[#allocation2 + $0x2c] sm:$0x1] %v430
      %455 = vst [vmem:[#allocation2 + $0x30] sm:$0xf] %v431
      %456 = vst [vmem:[#allocation2 + $0x34] sm:$0xf] %v432
      %457 = vst [vmem:[#allocation2 + $0x38] sm:$0x1] %v433
      %458 = vst [vmem:[#allocation2 + $0x3c] sm:$0xf] %v434
      %459 = vst [vmem:[#allocation2 + $0x40] sm:$0xf] %v435
      %460 = vst [vmem:[#allocation2 + $0x44] sm:$0x1] %v436
      %461 = vst [vmem:[#allocation2 + $0x48] sm:$0xf] %v437
      %462 = vst [vmem:[#allocation2 + $0x4c] sm:$0xf] %v438
      %463 = vst [vmem:[#allocation2 + $0x50] sm:$0x1] %v439
      %464 = vst [vmem:[#allocation2 + $0x54] sm:$0xf] %v440
      %465 = vst [vmem:[#allocation2 + $0x58] sm:$0xf] %v441
      %466 = vst [vmem:[#allocation2 + $0x5c] sm:$0x1] %v442
      %v467 = vld [vmem:[%s381] sm:$0xf]
      %v468 = vld [vmem:[%s381 + $0x4] sm:$0xf]
      %v469 = vld [vmem:[%s381 + $0x8] sm:$0x1]
      %s470 = scalar_lea.vmem [#allocation2], 96
      %471 = vst [vmem:[%s470] sm:$0xf] %v467
      %472 = vst [vmem:[%s470 + $0x4] sm:$0xf] %v468
      %473 = vst [vmem:[%s470 + $0x8] sm:$0x1] %v469
      %v474 = vld [vmem:[%s395] sm:$0xf]
      %v475 = vld [vmem:[%s395 + $0x4] sm:$0xf]
      %v476 = vld [vmem:[%s395 + $0x8] sm:$0x1]
      %s477 = scalar_lea.vmem [#allocation2], 108
      %478 = vst [vmem:[%s477] sm:$0xf] %v474
      %479 = vst [vmem:[%s477 + $0x4] sm:$0xf] %v475
      %480 = vst [vmem:[%s477 + $0x8] sm:$0x1] %v476
      %v481 = vld [vmem:[#allocation2] sm:$0xf]
      %v482 = vld [vmem:[#allocation2 + $0x4] sm:$0xf]
      %v483 = vld [vmem:[#allocation2 + $0xc] sm:$0xf]
      %v484 = vld [vmem:[#allocation2 + $0x10] sm:$0xf]
      %v485 = vld [vmem:[#allocation2 + $0x18] sm:$0xf]
      %v486 = vld [vmem:[#allocation2 + $0x1c] sm:$0xf]
      %v487 = vld [vmem:[#allocation2 + $0x24] sm:$0xf]
      %v488 = vld [vmem:[#allocation2 + $0x28] sm:$0xf]
      %v489 = vld [vmem:[#allocation2 + $0x30] sm:$0xf]
      %v490 = vld [vmem:[#allocation2 + $0x34] sm:$0xf]
      %v491 = vld [vmem:[#allocation2 + $0x3c] sm:$0xf]
      %v492 = vld [vmem:[#allocation2 + $0x40] sm:$0xf]
      %v493 = vld [vmem:[#allocation2 + $0x48] sm:$0xf]
      %v494 = vld [vmem:[#allocation2 + $0x4c] sm:$0xf]
      %v495 = vld [vmem:[#allocation2 + $0x54] sm:$0xf]
      %v496 = vld [vmem:[#allocation2 + $0x58] sm:$0xf]
      %v497 = vld [vmem:[%s3] sm:$0xf]
      %v498 = vld [vmem:[%s3 + $0x4] sm:$0xf]
      %v499 = vld [vmem:[%s3 + $0x8] sm:$0xf]
      %v500 = vld [vmem:[%s3 + $0xc] sm:$0xf]
      %v501 = vld [vmem:[%s3 + $0x10] sm:$0xf]
      %v502 = vld [vmem:[%s3 + $0x14] sm:$0xf]
      %v503 = vld [vmem:[%s3 + $0x18] sm:$0xf]
      %v504 = vld [vmem:[%s3 + $0x1c] sm:$0xf]
      %v505 = vld [vmem:[%s3 + $0x20] sm:$0xf]
      %v506 = vld [vmem:[%s3 + $0x24] sm:$0xf]
      %v507 = vld [vmem:[%s3 + $0x28] sm:$0xf]
      %v508 = vld [vmem:[%s3 + $0x2c] sm:$0xf]
      %v509 = vld [vmem:[%s3 + $0x30] sm:$0xf]
      %v510 = vld [vmem:[%s3 + $0x34] sm:$0xf]
      %v511 = vld [vmem:[%s3 + $0x38] sm:$0xf]
      %v512 = vld [vmem:[%s3 + $0x3c] sm:$0xf]
      %v513 = vld [vmem:[#allocation2 + $0x8] sm:$0x1]
      %v514 = vld [vmem:[#allocation2 + $0x14] sm:$0x1]
      %v515 = vld [vmem:[#allocation2 + $0x20] sm:$0x1]
      %v516 = vld [vmem:[#allocation2 + $0x2c] sm:$0x1]
      %v517 = vld [vmem:[#allocation2 + $0x38] sm:$0x1]
      %v518 = vld [vmem:[#allocation2 + $0x44] sm:$0x1]
      %v519 = vld [vmem:[#allocation2 + $0x50] sm:$0x1]
      %v520 = vld [vmem:[#allocation2 + $0x5c] sm:$0x1]
      %vm521 = vsmask.f32 3328
      %vm522 = vsmask.f32 7440
      %vm523 = vmor %vm521, %vm522
      %v525 = vshrl.u32 %v481, 16
      %v527 = vrot.slane %v525, 4
      %v528 = vshll.u32 %v481, 16
      %v530 = vrot.slane %v528, 5
      %v531 = vor.u32 %v527, %v530
      %v532 = vrot.slane %v531, 4
      %v534 = vshll.u32 %v482, 16
      %v536 = vrot.slane %v534, 5
      %v537 = vsel %vm523, %v532, %v536
      %v538 = vshrl.u32 %v482, 16
      %v540 = vrot.slane %v538, 4
      %v541 = vor.u32 %v540, %v536
      %v542 = vrot.slane %v541, 4
      %v544 = vshll.u32 %v513, 16
      %v546 = vrot.slane %v544, 5
      %v547 = vsel %vm523, %v542, %v546
      %v549 = vshrl.u32 %v483, 16
      %v551 = vrot.slane %v549, 4
      %v552 = vshll.u32 %v483, 16
      %v554 = vrot.slane %v552, 5
      %v555 = vor.u32 %v551, %v554
      %v556 = vrot.slane %v555, 4
      %v558 = vshll.u32 %v484, 16
      %v560 = vrot.slane %v558, 5
      %v561 = vsel %vm523, %v556, %v560
      %v562 = vshrl.u32 %v484, 16
      %v564 = vrot.slane %v562, 4
      %v565 = vor.u32 %v564, %v560
      %v566 = vrot.slane %v565, 4
      %v568 = vshll.u32 %v514, 16
      %v570 = vrot.slane %v568, 5
      %v571 = vsel %vm523, %v566, %v570
      %v573 = vshrl.u32 %v485, 16
      %v575 = vrot.slane %v573, 4
      %v576 = vshll.u32 %v485, 16
      %v578 = vrot.slane %v576, 5
      %v579 = vor.u32 %v575, %v578
      %v580 = vrot.slane %v579, 4
      %v582 = vshll.u32 %v486, 16
      %v584 = vrot.slane %v582, 5
      %v585 = vsel %vm523, %v580, %v584
      %v586 = vshrl.u32 %v486, 16
      %v588 = vrot.slane %v586, 4
      %v589 = vor.u32 %v588, %v584
      %v590 = vrot.slane %v589, 4
      %v592 = vshll.u32 %v515, 16
      %v594 = vrot.slane %v592, 5
      %v595 = vsel %vm523, %v590, %v594
      %v597 = vshrl.u32 %v487, 16
      %v599 = vrot.slane %v597, 4
      %v600 = vshll.u32 %v487, 16
      %v602 = vrot.slane %v600, 5
      %v603 = vor.u32 %v599, %v602
      %v604 = vrot.slane %v603, 4
      %v606 = vshll.u32 %v488, 16
      %v608 = vrot.slane %v606, 5
      %v609 = vsel %vm523, %v604, %v608
      %v610 = vshrl.u32 %v488, 16
      %v612 = vrot.slane %v610, 4
      %v613 = vor.u32 %v612, %v608
      %v614 = vrot.slane %v613, 4
      %v616 = vshll.u32 %v516, 16
      %v618 = vrot.slane %v616, 5
      %v619 = vsel %vm523, %v614, %v618
      %v621 = vshrl.u32 %v489, 16
      %v623 = vrot.slane %v621, 4
      %v624 = vshll.u32 %v489, 16
      %v626 = vrot.slane %v624, 5
      %v627 = vor.u32 %v623, %v626
      %v628 = vrot.slane %v627, 4
      %v630 = vshll.u32 %v490, 16
      %v632 = vrot.slane %v630, 5
      %v633 = vsel %vm523, %v628, %v632
      %v634 = vshrl.u32 %v490, 16
      %v636 = vrot.slane %v634, 4
      %v637 = vor.u32 %v636, %v632
      %v638 = vrot.slane %v637, 4
      %v640 = vshll.u32 %v517, 16
      %v642 = vrot.slane %v640, 5
      %v643 = vsel %vm523, %v638, %v642
      %v645 = vshrl.u32 %v491, 16
      %v647 = vrot.slane %v645, 4
      %v648 = vshll.u32 %v491, 16
      %v650 = vrot.slane %v648, 5
      %v651 = vor.u32 %v647, %v650
      %v652 = vrot.slane %v651, 4
      %v654 = vshll.u32 %v492, 16
      %v656 = vrot.slane %v654, 5
      %v657 = vsel %vm523, %v652, %v656
      %v658 = vshrl.u32 %v492, 16
      %v660 = vrot.slane %v658, 4
      %v661 = vor.u32 %v660, %v656
      %v662 = vrot.slane %v661, 4
      %v664 = vshll.u32 %v518, 16
      %v666 = vrot.slane %v664, 5
      %v667 = vsel %vm523, %v662, %v666
      %v669 = vshrl.u32 %v493, 16
      %v671 = vrot.slane %v669, 4
      %v672 = vshll.u32 %v493, 16
      %v674 = vrot.slane %v672, 5
      %v675 = vor.u32 %v671, %v674
      %v676 = vrot.slane %v675, 4
      %v678 = vshll.u32 %v494, 16
      %v680 = vrot.slane %v678, 5
      %v681 = vsel %vm523, %v676, %v680
      %v682 = vshrl.u32 %v494, 16
      %v684 = vrot.slane %v682, 4
      %v685 = vor.u32 %v684, %v680
      %v686 = vrot.slane %v685, 4
      %v688 = vshll.u32 %v519, 16
      %v690 = vrot.slane %v688, 5
      %v691 = vsel %vm523, %v686, %v690
      %v693 = vshrl.u32 %v495, 16
      %v695 = vrot.slane %v693, 4
      %v696 = vshll.u32 %v495, 16
      %v698 = vrot.slane %v696, 5
      %v699 = vor.u32 %v695, %v698
      %v700 = vrot.slane %v699, 4
      %v702 = vshll.u32 %v496, 16
      %v704 = vrot.slane %v702, 5
      %v705 = vsel %vm523, %v700, %v704
      %v706 = vshrl.u32 %v496, 16
      %v708 = vrot.slane %v706, 4
      %v709 = vor.u32 %v708, %v704
      %v710 = vrot.slane %v709, 4
      %v712 = vshll.u32 %v520, 16
      %v714 = vrot.slane %v712, 5
      %v715 = vsel %vm523, %v710, %v714
      %s716 = scalar_lea.vmem %s3, 64
      %v717 = vld [vmem:[%s716] sm:$0xf]
      %v718 = vld [vmem:[%s716 + $0x4] sm:$0xf]
      %v719 = vld [vmem:[%s716 + $0x8] sm:$0xf]
      %v720 = vld [vmem:[%s716 + $0xc] sm:$0xf]
      %v721 = vld [vmem:[%s716 + $0x10] sm:$0xf]
      %v722 = vld [vmem:[%s716 + $0x14] sm:$0xf]
      %v723 = vld [vmem:[%s716 + $0x18] sm:$0xf]
      %v724 = vld [vmem:[%s716 + $0x1c] sm:$0xf]
      %v725 = vld [vmem:[%s716 + $0x20] sm:$0xf]
      %v726 = vld [vmem:[%s716 + $0x24] sm:$0xf]
      %v727 = vld [vmem:[%s716 + $0x28] sm:$0xf]
      %v728 = vld [vmem:[%s716 + $0x2c] sm:$0xf]
      %v729 = vld [vmem:[%s716 + $0x30] sm:$0xf]
      %v730 = vld [vmem:[%s716 + $0x34] sm:$0xf]
      %v731 = vld [vmem:[%s716 + $0x38] sm:$0xf]
      %v732 = vld [vmem:[%s716 + $0x3c] sm:$0xf]
      %v733 = vunpack.c.l.b16 %v537
      %v734 = vunpack.c.l.b16 %v547
      %v735 = vunpack.c.l.b16 %v561
      %v736 = vunpack.c.l.b16 %v571
      %v737 = vunpack.c.l.b16 %v585
      %v738 = vunpack.c.l.b16 %v595
      %v739 = vunpack.c.l.b16 %v609
      %v740 = vunpack.c.l.b16 %v619
      %v741 = vunpack.c.l.b16 %v633
      %v742 = vunpack.c.l.b16 %v643
      %v743 = vunpack.c.l.b16 %v657
      %v744 = vunpack.c.l.b16 %v667
      %v745 = vunpack.c.l.b16 %v681
      %v746 = vunpack.c.l.b16 %v691
      %v747 = vunpack.c.l.b16 %v705
      %v748 = vunpack.c.l.b16 %v715
      %v749 = vpack.c.b16 %v734, %v733
      %v750 = vpack.c.b16 %v736, %v735
      %v751 = vpack.c.b16 %v738, %v737
      %v752 = vpack.c.b16 %v740, %v739
      %v753 = vpack.c.b16 %v742, %v741
      %v754 = vpack.c.b16 %v744, %v743
      %v755 = vpack.c.b16 %v746, %v745
      %v756 = vpack.c.b16 %v748, %v747
      %v781 = vunpack.c.l.b16 %v717
      %v782 = vunpack.c.l.b16 %v718
      %v783 = vunpack.c.l.b16 %v719
      %v784 = vunpack.c.l.b16 %v720
      %v785 = vunpack.c.l.b16 %v721
      %v786 = vunpack.c.l.b16 %v722
      %v787 = vunpack.c.l.b16 %v723
      %v788 = vunpack.c.l.b16 %v724
      %v789 = vunpack.c.l.b16 %v725
      %v790 = vunpack.c.l.b16 %v726
      %v791 = vunpack.c.l.b16 %v727
      %v792 = vunpack.c.l.b16 %v728
      %v793 = vunpack.c.l.b16 %v729
      %v794 = vunpack.c.l.b16 %v730
      %v795 = vunpack.c.l.b16 %v731
      %v796 = vunpack.c.l.b16 %v732
      %v797 = vpack.c.b16 %v782, %v781
      %v798 = vpack.c.b16 %v784, %v783
      %v799 = vpack.c.b16 %v786, %v785
      %v800 = vpack.c.b16 %v788, %v787
      %v801 = vpack.c.b16 %v790, %v789
      %v802 = vpack.c.b16 %v792, %v791
      %v803 = vpack.c.b16 %v794, %v793
      %v804 = vpack.c.b16 %v796, %v795
      %813 = vmatprep.subr.bf16.mxu0 0
      %814 = vmatpush1.bf16.msra.mxu0 %v804
      %815 = vmatprep.subr.bf16.mxu0 0
      %816 = vmatpush1.bf16.msra.mxu0 %v803
      %817 = vmatprep.subr.bf16.mxu0 0
      %818 = vmatpush1.bf16.msra.mxu0 %v802
      %819 = vmatprep.subr.bf16.mxu0 0
      %820 = vmatpush1.bf16.msra.mxu0 %v801
      %821 = vmatprep.subr.bf16.mxu0 0
      %822 = vmatpush1.bf16.msra.mxu0 %v800
      %823 = vmatprep.subr.bf16.mxu0 0
      %824 = vmatpush1.bf16.msra.mxu0 %v799
      %825 = vmatprep.subr.bf16.mxu0 0
      %826 = vmatpush1.bf16.msra.mxu0 %v798
      %827 = vmatprep.subr.bf16.mxu0 0
      %828 = vmatpush1.bf16.msra.mxu0 %v797
      %829 = vmatprep.subr.bf16.mxu0 0
      %830 = vmatpush2.bf16.msra.mxu0 0
      %831 = vmatprep.subr.bf16.mxu0 0
      %832 = vmatpush2.bf16.msra.mxu0 0
      %833 = vmatprep.subr.bf16.mxu0 0
      %834 = vmatpush2.bf16.msra.mxu0 0
      %835 = vmatprep.subr.bf16.mxu0 0
      %836 = vmatpush2.bf16.msra.mxu0 0
      %837 = vmatprep.subr.bf16.mxu0 0
      %838 = vmatpush2.bf16.msra.mxu0 0
      %839 = vmatprep.subr.bf16.mxu0 0
      %840 = vmatpush2.bf16.msra.mxu0 0
      %841 = vmatprep.subr.bf16.mxu0 0
      %842 = vmatpush2.bf16.msra.mxu0 0
      %843 = vmatprep.subr.bf16.mxu0 0
      %844 = vmatpush2.bf16.msra.mxu0 0
      %845 = vmatprep.mubr.bf16.mxu0 0
      %846 = vmatmul.mubr.bf16.gmra.mxu0 %v749
      %v847 = vpop.f32.mrf.mxu0
      %v848 = vadd.f32 0.0, %v847
      %v849 = vpop.f32.mrf.mxu0
      %v850 = vpop.f32.mrf.mxu0
      %v851 = vadd.f32 0.0, %v850
      %v852 = vpop.f32.mrf.mxu0
      %853 = vmatprep.mubr.bf16.mxu0 0
      %854 = vmatmul.mubr.bf16.gmra.mxu0 %v750
      %v855 = vpop.f32.mrf.mxu0
      %v856 = vadd.f32 0.0, %v855
      %v857 = vpop.f32.mrf.mxu0
      %v858 = vpop.f32.mrf.mxu0
      %v859 = vadd.f32 0.0, %v858
      %v860 = vpop.f32.mrf.mxu0
      %861 = vmatprep.mubr.bf16.mxu0 0
      %862 = vmatmul.mubr.bf16.gmra.mxu0 %v751
      %v863 = vpop.f32.mrf.mxu0
      %v864 = vadd.f32 0.0, %v863
      %v865 = vpop.f32.mrf.mxu0
      %v866 = vpop.f32.mrf.mxu0
      %v867 = vadd.f32 0.0, %v866
      %v868 = vpop.f32.mrf.mxu0
      %869 = vmatprep.mubr.bf16.mxu0 0
      %870 = vmatmul.mubr.bf16.gmra.mxu0 %v752
      %v871 = vpop.f32.mrf.mxu0
      %v872 = vadd.f32 0.0, %v871
      %v873 = vpop.f32.mrf.mxu0
      %v874 = vpop.f32.mrf.mxu0
      %v875 = vadd.f32 0.0, %v874
      %v876 = vpop.f32.mrf.mxu0
      %877 = vmatprep.mubr.bf16.mxu0 0
      %878 = vmatmul.mubr.bf16.gmra.mxu0 %v753
      %v879 = vpop.f32.mrf.mxu0
      %v880 = vadd.f32 0.0, %v879
      %v881 = vpop.f32.mrf.mxu0
      %v882 = vpop.f32.mrf.mxu0
      %v883 = vadd.f32 0.0, %v882
      %v884 = vpop.f32.mrf.mxu0
      %885 = vmatprep.mubr.bf16.mxu0 0
      %886 = vmatmul.mubr.bf16.gmra.mxu0 %v754
      %v887 = vpop.f32.mrf.mxu0
      %v888 = vadd.f32 0.0, %v887
      %v889 = vpop.f32.mrf.mxu0
      %v890 = vpop.f32.mrf.mxu0
      %v891 = vadd.f32 0.0, %v890
      %v892 = vpop.f32.mrf.mxu0
      %893 = vmatprep.mubr.bf16.mxu0 0
      %894 = vmatmul.mubr.bf16.gmra.mxu0 %v755
      %v895 = vpop.f32.mrf.mxu0
      %v896 = vadd.f32 0.0, %v895
      %v897 = vpop.f32.mrf.mxu0
      %v898 = vpop.f32.mrf.mxu0
      %v899 = vadd.f32 0.0, %v898
      %v900 = vpop.f32.mrf.mxu0
      %901 = vmatprep.mubr.bf16.mxu0 0
      %902 = vmatmul.mubr.bf16.gmra.mxu0 %v756
      %v903 = vpop.f32.mrf.mxu0
      %v904 = vadd.f32 0.0, %v903
      %v905 = vpop.f32.mrf.mxu0
      %v906 = vpop.f32.mrf.mxu0
      %v907 = vadd.f32 0.0, %v906
      %v908 = vpop.f32.mrf.mxu0
      %909 = vdwg.mxu0
      %v926 = vunpack.c.l.b16 %v481
      %v927 = vunpack.c.l.b16 %v482
      %v928 = vunpack.c.l.b16 %v483
      %v929 = vunpack.c.l.b16 %v484
      %v930 = vunpack.c.l.b16 %v485
      %v931 = vunpack.c.l.b16 %v486
      %v932 = vunpack.c.l.b16 %v487
      %v933 = vunpack.c.l.b16 %v488
      %v934 = vunpack.c.l.b16 %v489
      %v935 = vunpack.c.l.b16 %v490
      %v936 = vunpack.c.l.b16 %v491
      %v937 = vunpack.c.l.b16 %v492
      %v938 = vunpack.c.l.b16 %v493
      %v939 = vunpack.c.l.b16 %v494
      %v940 = vunpack.c.l.b16 %v495
      %v941 = vunpack.c.l.b16 %v496
      %v942 = vpack.c.b16 %v927, %v926
      %v943 = vpack.c.b16 %v929, %v928
      %v944 = vpack.c.b16 %v931, %v930
      %v945 = vpack.c.b16 %v933, %v932
      %v946 = vpack.c.b16 %v935, %v934
      %v947 = vpack.c.b16 %v937, %v936
      %v948 = vpack.c.b16 %v939, %v938
      %v949 = vpack.c.b16 %v941, %v940
      %v974 = vunpack.c.l.b16 %v497
      %v975 = vunpack.c.l.b16 %v498
      %v976 = vunpack.c.l.b16 %v499
      %v977 = vunpack.c.l.b16 %v500
      %v978 = vunpack.c.l.b16 %v501
      %v979 = vunpack.c.l.b16 %v502
      %v980 = vunpack.c.l.b16 %v503
      %v981 = vunpack.c.l.b16 %v504
      %v982 = vunpack.c.l.b16 %v505
      %v983 = vunpack.c.l.b16 %v506
      %v984 = vunpack.c.l.b16 %v507
      %v985 = vunpack.c.l.b16 %v508
      %v986 = vunpack.c.l.b16 %v509
      %v987 = vunpack.c.l.b16 %v510
      %v988 = vunpack.c.l.b16 %v511
      %v989 = vunpack.c.l.b16 %v512
      %v990 = vpack.c.b16 %v975, %v974
      %v991 = vpack.c.b16 %v977, %v976
      %v992 = vpack.c.b16 %v979, %v978
      %v993 = vpack.c.b16 %v981, %v980
      %v994 = vpack.c.b16 %v983, %v982
      %v995 = vpack.c.b16 %v985, %v984
      %v996 = vpack.c.b16 %v987, %v986
      %v997 = vpack.c.b16 %v989, %v988
      %1006 = vmatprep.subr.bf16.mxu0 0
      %1007 = vmatpush1.bf16.msra.mxu0 %v997
      %1008 = vmatprep.subr.bf16.mxu0 0
      %1009 = vmatpush1.bf16.msra.mxu0 %v996
      %1010 = vmatprep.subr.bf16.mxu0 0
      %1011 = vmatpush1.bf16.msra.mxu0 %v995
      %1012 = vmatprep.subr.bf16.mxu0 0
      %1013 = vmatpush1.bf16.msra.mxu0 %v994
      %1014 = vmatprep.subr.bf16.mxu0 0
      %1015 = vmatpush1.bf16.msra.mxu0 %v993
      %1016 = vmatprep.subr.bf16.mxu0 0
      %1017 = vmatpush1.bf16.msra.mxu0 %v992
      %1018 = vmatprep.subr.bf16.mxu0 0
      %1019 = vmatpush1.bf16.msra.mxu0 %v991
      %1020 = vmatprep.subr.bf16.mxu0 0
      %1021 = vmatpush1.bf16.msra.mxu0 %v990
      %1022 = vmatprep.subr.bf16.mxu0 0
      %1023 = vmatpush2.bf16.msra.mxu0 0
      %1024 = vmatprep.subr.bf16.mxu0 0
      %1025 = vmatpush2.bf16.msra.mxu0 0
      %1026 = vmatprep.subr.bf16.mxu0 0
      %1027 = vmatpush2.bf16.msra.mxu0 0
      %1028 = vmatprep.subr.bf16.mxu0 0
      %1029 = vmatpush2.bf16.msra.mxu0 0
      %1030 = vmatprep.subr.bf16.mxu0 0
      %1031 = vmatpush2.bf16.msra.mxu0 0
      %1032 = vmatprep.subr.bf16.mxu0 0
      %1033 = vmatpush2.bf16.msra.mxu0 0
      %1034 = vmatprep.subr.bf16.mxu0 0
      %1035 = vmatpush2.bf16.msra.mxu0 0
      %1036 = vmatprep.subr.bf16.mxu0 0
      %1037 = vmatpush2.bf16.msra.mxu0 0
      %1038 = vmatprep.mubr.bf16.mxu0 0
      %1039 = vmatmul.mubr.bf16.gmra.mxu0 %v942
      %v1040 = vpop.f32.mrf.mxu0
      %v1041 = vadd.f32 %v848, %v1040
      %v1042 = vpop.f32.mrf.mxu0
      %v1043 = vpop.f32.mrf.mxu0
      %v1044 = vadd.f32 %v851, %v1043
      %v1045 = vpop.f32.mrf.mxu0
      %1046 = vmatprep.mubr.bf16.mxu0 0
      %1047 = vmatmul.mubr.bf16.gmra.mxu0 %v943
      %v1048 = vpop.f32.mrf.mxu0
      %v1049 = vadd.f32 %v856, %v1048
      %v1050 = vpop.f32.mrf.mxu0
      %v1051 = vpop.f32.mrf.mxu0
      %v1052 = vadd.f32 %v859, %v1051
      %v1053 = vpop.f32.mrf.mxu0
      %1054 = vmatprep.mubr.bf16.mxu0 0
      %1055 = vmatmul.mubr.bf16.gmra.mxu0 %v944
      %v1056 = vpop.f32.mrf.mxu0
      %v1057 = vadd.f32 %v864, %v1056
      %v1058 = vpop.f32.mrf.mxu0
      %v1059 = vpop.f32.mrf.mxu0
      %v1060 = vadd.f32 %v867, %v1059
      %v1061 = vpop.f32.mrf.mxu0
      %1062 = vmatprep.mubr.bf16.mxu0 0
      %1063 = vmatmul.mubr.bf16.gmra.mxu0 %v945
      %v1064 = vpop.f32.mrf.mxu0
      %v1065 = vadd.f32 %v872, %v1064
      %v1066 = vpop.f32.mrf.mxu0
      %v1067 = vpop.f32.mrf.mxu0
      %v1068 = vadd.f32 %v875, %v1067
      %v1069 = vpop.f32.mrf.mxu0
      %1070 = vmatprep.mubr.bf16.mxu0 0
      %1071 = vmatmul.mubr.bf16.gmra.mxu0 %v946
      %v1072 = vpop.f32.mrf.mxu0
      %v1073 = vadd.f32 %v880, %v1072
      %v1074 = vpop.f32.mrf.mxu0
      %v1075 = vpop.f32.mrf.mxu0
      %v1076 = vadd.f32 %v883, %v1075
      %v1077 = vpop.f32.mrf.mxu0
      %1078 = vmatprep.mubr.bf16.mxu0 0
      %1079 = vmatmul.mubr.bf16.gmra.mxu0 %v947
      %v1080 = vpop.f32.mrf.mxu0
      %v1081 = vadd.f32 %v888, %v1080
      %v1082 = vpop.f32.mrf.mxu0
      %v1083 = vpop.f32.mrf.mxu0
      %v1084 = vadd.f32 %v891, %v1083
      %v1085 = vpop.f32.mrf.mxu0
      %1086 = vmatprep.mubr.bf16.mxu0 0
      %1087 = vmatmul.mubr.bf16.gmra.mxu0 %v948
      %v1088 = vpop.f32.mrf.mxu0
      %v1089 = vadd.f32 %v896, %v1088
      %v1090 = vpop.f32.mrf.mxu0
      %v1091 = vpop.f32.mrf.mxu0
      %v1092 = vadd.f32 %v899, %v1091
      %v1093 = vpop.f32.mrf.mxu0
      %1094 = vmatprep.mubr.bf16.mxu0 0
      %1095 = vmatmul.mubr.bf16.gmra.mxu0 %v949
      %v1096 = vpop.f32.mrf.mxu0
      %v1097 = vadd.f32 %v904, %v1096
      %v1098 = vpop.f32.mrf.mxu0
      %v1099 = vpop.f32.mrf.mxu0
      %v1100 = vadd.f32 %v907, %v1099
      %v1101 = vpop.f32.mrf.mxu0
      %1102 = vdwg.mxu0
      %v1103 = vld [vmem:[#allocation2] sm:$0xe]
      %v1104 = vld [vmem:[#allocation2 + $0xc] sm:$0xe]
      %v1105 = vld [vmem:[#allocation2 + $0x18] sm:$0xe]
      %v1106 = vld [vmem:[#allocation2 + $0x24] sm:$0xe]
      %v1107 = vld [vmem:[#allocation2 + $0x30] sm:$0xe]
      %v1108 = vld [vmem:[#allocation2 + $0x3c] sm:$0xe]
      %v1109 = vld [vmem:[#allocation2 + $0x48] sm:$0xe]
      %v1110 = vld [vmem:[#allocation2 + $0x54] sm:$0xe]
      %vm1127 = vcmask 1042432
      %vm1128 = vcmask 1046532
      %vm1129 = vmor %vm1127, %vm1128
      %v1130 = vrot.slane %v1103, 5
      %v1131 = vrot.slane %v1130, 4
      %v1132 = vrot.slane %v482, 5
      %v1133 = vsel %vm1129, %v1131, %v1132
      %v1134 = vrot.slane %v1132, 4
      %v1135 = vrot.slane %v513, 5
      %v1136 = vsel %vm1129, %v1134, %v1135
      %v1137 = vrot.slane %v1104, 5
      %v1138 = vrot.slane %v1137, 4
      %v1139 = vrot.slane %v484, 5
      %v1140 = vsel %vm1129, %v1138, %v1139
      %v1141 = vrot.slane %v1139, 4
      %v1142 = vrot.slane %v514, 5
      %v1143 = vsel %vm1129, %v1141, %v1142
      %v1144 = vrot.slane %v1105, 5
      %v1145 = vrot.slane %v1144, 4
      %v1146 = vrot.slane %v486, 5
      %v1147 = vsel %vm1129, %v1145, %v1146
      %v1148 = vrot.slane %v1146, 4
      %v1149 = vrot.slane %v515, 5
      %v1150 = vsel %vm1129, %v1148, %v1149
      %v1151 = vrot.slane %v1106, 5
      %v1152 = vrot.slane %v1151, 4
      %v1153 = vrot.slane %v488, 5
      %v1154 = vsel %vm1129, %v1152, %v1153
      %v1155 = vrot.slane %v1153, 4
      %v1156 = vrot.slane %v516, 5
      %v1157 = vsel %vm1129, %v1155, %v1156
      %v1158 = vrot.slane %v1107, 5
      %v1159 = vrot.slane %v1158, 4
      %v1160 = vrot.slane %v490, 5
      %v1161 = vsel %vm1129, %v1159, %v1160
      %v1162 = vrot.slane %v1160, 4
      %v1163 = vrot.slane %v517, 5
      %v1164 = vsel %vm1129, %v1162, %v1163
      %v1165 = vrot.slane %v1108, 5
      %v1166 = vrot.slane %v1165, 4
      %v1167 = vrot.slane %v492, 5
      %v1168 = vsel %vm1129, %v1166, %v1167
      %v1169 = vrot.slane %v1167, 4
      %v1170 = vrot.slane %v518, 5
      %v1171 = vsel %vm1129, %v1169, %v1170
      %v1172 = vrot.slane %v1109, 5
      %v1173 = vrot.slane %v1172, 4
      %v1174 = vrot.slane %v494, 5
      %v1175 = vsel %vm1129, %v1173, %v1174
      %v1176 = vrot.slane %v1174, 4
      %v1177 = vrot.slane %v519, 5
      %v1178 = vsel %vm1129, %v1176, %v1177
      %v1179 = vrot.slane %v1110, 5
      %v1180 = vrot.slane %v1179, 4
      %v1181 = vrot.slane %v496, 5
      %v1182 = vsel %vm1129, %v1180, %v1181
      %v1183 = vrot.slane %v1181, 4
      %v1184 = vrot.slane %v520, 5
      %v1185 = vsel %vm1129, %v1183, %v1184
      %s1186 = scalar_lea.vmem %s3, 128
      %v1187 = vld [vmem:[%s1186] sm:$0xf]
      %v1188 = vld [vmem:[%s1186 + $0x4] sm:$0xf]
      %v1189 = vld [vmem:[%s1186 + $0x8] sm:$0xf]
      %v1190 = vld [vmem:[%s1186 + $0xc] sm:$0xf]
      %v1191 = vld [vmem:[%s1186 + $0x10] sm:$0xf]
      %v1192 = vld [vmem:[%s1186 + $0x14] sm:$0xf]
      %v1193 = vld [vmem:[%s1186 + $0x18] sm:$0xf]
      %v1194 = vld [vmem:[%s1186 + $0x1c] sm:$0xf]
      %v1195 = vld [vmem:[%s1186 + $0x20] sm:$0xf]
      %v1196 = vld [vmem:[%s1186 + $0x24] sm:$0xf]
      %v1197 = vld [vmem:[%s1186 + $0x28] sm:$0xf]
      %v1198 = vld [vmem:[%s1186 + $0x2c] sm:$0xf]
      %v1199 = vld [vmem:[%s1186 + $0x30] sm:$0xf]
      %v1200 = vld [vmem:[%s1186 + $0x34] sm:$0xf]
      %v1201 = vld [vmem:[%s1186 + $0x38] sm:$0xf]
      %v1202 = vld [vmem:[%s1186 + $0x3c] sm:$0xf]
      %v1203 = vunpack.c.l.b16 %v1133
      %v1204 = vunpack.c.l.b16 %v1136
      %v1205 = vunpack.c.l.b16 %v1140
      %v1206 = vunpack.c.l.b16 %v1143
      %v1207 = vunpack.c.l.b16 %v1147
      %v1208 = vunpack.c.l.b16 %v1150
      %v1209 = vunpack.c.l.b16 %v1154
      %v1210 = vunpack.c.l.b16 %v1157
      %v1211 = vunpack.c.l.b16 %v1161
      %v1212 = vunpack.c.l.b16 %v1164
      %v1213 = vunpack.c.l.b16 %v1168
      %v1214 = vunpack.c.l.b16 %v1171
      %v1215 = vunpack.c.l.b16 %v1175
      %v1216 = vunpack.c.l.b16 %v1178
      %v1217 = vunpack.c.l.b16 %v1182
      %v1218 = vunpack.c.l.b16 %v1185
      %v1219 = vpack.c.b16 %v1204, %v1203
      %v1220 = vpack.c.b16 %v1206, %v1205
      %v1221 = vpack.c.b16 %v1208, %v1207
      %v1222 = vpack.c.b16 %v1210, %v1209
      %v1223 = vpack.c.b16 %v1212, %v1211
      %v1224 = vpack.c.b16 %v1214, %v1213
      %v1225 = vpack.c.b16 %v1216, %v1215
      %v1226 = vpack.c.b16 %v1218, %v1217
      %v1251 = vunpack.c.l.b16 %v1187
      %v1252 = vunpack.c.l.b16 %v1188
      %v1253 = vunpack.c.l.b16 %v1189
      %v1254 = vunpack.c.l.b16 %v1190
      %v1255 = vunpack.c.l.b16 %v1191
      %v1256 = vunpack.c.l.b16 %v1192
      %v1257 = vunpack.c.l.b16 %v1193
      %v1258 = vunpack.c.l.b16 %v1194
      %v1259 = vunpack.c.l.b16 %v1195
      %v1260 = vunpack.c.l.b16 %v1196
      %v1261 = vunpack.c.l.b16 %v1197
      %v1262 = vunpack.c.l.b16 %v1198
      %v1263 = vunpack.c.l.b16 %v1199
      %v1264 = vunpack.c.l.b16 %v1200
      %v1265 = vunpack.c.l.b16 %v1201
      %v1266 = vunpack.c.l.b16 %v1202
      %v1267 = vpack.c.b16 %v1252, %v1251
      %v1268 = vpack.c.b16 %v1254, %v1253
      %v1269 = vpack.c.b16 %v1256, %v1255
      %v1270 = vpack.c.b16 %v1258, %v1257
      %v1271 = vpack.c.b16 %v1260, %v1259
      %v1272 = vpack.c.b16 %v1262, %v1261
      %v1273 = vpack.c.b16 %v1264, %v1263
      %v1274 = vpack.c.b16 %v1266, %v1265
      %1283 = vmatprep.subr.bf16.mxu0 0
      %1284 = vmatpush1.bf16.msra.mxu0 %v1274
      %1285 = vmatprep.subr.bf16.mxu0 0
      %1286 = vmatpush1.bf16.msra.mxu0 %v1273
      %1287 = vmatprep.subr.bf16.mxu0 0
      %1288 = vmatpush1.bf16.msra.mxu0 %v1272
      %1289 = vmatprep.subr.bf16.mxu0 0
      %1290 = vmatpush1.bf16.msra.mxu0 %v1271
      %1291 = vmatprep.subr.bf16.mxu0 0
      %1292 = vmatpush1.bf16.msra.mxu0 %v1270
      %1293 = vmatprep.subr.bf16.mxu0 0
      %1294 = vmatpush1.bf16.msra.mxu0 %v1269
      %1295 = vmatprep.subr.bf16.mxu0 0
      %1296 = vmatpush1.bf16.msra.mxu0 %v1268
      %1297 = vmatprep.subr.bf16.mxu0 0
      %1298 = vmatpush1.bf16.msra.mxu0 %v1267
      %1299 = vmatprep.subr.bf16.mxu0 0
      %1300 = vmatpush2.bf16.msra.mxu0 0
      %1301 = vmatprep.subr.bf16.mxu0 0
      %1302 = vmatpush2.bf16.msra.mxu0 0
      %1303 = vmatprep.subr.bf16.mxu0 0
      %1304 = vmatpush2.bf16.msra.mxu0 0
      %1305 = vmatprep.subr.bf16.mxu0 0
      %1306 = vmatpush2.bf16.msra.mxu0 0
      %1307 = vmatprep.subr.bf16.mxu0 0
      %1308 = vmatpush2.bf16.msra.mxu0 0
      %1309 = vmatprep.subr.bf16.mxu0 0
      %1310 = vmatpush2.bf16.msra.mxu0 0
      %1311 = vmatprep.subr.bf16.mxu0 0
      %1312 = vmatpush2.bf16.msra.mxu0 0
      %1313 = vmatprep.subr.bf16.mxu0 0
      %1314 = vmatpush2.bf16.msra.mxu0 0
      %1315 = vmatprep.mubr.bf16.mxu0 0
      %1316 = vmatmul.mubr.bf16.gmra.mxu0 %v1219
      %v1317 = vpop.f32.mrf.mxu0
      %v1318 = vadd.f32 0.0, %v1317
      %v1319 = vpop.f32.mrf.mxu0
      %v1320 = vpop.f32.mrf.mxu0
      %v1321 = vadd.f32 0.0, %v1320
      %v1322 = vpop.f32.mrf.mxu0
      %1323 = vmatprep.mubr.bf16.mxu0 0
      %1324 = vmatmul.mubr.bf16.gmra.mxu0 %v1220
      %v1325 = vpop.f32.mrf.mxu0
      %v1326 = vadd.f32 0.0, %v1325
      %v1327 = vpop.f32.mrf.mxu0
      %v1328 = vpop.f32.mrf.mxu0
      %v1329 = vadd.f32 0.0, %v1328
      %v1330 = vpop.f32.mrf.mxu0
      %1331 = vmatprep.mubr.bf16.mxu0 0
      %1332 = vmatmul.mubr.bf16.gmra.mxu0 %v1221
      %v1333 = vpop.f32.mrf.mxu0
      %v1334 = vadd.f32 0.0, %v1333
      %v1335 = vpop.f32.mrf.mxu0
      %v1336 = vpop.f32.mrf.mxu0
      %v1337 = vadd.f32 0.0, %v1336
      %v1338 = vpop.f32.mrf.mxu0
      %1339 = vmatprep.mubr.bf16.mxu0 0
      %1340 = vmatmul.mubr.bf16.gmra.mxu0 %v1222
      %v1341 = vpop.f32.mrf.mxu0
      %v1342 = vadd.f32 0.0, %v1341
      %v1343 = vpop.f32.mrf.mxu0
      %v1344 = vpop.f32.mrf.mxu0
      %v1345 = vadd.f32 0.0, %v1344
      %v1346 = vpop.f32.mrf.mxu0
      %1347 = vmatprep.mubr.bf16.mxu0 0
      %1348 = vmatmul.mubr.bf16.gmra.mxu0 %v1223
      %v1349 = vpop.f32.mrf.mxu0
      %v1350 = vadd.f32 0.0, %v1349
      %v1351 = vpop.f32.mrf.mxu0
      %v1352 = vpop.f32.mrf.mxu0
      %v1353 = vadd.f32 0.0, %v1352
      %v1354 = vpop.f32.mrf.mxu0
      %1355 = vmatprep.mubr.bf16.mxu0 0
      %1356 = vmatmul.mubr.bf16.gmra.mxu0 %v1224
      %v1357 = vpop.f32.mrf.mxu0
      %v1358 = vadd.f32 0.0, %v1357
      %v1359 = vpop.f32.mrf.mxu0
      %v1360 = vpop.f32.mrf.mxu0
      %v1361 = vadd.f32 0.0, %v1360
      %v1362 = vpop.f32.mrf.mxu0
      %1363 = vmatprep.mubr.bf16.mxu0 0
      %1364 = vmatmul.mubr.bf16.gmra.mxu0 %v1225
      %v1365 = vpop.f32.mrf.mxu0
      %v1366 = vadd.f32 0.0, %v1365
      %v1367 = vpop.f32.mrf.mxu0
      %v1368 = vpop.f32.mrf.mxu0
      %v1369 = vadd.f32 0.0, %v1368
      %v1370 = vpop.f32.mrf.mxu0
      %1371 = vmatprep.mubr.bf16.mxu0 0
      %1372 = vmatmul.mubr.bf16.gmra.mxu0 %v1226
      %v1373 = vpop.f32.mrf.mxu0
      %v1374 = vadd.f32 0.0, %v1373
      %v1375 = vpop.f32.mrf.mxu0
      %v1376 = vpop.f32.mrf.mxu0
      %v1377 = vadd.f32 0.0, %v1376
      %v1378 = vpop.f32.mrf.mxu0
      %1379 = vdwg.mxu0
      %v1380 = vadd.f32 %v1041, %v1318
      %v1381 = vadd.f32 %v1044, %v1321
      %v1382 = vadd.f32 %v1049, %v1326
      %v1383 = vadd.f32 %v1052, %v1329
      %v1384 = vadd.f32 %v1057, %v1334
      %v1385 = vadd.f32 %v1060, %v1337
      %v1386 = vadd.f32 %v1065, %v1342
      %v1387 = vadd.f32 %v1068, %v1345
      %v1388 = vadd.f32 %v1073, %v1350
      %v1389 = vadd.f32 %v1076, %v1353
      %v1390 = vadd.f32 %v1081, %v1358
      %v1391 = vadd.f32 %v1084, %v1361
      %v1392 = vadd.f32 %v1089, %v1366
      %v1393 = vadd.f32 %v1092, %v1369
      %v1394 = vadd.f32 %v1097, %v1374
      %v1395 = vadd.f32 %v1100, %v1377
      %s1396 = scalar_lea.vmem [#allocation2], 12
      %v1397 = vld [vmem:[%s1396] sm:$0xf]
      %v1398 = vld [vmem:[%s1396 + $0x4] sm:$0xf]
      %v1399 = vld [vmem:[%s1396 + $0xc] sm:$0xf]
      %v1400 = vld [vmem:[%s1396 + $0x10] sm:$0xf]
      %v1401 = vld [vmem:[%s1396 + $0x18] sm:$0xf]
      %v1402 = vld [vmem:[%s1396 + $0x1c] sm:$0xf]
      %v1403 = vld [vmem:[%s1396 + $0x24] sm:$0xf]
      %v1404 = vld [vmem:[%s1396 + $0x28] sm:$0xf]
      %v1405 = vld [vmem:[%s1396 + $0x30] sm:$0xf]
      %v1406 = vld [vmem:[%s1396 + $0x34] sm:$0xf]
      %v1407 = vld [vmem:[%s1396 + $0x3c] sm:$0xf]
      %v1408 = vld [vmem:[%s1396 + $0x40] sm:$0xf]
      %v1409 = vld [vmem:[%s1396 + $0x48] sm:$0xf]
      %v1410 = vld [vmem:[%s1396 + $0x4c] sm:$0xf]
      %v1411 = vld [vmem:[%s1396 + $0x54] sm:$0xf]
      %v1412 = vld [vmem:[%s1396 + $0x58] sm:$0xf]
      %s1413 = scalar_lea.vmem %s3, 192
      %v1414 = vld [vmem:[%s1413] sm:$0xf]
      %v1415 = vld [vmem:[%s1413 + $0x4] sm:$0xf]
      %v1416 = vld [vmem:[%s1413 + $0x8] sm:$0xf]
      %v1417 = vld [vmem:[%s1413 + $0xc] sm:$0xf]
      %v1418 = vld [vmem:[%s1413 + $0x10] sm:$0xf]
      %v1419 = vld [vmem:[%s1413 + $0x14] sm:$0xf]
      %v1420 = vld [vmem:[%s1413 + $0x18] sm:$0xf]
      %v1421 = vld [vmem:[%s1413 + $0x1c] sm:$0xf]
      %v1422 = vld [vmem:[%s1413 + $0x20] sm:$0xf]
      %v1423 = vld [vmem:[%s1413 + $0x24] sm:$0xf]
      %v1424 = vld [vmem:[%s1413 + $0x28] sm:$0xf]
      %v1425 = vld [vmem:[%s1413 + $0x2c] sm:$0xf]
      %v1426 = vld [vmem:[%s1413 + $0x30] sm:$0xf]
      %v1427 = vld [vmem:[%s1413 + $0x34] sm:$0xf]
      %v1428 = vld [vmem:[%s1413 + $0x38] sm:$0xf]
      %v1429 = vld [vmem:[%s1413 + $0x3c] sm:$0xf]
      %v1446 = vunpack.c.l.b16 %v1397
      %v1447 = vunpack.c.l.b16 %v1398
      %v1448 = vunpack.c.l.b16 %v1399
      %v1449 = vunpack.c.l.b16 %v1400
      %v1450 = vunpack.c.l.b16 %v1401
      %v1451 = vunpack.c.l.b16 %v1402
      %v1452 = vunpack.c.l.b16 %v1403
      %v1453 = vunpack.c.l.b16 %v1404
      %v1454 = vunpack.c.l.b16 %v1405
      %v1455 = vunpack.c.l.b16 %v1406
      %v1456 = vunpack.c.l.b16 %v1407
      %v1457 = vunpack.c.l.b16 %v1408
      %v1458 = vunpack.c.l.b16 %v1409
      %v1459 = vunpack.c.l.b16 %v1410
      %v1460 = vunpack.c.l.b16 %v1411
      %v1461 = vunpack.c.l.b16 %v1412
      %v1462 = vpack.c.b16 %v1447, %v1446
      %v1463 = vpack.c.b16 %v1449, %v1448
      %v1464 = vpack.c.b16 %v1451, %v1450
      %v1465 = vpack.c.b16 %v1453, %v1452
      %v1466 = vpack.c.b16 %v1455, %v1454
      %v1467 = vpack.c.b16 %v1457, %v1456
      %v1468 = vpack.c.b16 %v1459, %v1458
      %v1469 = vpack.c.b16 %v1461, %v1460
      %v1494 = vunpack.c.l.b16 %v1414
      %v1495 = vunpack.c.l.b16 %v1415
      %v1496 = vunpack.c.l.b16 %v1416
      %v1497 = vunpack.c.l.b16 %v1417
      %v1498 = vunpack.c.l.b16 %v1418
      %v1499 = vunpack.c.l.b16 %v1419
      %v1500 = vunpack.c.l.b16 %v1420
      %v1501 = vunpack.c.l.b16 %v1421
      %v1502 = vunpack.c.l.b16 %v1422
      %v1503 = vunpack.c.l.b16 %v1423
      %v1504 = vunpack.c.l.b16 %v1424
      %v1505 = vunpack.c.l.b16 %v1425
      %v1506 = vunpack.c.l.b16 %v1426
      %v1507 = vunpack.c.l.b16 %v1427
      %v1508 = vunpack.c.l.b16 %v1428
      %v1509 = vunpack.c.l.b16 %v1429
      %v1510 = vpack.c.b16 %v1495, %v1494
      %v1511 = vpack.c.b16 %v1497, %v1496
      %v1512 = vpack.c.b16 %v1499, %v1498
      %v1513 = vpack.c.b16 %v1501, %v1500
      %v1514 = vpack.c.b16 %v1503, %v1502
      %v1515 = vpack.c.b16 %v1505, %v1504
      %v1516 = vpack.c.b16 %v1507, %v1506
      %v1517 = vpack.c.b16 %v1509, %v1508
      %1526 = vmatprep.subr.bf16.mxu0 0
      %1527 = vmatpush1.bf16.msra.mxu0 %v1517
      %1528 = vmatprep.subr.bf16.mxu0 0
      %1529 = vmatpush1.bf16.msra.mxu0 %v1516
      %1530 = vmatprep.subr.bf16.mxu0 0
      %1531 = vmatpush1.bf16.msra.mxu0 %v1515
      %1532 = vmatprep.subr.bf16.mxu0 0
      %1533 = vmatpush1.bf16.msra.mxu0 %v1514
      %1534 = vmatprep.subr.bf16.mxu0 0
      %1535 = vmatpush1.bf16.msra.mxu0 %v1513
      %1536 = vmatprep.subr.bf16.mxu0 0
      %1537 = vmatpush1.bf16.msra.mxu0 %v1512
      %1538 = vmatprep.subr.bf16.mxu0 0
      %1539 = vmatpush1.bf16.msra.mxu0 %v1511
      %1540 = vmatprep.subr.bf16.mxu0 0
      %1541 = vmatpush1.bf16.msra.mxu0 %v1510
      %1542 = vmatprep.subr.bf16.mxu0 0
      %1543 = vmatpush2.bf16.msra.mxu0 0
      %1544 = vmatprep.subr.bf16.mxu0 0
      %1545 = vmatpush2.bf16.msra.mxu0 0
      %1546 = vmatprep.subr.bf16.mxu0 0
      %1547 = vmatpush2.bf16.msra.mxu0 0
      %1548 = vmatprep.subr.bf16.mxu0 0
      %1549 = vmatpush2.bf16.msra.mxu0 0
      %1550 = vmatprep.subr.bf16.mxu0 0
      %1551 = vmatpush2.bf16.msra.mxu0 0
      %1552 = vmatprep.subr.bf16.mxu0 0
      %1553 = vmatpush2.bf16.msra.mxu0 0
      %1554 = vmatprep.subr.bf16.mxu0 0
      %1555 = vmatpush2.bf16.msra.mxu0 0
      %1556 = vmatprep.subr.bf16.mxu0 0
      %1557 = vmatpush2.bf16.msra.mxu0 0
      %1558 = vmatprep.mubr.bf16.mxu0 0
      %1559 = vmatmul.mubr.bf16.gmra.mxu0 %v1462
      %v1560 = vpop.f32.mrf.mxu0
      %v1561 = vadd.f32 0.0, %v1560
      %v1562 = vpop.f32.mrf.mxu0
      %v1563 = vpop.f32.mrf.mxu0
      %v1564 = vadd.f32 0.0, %v1563
      %v1565 = vpop.f32.mrf.mxu0
      %1566 = vmatprep.mubr.bf16.mxu0 0
      %1567 = vmatmul.mubr.bf16.gmra.mxu0 %v1463
      %v1568 = vpop.f32.mrf.mxu0
      %v1569 = vadd.f32 0.0, %v1568
      %v1570 = vpop.f32.mrf.mxu0
      %v1571 = vpop.f32.mrf.mxu0
      %v1572 = vadd.f32 0.0, %v1571
      %v1573 = vpop.f32.mrf.mxu0
      %1574 = vmatprep.mubr.bf16.mxu0 0
      %1575 = vmatmul.mubr.bf16.gmra.mxu0 %v1464
      %v1576 = vpop.f32.mrf.mxu0
      %v1577 = vadd.f32 0.0, %v1576
      %v1578 = vpop.f32.mrf.mxu0
      %v1579 = vpop.f32.mrf.mxu0
      %v1580 = vadd.f32 0.0, %v1579
      %v1581 = vpop.f32.mrf.mxu0
      %1582 = vmatprep.mubr.bf16.mxu0 0
      %1583 = vmatmul.mubr.bf16.gmra.mxu0 %v1465
      %v1584 = vpop.f32.mrf.mxu0
      %v1585 = vadd.f32 0.0, %v1584
      %v1586 = vpop.f32.mrf.mxu0
      %v1587 = vpop.f32.mrf.mxu0
      %v1588 = vadd.f32 0.0, %v1587
      %v1589 = vpop.f32.mrf.mxu0
      %1590 = vmatprep.mubr.bf16.mxu0 0
      %1591 = vmatmul.mubr.bf16.gmra.mxu0 %v1466
      %v1592 = vpop.f32.mrf.mxu0
      %v1593 = vadd.f32 0.0, %v1592
      %v1594 = vpop.f32.mrf.mxu0
      %v1595 = vpop.f32.mrf.mxu0
      %v1596 = vadd.f32 0.0, %v1595
      %v1597 = vpop.f32.mrf.mxu0
      %1598 = vmatprep.mubr.bf16.mxu0 0
      %1599 = vmatmul.mubr.bf16.gmra.mxu0 %v1467
      %v1600 = vpop.f32.mrf.mxu0
      %v1601 = vadd.f32 0.0, %v1600
      %v1602 = vpop.f32.mrf.mxu0
      %v1603 = vpop.f32.mrf.mxu0
      %v1604 = vadd.f32 0.0, %v1603
      %v1605 = vpop.f32.mrf.mxu0
      %1606 = vmatprep.mubr.bf16.mxu0 0
      %1607 = vmatmul.mubr.bf16.gmra.mxu0 %v1468
      %v1608 = vpop.f32.mrf.mxu0
      %v1609 = vadd.f32 0.0, %v1608
      %v1610 = vpop.f32.mrf.mxu0
      %v1611 = vpop.f32.mrf.mxu0
      %v1612 = vadd.f32 0.0, %v1611
      %v1613 = vpop.f32.mrf.mxu0
      %1614 = vmatprep.mubr.bf16.mxu0 0
      %1615 = vmatmul.mubr.bf16.gmra.mxu0 %v1469
      %v1616 = vpop.f32.mrf.mxu0
      %v1617 = vadd.f32 0.0, %v1616
      %v1618 = vpop.f32.mrf.mxu0
      %v1619 = vpop.f32.mrf.mxu0
      %v1620 = vadd.f32 0.0, %v1619
      %v1621 = vpop.f32.mrf.mxu0
      %1622 = vdwg.mxu0
      %v1623 = vadd.f32 %v1380, %v1561
      %v1624 = vadd.f32 %v1381, %v1564
      %v1625 = vadd.f32 %v1382, %v1569
      %v1626 = vadd.f32 %v1383, %v1572
      %v1627 = vadd.f32 %v1384, %v1577
      %v1628 = vadd.f32 %v1385, %v1580
      %v1629 = vadd.f32 %v1386, %v1585
      %v1630 = vadd.f32 %v1387, %v1588
      %v1631 = vadd.f32 %v1388, %v1593
      %v1632 = vadd.f32 %v1389, %v1596
      %v1633 = vadd.f32 %v1390, %v1601
      %v1634 = vadd.f32 %v1391, %v1604
      %v1635 = vadd.f32 %v1392, %v1609
      %v1636 = vadd.f32 %v1393, %v1612
      %v1637 = vadd.f32 %v1394, %v1617
      %v1638 = vadd.f32 %v1395, %v1620
      %v1639 = vld [vmem:[%s1396] sm:$0xf]
      %v1640 = vld [vmem:[%s1396 + $0x4] sm:$0xf]
      %v1641 = vld [vmem:[%s1396 + $0x8] sm:$0x1]
      %v1642 = vld [vmem:[%s1396 + $0xc] sm:$0xf]
      %v1643 = vld [vmem:[%s1396 + $0x10] sm:$0xf]
      %v1644 = vld [vmem:[%s1396 + $0x14] sm:$0x1]
      %v1645 = vld [vmem:[%s1396 + $0x18] sm:$0xf]
      %v1646 = vld [vmem:[%s1396 + $0x1c] sm:$0xf]
      %v1647 = vld [vmem:[%s1396 + $0x20] sm:$0x1]
      %v1648 = vld [vmem:[%s1396 + $0x24] sm:$0xf]
      %v1649 = vld [vmem:[%s1396 + $0x28] sm:$0xf]
      %v1650 = vld [vmem:[%s1396 + $0x2c] sm:$0x1]
      %v1651 = vld [vmem:[%s1396 + $0x30] sm:$0xf]
      %v1652 = vld [vmem:[%s1396 + $0x34] sm:$0xf]
      %v1653 = vld [vmem:[%s1396 + $0x38] sm:$0x1]
      %v1654 = vld [vmem:[%s1396 + $0x3c] sm:$0xf]
      %v1655 = vld [vmem:[%s1396 + $0x40] sm:$0xf]
      %v1656 = vld [vmem:[%s1396 + $0x44] sm:$0x1]
      %v1657 = vld [vmem:[%s1396 + $0x48] sm:$0xf]
      %v1658 = vld [vmem:[%s1396 + $0x4c] sm:$0xf]
      %v1659 = vld [vmem:[%s1396 + $0x50] sm:$0x1]
      %v1660 = vld [vmem:[%s1396 + $0x54] sm:$0xf]
      %v1661 = vld [vmem:[%s1396 + $0x58] sm:$0xf]
      %v1662 = vld [vmem:[%s1396 + $0x5c] sm:$0x1]
      %v1664 = vshrl.u32 %v1639, 16
      %v1666 = vrot.slane %v1664, 4
      %v1667 = vshll.u32 %v1639, 16
      %v1669 = vrot.slane %v1667, 5
      %v1670 = vor.u32 %v1666, %v1669
      %v1671 = vrot.slane %v1670, 4
      %v1673 = vshll.u32 %v1640, 16
      %v1675 = vrot.slane %v1673, 5
      %v1676 = vsel %vm523, %v1671, %v1675
      %v1677 = vshrl.u32 %v1640, 16
      %v1679 = vrot.slane %v1677, 4
      %v1680 = vor.u32 %v1679, %v1675
      %v1681 = vrot.slane %v1680, 4
      %v1683 = vshll.u32 %v1641, 16
      %v1685 = vrot.slane %v1683, 5
      %v1686 = vsel %vm523, %v1681, %v1685
      %v1688 = vshrl.u32 %v1642, 16
      %v1690 = vrot.slane %v1688, 4
      %v1691 = vshll.u32 %v1642, 16
      %v1693 = vrot.slane %v1691, 5
      %v1694 = vor.u32 %v1690, %v1693
      %v1695 = vrot.slane %v1694, 4
      %v1697 = vshll.u32 %v1643, 16
      %v1699 = vrot.slane %v1697, 5
      %v1700 = vsel %vm523, %v1695, %v1699
      %v1701 = vshrl.u32 %v1643, 16
      %v1703 = vrot.slane %v1701, 4
      %v1704 = vor.u32 %v1703, %v1699
      %v1705 = vrot.slane %v1704, 4
      %v1707 = vshll.u32 %v1644, 16
      %v1709 = vrot.slane %v1707, 5
      %v1710 = vsel %vm523, %v1705, %v1709
      %v1712 = vshrl.u32 %v1645, 16
      %v1714 = vrot.slane %v1712, 4
      %v1715 = vshll.u32 %v1645, 16
      %v1717 = vrot.slane %v1715, 5
      %v1718 = vor.u32 %v1714, %v1717
      %v1719 = vrot.slane %v1718, 4
      %v1721 = vshll.u32 %v1646, 16
      %v1723 = vrot.slane %v1721, 5
      %v1724 = vsel %vm523, %v1719, %v1723
      %v1725 = vshrl.u32 %v1646, 16
      %v1727 = vrot.slane %v1725, 4
      %v1728 = vor.u32 %v1727, %v1723
      %v1729 = vrot.slane %v1728, 4
      %v1731 = vshll.u32 %v1647, 16
      %v1733 = vrot.slane %v1731, 5
      %v1734 = vsel %vm523, %v1729, %v1733
      %v1736 = vshrl.u32 %v1648, 16
      %v1738 = vrot.slane %v1736, 4
      %v1739 = vshll.u32 %v1648, 16
      %v1741 = vrot.slane %v1739, 5
      %v1742 = vor.u32 %v1738, %v1741
      %v1743 = vrot.slane %v1742, 4
      %v1745 = vshll.u32 %v1649, 16
      %v1747 = vrot.slane %v1745, 5
      %v1748 = vsel %vm523, %v1743, %v1747
      %v1749 = vshrl.u32 %v1649, 16
      %v1751 = vrot.slane %v1749, 4
      %v1752 = vor.u32 %v1751, %v1747
      %v1753 = vrot.slane %v1752, 4
      %v1755 = vshll.u32 %v1650, 16
      %v1757 = vrot.slane %v1755, 5
      %v1758 = vsel %vm523, %v1753, %v1757
      %v1760 = vshrl.u32 %v1651, 16
      %v1762 = vrot.slane %v1760, 4
      %v1763 = vshll.u32 %v1651, 16
      %v1765 = vrot.slane %v1763, 5
      %v1766 = vor.u32 %v1762, %v1765
      %v1767 = vrot.slane %v1766, 4
      %v1769 = vshll.u32 %v1652, 16
      %v1771 = vrot.slane %v1769, 5
      %v1772 = vsel %vm523, %v1767, %v1771
      %v1773 = vshrl.u32 %v1652, 16
      %v1775 = vrot.slane %v1773, 4
      %v1776 = vor.u32 %v1775, %v1771
      %v1777 = vrot.slane %v1776, 4
      %v1779 = vshll.u32 %v1653, 16
      %v1781 = vrot.slane %v1779, 5
      %v1782 = vsel %vm523, %v1777, %v1781
      %v1784 = vshrl.u32 %v1654, 16
      %v1786 = vrot.slane %v1784, 4
      %v1787 = vshll.u32 %v1654, 16
      %v1789 = vrot.slane %v1787, 5
      %v1790 = vor.u32 %v1786, %v1789
      %v1791 = vrot.slane %v1790, 4
      %v1793 = vshll.u32 %v1655, 16
      %v1795 = vrot.slane %v1793, 5
      %v1796 = vsel %vm523, %v1791, %v1795
      %v1797 = vshrl.u32 %v1655, 16
      %v1799 = vrot.slane %v1797, 4
      %v1800 = vor.u32 %v1799, %v1795
      %v1801 = vrot.slane %v1800, 4
      %v1803 = vshll.u32 %v1656, 16
      %v1805 = vrot.slane %v1803, 5
      %v1806 = vsel %vm523, %v1801, %v1805
      %v1808 = vshrl.u32 %v1657, 16
      %v1810 = vrot.slane %v1808, 4
      %v1811 = vshll.u32 %v1657, 16
      %v1813 = vrot.slane %v1811, 5
      %v1814 = vor.u32 %v1810, %v1813
      %v1815 = vrot.slane %v1814, 4
      %v1817 = vshll.u32 %v1658, 16
      %v1819 = vrot.slane %v1817, 5
      %v1820 = vsel %vm523, %v1815, %v1819
      %v1821 = vshrl.u32 %v1658, 16
      %v1823 = vrot.slane %v1821, 4
      %v1824 = vor.u32 %v1823, %v1819
      %v1825 = vrot.slane %v1824, 4
      %v1827 = vshll.u32 %v1659, 16
      %v1829 = vrot.slane %v1827, 5
      %v1830 = vsel %vm523, %v1825, %v1829
      %v1832 = vshrl.u32 %v1660, 16
      %v1834 = vrot.slane %v1832, 4
      %v1835 = vshll.u32 %v1660, 16
      %v1837 = vrot.slane %v1835, 5
      %v1838 = vor.u32 %v1834, %v1837
      %v1839 = vrot.slane %v1838, 4
      %v1841 = vshll.u32 %v1661, 16
      %v1843 = vrot.slane %v1841, 5
      %v1844 = vsel %vm523, %v1839, %v1843
      %v1845 = vshrl.u32 %v1661, 16
      %v1847 = vrot.slane %v1845, 4
      %v1848 = vor.u32 %v1847, %v1843
      %v1849 = vrot.slane %v1848, 4
      %v1851 = vshll.u32 %v1662, 16
      %v1853 = vrot.slane %v1851, 5
      %v1854 = vsel %vm523, %v1849, %v1853
      %s1855 = scalar_lea.vmem %s3, 256
      %v1856 = vld [vmem:[%s1855] sm:$0xf]
      %v1857 = vld [vmem:[%s1855 + $0x4] sm:$0xf]
      %v1858 = vld [vmem:[%s1855 + $0x8] sm:$0xf]
      %v1859 = vld [vmem:[%s1855 + $0xc] sm:$0xf]
      %v1860 = vld [vmem:[%s1855 + $0x10] sm:$0xf]
      %v1861 = vld [vmem:[%s1855 + $0x14] sm:$0xf]
      %v1862 = vld [vmem:[%s1855 + $0x18] sm:$0xf]
      %v1863 = vld [vmem:[%s1855 + $0x1c] sm:$0xf]
      %v1864 = vld [vmem:[%s1855 + $0x20] sm:$0xf]
      %v1865 = vld [vmem:[%s1855 + $0x24] sm:$0xf]
      %v1866 = vld [vmem:[%s1855 + $0x28] sm:$0xf]
      %v1867 = vld [vmem:[%s1855 + $0x2c] sm:$0xf]
      %v1868 = vld [vmem:[%s1855 + $0x30] sm:$0xf]
      %v1869 = vld [vmem:[%s1855 + $0x34] sm:$0xf]
      %v1870 = vld [vmem:[%s1855 + $0x38] sm:$0xf]
      %v1871 = vld [vmem:[%s1855 + $0x3c] sm:$0xf]
      %v1872 = vunpack.c.l.b16 %v1676
      %v1873 = vunpack.c.l.b16 %v1686
      %v1874 = vunpack.c.l.b16 %v1700
      %v1875 = vunpack.c.l.b16 %v1710
      %v1876 = vunpack.c.l.b16 %v1724
      %v1877 = vunpack.c.l.b16 %v1734
      %v1878 = vunpack.c.l.b16 %v1748
      %v1879 = vunpack.c.l.b16 %v1758
      %v1880 = vunpack.c.l.b16 %v1772
      %v1881 = vunpack.c.l.b16 %v1782
      %v1882 = vunpack.c.l.b16 %v1796
      %v1883 = vunpack.c.l.b16 %v1806
      %v1884 = vunpack.c.l.b16 %v1820
      %v1885 = vunpack.c.l.b16 %v1830
      %v1886 = vunpack.c.l.b16 %v1844
      %v1887 = vunpack.c.l.b16 %v1854
      %v1888 = vpack.c.b16 %v1873, %v1872
      %v1889 = vpack.c.b16 %v1875, %v1874
      %v1890 = vpack.c.b16 %v1877, %v1876
      %v1891 = vpack.c.b16 %v1879, %v1878
      %v1892 = vpack.c.b16 %v1881, %v1880
      %v1893 = vpack.c.b16 %v1883, %v1882
      %v1894 = vpack.c.b16 %v1885, %v1884
      %v1895 = vpack.c.b16 %v1887, %v1886
      %v1920 = vunpack.c.l.b16 %v1856
      %v1921 = vunpack.c.l.b16 %v1857
      %v1922 = vunpack.c.l.b16 %v1858
      %v1923 = vunpack.c.l.b16 %v1859
      %v1924 = vunpack.c.l.b16 %v1860
      %v1925 = vunpack.c.l.b16 %v1861
      %v1926 = vunpack.c.l.b16 %v1862
      %v1927 = vunpack.c.l.b16 %v1863
      %v1928 = vunpack.c.l.b16 %v1864
      %v1929 = vunpack.c.l.b16 %v1865
      %v1930 = vunpack.c.l.b16 %v1866
      %v1931 = vunpack.c.l.b16 %v1867
      %v1932 = vunpack.c.l.b16 %v1868
      %v1933 = vunpack.c.l.b16 %v1869
      %v1934 = vunpack.c.l.b16 %v1870
      %v1935 = vunpack.c.l.b16 %v1871
      %v1936 = vpack.c.b16 %v1921, %v1920
      %v1937 = vpack.c.b16 %v1923, %v1922
      %v1938 = vpack.c.b16 %v1925, %v1924
      %v1939 = vpack.c.b16 %v1927, %v1926
      %v1940 = vpack.c.b16 %v1929, %v1928
      %v1941 = vpack.c.b16 %v1931, %v1930
      %v1942 = vpack.c.b16 %v1933, %v1932
      %v1943 = vpack.c.b16 %v1935, %v1934
      %1952 = vmatprep.subr.bf16.mxu0 0
      %1953 = vmatpush1.bf16.msra.mxu0 %v1943
      %1954 = vmatprep.subr.bf16.mxu0 0
      %1955 = vmatpush1.bf16.msra.mxu0 %v1942
      %1956 = vmatprep.subr.bf16.mxu0 0
      %1957 = vmatpush1.bf16.msra.mxu0 %v1941
      %1958 = vmatprep.subr.bf16.mxu0 0
      %1959 = vmatpush1.bf16.msra.mxu0 %v1940
      %1960 = vmatprep.subr.bf16.mxu0 0
      %1961 = vmatpush1.bf16.msra.mxu0 %v1939
      %1962 = vmatprep.subr.bf16.mxu0 0
      %1963 = vmatpush1.bf16.msra.mxu0 %v1938
      %1964 = vmatprep.subr.bf16.mxu0 0
      %1965 = vmatpush1.bf16.msra.mxu0 %v1937
      %1966 = vmatprep.subr.bf16.mxu0 0
      %1967 = vmatpush1.bf16.msra.mxu0 %v1936
      %1968 = vmatprep.subr.bf16.mxu0 0
      %1969 = vmatpush2.bf16.msra.mxu0 0
      %1970 = vmatprep.subr.bf16.mxu0 0
      %1971 = vmatpush2.bf16.msra.mxu0 0
      %1972 = vmatprep.subr.bf16.mxu0 0
      %1973 = vmatpush2.bf16.msra.mxu0 0
      %1974 = vmatprep.subr.bf16.mxu0 0
      %1975 = vmatpush2.bf16.msra.mxu0 0
      %1976 = vmatprep.subr.bf16.mxu0 0
      %1977 = vmatpush2.bf16.msra.mxu0 0
      %1978 = vmatprep.subr.bf16.mxu0 0
      %1979 = vmatpush2.bf16.msra.mxu0 0
      %1980 = vmatprep.subr.bf16.mxu0 0
      %1981 = vmatpush2.bf16.msra.mxu0 0
      %1982 = vmatprep.subr.bf16.mxu0 0
      %1983 = vmatpush2.bf16.msra.mxu0 0
      %1984 = vmatprep.mubr.bf16.mxu0 0
      %1985 = vmatmul.mubr.bf16.gmra.mxu0 %v1888
      %v1986 = vpop.f32.mrf.mxu0
      %v1987 = vadd.f32 0.0, %v1986
      %v1988 = vpop.f32.mrf.mxu0
      %v1989 = vpop.f32.mrf.mxu0
      %v1990 = vadd.f32 0.0, %v1989
      %v1991 = vpop.f32.mrf.mxu0
      %1992 = vmatprep.mubr.bf16.mxu0 0
      %1993 = vmatmul.mubr.bf16.gmra.mxu0 %v1889
      %v1994 = vpop.f32.mrf.mxu0
      %v1995 = vadd.f32 0.0, %v1994
      %v1996 = vpop.f32.mrf.mxu0
      %v1997 = vpop.f32.mrf.mxu0
      %v1998 = vadd.f32 0.0, %v1997
      %v1999 = vpop.f32.mrf.mxu0
      %2000 = vmatprep.mubr.bf16.mxu0 0
      %2001 = vmatmul.mubr.bf16.gmra.mxu0 %v1890
      %v2002 = vpop.f32.mrf.mxu0
      %v2003 = vadd.f32 0.0, %v2002
      %v2004 = vpop.f32.mrf.mxu0
      %v2005 = vpop.f32.mrf.mxu0
      %v2006 = vadd.f32 0.0, %v2005
      %v2007 = vpop.f32.mrf.mxu0
      %2008 = vmatprep.mubr.bf16.mxu0 0
      %2009 = vmatmul.mubr.bf16.gmra.mxu0 %v1891
      %v2010 = vpop.f32.mrf.mxu0
      %v2011 = vadd.f32 0.0, %v2010
      %v2012 = vpop.f32.mrf.mxu0
      %v2013 = vpop.f32.mrf.mxu0
      %v2014 = vadd.f32 0.0, %v2013
      %v2015 = vpop.f32.mrf.mxu0
      %2016 = vmatprep.mubr.bf16.mxu0 0
      %2017 = vmatmul.mubr.bf16.gmra.mxu0 %v1892
      %v2018 = vpop.f32.mrf.mxu0
      %v2019 = vadd.f32 0.0, %v2018
      %v2020 = vpop.f32.mrf.mxu0
      %v2021 = vpop.f32.mrf.mxu0
      %v2022 = vadd.f32 0.0, %v2021
      %v2023 = vpop.f32.mrf.mxu0
      %2024 = vmatprep.mubr.bf16.mxu0 0
      %2025 = vmatmul.mubr.bf16.gmra.mxu0 %v1893
      %v2026 = vpop.f32.mrf.mxu0
      %v2027 = vadd.f32 0.0, %v2026
      %v2028 = vpop.f32.mrf.mxu0
      %v2029 = vpop.f32.mrf.mxu0
      %v2030 = vadd.f32 0.0, %v2029
      %v2031 = vpop.f32.mrf.mxu0
      %2032 = vmatprep.mubr.bf16.mxu0 0
      %2033 = vmatmul.mubr.bf16.gmra.mxu0 %v1894
      %v2034 = vpop.f32.mrf.mxu0
      %v2035 = vadd.f32 0.0, %v2034
      %v2036 = vpop.f32.mrf.mxu0
      %v2037 = vpop.f32.mrf.mxu0
      %v2038 = vadd.f32 0.0, %v2037
      %v2039 = vpop.f32.mrf.mxu0
      %2040 = vmatprep.mubr.bf16.mxu0 0
      %2041 = vmatmul.mubr.bf16.gmra.mxu0 %v1895
      %v2042 = vpop.f32.mrf.mxu0
      %v2043 = vadd.f32 0.0, %v2042
      %v2044 = vpop.f32.mrf.mxu0
      %v2045 = vpop.f32.mrf.mxu0
      %v2046 = vadd.f32 0.0, %v2045
      %v2047 = vpop.f32.mrf.mxu0
      %2048 = vdwg.mxu0
      %v2049 = vadd.f32 %v1623, %v1987
      %v2050 = vadd.f32 %v1624, %v1990
      %v2051 = vadd.f32 %v1625, %v1995
      %v2052 = vadd.f32 %v1626, %v1998
      %v2053 = vadd.f32 %v1627, %v2003
      %v2054 = vadd.f32 %v1628, %v2006
      %v2055 = vadd.f32 %v1629, %v2011
      %v2056 = vadd.f32 %v1630, %v2014
      %v2057 = vadd.f32 %v1631, %v2019
      %v2058 = vadd.f32 %v1632, %v2022
      %v2059 = vadd.f32 %v1633, %v2027
      %v2060 = vadd.f32 %v1634, %v2030
      %v2061 = vadd.f32 %v1635, %v2035
      %v2062 = vadd.f32 %v1636, %v2038
      %v2063 = vadd.f32 %v1637, %v2043
      %v2064 = vadd.f32 %v1638, %v2046
      %v2065 = vld [vmem:[%s1396] sm:$0xe]
      %v2066 = vld [vmem:[%s1396 + $0xc] sm:$0xe]
      %v2067 = vld [vmem:[%s1396 + $0x18] sm:$0xe]
      %v2068 = vld [vmem:[%s1396 + $0x24] sm:$0xe]
      %v2069 = vld [vmem:[%s1396 + $0x30] sm:$0xe]
      %v2070 = vld [vmem:[%s1396 + $0x3c] sm:$0xe]
      %v2071 = vld [vmem:[%s1396 + $0x48] sm:$0xe]
      %v2072 = vld [vmem:[%s1396 + $0x54] sm:$0xe]
      %v2097 = vrot.slane %v2065, 5
      %v2098 = vrot.slane %v2097, 4
      %v2099 = vrot.slane %v1640, 5
      %v2100 = vsel %vm1129, %v2098, %v2099
      %v2101 = vrot.slane %v2099, 4
      %v2102 = vrot.slane %v1641, 5
      %v2103 = vsel %vm1129, %v2101, %v2102
      %v2104 = vrot.slane %v2066, 5
      %v2105 = vrot.slane %v2104, 4
      %v2106 = vrot.slane %v1643, 5
      %v2107 = vsel %vm1129, %v2105, %v2106
      %v2108 = vrot.slane %v2106, 4
      %v2109 = vrot.slane %v1644, 5
      %v2110 = vsel %vm1129, %v2108, %v2109
      %v2111 = vrot.slane %v2067, 5
      %v2112 = vrot.slane %v2111, 4
      %v2113 = vrot.slane %v1646, 5
      %v2114 = vsel %vm1129, %v2112, %v2113
      %v2115 = vrot.slane %v2113, 4
      %v2116 = vrot.slane %v1647, 5
      %v2117 = vsel %vm1129, %v2115, %v2116
      %v2118 = vrot.slane %v2068, 5
      %v2119 = vrot.slane %v2118, 4
      %v2120 = vrot.slane %v1649, 5
      %v2121 = vsel %vm1129, %v2119, %v2120
      %v2122 = vrot.slane %v2120, 4
      %v2123 = vrot.slane %v1650, 5
      %v2124 = vsel %vm1129, %v2122, %v2123
      %v2125 = vrot.slane %v2069, 5
      %v2126 = vrot.slane %v2125, 4
      %v2127 = vrot.slane %v1652, 5
      %v2128 = vsel %vm1129, %v2126, %v2127
      %v2129 = vrot.slane %v2127, 4
      %v2130 = vrot.slane %v1653, 5
      %v2131 = vsel %vm1129, %v2129, %v2130
      %v2132 = vrot.slane %v2070, 5
      %v2133 = vrot.slane %v2132, 4
      %v2134 = vrot.slane %v1655, 5
      %v2135 = vsel %vm1129, %v2133, %v2134
      %v2136 = vrot.slane %v2134, 4
      %v2137 = vrot.slane %v1656, 5
      %v2138 = vsel %vm1129, %v2136, %v2137
      %v2139 = vrot.slane %v2071, 5
      %v2140 = vrot.slane %v2139, 4
      %v2141 = vrot.slane %v1658, 5
      %v2142 = vsel %vm1129, %v2140, %v2141
      %v2143 = vrot.slane %v2141, 4
      %v2144 = vrot.slane %v1659, 5
      %v2145 = vsel %vm1129, %v2143, %v2144
      %v2146 = vrot.slane %v2072, 5
      %v2147 = vrot.slane %v2146, 4
      %v2148 = vrot.slane %v1661, 5
      %v2149 = vsel %vm1129, %v2147, %v2148
      %v2150 = vrot.slane %v2148, 4
      %v2151 = vrot.slane %v1662, 5
      %v2152 = vsel %vm1129, %v2150, %v2151
      %s2153 = scalar_lea.vmem %s3, 320
      %v2154 = vld [vmem:[%s2153] sm:$0xf]
      %v2155 = vld [vmem:[%s2153 + $0x4] sm:$0xf]
      %v2156 = vld [vmem:[%s2153 + $0x8] sm:$0xf]
      %v2157 = vld [vmem:[%s2153 + $0xc] sm:$0xf]
      %v2158 = vld [vmem:[%s2153 + $0x10] sm:$0xf]
      %v2159 = vld [vmem:[%s2153 + $0x14] sm:$0xf]
      %v2160 = vld [vmem:[%s2153 + $0x18] sm:$0xf]
      %v2161 = vld [vmem:[%s2153 + $0x1c] sm:$0xf]
      %v2162 = vld [vmem:[%s2153 + $0x20] sm:$0xf]
      %v2163 = vld [vmem:[%s2153 + $0x24] sm:$0xf]
      %v2164 = vld [vmem:[%s2153 + $0x28] sm:$0xf]
      %v2165 = vld [vmem:[%s2153 + $0x2c] sm:$0xf]
      %v2166 = vld [vmem:[%s2153 + $0x30] sm:$0xf]
      %v2167 = vld [vmem:[%s2153 + $0x34] sm:$0xf]
      %v2168 = vld [vmem:[%s2153 + $0x38] sm:$0xf]
      %v2169 = vld [vmem:[%s2153 + $0x3c] sm:$0xf]
      %v2170 = vunpack.c.l.b16 %v2100
      %v2171 = vunpack.c.l.b16 %v2103
      %v2172 = vunpack.c.l.b16 %v2107
      %v2173 = vunpack.c.l.b16 %v2110
      %v2174 = vunpack.c.l.b16 %v2114
      %v2175 = vunpack.c.l.b16 %v2117
      %v2176 = vunpack.c.l.b16 %v2121
      %v2177 = vunpack.c.l.b16 %v2124
      %v2178 = vunpack.c.l.b16 %v2128
      %v2179 = vunpack.c.l.b16 %v2131
      %v2180 = vunpack.c.l.b16 %v2135
      %v2181 = vunpack.c.l.b16 %v2138
      %v2182 = vunpack.c.l.b16 %v2142
      %v2183 = vunpack.c.l.b16 %v2145
      %v2184 = vunpack.c.l.b16 %v2149
      %v2185 = vunpack.c.l.b16 %v2152
      %v2186 = vpack.c.b16 %v2171, %v2170
      %v2187 = vpack.c.b16 %v2173, %v2172
      %v2188 = vpack.c.b16 %v2175, %v2174
      %v2189 = vpack.c.b16 %v2177, %v2176
      %v2190 = vpack.c.b16 %v2179, %v2178
      %v2191 = vpack.c.b16 %v2181, %v2180
      %v2192 = vpack.c.b16 %v2183, %v2182
      %v2193 = vpack.c.b16 %v2185, %v2184
      %v2218 = vunpack.c.l.b16 %v2154
      %v2219 = vunpack.c.l.b16 %v2155
      %v2220 = vunpack.c.l.b16 %v2156
      %v2221 = vunpack.c.l.b16 %v2157
      %v2222 = vunpack.c.l.b16 %v2158
      %v2223 = vunpack.c.l.b16 %v2159
      %v2224 = vunpack.c.l.b16 %v2160
      %v2225 = vunpack.c.l.b16 %v2161
      %v2226 = vunpack.c.l.b16 %v2162
      %v2227 = vunpack.c.l.b16 %v2163
      %v2228 = vunpack.c.l.b16 %v2164
      %v2229 = vunpack.c.l.b16 %v2165
      %v2230 = vunpack.c.l.b16 %v2166
      %v2231 = vunpack.c.l.b16 %v2167
      %v2232 = vunpack.c.l.b16 %v2168
      %v2233 = vunpack.c.l.b16 %v2169
      %v2234 = vpack.c.b16 %v2219, %v2218
      %v2235 = vpack.c.b16 %v2221, %v2220
      %v2236 = vpack.c.b16 %v2223, %v2222
      %v2237 = vpack.c.b16 %v2225, %v2224
      %v2238 = vpack.c.b16 %v2227, %v2226
      %v2239 = vpack.c.b16 %v2229, %v2228
      %v2240 = vpack.c.b16 %v2231, %v2230
      %v2241 = vpack.c.b16 %v2233, %v2232
      %2250 = vmatprep.subr.bf16.mxu0 0
      %2251 = vmatpush1.bf16.msra.mxu0 %v2241
      %2252 = vmatprep.subr.bf16.mxu0 0
      %2253 = vmatpush1.bf16.msra.mxu0 %v2240
      %2254 = vmatprep.subr.bf16.mxu0 0
      %2255 = vmatpush1.bf16.msra.mxu0 %v2239
      %2256 = vmatprep.subr.bf16.mxu0 0
      %2257 = vmatpush1.bf16.msra.mxu0 %v2238
      %2258 = vmatprep.subr.bf16.mxu0 0
      %2259 = vmatpush1.bf16.msra.mxu0 %v2237
      %2260 = vmatprep.subr.bf16.mxu0 0
      %2261 = vmatpush1.bf16.msra.mxu0 %v2236
      %2262 = vmatprep.subr.bf16.mxu0 0
      %2263 = vmatpush1.bf16.msra.mxu0 %v2235
      %2264 = vmatprep.subr.bf16.mxu0 0
      %2265 = vmatpush1.bf16.msra.mxu0 %v2234
      %2266 = vmatprep.subr.bf16.mxu0 0
      %2267 = vmatpush2.bf16.msra.mxu0 0
      %2268 = vmatprep.subr.bf16.mxu0 0
      %2269 = vmatpush2.bf16.msra.mxu0 0
      %2270 = vmatprep.subr.bf16.mxu0 0
      %2271 = vmatpush2.bf16.msra.mxu0 0
      %2272 = vmatprep.subr.bf16.mxu0 0
      %2273 = vmatpush2.bf16.msra.mxu0 0
      %2274 = vmatprep.subr.bf16.mxu0 0
      %2275 = vmatpush2.bf16.msra.mxu0 0
      %2276 = vmatprep.subr.bf16.mxu0 0
      %2277 = vmatpush2.bf16.msra.mxu0 0
      %2278 = vmatprep.subr.bf16.mxu0 0
      %2279 = vmatpush2.bf16.msra.mxu0 0
      %2280 = vmatprep.subr.bf16.mxu0 0
      %2281 = vmatpush2.bf16.msra.mxu0 0
      %2282 = vmatprep.mubr.bf16.mxu0 0
      %2283 = vmatmul.mubr.bf16.gmra.mxu0 %v2186
      %v2284 = vpop.f32.mrf.mxu0
      %v2285 = vadd.f32 0.0, %v2284
      %v2286 = vpop.f32.mrf.mxu0
      %v2287 = vpop.f32.mrf.mxu0
      %v2288 = vadd.f32 0.0, %v2287
      %v2289 = vpop.f32.mrf.mxu0
      %2290 = vmatprep.mubr.bf16.mxu0 0
      %2291 = vmatmul.mubr.bf16.gmra.mxu0 %v2187
      %v2292 = vpop.f32.mrf.mxu0
      %v2293 = vadd.f32 0.0, %v2292
      %v2294 = vpop.f32.mrf.mxu0
      %v2295 = vpop.f32.mrf.mxu0
      %v2296 = vadd.f32 0.0, %v2295
      %v2297 = vpop.f32.mrf.mxu0
      %2298 = vmatprep.mubr.bf16.mxu0 0
      %2299 = vmatmul.mubr.bf16.gmra.mxu0 %v2188
      %v2300 = vpop.f32.mrf.mxu0
      %v2301 = vadd.f32 0.0, %v2300
      %v2302 = vpop.f32.mrf.mxu0
      %v2303 = vpop.f32.mrf.mxu0
      %v2304 = vadd.f32 0.0, %v2303
      %v2305 = vpop.f32.mrf.mxu0
      %2306 = vmatprep.mubr.bf16.mxu0 0
      %2307 = vmatmul.mubr.bf16.gmra.mxu0 %v2189
      %v2308 = vpop.f32.mrf.mxu0
      %v2309 = vadd.f32 0.0, %v2308
      %v2310 = vpop.f32.mrf.mxu0
      %v2311 = vpop.f32.mrf.mxu0
      %v2312 = vadd.f32 0.0, %v2311
      %v2313 = vpop.f32.mrf.mxu0
      %2314 = vmatprep.mubr.bf16.mxu0 0
      %2315 = vmatmul.mubr.bf16.gmra.mxu0 %v2190
      %v2316 = vpop.f32.mrf.mxu0
      %v2317 = vadd.f32 0.0, %v2316
      %v2318 = vpop.f32.mrf.mxu0
      %v2319 = vpop.f32.mrf.mxu0
      %v2320 = vadd.f32 0.0, %v2319
      %v2321 = vpop.f32.mrf.mxu0
      %2322 = vmatprep.mubr.bf16.mxu0 0
      %2323 = vmatmul.mubr.bf16.gmra.mxu0 %v2191
      %v2324 = vpop.f32.mrf.mxu0
      %v2325 = vadd.f32 0.0, %v2324
      %v2326 = vpop.f32.mrf.mxu0
      %v2327 = vpop.f32.mrf.mxu0
      %v2328 = vadd.f32 0.0, %v2327
      %v2329 = vpop.f32.mrf.mxu0
      %2330 = vmatprep.mubr.bf16.mxu0 0
      %2331 = vmatmul.mubr.bf16.gmra.mxu0 %v2192
      %v2332 = vpop.f32.mrf.mxu0
      %v2333 = vadd.f32 0.0, %v2332
      %v2334 = vpop.f32.mrf.mxu0
      %v2335 = vpop.f32.mrf.mxu0
      %v2336 = vadd.f32 0.0, %v2335
      %v2337 = vpop.f32.mrf.mxu0
      %2338 = vmatprep.mubr.bf16.mxu0 0
      %2339 = vmatmul.mubr.bf16.gmra.mxu0 %v2193
      %v2340 = vpop.f32.mrf.mxu0
      %v2341 = vadd.f32 0.0, %v2340
      %v2342 = vpop.f32.mrf.mxu0
      %v2343 = vpop.f32.mrf.mxu0
      %v2344 = vadd.f32 0.0, %v2343
      %v2345 = vpop.f32.mrf.mxu0
      %2346 = vdwg.mxu0
      %v2347 = vadd.f32 %v2049, %v2285
      %v2348 = vadd.f32 %v2050, %v2288
      %v2349 = vadd.f32 %v2051, %v2293
      %v2350 = vadd.f32 %v2052, %v2296
      %v2351 = vadd.f32 %v2053, %v2301
      %v2352 = vadd.f32 %v2054, %v2304
      %v2353 = vadd.f32 %v2055, %v2309
      %v2354 = vadd.f32 %v2056, %v2312
      %v2355 = vadd.f32 %v2057, %v2317
      %v2356 = vadd.f32 %v2058, %v2320
      %v2357 = vadd.f32 %v2059, %v2325
      %v2358 = vadd.f32 %v2060, %v2328
      %v2359 = vadd.f32 %v2061, %v2333
      %v2360 = vadd.f32 %v2062, %v2336
      %v2361 = vadd.f32 %v2063, %v2341
      %v2362 = vadd.f32 %v2064, %v2344
      %s2363 = scalar_lea.vmem [#allocation2], 24
      %v2364 = vld [vmem:[%s2363] sm:$0xf]
      %v2365 = vld [vmem:[%s2363 + $0x4] sm:$0xf]
      %v2366 = vld [vmem:[%s2363 + $0xc] sm:$0xf]
      %v2367 = vld [vmem:[%s2363 + $0x10] sm:$0xf]
      %v2368 = vld [vmem:[%s2363 + $0x18] sm:$0xf]
      %v2369 = vld [vmem:[%s2363 + $0x1c] sm:$0xf]
      %v2370 = vld [vmem:[%s2363 + $0x24] sm:$0xf]
      %v2371 = vld [vmem:[%s2363 + $0x28] sm:$0xf]
      %v2372 = vld [vmem:[%s2363 + $0x30] sm:$0xf]
      %v2373 = vld [vmem:[%s2363 + $0x34] sm:$0xf]
      %v2374 = vld [vmem:[%s2363 + $0x3c] sm:$0xf]
      %v2375 = vld [vmem:[%s2363 + $0x40] sm:$0xf]
      %v2376 = vld [vmem:[%s2363 + $0x48] sm:$0xf]
      %v2377 = vld [vmem:[%s2363 + $0x4c] sm:$0xf]
      %v2378 = vld [vmem:[%s2363 + $0x54] sm:$0xf]
      %v2379 = vld [vmem:[%s2363 + $0x58] sm:$0xf]
      %s2380 = scalar_lea.vmem %s3, 384
      %v2381 = vld [vmem:[%s2380] sm:$0xf]
      %v2382 = vld [vmem:[%s2380 + $0x4] sm:$0xf]
      %v2383 = vld [vmem:[%s2380 + $0x8] sm:$0xf]
      %v2384 = vld [vmem:[%s2380 + $0xc] sm:$0xf]
      %v2385 = vld [vmem:[%s2380 + $0x10] sm:$0xf]
      %v2386 = vld [vmem:[%s2380 + $0x14] sm:$0xf]
      %v2387 = vld [vmem:[%s2380 + $0x18] sm:$0xf]
      %v2388 = vld [vmem:[%s2380 + $0x1c] sm:$0xf]
      %v2389 = vld [vmem:[%s2380 + $0x20] sm:$0xf]
      %v2390 = vld [vmem:[%s2380 + $0x24] sm:$0xf]
      %v2391 = vld [vmem:[%s2380 + $0x28] sm:$0xf]
      %v2392 = vld [vmem:[%s2380 + $0x2c] sm:$0xf]
      %v2393 = vld [vmem:[%s2380 + $0x30] sm:$0xf]
      %v2394 = vld [vmem:[%s2380 + $0x34] sm:$0xf]
      %v2395 = vld [vmem:[%s2380 + $0x38] sm:$0xf]
      %v2396 = vld [vmem:[%s2380 + $0x3c] sm:$0xf]
      %v2413 = vunpack.c.l.b16 %v2364
      %v2414 = vunpack.c.l.b16 %v2365
      %v2415 = vunpack.c.l.b16 %v2366
      %v2416 = vunpack.c.l.b16 %v2367
      %v2417 = vunpack.c.l.b16 %v2368
      %v2418 = vunpack.c.l.b16 %v2369
      %v2419 = vunpack.c.l.b16 %v2370
      %v2420 = vunpack.c.l.b16 %v2371
      %v2421 = vunpack.c.l.b16 %v2372
      %v2422 = vunpack.c.l.b16 %v2373
      %v2423 = vunpack.c.l.b16 %v2374
      %v2424 = vunpack.c.l.b16 %v2375
      %v2425 = vunpack.c.l.b16 %v2376
      %v2426 = vunpack.c.l.b16 %v2377
      %v2427 = vunpack.c.l.b16 %v2378
      %v2428 = vunpack.c.l.b16 %v2379
      %v2429 = vpack.c.b16 %v2414, %v2413
      %v2430 = vpack.c.b16 %v2416, %v2415
      %v2431 = vpack.c.b16 %v2418, %v2417
      %v2432 = vpack.c.b16 %v2420, %v2419
      %v2433 = vpack.c.b16 %v2422, %v2421
      %v2434 = vpack.c.b16 %v2424, %v2423
      %v2435 = vpack.c.b16 %v2426, %v2425
      %v2436 = vpack.c.b16 %v2428, %v2427
      %v2461 = vunpack.c.l.b16 %v2381
      %v2462 = vunpack.c.l.b16 %v2382
      %v2463 = vunpack.c.l.b16 %v2383
      %v2464 = vunpack.c.l.b16 %v2384
      %v2465 = vunpack.c.l.b16 %v2385
      %v2466 = vunpack.c.l.b16 %v2386
      %v2467 = vunpack.c.l.b16 %v2387
      %v2468 = vunpack.c.l.b16 %v2388
      %v2469 = vunpack.c.l.b16 %v2389
      %v2470 = vunpack.c.l.b16 %v2390
      %v2471 = vunpack.c.l.b16 %v2391
      %v2472 = vunpack.c.l.b16 %v2392
      %v2473 = vunpack.c.l.b16 %v2393
      %v2474 = vunpack.c.l.b16 %v2394
      %v2475 = vunpack.c.l.b16 %v2395
      %v2476 = vunpack.c.l.b16 %v2396
      %v2477 = vpack.c.b16 %v2462, %v2461
      %v2478 = vpack.c.b16 %v2464, %v2463
      %v2479 = vpack.c.b16 %v2466, %v2465
      %v2480 = vpack.c.b16 %v2468, %v2467
      %v2481 = vpack.c.b16 %v2470, %v2469
      %v2482 = vpack.c.b16 %v2472, %v2471
      %v2483 = vpack.c.b16 %v2474, %v2473
      %v2484 = vpack.c.b16 %v2476, %v2475
      %2493 = vmatprep.subr.bf16.mxu0 0
      %2494 = vmatpush1.bf16.msra.mxu0 %v2484
      %2495 = vmatprep.subr.bf16.mxu0 0
      %2496 = vmatpush1.bf16.msra.mxu0 %v2483
      %2497 = vmatprep.subr.bf16.mxu0 0
      %2498 = vmatpush1.bf16.msra.mxu0 %v2482
      %2499 = vmatprep.subr.bf16.mxu0 0
      %2500 = vmatpush1.bf16.msra.mxu0 %v2481
      %2501 = vmatprep.subr.bf16.mxu0 0
      %2502 = vmatpush1.bf16.msra.mxu0 %v2480
      %2503 = vmatprep.subr.bf16.mxu0 0
      %2504 = vmatpush1.bf16.msra.mxu0 %v2479
      %2505 = vmatprep.subr.bf16.mxu0 0
      %2506 = vmatpush1.bf16.msra.mxu0 %v2478
      %2507 = vmatprep.subr.bf16.mxu0 0
      %2508 = vmatpush1.bf16.msra.mxu0 %v2477
      %2509 = vmatprep.subr.bf16.mxu0 0
      %2510 = vmatpush2.bf16.msra.mxu0 0
      %2511 = vmatprep.subr.bf16.mxu0 0
      %2512 = vmatpush2.bf16.msra.mxu0 0
      %2513 = vmatprep.subr.bf16.mxu0 0
      %2514 = vmatpush2.bf16.msra.mxu0 0
      %2515 = vmatprep.subr.bf16.mxu0 0
      %2516 = vmatpush2.bf16.msra.mxu0 0
      %2517 = vmatprep.subr.bf16.mxu0 0
      %2518 = vmatpush2.bf16.msra.mxu0 0
      %2519 = vmatprep.subr.bf16.mxu0 0
      %2520 = vmatpush2.bf16.msra.mxu0 0
      %2521 = vmatprep.subr.bf16.mxu0 0
      %2522 = vmatpush2.bf16.msra.mxu0 0
      %2523 = vmatprep.subr.bf16.mxu0 0
      %2524 = vmatpush2.bf16.msra.mxu0 0
      %2525 = vmatprep.mubr.bf16.mxu0 0
      %2526 = vmatmul.mubr.bf16.gmra.mxu0 %v2429
      %v2527 = vpop.f32.mrf.mxu0
      %v2528 = vadd.f32 0.0, %v2527
      %v2529 = vpop.f32.mrf.mxu0
      %v2530 = vpop.f32.mrf.mxu0
      %v2531 = vadd.f32 0.0, %v2530
      %v2532 = vpop.f32.mrf.mxu0
      %2533 = vmatprep.mubr.bf16.mxu0 0
      %2534 = vmatmul.mubr.bf16.gmra.mxu0 %v2430
      %v2535 = vpop.f32.mrf.mxu0
      %v2536 = vadd.f32 0.0, %v2535
      %v2537 = vpop.f32.mrf.mxu0
      %v2538 = vpop.f32.mrf.mxu0
      %v2539 = vadd.f32 0.0, %v2538
      %v2540 = vpop.f32.mrf.mxu0
      %2541 = vmatprep.mubr.bf16.mxu0 0
      %2542 = vmatmul.mubr.bf16.gmra.mxu0 %v2431
      %v2543 = vpop.f32.mrf.mxu0
      %v2544 = vadd.f32 0.0, %v2543
      %v2545 = vpop.f32.mrf.mxu0
      %v2546 = vpop.f32.mrf.mxu0
      %v2547 = vadd.f32 0.0, %v2546
      %v2548 = vpop.f32.mrf.mxu0
      %2549 = vmatprep.mubr.bf16.mxu0 0
      %2550 = vmatmul.mubr.bf16.gmra.mxu0 %v2432
      %v2551 = vpop.f32.mrf.mxu0
      %v2552 = vadd.f32 0.0, %v2551
      %v2553 = vpop.f32.mrf.mxu0
      %v2554 = vpop.f32.mrf.mxu0
      %v2555 = vadd.f32 0.0, %v2554
      %v2556 = vpop.f32.mrf.mxu0
      %2557 = vmatprep.mubr.bf16.mxu0 0
      %2558 = vmatmul.mubr.bf16.gmra.mxu0 %v2433
      %v2559 = vpop.f32.mrf.mxu0
      %v2560 = vadd.f32 0.0, %v2559
      %v2561 = vpop.f32.mrf.mxu0
      %v2562 = vpop.f32.mrf.mxu0
      %v2563 = vadd.f32 0.0, %v2562
      %v2564 = vpop.f32.mrf.mxu0
      %2565 = vmatprep.mubr.bf16.mxu0 0
      %2566 = vmatmul.mubr.bf16.gmra.mxu0 %v2434
      %v2567 = vpop.f32.mrf.mxu0
      %v2568 = vadd.f32 0.0, %v2567
      %v2569 = vpop.f32.mrf.mxu0
      %v2570 = vpop.f32.mrf.mxu0
      %v2571 = vadd.f32 0.0, %v2570
      %v2572 = vpop.f32.mrf.mxu0
      %2573 = vmatprep.mubr.bf16.mxu0 0
      %2574 = vmatmul.mubr.bf16.gmra.mxu0 %v2435
      %v2575 = vpop.f32.mrf.mxu0
      %v2576 = vadd.f32 0.0, %v2575
      %v2577 = vpop.f32.mrf.mxu0
      %v2578 = vpop.f32.mrf.mxu0
      %v2579 = vadd.f32 0.0, %v2578
      %v2580 = vpop.f32.mrf.mxu0
      %2581 = vmatprep.mubr.bf16.mxu0 0
      %2582 = vmatmul.mubr.bf16.gmra.mxu0 %v2436
      %v2583 = vpop.f32.mrf.mxu0
      %v2584 = vadd.f32 0.0, %v2583
      %v2585 = vpop.f32.mrf.mxu0
      %v2586 = vpop.f32.mrf.mxu0
      %v2587 = vadd.f32 0.0, %v2586
      %v2588 = vpop.f32.mrf.mxu0
      %2589 = vdwg.mxu0
      %v2590 = vadd.f32 %v2347, %v2528
      %v2591 = vadd.f32 %v2348, %v2531
      %v2592 = vadd.f32 %v2349, %v2536
      %v2593 = vadd.f32 %v2350, %v2539
      %v2594 = vadd.f32 %v2351, %v2544
      %v2595 = vadd.f32 %v2352, %v2547
      %v2596 = vadd.f32 %v2353, %v2552
      %v2597 = vadd.f32 %v2354, %v2555
      %v2598 = vadd.f32 %v2355, %v2560
      %v2599 = vadd.f32 %v2356, %v2563
      %v2600 = vadd.f32 %v2357, %v2568
      %v2601 = vadd.f32 %v2358, %v2571
      %v2602 = vadd.f32 %v2359, %v2576
      %v2603 = vadd.f32 %v2360, %v2579
      %v2604 = vadd.f32 %v2361, %v2584
      %v2605 = vadd.f32 %v2362, %v2587
      %v2606 = vld [vmem:[%s2363] sm:$0xf]
      %v2607 = vld [vmem:[%s2363 + $0x4] sm:$0xf]
      %v2608 = vld [vmem:[%s2363 + $0x8] sm:$0x1]
      %v2609 = vld [vmem:[%s2363 + $0xc] sm:$0xf]
      %v2610 = vld [vmem:[%s2363 + $0x10] sm:$0xf]
      %v2611 = vld [vmem:[%s2363 + $0x14] sm:$0x1]
      %v2612 = vld [vmem:[%s2363 + $0x18] sm:$0xf]
      %v2613 = vld [vmem:[%s2363 + $0x1c] sm:$0xf]
      %v2614 = vld [vmem:[%s2363 + $0x20] sm:$0x1]
      %v2615 = vld [vmem:[%s2363 + $0x24] sm:$0xf]
      %v2616 = vld [vmem:[%s2363 + $0x28] sm:$0xf]
      %v2617 = vld [vmem:[%s2363 + $0x2c] sm:$0x1]
      %v2618 = vld [vmem:[%s2363 + $0x30] sm:$0xf]
      %v2619 = vld [vmem:[%s2363 + $0x34] sm:$0xf]
      %v2620 = vld [vmem:[%s2363 + $0x38] sm:$0x1]
      %v2621 = vld [vmem:[%s2363 + $0x3c] sm:$0xf]
      %v2622 = vld [vmem:[%s2363 + $0x40] sm:$0xf]
      %v2623 = vld [vmem:[%s2363 + $0x44] sm:$0x1]
      %v2624 = vld [vmem:[%s2363 + $0x48] sm:$0xf]
      %v2625 = vld [vmem:[%s2363 + $0x4c] sm:$0xf]
      %v2626 = vld [vmem:[%s2363 + $0x50] sm:$0x1]
      %v2627 = vld [vmem:[%s2363 + $0x54] sm:$0xf]
      %v2628 = vld [vmem:[%s2363 + $0x58] sm:$0xf]
      %v2629 = vld [vmem:[%s2363 + $0x5c] sm:$0x1]
      %v2631 = vshrl.u32 %v2606, 16
      %v2633 = vrot.slane %v2631, 4
      %v2634 = vshll.u32 %v2606, 16
      %v2636 = vrot.slane %v2634, 5
      %v2637 = vor.u32 %v2633, %v2636
      %v2638 = vrot.slane %v2637, 4
      %v2640 = vshll.u32 %v2607, 16
      %v2642 = vrot.slane %v2640, 5
      %v2643 = vsel %vm523, %v2638, %v2642
      %v2644 = vshrl.u32 %v2607, 16
      %v2646 = vrot.slane %v2644, 4
      %v2647 = vor.u32 %v2646, %v2642
      %v2648 = vrot.slane %v2647, 4
      %v2650 = vshll.u32 %v2608, 16
      %v2652 = vrot.slane %v2650, 5
      %v2653 = vsel %vm523, %v2648, %v2652
      %v2655 = vshrl.u32 %v2609, 16
      %v2657 = vrot.slane %v2655, 4
      %v2658 = vshll.u32 %v2609, 16
      %v2660 = vrot.slane %v2658, 5
      %v2661 = vor.u32 %v2657, %v2660
      %v2662 = vrot.slane %v2661, 4
      %v2664 = vshll.u32 %v2610, 16
      %v2666 = vrot.slane %v2664, 5
      %v2667 = vsel %vm523, %v2662, %v2666
      %v2668 = vshrl.u32 %v2610, 16
      %v2670 = vrot.slane %v2668, 4
      %v2671 = vor.u32 %v2670, %v2666
      %v2672 = vrot.slane %v2671, 4
      %v2674 = vshll.u32 %v2611, 16
      %v2676 = vrot.slane %v2674, 5
      %v2677 = vsel %vm523, %v2672, %v2676
      %v2679 = vshrl.u32 %v2612, 16
      %v2681 = vrot.slane %v2679, 4
      %v2682 = vshll.u32 %v2612, 16
      %v2684 = vrot.slane %v2682, 5
      %v2685 = vor.u32 %v2681, %v2684
      %v2686 = vrot.slane %v2685, 4
      %v2688 = vshll.u32 %v2613, 16
      %v2690 = vrot.slane %v2688, 5
      %v2691 = vsel %vm523, %v2686, %v2690
      %v2692 = vshrl.u32 %v2613, 16
      %v2694 = vrot.slane %v2692, 4
      %v2695 = vor.u32 %v2694, %v2690
      %v2696 = vrot.slane %v2695, 4
      %v2698 = vshll.u32 %v2614, 16
      %v2700 = vrot.slane %v2698, 5
      %v2701 = vsel %vm523, %v2696, %v2700
      %v2703 = vshrl.u32 %v2615, 16
      %v2705 = vrot.slane %v2703, 4
      %v2706 = vshll.u32 %v2615, 16
      %v2708 = vrot.slane %v2706, 5
      %v2709 = vor.u32 %v2705, %v2708
      %v2710 = vrot.slane %v2709, 4
      %v2712 = vshll.u32 %v2616, 16
      %v2714 = vrot.slane %v2712, 5
      %v2715 = vsel %vm523, %v2710, %v2714
      %v2716 = vshrl.u32 %v2616, 16
      %v2718 = vrot.slane %v2716, 4
      %v2719 = vor.u32 %v2718, %v2714
      %v2720 = vrot.slane %v2719, 4
      %v2722 = vshll.u32 %v2617, 16
      %v2724 = vrot.slane %v2722, 5
      %v2725 = vsel %vm523, %v2720, %v2724
      %v2727 = vshrl.u32 %v2618, 16
      %v2729 = vrot.slane %v2727, 4
      %v2730 = vshll.u32 %v2618, 16
      %v2732 = vrot.slane %v2730, 5
      %v2733 = vor.u32 %v2729, %v2732
      %v2734 = vrot.slane %v2733, 4
      %v2736 = vshll.u32 %v2619, 16
      %v2738 = vrot.slane %v2736, 5
      %v2739 = vsel %vm523, %v2734, %v2738
      %v2740 = vshrl.u32 %v2619, 16
      %v2742 = vrot.slane %v2740, 4
      %v2743 = vor.u32 %v2742, %v2738
      %v2744 = vrot.slane %v2743, 4
      %v2746 = vshll.u32 %v2620, 16
      %v2748 = vrot.slane %v2746, 5
      %v2749 = vsel %vm523, %v2744, %v2748
      %v2751 = vshrl.u32 %v2621, 16
      %v2753 = vrot.slane %v2751, 4
      %v2754 = vshll.u32 %v2621, 16
      %v2756 = vrot.slane %v2754, 5
      %v2757 = vor.u32 %v2753, %v2756
      %v2758 = vrot.slane %v2757, 4
      %v2760 = vshll.u32 %v2622, 16
      %v2762 = vrot.slane %v2760, 5
      %v2763 = vsel %vm523, %v2758, %v2762
      %v2764 = vshrl.u32 %v2622, 16
      %v2766 = vrot.slane %v2764, 4
      %v2767 = vor.u32 %v2766, %v2762
      %v2768 = vrot.slane %v2767, 4
      %v2770 = vshll.u32 %v2623, 16
      %v2772 = vrot.slane %v2770, 5
      %v2773 = vsel %vm523, %v2768, %v2772
      %v2775 = vshrl.u32 %v2624, 16
      %v2777 = vrot.slane %v2775, 4
      %v2778 = vshll.u32 %v2624, 16
      %v2780 = vrot.slane %v2778, 5
      %v2781 = vor.u32 %v2777, %v2780
      %v2782 = vrot.slane %v2781, 4
      %v2784 = vshll.u32 %v2625, 16
      %v2786 = vrot.slane %v2784, 5
      %v2787 = vsel %vm523, %v2782, %v2786
      %v2788 = vshrl.u32 %v2625, 16
      %v2790 = vrot.slane %v2788, 4
      %v2791 = vor.u32 %v2790, %v2786
      %v2792 = vrot.slane %v2791, 4
      %v2794 = vshll.u32 %v2626, 16
      %v2796 = vrot.slane %v2794, 5
      %v2797 = vsel %vm523, %v2792, %v2796
      %v2799 = vshrl.u32 %v2627, 16
      %v2801 = vrot.slane %v2799, 4
      %v2802 = vshll.u32 %v2627, 16
      %v2804 = vrot.slane %v2802, 5
      %v2805 = vor.u32 %v2801, %v2804
      %v2806 = vrot.slane %v2805, 4
      %v2808 = vshll.u32 %v2628, 16
      %v2810 = vrot.slane %v2808, 5
      %v2811 = vsel %vm523, %v2806, %v2810
      %v2812 = vshrl.u32 %v2628, 16
      %v2814 = vrot.slane %v2812, 4
      %v2815 = vor.u32 %v2814, %v2810
      %v2816 = vrot.slane %v2815, 4
      %v2818 = vshll.u32 %v2629, 16
      %v2820 = vrot.slane %v2818, 5
      %v2821 = vsel %vm523, %v2816, %v2820
      %s2822 = scalar_lea.vmem %s3, 448
      %v2823 = vld [vmem:[%s2822] sm:$0xf]
      %v2824 = vld [vmem:[%s2822 + $0x4] sm:$0xf]
      %v2825 = vld [vmem:[%s2822 + $0x8] sm:$0xf]
      %v2826 = vld [vmem:[%s2822 + $0xc] sm:$0xf]
      %v2827 = vld [vmem:[%s2822 + $0x10] sm:$0xf]
      %v2828 = vld [vmem:[%s2822 + $0x14] sm:$0xf]
      %v2829 = vld [vmem:[%s2822 + $0x18] sm:$0xf]
      %v2830 = vld [vmem:[%s2822 + $0x1c] sm:$0xf]
      %v2831 = vld [vmem:[%s2822 + $0x20] sm:$0xf]
      %v2832 = vld [vmem:[%s2822 + $0x24] sm:$0xf]
      %v2833 = vld [vmem:[%s2822 + $0x28] sm:$0xf]
      %v2834 = vld [vmem:[%s2822 + $0x2c] sm:$0xf]
      %v2835 = vld [vmem:[%s2822 + $0x30] sm:$0xf]
      %v2836 = vld [vmem:[%s2822 + $0x34] sm:$0xf]
      %v2837 = vld [vmem:[%s2822 + $0x38] sm:$0xf]
      %v2838 = vld [vmem:[%s2822 + $0x3c] sm:$0xf]
      %v2839 = vunpack.c.l.b16 %v2643
      %v2840 = vunpack.c.l.b16 %v2653
      %v2841 = vunpack.c.l.b16 %v2667
      %v2842 = vunpack.c.l.b16 %v2677
      %v2843 = vunpack.c.l.b16 %v2691
      %v2844 = vunpack.c.l.b16 %v2701
      %v2845 = vunpack.c.l.b16 %v2715
      %v2846 = vunpack.c.l.b16 %v2725
      %v2847 = vunpack.c.l.b16 %v2739
      %v2848 = vunpack.c.l.b16 %v2749
      %v2849 = vunpack.c.l.b16 %v2763
      %v2850 = vunpack.c.l.b16 %v2773
      %v2851 = vunpack.c.l.b16 %v2787
      %v2852 = vunpack.c.l.b16 %v2797
      %v2853 = vunpack.c.l.b16 %v2811
      %v2854 = vunpack.c.l.b16 %v2821
      %v2855 = vpack.c.b16 %v2840, %v2839
      %v2856 = vpack.c.b16 %v2842, %v2841
      %v2857 = vpack.c.b16 %v2844, %v2843
      %v2858 = vpack.c.b16 %v2846, %v2845
      %v2859 = vpack.c.b16 %v2848, %v2847
      %v2860 = vpack.c.b16 %v2850, %v2849
      %v2861 = vpack.c.b16 %v2852, %v2851
      %v2862 = vpack.c.b16 %v2854, %v2853
      %v2887 = vunpack.c.l.b16 %v2823
      %v2888 = vunpack.c.l.b16 %v2824
      %v2889 = vunpack.c.l.b16 %v2825
      %v2890 = vunpack.c.l.b16 %v2826
      %v2891 = vunpack.c.l.b16 %v2827
      %v2892 = vunpack.c.l.b16 %v2828
      %v2893 = vunpack.c.l.b16 %v2829
      %v2894 = vunpack.c.l.b16 %v2830
      %v2895 = vunpack.c.l.b16 %v2831
      %v2896 = vunpack.c.l.b16 %v2832
      %v2897 = vunpack.c.l.b16 %v2833
      %v2898 = vunpack.c.l.b16 %v2834
      %v2899 = vunpack.c.l.b16 %v2835
      %v2900 = vunpack.c.l.b16 %v2836
      %v2901 = vunpack.c.l.b16 %v2837
      %v2902 = vunpack.c.l.b16 %v2838
      %v2903 = vpack.c.b16 %v2888, %v2887
      %v2904 = vpack.c.b16 %v2890, %v2889
      %v2905 = vpack.c.b16 %v2892, %v2891
      %v2906 = vpack.c.b16 %v2894, %v2893
      %v2907 = vpack.c.b16 %v2896, %v2895
      %v2908 = vpack.c.b16 %v2898, %v2897
      %v2909 = vpack.c.b16 %v2900, %v2899
      %v2910 = vpack.c.b16 %v2902, %v2901
      %2919 = vmatprep.subr.bf16.mxu0 0
      %2920 = vmatpush1.bf16.msra.mxu0 %v2910
      %2921 = vmatprep.subr.bf16.mxu0 0
      %2922 = vmatpush1.bf16.msra.mxu0 %v2909
      %2923 = vmatprep.subr.bf16.mxu0 0
      %2924 = vmatpush1.bf16.msra.mxu0 %v2908
      %2925 = vmatprep.subr.bf16.mxu0 0
      %2926 = vmatpush1.bf16.msra.mxu0 %v2907
      %2927 = vmatprep.subr.bf16.mxu0 0
      %2928 = vmatpush1.bf16.msra.mxu0 %v2906
      %2929 = vmatprep.subr.bf16.mxu0 0
      %2930 = vmatpush1.bf16.msra.mxu0 %v2905
      %2931 = vmatprep.subr.bf16.mxu0 0
      %2932 = vmatpush1.bf16.msra.mxu0 %v2904
      %2933 = vmatprep.subr.bf16.mxu0 0
      %2934 = vmatpush1.bf16.msra.mxu0 %v2903
      %2935 = vmatprep.subr.bf16.mxu0 0
      %2936 = vmatpush2.bf16.msra.mxu0 0
      %2937 = vmatprep.subr.bf16.mxu0 0
      %2938 = vmatpush2.bf16.msra.mxu0 0
      %2939 = vmatprep.subr.bf16.mxu0 0
      %2940 = vmatpush2.bf16.msra.mxu0 0
      %2941 = vmatprep.subr.bf16.mxu0 0
      %2942 = vmatpush2.bf16.msra.mxu0 0
      %2943 = vmatprep.subr.bf16.mxu0 0
      %2944 = vmatpush2.bf16.msra.mxu0 0
      %2945 = vmatprep.subr.bf16.mxu0 0
      %2946 = vmatpush2.bf16.msra.mxu0 0
      %2947 = vmatprep.subr.bf16.mxu0 0
      %2948 = vmatpush2.bf16.msra.mxu0 0
      %2949 = vmatprep.subr.bf16.mxu0 0
      %2950 = vmatpush2.bf16.msra.mxu0 0
      %2951 = vmatprep.mubr.bf16.mxu0 0
      %2952 = vmatmul.mubr.bf16.gmra.mxu0 %v2855
      %v2953 = vpop.f32.mrf.mxu0
      %v2954 = vadd.f32 0.0, %v2953
      %v2955 = vpop.f32.mrf.mxu0
      %v2956 = vpop.f32.mrf.mxu0
      %v2957 = vadd.f32 0.0, %v2956
      %v2958 = vpop.f32.mrf.mxu0
      %2959 = vmatprep.mubr.bf16.mxu0 0
      %2960 = vmatmul.mubr.bf16.gmra.mxu0 %v2856
      %v2961 = vpop.f32.mrf.mxu0
      %v2962 = vadd.f32 0.0, %v2961
      %v2963 = vpop.f32.mrf.mxu0
      %v2964 = vpop.f32.mrf.mxu0
      %v2965 = vadd.f32 0.0, %v2964
      %v2966 = vpop.f32.mrf.mxu0
      %2967 = vmatprep.mubr.bf16.mxu0 0
      %2968 = vmatmul.mubr.bf16.gmra.mxu0 %v2857
      %v2969 = vpop.f32.mrf.mxu0
      %v2970 = vadd.f32 0.0, %v2969
      %v2971 = vpop.f32.mrf.mxu0
      %v2972 = vpop.f32.mrf.mxu0
      %v2973 = vadd.f32 0.0, %v2972
      %v2974 = vpop.f32.mrf.mxu0
      %2975 = vmatprep.mubr.bf16.mxu0 0
      %2976 = vmatmul.mubr.bf16.gmra.mxu0 %v2858
      %v2977 = vpop.f32.mrf.mxu0
      %v2978 = vadd.f32 0.0, %v2977
      %v2979 = vpop.f32.mrf.mxu0
      %v2980 = vpop.f32.mrf.mxu0
      %v2981 = vadd.f32 0.0, %v2980
      %v2982 = vpop.f32.mrf.mxu0
      %2983 = vmatprep.mubr.bf16.mxu0 0
      %2984 = vmatmul.mubr.bf16.gmra.mxu0 %v2859
      %v2985 = vpop.f32.mrf.mxu0
      %v2986 = vadd.f32 0.0, %v2985
      %v2987 = vpop.f32.mrf.mxu0
      %v2988 = vpop.f32.mrf.mxu0
      %v2989 = vadd.f32 0.0, %v2988
      %v2990 = vpop.f32.mrf.mxu0
      %2991 = vmatprep.mubr.bf16.mxu0 0
      %2992 = vmatmul.mubr.bf16.gmra.mxu0 %v2860
      %v2993 = vpop.f32.mrf.mxu0
      %v2994 = vadd.f32 0.0, %v2993
      %v2995 = vpop.f32.mrf.mxu0
      %v2996 = vpop.f32.mrf.mxu0
      %v2997 = vadd.f32 0.0, %v2996
      %v2998 = vpop.f32.mrf.mxu0
      %2999 = vmatprep.mubr.bf16.mxu0 0
      %3000 = vmatmul.mubr.bf16.gmra.mxu0 %v2861
      %v3001 = vpop.f32.mrf.mxu0
      %v3002 = vadd.f32 0.0, %v3001
      %v3003 = vpop.f32.mrf.mxu0
      %v3004 = vpop.f32.mrf.mxu0
      %v3005 = vadd.f32 0.0, %v3004
      %v3006 = vpop.f32.mrf.mxu0
      %3007 = vmatprep.mubr.bf16.mxu0 0
      %3008 = vmatmul.mubr.bf16.gmra.mxu0 %v2862
      %v3009 = vpop.f32.mrf.mxu0
      %v3010 = vadd.f32 0.0, %v3009
      %v3011 = vpop.f32.mrf.mxu0
      %v3012 = vpop.f32.mrf.mxu0
      %v3013 = vadd.f32 0.0, %v3012
      %v3014 = vpop.f32.mrf.mxu0
      %3015 = vdwg.mxu0
      %v3016 = vadd.f32 %v2590, %v2954
      %v3017 = vadd.f32 %v2591, %v2957
      %v3018 = vadd.f32 %v2592, %v2962
      %v3019 = vadd.f32 %v2593, %v2965
      %v3020 = vadd.f32 %v2594, %v2970
      %v3021 = vadd.f32 %v2595, %v2973
      %v3022 = vadd.f32 %v2596, %v2978
      %v3023 = vadd.f32 %v2597, %v2981
      %v3024 = vadd.f32 %v2598, %v2986
      %v3025 = vadd.f32 %v2599, %v2989
      %v3026 = vadd.f32 %v2600, %v2994
      %v3027 = vadd.f32 %v2601, %v2997
      %v3028 = vadd.f32 %v2602, %v3002
      %v3029 = vadd.f32 %v2603, %v3005
      %v3030 = vadd.f32 %v2604, %v3010
      %v3031 = vadd.f32 %v2605, %v3013
      %v3032 = vld [vmem:[%s2363] sm:$0xe]
      %v3033 = vld [vmem:[%s2363 + $0xc] sm:$0xe]
      %v3034 = vld [vmem:[%s2363 + $0x18] sm:$0xe]
      %v3035 = vld [vmem:[%s2363 + $0x24] sm:$0xe]
      %v3036 = vld [vmem:[%s2363 + $0x30] sm:$0xe]
      %v3037 = vld [vmem:[%s2363 + $0x3c] sm:$0xe]
      %v3038 = vld [vmem:[%s2363 + $0x48] sm:$0xe]
      %v3039 = vld [vmem:[%s2363 + $0x54] sm:$0xe]
      %v3064 = vrot.slane %v3032, 5
      %v3065 = vrot.slane %v3064, 4
      %v3066 = vrot.slane %v2607, 5
      %v3067 = vsel %vm1129, %v3065, %v3066
      %v3068 = vrot.slane %v3066, 4
      %v3069 = vrot.slane %v2608, 5
      %v3070 = vsel %vm1129, %v3068, %v3069
      %v3071 = vrot.slane %v3033, 5
      %v3072 = vrot.slane %v3071, 4
      %v3073 = vrot.slane %v2610, 5
      %v3074 = vsel %vm1129, %v3072, %v3073
      %v3075 = vrot.slane %v3073, 4
      %v3076 = vrot.slane %v2611, 5
      %v3077 = vsel %vm1129, %v3075, %v3076
      %v3078 = vrot.slane %v3034, 5
      %v3079 = vrot.slane %v3078, 4
      %v3080 = vrot.slane %v2613, 5
      %v3081 = vsel %vm1129, %v3079, %v3080
      %v3082 = vrot.slane %v3080, 4
      %v3083 = vrot.slane %v2614, 5
      %v3084 = vsel %vm1129, %v3082, %v3083
      %v3085 = vrot.slane %v3035, 5
      %v3086 = vrot.slane %v3085, 4
      %v3087 = vrot.slane %v2616, 5
      %v3088 = vsel %vm1129, %v3086, %v3087
      %v3089 = vrot.slane %v3087, 4
      %v3090 = vrot.slane %v2617, 5
      %v3091 = vsel %vm1129, %v3089, %v3090
      %v3092 = vrot.slane %v3036, 5
      %v3093 = vrot.slane %v3092, 4
      %v3094 = vrot.slane %v2619, 5
      %v3095 = vsel %vm1129, %v3093, %v3094
      %v3096 = vrot.slane %v3094, 4
      %v3097 = vrot.slane %v2620, 5
      %v3098 = vsel %vm1129, %v3096, %v3097
      %v3099 = vrot.slane %v3037, 5
      %v3100 = vrot.slane %v3099, 4
      %v3101 = vrot.slane %v2622, 5
      %v3102 = vsel %vm1129, %v3100, %v3101
      %v3103 = vrot.slane %v3101, 4
      %v3104 = vrot.slane %v2623, 5
      %v3105 = vsel %vm1129, %v3103, %v3104
      %v3106 = vrot.slane %v3038, 5
      %v3107 = vrot.slane %v3106, 4
      %v3108 = vrot.slane %v2625, 5
      %v3109 = vsel %vm1129, %v3107, %v3108
      %v3110 = vrot.slane %v3108, 4
      %v3111 = vrot.slane %v2626, 5
      %v3112 = vsel %vm1129, %v3110, %v3111
      %v3113 = vrot.slane %v3039, 5
      %v3114 = vrot.slane %v3113, 4
      %v3115 = vrot.slane %v2628, 5
      %v3116 = vsel %vm1129, %v3114, %v3115
      %v3117 = vrot.slane %v3115, 4
      %v3118 = vrot.slane %v2629, 5
      %v3119 = vsel %vm1129, %v3117, %v3118
      %s3120 = scalar_lea.vmem %s3, 512
      %v3121 = vld [vmem:[%s3120] sm:$0xf]
      %v3122 = vld [vmem:[%s3120 + $0x4] sm:$0xf]
      %v3123 = vld [vmem:[%s3120 + $0x8] sm:$0xf]
      %v3124 = vld [vmem:[%s3120 + $0xc] sm:$0xf]
      %v3125 = vld [vmem:[%s3120 + $0x10] sm:$0xf]
      %v3126 = vld [vmem:[%s3120 + $0x14] sm:$0xf]
      %v3127 = vld [vmem:[%s3120 + $0x18] sm:$0xf]
      %v3128 = vld [vmem:[%s3120 + $0x1c] sm:$0xf]
      %v3129 = vld [vmem:[%s3120 + $0x20] sm:$0xf]
      %v3130 = vld [vmem:[%s3120 + $0x24] sm:$0xf]
      %v3131 = vld [vmem:[%s3120 + $0x28] sm:$0xf]
      %v3132 = vld [vmem:[%s3120 + $0x2c] sm:$0xf]
      %v3133 = vld [vmem:[%s3120 + $0x30] sm:$0xf]
      %v3134 = vld [vmem:[%s3120 + $0x34] sm:$0xf]
      %v3135 = vld [vmem:[%s3120 + $0x38] sm:$0xf]
      %v3136 = vld [vmem:[%s3120 + $0x3c] sm:$0xf]
      %v3137 = vunpack.c.l.b16 %v3067
      %v3138 = vunpack.c.l.b16 %v3070
      %v3139 = vunpack.c.l.b16 %v3074
      %v3140 = vunpack.c.l.b16 %v3077
      %v3141 = vunpack.c.l.b16 %v3081
      %v3142 = vunpack.c.l.b16 %v3084
      %v3143 = vunpack.c.l.b16 %v3088
      %v3144 = vunpack.c.l.b16 %v3091
      %v3145 = vunpack.c.l.b16 %v3095
      %v3146 = vunpack.c.l.b16 %v3098
      %v3147 = vunpack.c.l.b16 %v3102
      %v3148 = vunpack.c.l.b16 %v3105
      %v3149 = vunpack.c.l.b16 %v3109
      %v3150 = vunpack.c.l.b16 %v3112
      %v3151 = vunpack.c.l.b16 %v3116
      %v3152 = vunpack.c.l.b16 %v3119
      %v3153 = vpack.c.b16 %v3138, %v3137
      %v3154 = vpack.c.b16 %v3140, %v3139
      %v3155 = vpack.c.b16 %v3142, %v3141
      %v3156 = vpack.c.b16 %v3144, %v3143
      %v3157 = vpack.c.b16 %v3146, %v3145
      %v3158 = vpack.c.b16 %v3148, %v3147
      %v3159 = vpack.c.b16 %v3150, %v3149
      %v3160 = vpack.c.b16 %v3152, %v3151
      %v3185 = vunpack.c.l.b16 %v3121
      %v3186 = vunpack.c.l.b16 %v3122
      %v3187 = vunpack.c.l.b16 %v3123
      %v3188 = vunpack.c.l.b16 %v3124
      %v3189 = vunpack.c.l.b16 %v3125
      %v3190 = vunpack.c.l.b16 %v3126
      %v3191 = vunpack.c.l.b16 %v3127
      %v3192 = vunpack.c.l.b16 %v3128
      %v3193 = vunpack.c.l.b16 %v3129
      %v3194 = vunpack.c.l.b16 %v3130
      %v3195 = vunpack.c.l.b16 %v3131
      %v3196 = vunpack.c.l.b16 %v3132
      %v3197 = vunpack.c.l.b16 %v3133
      %v3198 = vunpack.c.l.b16 %v3134
      %v3199 = vunpack.c.l.b16 %v3135
      %v3200 = vunpack.c.l.b16 %v3136
      %v3201 = vpack.c.b16 %v3186, %v3185
      %v3202 = vpack.c.b16 %v3188, %v3187
      %v3203 = vpack.c.b16 %v3190, %v3189
      %v3204 = vpack.c.b16 %v3192, %v3191
      %v3205 = vpack.c.b16 %v3194, %v3193
      %v3206 = vpack.c.b16 %v3196, %v3195
      %v3207 = vpack.c.b16 %v3198, %v3197
      %v3208 = vpack.c.b16 %v3200, %v3199
      %3217 = vmatprep.subr.bf16.mxu0 0
      %3218 = vmatpush1.bf16.msra.mxu0 %v3208
      %3219 = vmatprep.subr.bf16.mxu0 0
      %3220 = vmatpush1.bf16.msra.mxu0 %v3207
      %3221 = vmatprep.subr.bf16.mxu0 0
      %3222 = vmatpush1.bf16.msra.mxu0 %v3206
      %3223 = vmatprep.subr.bf16.mxu0 0
      %3224 = vmatpush1.bf16.msra.mxu0 %v3205
      %3225 = vmatprep.subr.bf16.mxu0 0
      %3226 = vmatpush1.bf16.msra.mxu0 %v3204
      %3227 = vmatprep.subr.bf16.mxu0 0
      %3228 = vmatpush1.bf16.msra.mxu0 %v3203
      %3229 = vmatprep.subr.bf16.mxu0 0
      %3230 = vmatpush1.bf16.msra.mxu0 %v3202
      %3231 = vmatprep.subr.bf16.mxu0 0
      %3232 = vmatpush1.bf16.msra.mxu0 %v3201
      %3233 = vmatprep.subr.bf16.mxu0 0
      %3234 = vmatpush2.bf16.msra.mxu0 0
      %3235 = vmatprep.subr.bf16.mxu0 0
      %3236 = vmatpush2.bf16.msra.mxu0 0
      %3237 = vmatprep.subr.bf16.mxu0 0
      %3238 = vmatpush2.bf16.msra.mxu0 0
      %3239 = vmatprep.subr.bf16.mxu0 0
      %3240 = vmatpush2.bf16.msra.mxu0 0
      %3241 = vmatprep.subr.bf16.mxu0 0
      %3242 = vmatpush2.bf16.msra.mxu0 0
      %3243 = vmatprep.subr.bf16.mxu0 0
      %3244 = vmatpush2.bf16.msra.mxu0 0
      %3245 = vmatprep.subr.bf16.mxu0 0
      %3246 = vmatpush2.bf16.msra.mxu0 0
      %3247 = vmatprep.subr.bf16.mxu0 0
      %3248 = vmatpush2.bf16.msra.mxu0 0
      %3249 = vmatprep.mubr.bf16.mxu0 0
      %3250 = vmatmul.mubr.bf16.gmra.mxu0 %v3153
      %v3251 = vpop.f32.mrf.mxu0
      %v3252 = vadd.f32 0.0, %v3251
      %v3253 = vpop.f32.mrf.mxu0
      %v3254 = vpop.f32.mrf.mxu0
      %v3255 = vadd.f32 0.0, %v3254
      %v3256 = vpop.f32.mrf.mxu0
      %3257 = vmatprep.mubr.bf16.mxu0 0
      %3258 = vmatmul.mubr.bf16.gmra.mxu0 %v3154
      %v3259 = vpop.f32.mrf.mxu0
      %v3260 = vadd.f32 0.0, %v3259
      %v3261 = vpop.f32.mrf.mxu0
      %v3262 = vpop.f32.mrf.mxu0
      %v3263 = vadd.f32 0.0, %v3262
      %v3264 = vpop.f32.mrf.mxu0
      %3265 = vmatprep.mubr.bf16.mxu0 0
      %3266 = vmatmul.mubr.bf16.gmra.mxu0 %v3155
      %v3267 = vpop.f32.mrf.mxu0
      %v3268 = vadd.f32 0.0, %v3267
      %v3269 = vpop.f32.mrf.mxu0
      %v3270 = vpop.f32.mrf.mxu0
      %v3271 = vadd.f32 0.0, %v3270
      %v3272 = vpop.f32.mrf.mxu0
      %3273 = vmatprep.mubr.bf16.mxu0 0
      %3274 = vmatmul.mubr.bf16.gmra.mxu0 %v3156
      %v3275 = vpop.f32.mrf.mxu0
      %v3276 = vadd.f32 0.0, %v3275
      %v3277 = vpop.f32.mrf.mxu0
      %v3278 = vpop.f32.mrf.mxu0
      %v3279 = vadd.f32 0.0, %v3278
      %v3280 = vpop.f32.mrf.mxu0
      %3281 = vmatprep.mubr.bf16.mxu0 0
      %3282 = vmatmul.mubr.bf16.gmra.mxu0 %v3157
      %v3283 = vpop.f32.mrf.mxu0
      %v3284 = vadd.f32 0.0, %v3283
      %v3285 = vpop.f32.mrf.mxu0
      %v3286 = vpop.f32.mrf.mxu0
      %v3287 = vadd.f32 0.0, %v3286
      %v3288 = vpop.f32.mrf.mxu0
      %3289 = vmatprep.mubr.bf16.mxu0 0
      %3290 = vmatmul.mubr.bf16.gmra.mxu0 %v3158
      %v3291 = vpop.f32.mrf.mxu0
      %v3292 = vadd.f32 0.0, %v3291
      %v3293 = vpop.f32.mrf.mxu0
      %v3294 = vpop.f32.mrf.mxu0
      %v3295 = vadd.f32 0.0, %v3294
      %v3296 = vpop.f32.mrf.mxu0
      %3297 = vmatprep.mubr.bf16.mxu0 0
      %3298 = vmatmul.mubr.bf16.gmra.mxu0 %v3159
      %v3299 = vpop.f32.mrf.mxu0
      %v3300 = vadd.f32 0.0, %v3299
      %v3301 = vpop.f32.mrf.mxu0
      %v3302 = vpop.f32.mrf.mxu0
      %v3303 = vadd.f32 0.0, %v3302
      %v3304 = vpop.f32.mrf.mxu0
      %3305 = vmatprep.mubr.bf16.mxu0 0
      %3306 = vmatmul.mubr.bf16.gmra.mxu0 %v3160
      %v3307 = vpop.f32.mrf.mxu0
      %v3308 = vadd.f32 0.0, %v3307
      %v3309 = vpop.f32.mrf.mxu0
      %v3310 = vpop.f32.mrf.mxu0
      %v3311 = vadd.f32 0.0, %v3310
      %v3312 = vpop.f32.mrf.mxu0
      %3313 = vdwg.mxu0
      %v3314 = vadd.f32 %v3016, %v3252
      %v3315 = vadd.f32 %v3017, %v3255
      %v3316 = vadd.f32 %v3018, %v3260
      %v3317 = vadd.f32 %v3019, %v3263
      %v3318 = vadd.f32 %v3020, %v3268
      %v3319 = vadd.f32 %v3021, %v3271
      %v3320 = vadd.f32 %v3022, %v3276
      %v3321 = vadd.f32 %v3023, %v3279
      %v3322 = vadd.f32 %v3024, %v3284
      %v3323 = vadd.f32 %v3025, %v3287
      %v3324 = vadd.f32 %v3026, %v3292
      %v3325 = vadd.f32 %v3027, %v3295
      %v3326 = vadd.f32 %v3028, %v3300
      %v3327 = vadd.f32 %v3029, %v3303
      %v3328 = vadd.f32 %v3030, %v3308
      %v3329 = vadd.f32 %v3031, %v3311
      %v3330 = vadd.f32 %v3314, %v3315
      %v3331 = vadd.f32 %v3330, %v3316
      %v3332 = vadd.f32 %v3331, %v3317
      %v3333 = vadd.f32 %v3332, %v3318
      %v3334 = vadd.f32 %v3333, %v3319
      %v3335 = vadd.f32 %v3334, %v3320
      %v3336 = vadd.f32 %v3335, %v3321
      %v3337 = vadd.f32 %v3336, %v3322
      %v3338 = vadd.f32 %v3337, %v3323
      %v3339 = vadd.f32 %v3338, %v3324
      %v3340 = vadd.f32 %v3339, %v3325
      %v3341 = vadd.f32 %v3340, %v3326
      %v3342 = vadd.f32 %v3341, %v3327
      %v3343 = vadd.f32 %v3342, %v3328
      %v3344 = vadd.f32 %v3343, %v3329
      %v3345 = vrot.slane %v3344, 4
      %v3346 = vadd.f32 %v3344, %v3345
      %v3347 = vrot.slane %v3346, 2
      %v3348 = vadd.f32 %v3346, %v3347
      %v3349 = vrot.slane %v3348, 1
      %v3350 = vadd.f32 %v3348, %v3349
      %3351 = vst [vmem:[%s417] sm:$0x1] %v3350
      %v3352 = vmul.f32 %v3314, %v3314
      %v3353 = vmul.f32 %v3315, %v3315
      %v3354 = vmul.f32 %v3316, %v3316
      %v3355 = vmul.f32 %v3317, %v3317
      %v3356 = vmul.f32 %v3318, %v3318
      %v3357 = vmul.f32 %v3319, %v3319
      %v3358 = vmul.f32 %v3320, %v3320
      %v3359 = vmul.f32 %v3321, %v3321
      %v3360 = vmul.f32 %v3322, %v3322
      %v3361 = vmul.f32 %v3323, %v3323
      %v3362 = vmul.f32 %v3324, %v3324
      %v3363 = vmul.f32 %v3325, %v3325
      %v3364 = vmul.f32 %v3326, %v3326
      %v3365 = vmul.f32 %v3327, %v3327
      %v3366 = vmul.f32 %v3328, %v3328
      %v3367 = vmul.f32 %v3329, %v3329
      %v3368 = vadd.f32 %v3352, %v3353
      %v3369 = vadd.f32 %v3368, %v3354
      %v3370 = vadd.f32 %v3369, %v3355
      %v3371 = vadd.f32 %v3370, %v3356
      %v3372 = vadd.f32 %v3371, %v3357
      %v3373 = vadd.f32 %v3372, %v3358
      %v3374 = vadd.f32 %v3373, %v3359
      %v3375 = vadd.f32 %v3374, %v3360
      %v3376 = vadd.f32 %v3375, %v3361
      %v3377 = vadd.f32 %v3376, %v3362
      %v3378 = vadd.f32 %v3377, %v3363
      %v3379 = vadd.f32 %v3378, %v3364
      %v3380 = vadd.f32 %v3379, %v3365
      %v3381 = vadd.f32 %v3380, %v3366
      %v3382 = vadd.f32 %v3381, %v3367
      %v3383 = vrot.slane %v3382, 4
      %v3384 = vadd.f32 %v3382, %v3383
      %v3385 = vrot.slane %v3384, 2
      %v3386 = vadd.f32 %v3384, %v3385
      %v3387 = vrot.slane %v3386, 1
      %v3388 = vadd.f32 %v3386, %v3387
      %3389 = vst [vmem:[%s417 + $0x1] sm:$0x1] %v3388
      %v3390 = vpack.c.bf16 %v3315, %v3314
      %v3391 = vpack.c.bf16 %v3317, %v3316
      %v3392 = vpack.c.bf16 %v3319, %v3318
      %v3393 = vpack.c.bf16 %v3321, %v3320
      %v3394 = vpack.c.bf16 %v3323, %v3322
      %v3395 = vpack.c.bf16 %v3325, %v3324
      %v3396 = vpack.c.bf16 %v3327, %v3326
      %v3397 = vpack.c.bf16 %v3329, %v3328
      %v3406 = vunpack.c.l.b16 %v3390
      %v3407 = vunpack.c.h.b16 %v3390
      %v3408 = vunpack.c.l.b16 %v3391
      %v3409 = vunpack.c.h.b16 %v3391
      %v3410 = vunpack.c.l.b16 %v3392
      %v3411 = vunpack.c.h.b16 %v3392
      %v3412 = vunpack.c.l.b16 %v3393
      %v3413 = vunpack.c.h.b16 %v3393
      %v3414 = vunpack.c.l.b16 %v3394
      %v3415 = vunpack.c.h.b16 %v3394
      %v3416 = vunpack.c.l.b16 %v3395
      %v3417 = vunpack.c.h.b16 %v3395
      %v3418 = vunpack.c.l.b16 %v3396
      %v3419 = vunpack.c.h.b16 %v3396
      %v3420 = vunpack.c.l.b16 %v3397
      %v3421 = vunpack.c.h.b16 %v3397
      %v3422 = vpack.c.b16 %v3406, %v3406
      %v3423 = vpack.c.b16 %v3407, %v3407
      %v3424 = vpack.c.b16 %v3408, %v3408
      %v3425 = vpack.c.b16 %v3409, %v3409
      %v3426 = vpack.c.b16 %v3410, %v3410
      %v3427 = vpack.c.b16 %v3411, %v3411
      %v3428 = vpack.c.b16 %v3412, %v3412
      %v3429 = vpack.c.b16 %v3413, %v3413
      %v3430 = vpack.c.b16 %v3414, %v3414
      %v3431 = vpack.c.b16 %v3415, %v3415
      %v3432 = vpack.c.b16 %v3416, %v3416
      %v3433 = vpack.c.b16 %v3417, %v3417
      %v3434 = vpack.c.b16 %v3418, %v3418
      %v3435 = vpack.c.b16 %v3419, %v3419
      %v3436 = vpack.c.b16 %v3420, %v3420
      %v3437 = vpack.c.b16 %v3421, %v3421
      %vm3438 = vsmask.f32 256
      %vm3439 = vsmask.f32 4368
      %vm3440 = vmor %vm3438, %vm3439
      %v3442 = vshrl.u32 %v3422, 16
      %v3444 = vrot.slane %v3442, 7
      %v3445 = vshll.u32 %v3422, 16
      %v3447 = vor.u32 %v3444, %v3445
      %v3448 = vrot.slane %v3444, 4
      %v3450 = vshrl.u32 %v3423, 16
      %v3452 = vrot.slane %v3450, 7
      %v3453 = vshll.u32 %v3423, 16
      %v3455 = vor.u32 %v3452, %v3453
      %v3456 = vsel %vm3440, %v3448, %v3455
      %v3457 = vrot.slane %v3452, 4
      %v3459 = vshrl.u32 %v3424, 16
      %v3461 = vrot.slane %v3459, 7
      %v3462 = vshll.u32 %v3424, 16
      %v3464 = vor.u32 %v3461, %v3462
      %v3465 = vrot.slane %v3461, 4
      %v3467 = vshrl.u32 %v3425, 16
      %v3469 = vrot.slane %v3467, 7
      %v3470 = vshll.u32 %v3425, 16
      %v3472 = vor.u32 %v3469, %v3470
      %v3473 = vsel %vm3440, %v3465, %v3472
      %v3474 = vrot.slane %v3469, 4
      %v3476 = vshrl.u32 %v3426, 16
      %v3478 = vrot.slane %v3476, 7
      %v3479 = vshll.u32 %v3426, 16
      %v3481 = vor.u32 %v3478, %v3479
      %v3482 = vrot.slane %v3478, 4
      %v3484 = vshrl.u32 %v3427, 16
      %v3486 = vrot.slane %v3484, 7
      %v3487 = vshll.u32 %v3427, 16
      %v3489 = vor.u32 %v3486, %v3487
      %v3490 = vsel %vm3440, %v3482, %v3489
      %v3491 = vrot.slane %v3486, 4
      %v3493 = vshrl.u32 %v3428, 16
      %v3495 = vrot.slane %v3493, 7
      %v3496 = vshll.u32 %v3428, 16
      %v3498 = vor.u32 %v3495, %v3496
      %v3499 = vrot.slane %v3495, 4
      %v3501 = vshrl.u32 %v3429, 16
      %v3503 = vrot.slane %v3501, 7
      %v3504 = vshll.u32 %v3429, 16
      %v3506 = vor.u32 %v3503, %v3504
      %v3507 = vsel %vm3440, %v3499, %v3506
      %v3508 = vrot.slane %v3503, 4
      %v3510 = vshrl.u32 %v3430, 16
      %v3512 = vrot.slane %v3510, 7
      %v3513 = vshll.u32 %v3430, 16
      %v3515 = vor.u32 %v3512, %v3513
      %v3516 = vrot.slane %v3512, 4
      %v3518 = vshrl.u32 %v3431, 16
      %v3520 = vrot.slane %v3518, 7
      %v3521 = vshll.u32 %v3431, 16
      %v3523 = vor.u32 %v3520, %v3521
      %v3524 = vsel %vm3440, %v3516, %v3523
      %v3525 = vrot.slane %v3520, 4
      %v3527 = vshrl.u32 %v3432, 16
      %v3529 = vrot.slane %v3527, 7
      %v3530 = vshll.u32 %v3432, 16
      %v3532 = vor.u32 %v3529, %v3530
      %v3533 = vrot.slane %v3529, 4
      %v3535 = vshrl.u32 %v3433, 16
      %v3537 = vrot.slane %v3535, 7
      %v3538 = vshll.u32 %v3433, 16
      %v3540 = vor.u32 %v3537, %v3538
      %v3541 = vsel %vm3440, %v3533, %v3540
      %v3542 = vrot.slane %v3537, 4
      %v3544 = vshrl.u32 %v3434, 16
      %v3546 = vrot.slane %v3544, 7
      %v3547 = vshll.u32 %v3434, 16
      %v3549 = vor.u32 %v3546, %v3547
      %v3550 = vrot.slane %v3546, 4
      %v3552 = vshrl.u32 %v3435, 16
      %v3554 = vrot.slane %v3552, 7
      %v3555 = vshll.u32 %v3435, 16
      %v3557 = vor.u32 %v3554, %v3555
      %v3558 = vsel %vm3440, %v3550, %v3557
      %v3559 = vrot.slane %v3554, 4
      %v3561 = vshrl.u32 %v3436, 16
      %v3563 = vrot.slane %v3561, 7
      %v3564 = vshll.u32 %v3436, 16
      %v3566 = vor.u32 %v3563, %v3564
      %v3567 = vrot.slane %v3563, 4
      %v3569 = vshrl.u32 %v3437, 16
      %v3571 = vrot.slane %v3569, 7
      %v3572 = vshll.u32 %v3437, 16
      %v3574 = vor.u32 %v3571, %v3572
      %v3575 = vsel %vm3440, %v3567, %v3574
      %v3576 = vrot.slane %v3571, 4
      %vm3601 = vcmask 1043456
      %vm3602 = vsmask.f32 7938
      %vm3603 = vmand %vm3601, %vm3602
      %v3604 = vld [vmem:[%s408] sm:$0xf]
      %v3605 = vsel %vm3603, %v3447, %v3604
      %3606 = vst [vmem:[%s408] sm:$0xf] %v3605
      %3607 = vst [vmem:[%s408 + $0x4] sm:$0xf] %v3456
      %vm3608 = vcmask 1040384
      %vm3609 = vmand %vm3608, %vm3438
      %v3610 = vld [vmem:[%s408 + $0x8] sm:$0x1]
      %v3611 = vsel %vm3609, %v3457, %v3610
      %3612 = vst [vmem:[%s408 + $0x8] sm:$0x1] %v3611
      %v3613 = vld [vmem:[%s408 + $0xc] sm:$0xf]
      %v3614 = vsel %vm3603, %v3464, %v3613
      %3615 = vst [vmem:[%s408 + $0xc] sm:$0xf] %v3614
      %3616 = vst [vmem:[%s408 + $0x10] sm:$0xf] %v3473
      %v3617 = vld [vmem:[%s408 + $0x14] sm:$0x1]
      %v3618 = vsel %vm3609, %v3474, %v3617
      %3619 = vst [vmem:[%s408 + $0x14] sm:$0x1] %v3618
      %v3620 = vld [vmem:[%s408 + $0x18] sm:$0xf]
      %v3621 = vsel %vm3603, %v3481, %v3620
      %3622 = vst [vmem:[%s408 + $0x18] sm:$0xf] %v3621
      %3623 = vst [vmem:[%s408 + $0x1c] sm:$0xf] %v3490
      %v3624 = vld [vmem:[%s408 + $0x20] sm:$0x1]
      %v3625 = vsel %vm3609, %v3491, %v3624
      %3626 = vst [vmem:[%s408 + $0x20] sm:$0x1] %v3625
      %v3627 = vld [vmem:[%s408 + $0x24] sm:$0xf]
      %v3628 = vsel %vm3603, %v3498, %v3627
      %3629 = vst [vmem:[%s408 + $0x24] sm:$0xf] %v3628
      %3630 = vst [vmem:[%s408 + $0x28] sm:$0xf] %v3507
      %v3631 = vld [vmem:[%s408 + $0x2c] sm:$0x1]
      %v3632 = vsel %vm3609, %v3508, %v3631
      %3633 = vst [vmem:[%s408 + $0x2c] sm:$0x1] %v3632
      %v3634 = vld [vmem:[%s408 + $0x30] sm:$0xf]
      %v3635 = vsel %vm3603, %v3515, %v3634
      %3636 = vst [vmem:[%s408 + $0x30] sm:$0xf] %v3635
      %3637 = vst [vmem:[%s408 + $0x34] sm:$0xf] %v3524
      %v3638 = vld [vmem:[%s408 + $0x38] sm:$0x1]
      %v3639 = vsel %vm3609, %v3525, %v3638
      %3640 = vst [vmem:[%s408 + $0x38] sm:$0x1] %v3639
      %v3641 = vld [vmem:[%s408 + $0x3c] sm:$0xf]
      %v3642 = vsel %vm3603, %v3532, %v3641
      %3643 = vst [vmem:[%s408 + $0x3c] sm:$0xf] %v3642
      %3644 = vst [vmem:[%s408 + $0x40] sm:$0xf] %v3541
      %v3645 = vld [vmem:[%s408 + $0x44] sm:$0x1]
      %v3646 = vsel %vm3609, %v3542, %v3645
      %3647 = vst [vmem:[%s408 + $0x44] sm:$0x1] %v3646
      %v3648 = vld [vmem:[%s408 + $0x48] sm:$0xf]
      %v3649 = vsel %vm3603, %v3549, %v3648
      %3650 = vst [vmem:[%s408 + $0x48] sm:$0xf] %v3649
      %3651 = vst [vmem:[%s408 + $0x4c] sm:$0xf] %v3558
      %v3652 = vld [vmem:[%s408 + $0x50] sm:$0x1]
      %v3653 = vsel %vm3609, %v3559, %v3652
      %3654 = vst [vmem:[%s408 + $0x50] sm:$0x1] %v3653
      %v3655 = vld [vmem:[%s408 + $0x54] sm:$0xf]
      %v3656 = vsel %vm3603, %v3566, %v3655
      %3657 = vst [vmem:[%s408 + $0x54] sm:$0xf] %v3656
      %3658 = vst [vmem:[%s408 + $0x58] sm:$0xf] %v3575
      %v3659 = vld [vmem:[%s408 + $0x5c] sm:$0x1]
      %v3660 = vsel %vm3609, %v3576, %v3659
      %3661 = vst [vmem:[%s408 + $0x5c] sm:$0x1] %v3660
      %v3662 = vld [vmem:[%s408] sm:$0x1]
      %v3663 = vsel %vm3609, 0, %v3662
      %3664 = vst [vmem:[%s408] sm:$0x1] %v3663
      %v3665 = vld [vmem:[%s408 + $0xc] sm:$0x1]
      %v3666 = vsel %vm3609, 0, %v3665
      %3667 = vst [vmem:[%s408 + $0xc] sm:$0x1] %v3666
      %v3668 = vld [vmem:[%s408 + $0x18] sm:$0x1]
      %v3669 = vsel %vm3609, 0, %v3668
      %3670 = vst [vmem:[%s408 + $0x18] sm:$0x1] %v3669
      %v3671 = vld [vmem:[%s408 + $0x24] sm:$0x1]
      %v3672 = vsel %vm3609, 0, %v3671
      %3673 = vst [vmem:[%s408 + $0x24] sm:$0x1] %v3672
      %v3674 = vld [vmem:[%s408 + $0x30] sm:$0x1]
      %v3675 = vsel %vm3609, 0, %v3674
      %3676 = vst [vmem:[%s408 + $0x30] sm:$0x1] %v3675
      %v3677 = vld [vmem:[%s408 + $0x3c] sm:$0x1]
      %v3678 = vsel %vm3609, 0, %v3677
      %3679 = vst [vmem:[%s408 + $0x3c] sm:$0x1] %v3678
      %v3680 = vld [vmem:[%s408 + $0x48] sm:$0x1]
      %v3681 = vsel %vm3609, 0, %v3680
      %3682 = vst [vmem:[%s408 + $0x48] sm:$0x1] %v3681
      %v3683 = vld [vmem:[%s408 + $0x54] sm:$0x1]
      %v3684 = vsel %vm3609, 0, %v3683
      %3685 = vst [vmem:[%s408 + $0x54] sm:$0x1] %v3684
      %vm3686 = vmand %vm3608, %vm3602
      %v3687 = vld [vmem:[%s408 + $0x8] sm:$0x1]
      %v3688 = vsel %vm3686, 0, %v3687
      %3689 = vst [vmem:[%s408 + $0x8] sm:$0x1] %v3688
      %v3690 = vld [vmem:[%s408 + $0x14] sm:$0x1]
      %v3691 = vsel %vm3686, 0, %v3690
      %3692 = vst [vmem:[%s408 + $0x14] sm:$0x1] %v3691
      %v3693 = vld [vmem:[%s408 + $0x20] sm:$0x1]
      %v3694 = vsel %vm3686, 0, %v3693
      %3695 = vst [vmem:[%s408 + $0x20] sm:$0x1] %v3694
      %v3696 = vld [vmem:[%s408 + $0x2c] sm:$0x1]
      %v3697 = vsel %vm3686, 0, %v3696
      %3698 = vst [vmem:[%s408 + $0x2c] sm:$0x1] %v3697
      %v3699 = vld [vmem:[%s408 + $0x38] sm:$0x1]
      %v3700 = vsel %vm3686, 0, %v3699
      %3701 = vst [vmem:[%s408 + $0x38] sm:$0x1] %v3700
      %v3702 = vld [vmem:[%s408 + $0x44] sm:$0x1]
      %v3703 = vsel %vm3686, 0, %v3702
      %3704 = vst [vmem:[%s408 + $0x44] sm:$0x1] %v3703
      %v3705 = vld [vmem:[%s408 + $0x50] sm:$0x1]
      %v3706 = vsel %vm3686, 0, %v3705
      %3707 = vst [vmem:[%s408 + $0x50] sm:$0x1] %v3706
      %v3708 = vld [vmem:[%s408 + $0x5c] sm:$0x1]
      %v3709 = vsel %vm3686, 0, %v3708
      %3710 = vst [vmem:[%s408 + $0x5c] sm:$0x1] %v3709
      %s3711 = smul.u32 8, %s22
      %p3712 = scmp.lt.s32.totalorder %s21, 1
      %s3713 = scalar_select %p3712, %s21, 1
      %p3714 = scmp.lt.s32.totalorder %s3711, 15
      %s3715 = scalar_select %p3714, %s3711, 15
      %s3716 = smul.addr %s3715, 3
      %s3717 = smul.addr %s3713, 48
      %s3718 = sadd.s32 %s3716, %s3717
      %s3719 = smul.addr %s3718, 4
      %s3720 = scalar_lea.vmem %s4, %s3719
      %p3721 = scmp.lt.s32.totalorder %s21, 1
      %s3722 = scalar_select %p3721, %s21, 1
      %p3723 = scmp.lt.s32.totalorder %s22, 1
      %s3724 = scalar_select %p3723, %s22, 1
      %s3725 = smul.addr %s3722, 2
      %s3726 = sadd.s32 %s3724, %s3725
      %s3727 = smul.addr %s3726, 2
      %s3728 = scalar_lea.vmem %s5, %s3727
      // Predicated region
      $region37: #{upsampling_concat_forward.2} parent=35 // pred_check
        %p3729 = pneg %p164
      $region38: #{upsampling_concat_forward.2} parent=35 // pred_check_branch
        %3731 = sbr.rel (%p3729) target = $region40
      $region39: #{upsampling_concat_forward.2} parent=35 // pred_region
        %s3732 = smul.u32 8, %s22
      $region40: #{upsampling_concat_forward.2} parent=35 // pred_fallthru
        _
      // Predicated region
      $region41: #{upsampling_concat_forward.2} parent=35 // pred_check
        %p3733 = pneg %p192
      $region42: #{upsampling_concat_forward.2} parent=35 // pred_check_branch
        %3735 = sbr.rel (%p3733) target = $region44
      $region43: #{upsampling_concat_forward.2} parent=35 // pred_region
        _
      $region44: #{upsampling_concat_forward.2} parent=35 // pred_fallthru
        _
    $region36: #{upsampling_concat_forward.2} parent=5 // pred_fallthru
      _
    %p3736 = scmp.le.s32.totalorder 2, %s12
    // Predicated region
    $region45: #{upsampling_concat_forward.2} parent=5 // pred_check
      %p3737 = pneg %p3736
    $region46: #{upsampling_concat_forward.2} parent=5 // pred_check_branch
      %3739 = sbr.rel (%p3737) target = $region48
    $region47: #{upsampling_concat_forward.2} parent=5 // pred_region
      %s3740 = ssub.s32 %s12, 2
      // Predicated region
      $region49: #{upsampling_concat_forward.2} parent=47 // pred_check
        %p3741 = pneg %p170
      $region50: #{upsampling_concat_forward.2} parent=47 // pred_check_branch
        %3743 = sbr.rel (%p3741) target = $region52
      $region51: #{upsampling_concat_forward.2} parent=47 // pred_region
        %s3744 = smul.u32 8, %s24
        %p3745 = scmp.lt.s32.totalorder %s23, 1
        %s3746 = scalar_select %p3745, %s23, 1
        %p3747 = scmp.lt.s32.totalorder %s3744, 15
        %s3748 = scalar_select %p3747, %s3744, 15
        %s3749 = smul.addr %s3748, 3
        %s3750 = smul.addr %s3746, 48
        %s3751 = sadd.s32 %s3749, %s3750
        %s3752 = smul.addr %s3751, 4
        %s3753 = scalar_lea.vmem %s4, %s3752
      $region52: #{upsampling_concat_forward.2} parent=47 // pred_fallthru
        _
      // Predicated region
      $region53: #{upsampling_concat_forward.2} parent=47 // pred_check
        %p3754 = pneg %p198
      $region54: #{upsampling_concat_forward.2} parent=47 // pred_check_branch
        %3756 = sbr.rel (%p3754) target = $region56
      $region55: #{upsampling_concat_forward.2} parent=47 // pred_region
        %p3757 = scmp.lt.s32.totalorder %s23, 1
        %s3758 = scalar_select %p3757, %s23, 1
        %p3759 = scmp.lt.s32.totalorder %s24, 1
        %s3760 = scalar_select %p3759, %s24, 1
        %s3761 = smul.addr %s3758, 2
        %s3762 = sadd.s32 %s3760, %s3761
        %s3763 = smul.addr %s3762, 2
        %s3764 = scalar_lea.vmem %s5, %s3763
      $region56: #{upsampling_concat_forward.2} parent=47 // pred_fallthru
        _
    $region48: #{upsampling_concat_forward.2} parent=5 // pred_fallthru
      _
  $region6: #{upsampling_concat_forward.2} parent=0 // loop_footer
    %s16 = sadd.s32 1, %s12
  $region7: #{upsampling_concat_forward.2} parent=0 // loop_footer_branch
    %11 = sbr.rel target = $region3
  $region8: #{upsampling_concat_forward.2} parent=0 // loop_exit
    _

</llo_original>
